<compile_context>
chip_gen: v5e
topology: v5e:2x2
jax: 0.10.0
libtpu: 0.0.40
codegen_flags: <defaults>
</compile_context>

<pallas_src>
import functools

import jax
import jax.numpy as jnp
from jax.experimental import pallas as pl
from jax.experimental.pallas import tpu as pltpu


# ---------------------------------------------------------------------------
# Small, lane-sparse helpers: plain JAX (XLA fuses these).
# ---------------------------------------------------------------------------
def get_valid_ratio(padding_mask_f, bs, nf, H, W):
    """padding_mask_f: (bs, nf*H*W) float32 (1.0 = padded) -> (bs, nf, 2)."""
    m = padding_mask_f.reshape(bs, nf, H, W)
    valid_h = jnp.sum(1.0 - m[:, :, :, 0], axis=2)          # (bs, nf)
    valid_w = jnp.sum(1.0 - m[:, :, 0, :], axis=2)          # (bs, nf)
    return jnp.stack([valid_w / W, valid_h / H], axis=-1)   # (bs, nf, 2)


def get_reference_points(self_shape, valid_ratios, ref_valid_ratios):
    """-> (bs, H_t*W_t, nf, 2); matches the PyTorch reference math."""
    H_t, W_t = self_shape
    ys = jnp.linspace(0.5, H_t - 0.5, H_t, dtype=jnp.float32)
    xs = jnp.linspace(0.5, W_t - 0.5, W_t, dtype=jnp.float32)
    ref_y, ref_x = jnp.meshgrid(ys, xs, indexing="ij")       # torch default 'ij'
    # NOTE: fully-padded frames (valid ratio 0) yield inf, same as the torch code.
    ref_y = ref_y.reshape(-1)[None] / (valid_ratios[:, None, 1] * H_t)
    ref_x = ref_x.reshape(-1)[None] / (valid_ratios[:, None, 0] * W_t)
    ref = jnp.stack([ref_x, ref_y], axis=-1)                  # (bs, Ht*Wt, 2)
    return ref[:, :, None] * ref_valid_ratios[:, None]        # (bs, Ht*Wt, nf, 2)


# ---------------------------------------------------------------------------
# Generation-dependent defaults.
# ---------------------------------------------------------------------------
def _tpu_defaults():
    """Returns (tile_k, vmem_cap_bytes) for the current TPU generation."""
    try:
        kind = jax.devices()[0].device_kind.lower()
    except Exception:  # pragma: no cover
        kind = ""
    if ("v5 lite" in kind) or ("v5e" in kind) or ("v5lite" in kind):
        return 128, 100 << 20      # 4x128 MXU: TK=256 buys nothing, halves vregs
    if "v7" in kind:
        return 256, 56 << 20       # only 64 MiB VMEM per TensorCore
    return 256, 100 << 20          # v6e / default


# ---------------------------------------------------------------------------
# Fused encoder-layer stack kernel (stand-in layer; see TODO(synk) above).
# ---------------------------------------------------------------------------
def _encoder_stack_kernel(tgt_ref, qpos_ref, kt_ref, v_ref, bias_ref,
                          wq_ref, wo_ref, g1_ref, be1_ref,
                          w1_ref, fb1_ref, w2_ref, fb2_ref,
                          g2_ref, be2_ref, out_ref, *, num_layers):
    f32 = jnp.float32
    bf16 = jnp.bfloat16

    x0 = tgt_ref[0]                               # (TQ, D) f32
    TQ, D = x0.shape
    n_k = kt_ref.shape[1]
    scale = D ** -0.5
    # TODO(synk): single-head scale; a real multi-head/deformable layer would
    # use head_dim ** -0.5.

    def layer_norm(x, g_ref, b_ref):
        mu = jnp.mean(x, axis=-1, keepdims=True)
        var = jnp.mean((x - mu) ** 2, axis=-1, keepdims=True)
        return (x - mu) * jax.lax.rsqrt(var + 1e-5) * g_ref[...] + b_ref[...]

    def one_layer(_, x):
        # --- cross-attention over reference-frame features (flash softmax) ---
        q = jnp.dot((x + qpos_ref[0]).astype(bf16), wq_ref[...],
                    preferred_element_type=f32)
        q_bf = (q * scale).astype(bf16)

        def chunk_body(i, carry):
            m, l, acc = carry
            kc = kt_ref[0, i]                     # (D, TK)  bf16, pre-transposed
            vc = v_ref[0, i]                      # (TK, D)  bf16
            bc = bias_ref[0, i]                   # (1, TK)  f32 additive mask
            s = jnp.dot(q_bf, kc, preferred_element_type=f32) + bc
            m_new = jnp.maximum(m, jnp.max(s, axis=-1, keepdims=True))
            alpha = jnp.exp(m - m_new)
            p = jnp.exp(s - m_new)
            l_new = alpha * l + jnp.sum(p, axis=-1, keepdims=True)
            acc_new = alpha * acc + jnp.dot(p.astype(bf16), vc,
                                            preferred_element_type=f32)
            return m_new, l_new, acc_new

        init = (jnp.full((TQ, 1), -jnp.inf, f32),
                jnp.zeros((TQ, 1), f32),
                jnp.zeros((TQ, D), f32))
        m, l, acc = jax.lax.fori_loop(0, n_k, chunk_body, init,
                                      unroll=(n_k <= 8))
        attn = acc * pl.reciprocal(l, approx=True)
        attn_out = jnp.dot(attn.astype(bf16), wo_ref[...],
                           preferred_element_type=f32)

        # --- residual + layernorm 1 (f32) ---
        x1 = layer_norm(x + attn_out, g1_ref, be1_ref)

        # --- FFN (bf16 MXU matmuls, f32 accumulation) ---
        h = jnp.dot(x1.astype(bf16), w1_ref[...],
                    preferred_element_type=f32) + fb1_ref[...]
        h = jnp.maximum(h, 0.0)
        y = jnp.dot(h.astype(bf16), w2_ref[...],
                    preferred_element_type=f32) + fb2_ref[...]

        # --- residual + layernorm 2 (f32) ---
        return layer_norm(x1 + y, g2_ref, be2_ref)

    # _get_clones deep-copies the layer -> every clone has identical weights.
    out_ref[0] = jax.lax.fori_loop(0, num_layers, one_layer, x0)


def encoder_stack(tgt, query_pos, src, padding_mask_f, params, num_layers,
                  tile_q=128, tile_k=None):
    """Runs all num_layers stand-in encoder layers in one fused pallas_call."""
    B, Lq, D = tgt.shape
    Ls = src.shape[1]
    F = params["w1"].shape[1]
    assert D % 128 == 0 and F % 128 == 0, "pad d_model/d_ff to multiples of 128"

    gen_tile_k, vmem_cap = _tpu_defaults()
    if tile_k is None:
        tile_k = gen_tile_k
    tile_q = min(tile_q, Lq)
    assert Lq % tile_q == 0, "Lq must be divisible by the query tile"
    n_q = Lq // tile_q

    bf16 = jnp.bfloat16
    f32 = jnp.float32

    # Pad the key axis to a multiple of tile_k (padded keys are masked out with
    # the -1e9 bias) so the flash chunking never degenerates.
    Ls_p = ((Ls + tile_k - 1) // tile_k) * tile_k
    if Ls_p != Ls:
        src = jnp.pad(src, ((0, 0), (0, Ls_p - Ls), (0, 0)))
        padding_mask_f = jnp.pad(padding_mask_f, ((0, 0), (0, Ls_p - Ls)),
                                 constant_values=1.0)
    n_k = Ls_p // tile_k

    # K/V projection hoisted to the wrapper: one fused (D, 2D) bf16 matmul per
    # batch (MXU N-dim stays full on v6e/v7x); K stored pre-transposed so the
    # in-kernel q @ k^T needs no transpose. Chunked along the key axis so the
    # kernel loads (TK, D)/(D, TK) slabs by dynamic leading-dim index.
    w_kv = jnp.concatenate([params["wk"], params["wv"]], axis=1).astype(bf16)
    kv = jnp.einsum("bld,de->ble", src.astype(bf16), w_kv,
                    preferred_element_type=f32)                 # (B, Ls_p, 2D)
    k_t = (kv[..., :D].astype(bf16)
           .reshape(B, n_k, tile_k, D).transpose(0, 1, 3, 2))   # (B, nk, D, TK)
    v_c = kv[..., D:].astype(bf16).reshape(B, n_k, tile_k, D)   # (B, nk, TK, D)
    bias_c = (padding_mask_f.astype(f32) * f32(-1e9)
              ).reshape(B, n_k, 1, tile_k)                      # (B, nk, 1, TK)

    wq = params["wq"].astype(bf16)
    wo = params["wo"].astype(bf16)
    w1 = params["w1"].astype(bf16)
    w2 = params["w2"].astype(bf16)

    # VMEM budget: resident K/V/bias/weights (x2 in case single-buffering is
    # unavailable) + double-buffered pipelined q tiles + compiler scratch.
    resident = (2 * Ls_p * D * 2 + Ls_p * 4
                + 2 * D * D * 2 + 2 * D * F * 2 + (4 * D + 2 * F) * 4)
    pipelined = 3 * 2 * tile_q * D * 4
    vmem_limit = int(min(max(2 * resident + pipelined + (8 << 20), 32 << 20),
                         vmem_cap))

    kernel = functools.partial(_encoder_stack_kernel, num_layers=num_layers)

    tile_map = lambda b, i: (b, i, 0)       # pipelined q-tiles
    batch_map = lambda b, i: (b, 0, 0, 0)   # per-batch resident blocks
    const_map = lambda b, i: (0, 0)         # weights: DMA'd once, stay resident

    def run(single_buffer_resident):
        res_kw = ({"pipeline_mode": pl.Buffered(1)}
                  if single_buffer_resident and hasattr(pl, "Buffered") else {})
        in_specs = [
            pl.BlockSpec((1, tile_q, D), tile_map),                    # tgt
            pl.BlockSpec((1, tile_q, D), tile_map),                    # query_pos
            pl.BlockSpec((1, n_k, D, tile_k), batch_map, **res_kw),    # K^T chunks
            pl.BlockSpec((1, n_k, tile_k, D), batch_map, **res_kw),    # V chunks
            pl.BlockSpec((1, n_k, 1, tile_k), batch_map, **res_kw),    # mask bias
            pl.BlockSpec((D, D), const_map, **res_kw),                 # wq
            pl.BlockSpec((D, D), const_map, **res_kw),                 # wo
            pl.BlockSpec((1, D), const_map, **res_kw),                 # ln1 gamma
            pl.BlockSpec((1, D), const_map, **res_kw),                 # ln1 beta
            pl.BlockSpec((D, F), const_map, **res_kw),                 # ffn w1
            pl.BlockSpec((1, F), const_map, **res_kw),                 # ffn b1
            pl.BlockSpec((F, D), const_map, **res_kw),                 # ffn w2
            pl.BlockSpec((1, D), const_map, **res_kw),                 # ffn b2
            pl.BlockSpec((1, D), const_map, **res_kw),                 # ln2 gamma
            pl.BlockSpec((1, D), const_map, **res_kw),                 # ln2 beta
        ]
        return pl.pallas_call(
            kernel,
            out_shape=jax.ShapeDtypeStruct((B, Lq, D), jnp.float32),
            grid=(B, n_q),   # both parallel; keep B*n_q even so v7x's 2 TCs split
            in_specs=in_specs,
            out_specs=pl.BlockSpec((1, tile_q, D), tile_map),
            compiler_params=pltpu.CompilerParams(
                dimension_semantics=("parallel", "parallel"),
                vmem_limit_bytes=vmem_limit,
            ),
        )(tgt, query_pos, k_t, v_c, bias_c,
          wq, wo, params["ln1_g"], params["ln1_b"],
          w1, params["b1"], w2, params["b2"],
          params["ln2_g"], params["ln2_b"])

    try:
        return run(True)
    except Exception:
        # TODO(synk): pipeline_mode=pl.Buffered(1) unsupported on this jax
        # version; fall back to default double-buffered resident blocks.
        return run(False)


# ---------------------------------------------------------------------------
# TemporalEncoder.forward
# ---------------------------------------------------------------------------
def temporal_encoder_forward(params, num_encoder, tgt, src, self_shape,
                             spatial_shapes, level_start_index,
                             padding_mask_f, query_pos, valid_ratios):
    H_p, W_p = spatial_shapes[0]
    bs = padding_mask_f.shape[0]
    nf = padding_mask_f.shape[1] // (H_p * W_p)

    ref_valid_ratios = get_valid_ratio(padding_mask_f, bs, nf, H_p, W_p)
    reference_points = get_reference_points(self_shape, valid_ratios,
                                            ref_valid_ratios)
    # TODO(synk): reference_points / spatial_shapes / level_start_index would be
    # consumed by the real deformable-attention layer; the stand-in ignores them.
    del reference_points, level_start_index

    # Whole layer stack fused into a single pallas_call (clones share weights).
    return encoder_stack(tgt, query_pos, src, padding_mask_f, params, num_encoder)


def init_params(key, d_model, d_ff):
    ks = jax.random.split(key, 6)
    s = 0.02
    return {
        "wq": s * jax.random.normal(ks[0], (d_model, d_model), jnp.float32),
        "wk": s * jax.random.normal(ks[1], (d_model, d_model), jnp.float32),
        "wv": s * jax.random.normal(ks[2], (d_model, d_model), jnp.float32),
        "wo": s * jax.random.normal(ks[3], (d_model, d_model), jnp.float32),
        "ln1_g": jnp.ones((1, d_model), jnp.float32),
        "ln1_b": jnp.zeros((1, d_model), jnp.float32),
        "w1": s * jax.random.normal(ks[4], (d_model, d_ff), jnp.float32),
        "b1": jnp.zeros((1, d_ff), jnp.float32),
        "w2": s * jax.random.normal(ks[5], (d_ff, d_model), jnp.float32),
        "b2": jnp.zeros((1, d_model), jnp.float32),
        "ln2_g": jnp.ones((1, d_model), jnp.float32),
        "ln2_b": jnp.zeros((1, d_model), jnp.float32),
    }


if __name__ == "__main__":
    # Lane-dense sizes: d_model / d_ff multiples of 128, Lq / Ls multiples of 128.
    bs, nf, d_model, d_ff = 2, 2, 128, 256
    H_t, W_t, H_p, W_p = 16, 16, 16, 16
    num_encoder = 2
    Lt, Ls = H_t * W_t, nf * H_p * W_p            # 256, 512

    key = jax.random.PRNGKey(0)
    k_tgt, k_src, k_qpos, k_par = jax.random.split(key, 4)

    tgt = jax.random.normal(k_tgt, (bs, Lt, d_model), jnp.float32)
    src = jax.random.normal(k_src, (bs, Ls, d_model), jnp.float32)
    query_pos = jax.random.normal(k_qpos, (bs, Lt, d_model), jnp.float32)

    # DETR-style padding masks: valid region is the top-left (valid_h, valid_w)
    # block of each reference frame; the rest is padded (True -> 1.0).
    valid_h = jnp.array([[16, 12], [12, 8]], jnp.int32)    # (bs, nf)
    valid_w = jnp.array([[16, 16], [12, 12]], jnp.int32)   # (bs, nf)
    rows = jnp.arange(H_p)[None, None, :, None]
    cols = jnp.arange(W_p)[None, None, None, :]
    padded = (rows >= valid_h[:, :, None, None]) | (cols >= valid_w[:, :, None, None])
    padding_mask_f = padded.astype(jnp.float32).reshape(bs, nf * H_p * W_p)

    valid_ratios = jnp.array([[1.0, 1.0], [0.75, 0.75]], jnp.float32)   # (bs, 2) [w, h]
    self_shape = (H_t, W_t)
    spatial_shapes = ((H_p, W_p),) * nf
    level_start_index = jnp.arange(nf, dtype=jnp.int32) * (H_p * W_p)

    params = init_params(k_par, d_model, d_ff)

    out = temporal_encoder_forward(params, num_encoder, tgt, src, self_shape,
                                   spatial_shapes, level_start_index,
                                   padding_mask_f, query_pos, valid_ratios)
    out = jax.block_until_ready(out)
    assert out.shape == (bs, Lt, d_model)
    assert bool(jnp.all(jnp.isfinite(out)))
    print("KERNEL_OK")
</pallas_src>

<mosaic_0001>
module attributes {stable_mosaic.version = 11 : i64} {
  func.func @_encoder_stack_kernel(%arg0: i32, %arg1: i32, %arg2: memref<1x128x128xf32, #tpu.memory_space<vmem>>, %arg3: memref<1x128x128xf32, #tpu.memory_space<vmem>>, %arg4: memref<1x2x128x256xbf16, #tpu.memory_space<vmem>>, %arg5: memref<1x2x256x128xbf16, #tpu.memory_space<vmem>>, %arg6: memref<1x2x1x256xf32, #tpu.memory_space<vmem>>, %arg7: memref<128x128xbf16, #tpu.memory_space<vmem>>, %arg8: memref<128x128xbf16, #tpu.memory_space<vmem>>, %arg9: memref<1x128xf32, #tpu.memory_space<vmem>>, %arg10: memref<1x128xf32, #tpu.memory_space<vmem>>, %arg11: memref<128x256xbf16, #tpu.memory_space<vmem>>, %arg12: memref<1x256xf32, #tpu.memory_space<vmem>>, %arg13: memref<256x128xbf16, #tpu.memory_space<vmem>>, %arg14: memref<1x128xf32, #tpu.memory_space<vmem>>, %arg15: memref<1x128xf32, #tpu.memory_space<vmem>>, %arg16: memref<1x128xf32, #tpu.memory_space<vmem>>, %arg17: memref<1x128x128xf32, #tpu.memory_space<vmem>>) attributes {dimension_semantics = [#tpu.dimension_semantics<parallel>, #tpu.dimension_semantics<parallel>], iteration_bounds = array<i64: 2, 2>, scalar_prefetch = 0 : i64, scratch_operands = 0 : i64, tpu.core_type = #tpu.core_type<tc>, window_params = [{transform_indices = @transform_0, window_bounds = array<i64: 1, 128, 128>}, {transform_indices = @transform_1, window_bounds = array<i64: 1, 128, 128>}, {pipeline_mode = #tpu.pipeline_mode<synchronous>, transform_indices = @transform_2, window_bounds = array<i64: 1, 2, 128, 256>}, {pipeline_mode = #tpu.pipeline_mode<synchronous>, transform_indices = @transform_3, window_bounds = array<i64: 1, 2, 256, 128>}, {pipeline_mode = #tpu.pipeline_mode<synchronous>, transform_indices = @transform_4, window_bounds = array<i64: 1, 2, 1, 256>}, {pipeline_mode = #tpu.pipeline_mode<synchronous>, transform_indices = @transform_5, window_bounds = array<i64: 128, 128>}, {pipeline_mode = #tpu.pipeline_mode<synchronous>, transform_indices = @transform_6, window_bounds = array<i64: 128, 128>}, {pipeline_mode = #tpu.pipeline_mode<synchronous>, transform_indices = @transform_7, window_bounds = array<i64: 1, 128>}, {pipeline_mode = #tpu.pipeline_mode<synchronous>, transform_indices = @transform_8, window_bounds = array<i64: 1, 128>}, {pipeline_mode = #tpu.pipeline_mode<synchronous>, transform_indices = @transform_9, window_bounds = array<i64: 128, 256>}, {pipeline_mode = #tpu.pipeline_mode<synchronous>, transform_indices = @transform_10, window_bounds = array<i64: 1, 256>}, {pipeline_mode = #tpu.pipeline_mode<synchronous>, transform_indices = @transform_11, window_bounds = array<i64: 256, 128>}, {pipeline_mode = #tpu.pipeline_mode<synchronous>, transform_indices = @transform_12, window_bounds = array<i64: 1, 128>}, {pipeline_mode = #tpu.pipeline_mode<synchronous>, transform_indices = @transform_13, window_bounds = array<i64: 1, 128>}, {pipeline_mode = #tpu.pipeline_mode<synchronous>, transform_indices = @transform_14, window_bounds = array<i64: 1, 128>}, {transform_indices = @transform_15, window_bounds = array<i64: 1, 128, 128>}]} {
    %c0 = arith.constant 0 : index
    %c0_0 = arith.constant 0 : index
    %c0_1 = arith.constant 0 : index
    %0 = vector.load %arg2[%c0, %c0_0, %c0_1] : memref<1x128x128xf32, #tpu.memory_space<vmem>>, vector<1x128x128xf32>
    %1 = vector.shape_cast %0 : vector<1x128x128xf32> to vector<128x128xf32>
    %c0_i32 = arith.constant 0 : i32
    %c2_i32 = arith.constant 2 : i32
    %2 = arith.addi %c0_i32, %c2_i32 : i32
    %c1_i32 = arith.constant 1 : i32
    %3 = scf.for %arg18 = %c0_i32 to %2 step %c1_i32 iter_args(%arg19 = %1) -> (vector<128x128xf32>)  : i32 {
      %c0_5 = arith.constant 0 : index
      %c0_6 = arith.constant 0 : index
      %c0_7 = arith.constant 0 : index
      %7 = vector.load %arg3[%c0_5, %c0_6, %c0_7] : memref<1x128x128xf32, #tpu.memory_space<vmem>>, vector<1x128x128xf32>
      %8 = vector.shape_cast %7 : vector<1x128x128xf32> to vector<128x128xf32>
      %9 = arith.addf %arg19, %8 : vector<128x128xf32>
      %10 = arith.truncf %9 : vector<128x128xf32> to vector<128x128xbf16>
      %c0_8 = arith.constant 0 : index
      %c0_9 = arith.constant 0 : index
      %11 = vector.load %arg7[%c0_8, %c0_9] : memref<128x128xbf16, #tpu.memory_space<vmem>>, vector<128x128xbf16>
      %cst = arith.constant dense<0.000000e+00> : vector<128x128xf32>
      %12 = tpu.matmul %10, %11, %cst {dimension_numbers = #tpu.dot_dimension_numbers<[1], [0], [0], [1], [0, 0, 1, 1], [], []>} : vector<128x128xbf16>, vector<128x128xbf16>, vector<128x128xf32> -> vector<128x128xf32>
      %cst_10 = arith.constant 0.0883883461 : f32
      %13 = vector.broadcast %cst_10 : f32 to vector<128x128xf32>
      %14 = arith.mulf %12, %13 : vector<128x128xf32>
      %15 = arith.truncf %14 : vector<128x128xf32> to vector<128x128xbf16>
      %cst_11 = arith.constant 0xFF800000 : f32
      %16 = vector.broadcast %cst_11 : f32 to vector<128x1xf32>
      %cst_12 = arith.constant 0.000000e+00 : f32
      %17 = vector.broadcast %cst_12 : f32 to vector<128x1xf32>
      %cst_13 = arith.constant 0.000000e+00 : f32
      %18 = vector.broadcast %cst_13 : f32 to vector<128x128xf32>
      %c0_i32_14 = arith.constant 0 : i32
      %c0_15 = arith.constant 0 : index
      %19 = arith.index_cast %c0_i32_14 : i32 to index
      %c0_16 = arith.constant 0 : index
      %c0_17 = arith.constant 0 : index
      %20 = vector.load %arg4[%c0_15, %19, %c0_16, %c0_17] : memref<1x2x128x256xbf16, #tpu.memory_space<vmem>>, vector<1x1x128x256xbf16>
      %21 = vector.shape_cast %20 : vector<1x1x128x256xbf16> to vector<128x256xbf16>
      %c0_18 = arith.constant 0 : index
      %22 = arith.index_cast %c0_i32_14 : i32 to index
      %c0_19 = arith.constant 0 : index
      %c0_20 = arith.constant 0 : index
      %23 = vector.load %arg5[%c0_18, %22, %c0_19, %c0_20] : memref<1x2x256x128xbf16, #tpu.memory_space<vmem>>, vector<1x1x256x128xbf16>
      %24 = vector.shape_cast %23 : vector<1x1x256x128xbf16> to vector<256x128xbf16>
      %c0_21 = arith.constant 0 : index
      %25 = arith.index_cast %c0_i32_14 : i32 to index
      %c0_22 = arith.constant 0 : index
      %c0_23 = arith.constant 0 : index
      %26 = vector.load %arg6[%c0_21, %25, %c0_22, %c0_23] : memref<1x2x1x256xf32, #tpu.memory_space<vmem>>, vector<1x1x1x256xf32>
      %27 = vector.shape_cast %26 : vector<1x1x1x256xf32> to vector<1x256xf32>
      %cst_24 = arith.constant dense<0.000000e+00> : vector<128x256xf32>
      %28 = tpu.matmul %15, %21, %cst_24 {dimension_numbers = #tpu.dot_dimension_numbers<[1], [0], [0], [1], [0, 0, 1, 1], [], []>} : vector<128x128xbf16>, vector<128x256xbf16>, vector<128x256xf32> -> vector<128x256xf32>
      %29 = vector.broadcast %27 : vector<1x256xf32> to vector<128x256xf32>
      %30 = arith.addf %28, %29 : vector<128x256xf32>
      %cst_25 = arith.constant dense<0xFF800000> : vector<128xf32>
      %31 = vector.multi_reduction <maximumf>, %30, %cst_25 [1] : vector<128x256xf32> to vector<128xf32>
      %32 = vector.shape_cast %31 : vector<128xf32> to vector<128x1xf32>
      %33 = arith.maximumf %16, %32 : vector<128x1xf32>
      %34 = arith.subf %16, %33 : vector<128x1xf32>
      %35 = math.exp %34 : vector<128x1xf32>
      %36 = vector.broadcast %33 : vector<128x1xf32> to vector<128x256xf32>
      %37 = arith.subf %30, %36 : vector<128x256xf32>
      %38 = math.exp %37 : vector<128x256xf32>
      %39 = arith.mulf %35, %17 : vector<128x1xf32>
      %cst_26 = arith.constant dense<0.000000e+00> : vector<128xf32>
      %40 = vector.multi_reduction <add>, %38, %cst_26 [1] : vector<128x256xf32> to vector<128xf32>
      %41 = vector.shape_cast %40 : vector<128xf32> to vector<128x1xf32>
      %42 = arith.addf %39, %41 : vector<128x1xf32>
      %43 = vector.broadcast %35 : vector<128x1xf32> to vector<128x128xf32>
      %44 = arith.mulf %43, %18 : vector<128x128xf32>
      %45 = arith.truncf %38 : vector<128x256xf32> to vector<128x256xbf16>
      %cst_27 = arith.constant dense<0.000000e+00> : vector<128x128xf32>
      %46 = tpu.matmul %45, %24, %cst_27 {dimension_numbers = #tpu.dot_dimension_numbers<[1], [0], [0], [1], [0, 0, 1, 1], [], []>} : vector<128x256xbf16>, vector<256x128xbf16>, vector<128x128xf32> -> vector<128x128xf32>
      %47 = arith.addf %44, %46 : vector<128x128xf32>
      %c1_i32_28 = arith.constant 1 : i32
      %c0_29 = arith.constant 0 : index
      %48 = arith.index_cast %c1_i32_28 : i32 to index
      %c0_30 = arith.constant 0 : index
      %c0_31 = arith.constant 0 : index
      %49 = vector.load %arg4[%c0_29, %48, %c0_30, %c0_31] : memref<1x2x128x256xbf16, #tpu.memory_space<vmem>>, vector<1x1x128x256xbf16>
      %50 = vector.shape_cast %49 : vector<1x1x128x256xbf16> to vector<128x256xbf16>
      %c0_32 = arith.constant 0 : index
      %51 = arith.index_cast %c1_i32_28 : i32 to index
      %c0_33 = arith.constant 0 : index
      %c0_34 = arith.constant 0 : index
      %52 = vector.load %arg5[%c0_32, %51, %c0_33, %c0_34] : memref<1x2x256x128xbf16, #tpu.memory_space<vmem>>, vector<1x1x256x128xbf16>
      %53 = vector.shape_cast %52 : vector<1x1x256x128xbf16> to vector<256x128xbf16>
      %c0_35 = arith.constant 0 : index
      %54 = arith.index_cast %c1_i32_28 : i32 to index
      %c0_36 = arith.constant 0 : index
      %c0_37 = arith.constant 0 : index
      %55 = vector.load %arg6[%c0_35, %54, %c0_36, %c0_37] : memref<1x2x1x256xf32, #tpu.memory_space<vmem>>, vector<1x1x1x256xf32>
      %56 = vector.shape_cast %55 : vector<1x1x1x256xf32> to vector<1x256xf32>
      %cst_38 = arith.constant dense<0.000000e+00> : vector<128x256xf32>
      %57 = tpu.matmul %15, %50, %cst_38 {dimension_numbers = #tpu.dot_dimension_numbers<[1], [0], [0], [1], [0, 0, 1, 1], [], []>} : vector<128x128xbf16>, vector<128x256xbf16>, vector<128x256xf32> -> vector<128x256xf32>
      %58 = vector.broadcast %56 : vector<1x256xf32> to vector<128x256xf32>
      %59 = arith.addf %57, %58 : vector<128x256xf32>
      %cst_39 = arith.constant dense<0xFF800000> : vector<128xf32>
      %60 = vector.multi_reduction <maximumf>, %59, %cst_39 [1] : vector<128x256xf32> to vector<128xf32>
      %61 = vector.shape_cast %60 : vector<128xf32> to vector<128x1xf32>
      %62 = arith.maximumf %33, %61 : vector<128x1xf32>
      %63 = arith.subf %33, %62 : vector<128x1xf32>
      %64 = math.exp %63 : vector<128x1xf32>
      %65 = vector.broadcast %62 : vector<128x1xf32> to vector<128x256xf32>
      %66 = arith.subf %59, %65 : vector<128x256xf32>
      %67 = math.exp %66 : vector<128x256xf32>
      %68 = arith.mulf %64, %42 : vector<128x1xf32>
      %cst_40 = arith.constant dense<0.000000e+00> : vector<128xf32>
      %69 = vector.multi_reduction <add>, %67, %cst_40 [1] : vector<128x256xf32> to vector<128xf32>
      %70 = vector.shape_cast %69 : vector<128xf32> to vector<128x1xf32>
      %71 = arith.addf %68, %70 : vector<128x1xf32>
      %72 = vector.broadcast %64 : vector<128x1xf32> to vector<128x128xf32>
      %73 = arith.mulf %72, %47 : vector<128x128xf32>
      %74 = arith.truncf %67 : vector<128x256xf32> to vector<128x256xbf16>
      %cst_41 = arith.constant dense<0.000000e+00> : vector<128x128xf32>
      %75 = tpu.matmul %74, %53, %cst_41 {dimension_numbers = #tpu.dot_dimension_numbers<[1], [0], [0], [1], [0, 0, 1, 1], [], []>} : vector<128x256xbf16>, vector<256x128xbf16>, vector<128x128xf32> -> vector<128x128xf32>
      %76 = arith.addf %73, %75 : vector<128x128xf32>
      %c2_i32_42 = arith.constant 2 : i32
      %77 = tpu.reciprocal %71 {approx = true} : vector<128x1xf32> -> vector<128x1xf32>
      %78 = vector.broadcast %77 : vector<128x1xf32> to vector<128x128xf32>
      %79 = arith.mulf %76, %78 : vector<128x128xf32>
      %80 = arith.truncf %79 : vector<128x128xf32> to vector<128x128xbf16>
      %c0_43 = arith.constant 0 : index
      %c0_44 = arith.constant 0 : index
      %81 = vector.load %arg8[%c0_43, %c0_44] : memref<128x128xbf16, #tpu.memory_space<vmem>>, vector<128x128xbf16>
      %cst_45 = arith.constant dense<0.000000e+00> : vector<128x128xf32>
      %82 = tpu.matmul %80, %81, %cst_45 {dimension_numbers = #tpu.dot_dimension_numbers<[1], [0], [0], [1], [0, 0, 1, 1], [], []>} : vector<128x128xbf16>, vector<128x128xbf16>, vector<128x128xf32> -> vector<128x128xf32>
      %83 = arith.addf %arg19, %82 : vector<128x128xf32>
      %cst_46 = arith.constant dense<0.000000e+00> : vector<128xf32>
      %84 = vector.multi_reduction <add>, %83, %cst_46 [1] : vector<128x128xf32> to vector<128xf32>
      %85 = vector.shape_cast %84 : vector<128xf32> to vector<128x1xf32>
      %cst_47 = arith.constant 1.280000e+02 : f32
      %86 = vector.broadcast %cst_47 : f32 to vector<128x1xf32>
      %87 = arith.divf %85, %86 : vector<128x1xf32>
      %88 = vector.broadcast %87 : vector<128x1xf32> to vector<128x128xf32>
      %89 = arith.subf %83, %88 : vector<128x128xf32>
      %90 = arith.mulf %89, %89 : vector<128x128xf32>
      %cst_48 = arith.constant dense<0.000000e+00> : vector<128xf32>
      %91 = vector.multi_reduction <add>, %90, %cst_48 [1] : vector<128x128xf32> to vector<128xf32>
      %92 = vector.shape_cast %91 : vector<128xf32> to vector<128x1xf32>
      %cst_49 = arith.constant 1.280000e+02 : f32
      %93 = vector.broadcast %cst_49 : f32 to vector<128x1xf32>
      %94 = arith.divf %92, %93 : vector<128x1xf32>
      %95 = vector.broadcast %87 : vector<128x1xf32> to vector<128x128xf32>
      %96 = arith.subf %83, %95 : vector<128x128xf32>
      %cst_50 = arith.constant 9.99999974E-6 : f32
      %97 = vector.broadcast %cst_50 : f32 to vector<128x1xf32>
      %98 = arith.addf %94, %97 : vector<128x1xf32>
      %99 = math.rsqrt %98 : vector<128x1xf32>
      %100 = vector.broadcast %99 : vector<128x1xf32> to vector<128x128xf32>
      %101 = arith.mulf %96, %100 : vector<128x128xf32>
      %c0_51 = arith.constant 0 : index
      %c0_52 = arith.constant 0 : index
      %102 = vector.load %arg9[%c0_51, %c0_52] : memref<1x128xf32, #tpu.memory_space<vmem>>, vector<1x128xf32>
      %103 = vector.broadcast %102 : vector<1x128xf32> to vector<128x128xf32>
      %104 = arith.mulf %101, %103 : vector<128x128xf32>
      %c0_53 = arith.constant 0 : index
      %c0_54 = arith.constant 0 : index
      %105 = vector.load %arg10[%c0_53, %c0_54] : memref<1x128xf32, #tpu.memory_space<vmem>>, vector<1x128xf32>
      %106 = vector.broadcast %105 : vector<1x128xf32> to vector<128x128xf32>
      %107 = arith.addf %104, %106 : vector<128x128xf32>
      %108 = arith.truncf %107 : vector<128x128xf32> to vector<128x128xbf16>
      %c0_55 = arith.constant 0 : index
      %c0_56 = arith.constant 0 : index
      %109 = vector.load %arg11[%c0_55, %c0_56] : memref<128x256xbf16, #tpu.memory_space<vmem>>, vector<128x256xbf16>
      %cst_57 = arith.constant dense<0.000000e+00> : vector<128x256xf32>
      %110 = tpu.matmul %108, %109, %cst_57 {dimension_numbers = #tpu.dot_dimension_numbers<[1], [0], [0], [1], [0, 0, 1, 1], [], []>} : vector<128x128xbf16>, vector<128x256xbf16>, vector<128x256xf32> -> vector<128x256xf32>
      %c0_58 = arith.constant 0 : index
      %c0_59 = arith.constant 0 : index
      %111 = vector.load %arg12[%c0_58, %c0_59] : memref<1x256xf32, #tpu.memory_space<vmem>>, vector<1x256xf32>
      %112 = vector.broadcast %111 : vector<1x256xf32> to vector<128x256xf32>
      %113 = arith.addf %110, %112 : vector<128x256xf32>
      %cst_60 = arith.constant 0.000000e+00 : f32
      %114 = vector.broadcast %cst_60 : f32 to vector<128x256xf32>
      %115 = arith.maximumf %113, %114 : vector<128x256xf32>
      %116 = arith.truncf %115 : vector<128x256xf32> to vector<128x256xbf16>
      %c0_61 = arith.constant 0 : index
      %c0_62 = arith.constant 0 : index
      %117 = vector.load %arg13[%c0_61, %c0_62] : memref<256x128xbf16, #tpu.memory_space<vmem>>, vector<256x128xbf16>
      %cst_63 = arith.constant dense<0.000000e+00> : vector<128x128xf32>
      %118 = tpu.matmul %116, %117, %cst_63 {dimension_numbers = #tpu.dot_dimension_numbers<[1], [0], [0], [1], [0, 0, 1, 1], [], []>} : vector<128x256xbf16>, vector<256x128xbf16>, vector<128x128xf32> -> vector<128x128xf32>
      %c0_64 = arith.constant 0 : index
      %c0_65 = arith.constant 0 : index
      %119 = vector.load %arg14[%c0_64, %c0_65] : memref<1x128xf32, #tpu.memory_space<vmem>>, vector<1x128xf32>
      %120 = vector.broadcast %119 : vector<1x128xf32> to vector<128x128xf32>
      %121 = arith.addf %118, %120 : vector<128x128xf32>
      %122 = arith.addf %107, %121 : vector<128x128xf32>
      %cst_66 = arith.constant dense<0.000000e+00> : vector<128xf32>
      %123 = vector.multi_reduction <add>, %122, %cst_66 [1] : vector<128x128xf32> to vector<128xf32>
      %124 = vector.shape_cast %123 : vector<128xf32> to vector<128x1xf32>
      %cst_67 = arith.constant 1.280000e+02 : f32
      %125 = vector.broadcast %cst_67 : f32 to vector<128x1xf32>
      %126 = arith.divf %124, %125 : vector<128x1xf32>
      %127 = vector.broadcast %126 : vector<128x1xf32> to vector<128x128xf32>
      %128 = arith.subf %122, %127 : vector<128x128xf32>
      %129 = arith.mulf %128, %128 : vector<128x128xf32>
      %cst_68 = arith.constant dense<0.000000e+00> : vector<128xf32>
      %130 = vector.multi_reduction <add>, %129, %cst_68 [1] : vector<128x128xf32> to vector<128xf32>
      %131 = vector.shape_cast %130 : vector<128xf32> to vector<128x1xf32>
      %cst_69 = arith.constant 1.280000e+02 : f32
      %132 = vector.broadcast %cst_69 : f32 to vector<128x1xf32>
      %133 = arith.divf %131, %132 : vector<128x1xf32>
      %134 = vector.broadcast %126 : vector<128x1xf32> to vector<128x128xf32>
      %135 = arith.subf %122, %134 : vector<128x128xf32>
      %cst_70 = arith.constant 9.99999974E-6 : f32
      %136 = vector.broadcast %cst_70 : f32 to vector<128x1xf32>
      %137 = arith.addf %133, %136 : vector<128x1xf32>
      %138 = math.rsqrt %137 : vector<128x1xf32>
      %139 = vector.broadcast %138 : vector<128x1xf32> to vector<128x128xf32>
      %140 = arith.mulf %135, %139 : vector<128x128xf32>
      %c0_71 = arith.constant 0 : index
      %c0_72 = arith.constant 0 : index
      %141 = vector.load %arg15[%c0_71, %c0_72] : memref<1x128xf32, #tpu.memory_space<vmem>>, vector<1x128xf32>
      %142 = vector.broadcast %141 : vector<1x128xf32> to vector<128x128xf32>
      %143 = arith.mulf %140, %142 : vector<128x128xf32>
      %c0_73 = arith.constant 0 : index
      %c0_74 = arith.constant 0 : index
      %144 = vector.load %arg16[%c0_73, %c0_74] : memref<1x128xf32, #tpu.memory_space<vmem>>, vector<1x128xf32>
      %145 = vector.broadcast %144 : vector<1x128xf32> to vector<128x128xf32>
      %146 = arith.addf %143, %145 : vector<128x128xf32>
      scf.yield %146 : vector<128x128xf32>
    }
    %c0_2 = arith.constant 0 : index
    %c0_3 = arith.constant 0 : index
    %c0_4 = arith.constant 0 : index
    %4 = vector.load %arg17[%c0_2, %c0_3, %c0_4] : memref<1x128x128xf32, #tpu.memory_space<vmem>>, vector<1x128x128xf32>
    %5 = vector.shape_cast %4 : vector<1x128x128xf32> to vector<128x128xf32>
    %6 = vector.shape_cast %3 : vector<128x128xf32> to vector<1x128x128xf32>
    tpu.vector_store %arg17[%c0_2, %c0_3, %c0_4], %6 {strides = array<i32>} : memref<1x128x128xf32, #tpu.memory_space<vmem>>, vector<1x128x128xf32>,
    return
  }
  func.func @transform_0(%arg0: i32, %arg1: i32) -> (i32, i32, i32) {
    %c0_i32 = arith.constant 0 : i32
    %c0_i32_0 = arith.constant 0 : i32
    return %arg0, %arg1, %c0_i32 : i32, i32, i32
  }
  func.func @transform_1(%arg0: i32, %arg1: i32) -> (i32, i32, i32) {
    %c0_i32 = arith.constant 0 : i32
    %c0_i32_0 = arith.constant 0 : i32
    return %arg0, %arg1, %c0_i32 : i32, i32, i32
  }
  func.func @transform_2(%arg0: i32, %arg1: i32) -> (i32, i32, i32, i32) {
    %c0_i32 = arith.constant 0 : i32
    %c0_i32_0 = arith.constant 0 : i32
    %c0_i32_1 = arith.constant 0 : i32
    %c0_i32_2 = arith.constant 0 : i32
    return %arg0, %c0_i32, %c0_i32_0, %c0_i32_1 : i32, i32, i32, i32
  }
  func.func @transform_3(%arg0: i32, %arg1: i32) -> (i32, i32, i32, i32) {
    %c0_i32 = arith.constant 0 : i32
    %c0_i32_0 = arith.constant 0 : i32
    %c0_i32_1 = arith.constant 0 : i32
    %c0_i32_2 = arith.constant 0 : i32
    return %arg0, %c0_i32, %c0_i32_0, %c0_i32_1 : i32, i32, i32, i32
  }
  func.func @transform_4(%arg0: i32, %arg1: i32) -> (i32, i32, i32, i32) {
    %c0_i32 = arith.constant 0 : i32
    %c0_i32_0 = arith.constant 0 : i32
    %c0_i32_1 = arith.constant 0 : i32
    %c0_i32_2 = arith.constant 0 : i32
    return %arg0, %c0_i32, %c0_i32_0, %c0_i32_1 : i32, i32, i32, i32
  }
  func.func @transform_5(%arg0: i32, %arg1: i32) -> (i32, i32) {
    %c0_i32 = arith.constant 0 : i32
    %c0_i32_0 = arith.constant 0 : i32
    %c0_i32_1 = arith.constant 0 : i32
    return %c0_i32, %c0_i32_0 : i32, i32
  }
  func.func @transform_6(%arg0: i32, %arg1: i32) -> (i32, i32) {
    %c0_i32 = arith.constant 0 : i32
    %c0_i32_0 = arith.constant 0 : i32
    %c0_i32_1 = arith.constant 0 : i32
    return %c0_i32, %c0_i32_0 : i32, i32
  }
  func.func @transform_7(%arg0: i32, %arg1: i32) -> (i32, i32) {
    %c0_i32 = arith.constant 0 : i32
    %c0_i32_0 = arith.constant 0 : i32
    %c0_i32_1 = arith.constant 0 : i32
    return %c0_i32, %c0_i32_0 : i32, i32
  }
  func.func @transform_8(%arg0: i32, %arg1: i32) -> (i32, i32) {
    %c0_i32 = arith.constant 0 : i32
    %c0_i32_0 = arith.constant 0 : i32
    %c0_i32_1 = arith.constant 0 : i32
    return %c0_i32, %c0_i32_0 : i32, i32
  }
  func.func @transform_9(%arg0: i32, %arg1: i32) -> (i32, i32) {
    %c0_i32 = arith.constant 0 : i32
    %c0_i32_0 = arith.constant 0 : i32
    %c0_i32_1 = arith.constant 0 : i32
    return %c0_i32, %c0_i32_0 : i32, i32
  }
  func.func @transform_10(%arg0: i32, %arg1: i32) -> (i32, i32) {
    %c0_i32 = arith.constant 0 : i32
    %c0_i32_0 = arith.constant 0 : i32
    %c0_i32_1 = arith.constant 0 : i32
    return %c0_i32, %c0_i32_0 : i32, i32
  }
  func.func @transform_11(%arg0: i32, %arg1: i32) -> (i32, i32) {
    %c0_i32 = arith.constant 0 : i32
    %c0_i32_0 = arith.constant 0 : i32
    %c0_i32_1 = arith.constant 0 : i32
    return %c0_i32, %c0_i32_0 : i32, i32
  }
  func.func @transform_12(%arg0: i32, %arg1: i32) -> (i32, i32) {
    %c0_i32 = arith.constant 0 : i32
    %c0_i32_0 = arith.constant 0 : i32
    %c0_i32_1 = arith.constant 0 : i32
    return %c0_i32, %c0_i32_0 : i32, i32
  }
  func.func @transform_13(%arg0: i32, %arg1: i32) -> (i32, i32) {
    %c0_i32 = arith.constant 0 : i32
    %c0_i32_0 = arith.constant 0 : i32
    %c0_i32_1 = arith.constant 0 : i32
    return %c0_i32, %c0_i32_0 : i32, i32
  }
  func.func @transform_14(%arg0: i32, %arg1: i32) -> (i32, i32) {
    %c0_i32 = arith.constant 0 : i32
    %c0_i32_0 = arith.constant 0 : i32
    %c0_i32_1 = arith.constant 0 : i32
    return %c0_i32, %c0_i32_0 : i32, i32
  }
  func.func @transform_15(%arg0: i32, %arg1: i32) -> (i32, i32, i32) {
    %c0_i32 = arith.constant 0 : i32
    %c0_i32_0 = arith.constant 0 : i32
    return %arg0, %arg1, %c0_i32 : i32, i32, i32
  }
}

module attributes {stable_mosaic.version = 11 : i64} {
  func.func @_encoder_stack_kernel(%arg0: i32, %arg1: i32, %arg2: memref<1x128x128xf32, #tpu.memory_space<vmem>>, %arg3: memref<1x128x128xf32, #tpu.memory_space<vmem>>, %arg4: memref<1x2x128x256xbf16, #tpu.memory_space<vmem>>, %arg5: memref<1x2x256x128xbf16, #tpu.memory_space<vmem>>, %arg6: memref<1x2x1x256xf32, #tpu.memory_space<vmem>>, %arg7: memref<128x128xbf16, #tpu.memory_space<vmem>>, %arg8: memref<128x128xbf16, #tpu.memory_space<vmem>>, %arg9: memref<1x128xf32, #tpu.memory_space<vmem>>, %arg10: memref<1x128xf32, #tpu.memory_space<vmem>>, %arg11: memref<128x256xbf16, #tpu.memory_space<vmem>>, %arg12: memref<1x256xf32, #tpu.memory_space<vmem>>, %arg13: memref<256x128xbf16, #tpu.memory_space<vmem>>, %arg14: memref<1x128xf32, #tpu.memory_space<vmem>>, %arg15: memref<1x128xf32, #tpu.memory_space<vmem>>, %arg16: memref<1x128xf32, #tpu.memory_space<vmem>>, %arg17: memref<1x128x128xf32, #tpu.memory_space<vmem>>) attributes {dimension_semantics = [#tpu.dimension_semantics<parallel>, #tpu.dimension_semantics<parallel>], iteration_bounds = array<i64: 2, 2>, scalar_prefetch = 0 : i64, scratch_operands = 0 : i64, tpu.core_type = #tpu.core_type<tc>, window_params = [{transform_indices = @transform_0, window_bounds = array<i64: 1, 128, 128>}, {transform_indices = @transform_1, window_bounds = array<i64: 1, 128, 128>}, {transform_indices = @transform_2, window_bounds = array<i64: 1, 2, 128, 256>}, {transform_indices = @transform_3, window_bounds = array<i64: 1, 2, 256, 128>}, {transform_indices = @transform_4, window_bounds = array<i64: 1, 2, 1, 256>}, {pipeline_mode = #tpu.pipeline_mode<synchronous>, transform_indices = @transform_5, window_bounds = array<i64: 128, 128>}, {pipeline_mode = #tpu.pipeline_mode<synchronous>, transform_indices = @transform_6, window_bounds = array<i64: 128, 128>}, {pipeline_mode = #tpu.pipeline_mode<synchronous>, transform_indices = @transform_7, window_bounds = array<i64: 1, 128>}, {pipeline_mode = #tpu.pipeline_mode<synchronous>, transform_indices = @transform_8, window_bounds = array<i64: 1, 128>}, {pipeline_mode = #tpu.pipeline_mode<synchronous>, transform_indices = @transform_9, window_bounds = array<i64: 128, 256>}, {pipeline_mode = #tpu.pipeline_mode<synchronous>, transform_indices = @transform_10, window_bounds = array<i64: 1, 256>}, {pipeline_mode = #tpu.pipeline_mode<synchronous>, transform_indices = @transform_11, window_bounds = array<i64: 256, 128>}, {pipeline_mode = #tpu.pipeline_mode<synchronous>, transform_indices = @transform_12, window_bounds = array<i64: 1, 128>}, {pipeline_mode = #tpu.pipeline_mode<synchronous>, transform_indices = @transform_13, window_bounds = array<i64: 1, 128>}, {pipeline_mode = #tpu.pipeline_mode<synchronous>, transform_indices = @transform_14, window_bounds = array<i64: 1, 128>}, {transform_indices = @transform_15, window_bounds = array<i64: 1, 128, 128>}]} {
    %c0 = arith.constant 0 : index
    %c0_0 = arith.constant 0 : index
    %c0_1 = arith.constant 0 : index
    %0 = vector.load %arg2[%c0, %c0_0, %c0_1] : memref<1x128x128xf32, #tpu.memory_space<vmem>>, vector<1x128x128xf32>
    %1 = vector.shape_cast %0 : vector<1x128x128xf32> to vector<128x128xf32>
    %c0_i32 = arith.constant 0 : i32
    %c2_i32 = arith.constant 2 : i32
    %2 = arith.addi %c0_i32, %c2_i32 : i32
    %c1_i32 = arith.constant 1 : i32
    %3 = scf.for %arg18 = %c0_i32 to %2 step %c1_i32 iter_args(%arg19 = %1) -> (vector<128x128xf32>)  : i32 {
      %c0_5 = arith.constant 0 : index
      %c0_6 = arith.constant 0 : index
      %c0_7 = arith.constant 0 : index
      %7 = vector.load %arg3[%c0_5, %c0_6, %c0_7] : memref<1x128x128xf32, #tpu.memory_space<vmem>>, vector<1x128x128xf32>
      %8 = vector.shape_cast %7 : vector<1x128x128xf32> to vector<128x128xf32>
      %9 = arith.addf %arg19, %8 : vector<128x128xf32>
      %10 = arith.truncf %9 : vector<128x128xf32> to vector<128x128xbf16>
      %c0_8 = arith.constant 0 : index
      %c0_9 = arith.constant 0 : index
      %11 = vector.load %arg7[%c0_8, %c0_9] : memref<128x128xbf16, #tpu.memory_space<vmem>>, vector<128x128xbf16>
      %cst = arith.constant dense<0.000000e+00> : vector<128x128xf32>
      %12 = tpu.matmul %10, %11, %cst {dimension_numbers = #tpu.dot_dimension_numbers<[1], [0], [0], [1], [0, 0, 1, 1], [], []>} : vector<128x128xbf16>, vector<128x128xbf16>, vector<128x128xf32> -> vector<128x128xf32>
      %cst_10 = arith.constant 0.0883883461 : f32
      %13 = vector.broadcast %cst_10 : f32 to vector<128x128xf32>
      %14 = arith.mulf %12, %13 : vector<128x128xf32>
      %15 = arith.truncf %14 : vector<128x128xf32> to vector<128x128xbf16>
      %cst_11 = arith.constant 0xFF800000 : f32
      %16 = vector.broadcast %cst_11 : f32 to vector<128x1xf32>
      %cst_12 = arith.constant 0.000000e+00 : f32
      %17 = vector.broadcast %cst_12 : f32 to vector<128x1xf32>
      %cst_13 = arith.constant 0.000000e+00 : f32
      %18 = vector.broadcast %cst_13 : f32 to vector<128x128xf32>
      %c0_i32_14 = arith.constant 0 : i32
      %c0_15 = arith.constant 0 : index
      %19 = arith.index_cast %c0_i32_14 : i32 to index
      %c0_16 = arith.constant 0 : index
      %c0_17 = arith.constant 0 : index
      %20 = vector.load %arg4[%c0_15, %19, %c0_16, %c0_17] : memref<1x2x128x256xbf16, #tpu.memory_space<vmem>>, vector<1x1x128x256xbf16>
      %21 = vector.shape_cast %20 : vector<1x1x128x256xbf16> to vector<128x256xbf16>
      %c0_18 = arith.constant 0 : index
      %22 = arith.index_cast %c0_i32_14 : i32 to index
      %c0_19 = arith.constant 0 : index
      %c0_20 = arith.constant 0 : index
      %23 = vector.load %arg5[%c0_18, %22, %c0_19, %c0_20] : memref<1x2x256x128xbf16, #tpu.memory_space<vmem>>, vector<1x1x256x128xbf16>
      %24 = vector.shape_cast %23 : vector<1x1x256x128xbf16> to vector<256x128xbf16>
      %c0_21 = arith.constant 0 : index
      %25 = arith.index_cast %c0_i32_14 : i32 to index
      %c0_22 = arith.constant 0 : index
      %c0_23 = arith.constant 0 : index
      %26 = vector.load %arg6[%c0_21, %25, %c0_22, %c0_23] : memref<1x2x1x256xf32, #tpu.memory_space<vmem>>, vector<1x1x1x256xf32>
      %27 = vector.shape_cast %26 : vector<1x1x1x256xf32> to vector<1x256xf32>
      %cst_24 = arith.constant dense<0.000000e+00> : vector<128x256xf32>
      %28 = tpu.matmul %15, %21, %cst_24 {dimension_numbers = #tpu.dot_dimension_numbers<[1], [0], [0], [1], [0, 0, 1, 1], [], []>} : vector<128x128xbf16>, vector<128x256xbf16>, vector<128x256xf32> -> vector<128x256xf32>
      %29 = vector.broadcast %27 : vector<1x256xf32> to vector<128x256xf32>
      %30 = arith.addf %28, %29 : vector<128x256xf32>
      %cst_25 = arith.constant dense<0xFF800000> : vector<128xf32>
      %31 = vector.multi_reduction <maximumf>, %30, %cst_25 [1] : vector<128x256xf32> to vector<128xf32>
      %32 = vector.shape_cast %31 : vector<128xf32> to vector<128x1xf32>
      %33 = arith.maximumf %16, %32 : vector<128x1xf32>
      %34 = arith.subf %16, %33 : vector<128x1xf32>
      %35 = math.exp %34 : vector<128x1xf32>
      %36 = vector.broadcast %33 : vector<128x1xf32> to vector<128x256xf32>
      %37 = arith.subf %30, %36 : vector<128x256xf32>
      %38 = math.exp %37 : vector<128x256xf32>
      %39 = arith.mulf %35, %17 : vector<128x1xf32>
      %cst_26 = arith.constant dense<0.000000e+00> : vector<128xf32>
      %40 = vector.multi_reduction <add>, %38, %cst_26 [1] : vector<128x256xf32> to vector<128xf32>
      %41 = vector.shape_cast %40 : vector<128xf32> to vector<128x1xf32>
      %42 = arith.addf %39, %41 : vector<128x1xf32>
      %43 = vector.broadcast %35 : vector<128x1xf32> to vector<128x128xf32>
      %44 = arith.mulf %43, %18 : vector<128x128xf32>
      %45 = arith.truncf %38 : vector<128x256xf32> to vector<128x256xbf16>
      %cst_27 = arith.constant dense<0.000000e+00> : vector<128x128xf32>
      %46 = tpu.matmul %45, %24, %cst_27 {dimension_numbers = #tpu.dot_dimension_numbers<[1], [0], [0], [1], [0, 0, 1, 1], [], []>} : vector<128x256xbf16>, vector<256x128xbf16>, vector<128x128xf32> -> vector<128x128xf32>
      %47 = arith.addf %44, %46 : vector<128x128xf32>
      %c1_i32_28 = arith.constant 1 : i32
      %c0_29 = arith.constant 0 : index
      %48 = arith.index_cast %c1_i32_28 : i32 to index
      %c0_30 = arith.constant 0 : index
      %c0_31 = arith.constant 0 : index
      %49 = vector.load %arg4[%c0_29, %48, %c0_30, %c0_31] : memref<1x2x128x256xbf16, #tpu.memory_space<vmem>>, vector<1x1x128x256xbf16>
      %50 = vector.shape_cast %49 : vector<1x1x128x256xbf16> to vector<128x256xbf16>
      %c0_32 = arith.constant 0 : index
      %51 = arith.index_cast %c1_i32_28 : i32 to index
      %c0_33 = arith.constant 0 : index
      %c0_34 = arith.constant 0 : index
      %52 = vector.load %arg5[%c0_32, %51, %c0_33, %c0_34] : memref<1x2x256x128xbf16, #tpu.memory_space<vmem>>, vector<1x1x256x128xbf16>
      %53 = vector.shape_cast %52 : vector<1x1x256x128xbf16> to vector<256x128xbf16>
      %c0_35 = arith.constant 0 : index
      %54 = arith.index_cast %c1_i32_28 : i32 to index
      %c0_36 = arith.constant 0 : index
      %c0_37 = arith.constant 0 : index
      %55 = vector.load %arg6[%c0_35, %54, %c0_36, %c0_37] : memref<1x2x1x256xf32, #tpu.memory_space<vmem>>, vector<1x1x1x256xf32>
      %56 = vector.shape_cast %55 : vector<1x1x1x256xf32> to vector<1x256xf32>
      %cst_38 = arith.constant dense<0.000000e+00> : vector<128x256xf32>
      %57 = tpu.matmul %15, %50, %cst_38 {dimension_numbers = #tpu.dot_dimension_numbers<[1], [0], [0], [1], [0, 0, 1, 1], [], []>} : vector<128x128xbf16>, vector<128x256xbf16>, vector<128x256xf32> -> vector<128x256xf32>
      %58 = vector.broadcast %56 : vector<1x256xf32> to vector<128x256xf32>
      %59 = arith.addf %57, %58 : vector<128x256xf32>
      %cst_39 = arith.constant dense<0xFF800000> : vector<128xf32>
      %60 = vector.multi_reduction <maximumf>, %59, %cst_39 [1] : vector<128x256xf32> to vector<128xf32>
      %61 = vector.shape_cast %60 : vector<128xf32> to vector<128x1xf32>
      %62 = arith.maximumf %33, %61 : vector<128x1xf32>
      %63 = arith.subf %33, %62 : vector<128x1xf32>
      %64 = math.exp %63 : vector<128x1xf32>
      %65 = vector.broadcast %62 : vector<128x1xf32> to vector<128x256xf32>
      %66 = arith.subf %59, %65 : vector<128x256xf32>
      %67 = math.exp %66 : vector<128x256xf32>
      %68 = arith.mulf %64, %42 : vector<128x1xf32>
      %cst_40 = arith.constant dense<0.000000e+00> : vector<128xf32>
      %69 = vector.multi_reduction <add>, %67, %cst_40 [1] : vector<128x256xf32> to vector<128xf32>
      %70 = vector.shape_cast %69 : vector<128xf32> to vector<128x1xf32>
      %71 = arith.addf %68, %70 : vector<128x1xf32>
      %72 = vector.broadcast %64 : vector<128x1xf32> to vector<128x128xf32>
      %73 = arith.mulf %72, %47 : vector<128x128xf32>
      %74 = arith.truncf %67 : vector<128x256xf32> to vector<128x256xbf16>
      %cst_41 = arith.constant dense<0.000000e+00> : vector<128x128xf32>
      %75 = tpu.matmul %74, %53, %cst_41 {dimension_numbers = #tpu.dot_dimension_numbers<[1], [0], [0], [1], [0, 0, 1, 1], [], []>} : vector<128x256xbf16>, vector<256x128xbf16>, vector<128x128xf32> -> vector<128x128xf32>
      %76 = arith.addf %73, %75 : vector<128x128xf32>
      %c2_i32_42 = arith.constant 2 : i32
      %77 = tpu.reciprocal %71 {approx = true} : vector<128x1xf32> -> vector<128x1xf32>
      %78 = vector.broadcast %77 : vector<128x1xf32> to vector<128x128xf32>
      %79 = arith.mulf %76, %78 : vector<128x128xf32>
      %80 = arith.truncf %79 : vector<128x128xf32> to vector<128x128xbf16>
      %c0_43 = arith.constant 0 : index
      %c0_44 = arith.constant 0 : index
      %81 = vector.load %arg8[%c0_43, %c0_44] : memref<128x128xbf16, #tpu.memory_space<vmem>>, vector<128x128xbf16>
      %cst_45 = arith.constant dense<0.000000e+00> : vector<128x128xf32>
      %82 = tpu.matmul %80, %81, %cst_45 {dimension_numbers = #tpu.dot_dimension_numbers<[1], [0], [0], [1], [0, 0, 1, 1], [], []>} : vector<128x128xbf16>, vector<128x128xbf16>, vector<128x128xf32> -> vector<128x128xf32>
      %83 = arith.addf %arg19, %82 : vector<128x128xf32>
      %cst_46 = arith.constant dense<0.000000e+00> : vector<128xf32>
      %84 = vector.multi_reduction <add>, %83, %cst_46 [1] : vector<128x128xf32> to vector<128xf32>
      %85 = vector.shape_cast %84 : vector<128xf32> to vector<128x1xf32>
      %cst_47 = arith.constant 1.280000e+02 : f32
      %86 = vector.broadcast %cst_47 : f32 to vector<128x1xf32>
      %87 = arith.divf %85, %86 : vector<128x1xf32>
      %88 = vector.broadcast %87 : vector<128x1xf32> to vector<128x128xf32>
      %89 = arith.subf %83, %88 : vector<128x128xf32>
      %90 = arith.mulf %89, %89 : vector<128x128xf32>
      %cst_48 = arith.constant dense<0.000000e+00> : vector<128xf32>
      %91 = vector.multi_reduction <add>, %90, %cst_48 [1] : vector<128x128xf32> to vector<128xf32>
      %92 = vector.shape_cast %91 : vector<128xf32> to vector<128x1xf32>
      %cst_49 = arith.constant 1.280000e+02 : f32
      %93 = vector.broadcast %cst_49 : f32 to vector<128x1xf32>
      %94 = arith.divf %92, %93 : vector<128x1xf32>
      %95 = vector.broadcast %87 : vector<128x1xf32> to vector<128x128xf32>
      %96 = arith.subf %83, %95 : vector<128x128xf32>
      %cst_50 = arith.constant 9.99999974E-6 : f32
      %97 = vector.broadcast %cst_50 : f32 to vector<128x1xf32>
      %98 = arith.addf %94, %97 : vector<128x1xf32>
      %99 = math.rsqrt %98 : vector<128x1xf32>
      %100 = vector.broadcast %99 : vector<128x1xf32> to vector<128x128xf32>
      %101 = arith.mulf %96, %100 : vector<128x128xf32>
      %c0_51 = arith.constant 0 : index
      %c0_52 = arith.constant 0 : index
      %102 = vector.load %arg9[%c0_51, %c0_52] : memref<1x128xf32, #tpu.memory_space<vmem>>, vector<1x128xf32>
      %103 = vector.broadcast %102 : vector<1x128xf32> to vector<128x128xf32>
      %104 = arith.mulf %101, %103 : vector<128x128xf32>
      %c0_53 = arith.constant 0 : index
      %c0_54 = arith.constant 0 : index
      %105 = vector.load %arg10[%c0_53, %c0_54] : memref<1x128xf32, #tpu.memory_space<vmem>>, vector<1x128xf32>
      %106 = vector.broadcast %105 : vector<1x128xf32> to vector<128x128xf32>
      %107 = arith.addf %104, %106 : vector<128x128xf32>
      %108 = arith.truncf %107 : vector<128x128xf32> to vector<128x128xbf16>
      %c0_55 = arith.constant 0 : index
      %c0_56 = arith.constant 0 : index
      %109 = vector.load %arg11[%c0_55, %c0_56] : memref<128x256xbf16, #tpu.memory_space<vmem>>, vector<128x256xbf16>
      %cst_57 = arith.constant dense<0.000000e+00> : vector<128x256xf32>
      %110 = tpu.matmul %108, %109, %cst_57 {dimension_numbers = #tpu.dot_dimension_numbers<[1], [0], [0], [1], [0, 0, 1, 1], [], []>} : vector<128x128xbf16>, vector<128x256xbf16>, vector<128x256xf32> -> vector<128x256xf32>
      %c0_58 = arith.constant 0 : index
      %c0_59 = arith.constant 0 : index
      %111 = vector.load %arg12[%c0_58, %c0_59] : memref<1x256xf32, #tpu.memory_space<vmem>>, vector<1x256xf32>
      %112 = vector.broadcast %111 : vector<1x256xf32> to vector<128x256xf32>
      %113 = arith.addf %110, %112 : vector<128x256xf32>
      %cst_60 = arith.constant 0.000000e+00 : f32
      %114 = vector.broadcast %cst_60 : f32 to vector<128x256xf32>
      %115 = arith.maximumf %113, %114 : vector<128x256xf32>
      %116 = arith.truncf %115 : vector<128x256xf32> to vector<128x256xbf16>
      %c0_61 = arith.constant 0 : index
      %c0_62 = arith.constant 0 : index
      %117 = vector.load %arg13[%c0_61, %c0_62] : memref<256x128xbf16, #tpu.memory_space<vmem>>, vector<256x128xbf16>
      %cst_63 = arith.constant dense<0.000000e+00> : vector<128x128xf32>
      %118 = tpu.matmul %116, %117, %cst_63 {dimension_numbers = #tpu.dot_dimension_numbers<[1], [0], [0], [1], [0, 0, 1, 1], [], []>} : vector<128x256xbf16>, vector<256x128xbf16>, vector<128x128xf32> -> vector<128x128xf32>
      %c0_64 = arith.constant 0 : index
      %c0_65 = arith.constant 0 : index
      %119 = vector.load %arg14[%c0_64, %c0_65] : memref<1x128xf32, #tpu.memory_space<vmem>>, vector<1x128xf32>
      %120 = vector.broadcast %119 : vector<1x128xf32> to vector<128x128xf32>
      %121 = arith.addf %118, %120 : vector<128x128xf32>
      %122 = arith.addf %107, %121 : vector<128x128xf32>
      %cst_66 = arith.constant dense<0.000000e+00> : vector<128xf32>
      %123 = vector.multi_reduction <add>, %122, %cst_66 [1] : vector<128x128xf32> to vector<128xf32>
      %124 = vector.shape_cast %123 : vector<128xf32> to vector<128x1xf32>
      %cst_67 = arith.constant 1.280000e+02 : f32
      %125 = vector.broadcast %cst_67 : f32 to vector<128x1xf32>
      %126 = arith.divf %124, %125 : vector<128x1xf32>
      %127 = vector.broadcast %126 : vector<128x1xf32> to vector<128x128xf32>
      %128 = arith.subf %122, %127 : vector<128x128xf32>
      %129 = arith.mulf %128, %128 : vector<128x128xf32>
      %cst_68 = arith.constant dense<0.000000e+00> : vector<128xf32>
      %130 = vector.multi_reduction <add>, %129, %cst_68 [1] : vector<128x128xf32> to vector<128xf32>
      %131 = vector.shape_cast %130 : vector<128xf32> to vector<128x1xf32>
      %cst_69 = arith.constant 1.280000e+02 : f32
      %132 = vector.broadcast %cst_69 : f32 to vector<128x1xf32>
      %133 = arith.divf %131, %132 : vector<128x1xf32>
      %134 = vector.broadcast %126 : vector<128x1xf32> to vector<128x128xf32>
      %135 = arith.subf %122, %134 : vector<128x128xf32>
      %cst_70 = arith.constant 9.99999974E-6 : f32
      %136 = vector.broadcast %cst_70 : f32 to vector<128x1xf32>
      %137 = arith.addf %133, %136 : vector<128x1xf32>
      %138 = math.rsqrt %137 : vector<128x1xf32>
      %139 = vector.broadcast %138 : vector<128x1xf32> to vector<128x128xf32>
      %140 = arith.mulf %135, %139 : vector<128x128xf32>
      %c0_71 = arith.constant 0 : index
      %c0_72 = arith.constant 0 : index
      %141 = vector.load %arg15[%c0_71, %c0_72] : memref<1x128xf32, #tpu.memory_space<vmem>>, vector<1x128xf32>
      %142 = vector.broadcast %141 : vector<1x128xf32> to vector<128x128xf32>
      %143 = arith.mulf %140, %142 : vector<128x128xf32>
      %c0_73 = arith.constant 0 : index
      %c0_74 = arith.constant 0 : index
      %144 = vector.load %arg16[%c0_73, %c0_74] : memref<1x128xf32, #tpu.memory_space<vmem>>, vector<1x128xf32>
      %145 = vector.broadcast %144 : vector<1x128xf32> to vector<128x128xf32>
      %146 = arith.addf %143, %145 : vector<128x128xf32>
      scf.yield %146 : vector<128x128xf32>
    }
    %c0_2 = arith.constant 0 : index
    %c0_3 = arith.constant 0 : index
    %c0_4 = arith.constant 0 : index
    %4 = vector.load %arg17[%c0_2, %c0_3, %c0_4] : memref<1x128x128xf32, #tpu.memory_space<vmem>>, vector<1x128x128xf32>
    %5 = vector.shape_cast %4 : vector<1x128x128xf32> to vector<128x128xf32>
    %6 = vector.shape_cast %3 : vector<128x128xf32> to vector<1x128x128xf32>
    tpu.vector_store %arg17[%c0_2, %c0_3, %c0_4], %6 {strides = array<i32>} : memref<1x128x128xf32, #tpu.memory_space<vmem>>, vector<1x128x128xf32>,
    return
  }
  func.func @transform_0(%arg0: i32, %arg1: i32) -> (i32, i32, i32) {
    %c0_i32 = arith.constant 0 : i32
    %c0_i32_0 = arith.constant 0 : i32
    return %arg0, %arg1, %c0_i32 : i32, i32, i32
  }
  func.func @transform_1(%arg0: i32, %arg1: i32) -> (i32, i32, i32) {
    %c0_i32 = arith.constant 0 : i32
    %c0_i32_0 = arith.constant 0 : i32
    return %arg0, %arg1, %c0_i32 : i32, i32, i32
  }
  func.func @transform_2(%arg0: i32, %arg1: i32) -> (i32, i32, i32, i32) {
    %c0_i32 = arith.constant 0 : i32
    %c0_i32_0 = arith.constant 0 : i32
    %c0_i32_1 = arith.constant 0 : i32
    %c0_i32_2 = arith.constant 0 : i32
    return %arg0, %c0_i32, %c0_i32_0, %c0_i32_1 : i32, i32, i32, i32
  }
  func.func @transform_3(%arg0: i32, %arg1: i32) -> (i32, i32, i32, i32) {
    %c0_i32 = arith.constant 0 : i32
    %c0_i32_0 = arith.constant 0 : i32
    %c0_i32_1 = arith.constant 0 : i32
    %c0_i32_2 = arith.constant 0 : i32
    return %arg0, %c0_i32, %c0_i32_0, %c0_i32_1 : i32, i32, i32, i32
  }
  func.func @transform_4(%arg0: i32, %arg1: i32) -> (i32, i32, i32, i32) {
    %c0_i32 = arith.constant 0 : i32
    %c0_i32_0 = arith.constant 0 : i32
    %c0_i32_1 = arith.constant 0 : i32
    %c0_i32_2 = arith.constant 0 : i32
    return %arg0, %c0_i32, %c0_i32_0, %c0_i32_1 : i32, i32, i32, i32
  }
  func.func @transform_5(%arg0: i32, %arg1: i32) -> (i32, i32) {
    %c0_i32 = arith.constant 0 : i32
    %c0_i32_0 = arith.constant 0 : i32
    %c0_i32_1 = arith.constant 0 : i32
    return %c0_i32, %c0_i32_0 : i32, i32
  }
  func.func @transform_6(%arg0: i32, %arg1: i32) -> (i32, i32) {
    %c0_i32 = arith.constant 0 : i32
    %c0_i32_0 = arith.constant 0 : i32
    %c0_i32_1 = arith.constant 0 : i32
    return %c0_i32, %c0_i32_0 : i32, i32
  }
  func.func @transform_7(%arg0: i32, %arg1: i32) -> (i32, i32) {
    %c0_i32 = arith.constant 0 : i32
    %c0_i32_0 = arith.constant 0 : i32
    %c0_i32_1 = arith.constant 0 : i32
    return %c0_i32, %c0_i32_0 : i32, i32
  }
  func.func @transform_8(%arg0: i32, %arg1: i32) -> (i32, i32) {
    %c0_i32 = arith.constant 0 : i32
    %c0_i32_0 = arith.constant 0 : i32
    %c0_i32_1 = arith.constant 0 : i32
    return %c0_i32, %c0_i32_0 : i32, i32
  }
  func.func @transform_9(%arg0: i32, %arg1: i32) -> (i32, i32) {
    %c0_i32 = arith.constant 0 : i32
    %c0_i32_0 = arith.constant 0 : i32
    %c0_i32_1 = arith.constant 0 : i32
    return %c0_i32, %c0_i32_0 : i32, i32
  }
  func.func @transform_10(%arg0: i32, %arg1: i32) -> (i32, i32) {
    %c0_i32 = arith.constant 0 : i32
    %c0_i32_0 = arith.constant 0 : i32
    %c0_i32_1 = arith.constant 0 : i32
    return %c0_i32, %c0_i32_0 : i32, i32
  }
  func.func @transform_11(%arg0: i32, %arg1: i32) -> (i32, i32) {
    %c0_i32 = arith.constant 0 : i32
    %c0_i32_0 = arith.constant 0 : i32
    %c0_i32_1 = arith.constant 0 : i32
    return %c0_i32, %c0_i32_0 : i32, i32
  }
  func.func @transform_12(%arg0: i32, %arg1: i32) -> (i32, i32) {
    %c0_i32 = arith.constant 0 : i32
    %c0_i32_0 = arith.constant 0 : i32
    %c0_i32_1 = arith.constant 0 : i32
    return %c0_i32, %c0_i32_0 : i32, i32
  }
  func.func @transform_13(%arg0: i32, %arg1: i32) -> (i32, i32) {
    %c0_i32 = arith.constant 0 : i32
    %c0_i32_0 = arith.constant 0 : i32
    %c0_i32_1 = arith.constant 0 : i32
    return %c0_i32, %c0_i32_0 : i32, i32
  }
  func.func @transform_14(%arg0: i32, %arg1: i32) -> (i32, i32) {
    %c0_i32 = arith.constant 0 : i32
    %c0_i32_0 = arith.constant 0 : i32
    %c0_i32_1 = arith.constant 0 : i32
    return %c0_i32, %c0_i32_0 : i32, i32
  }
  func.func @transform_15(%arg0: i32, %arg1: i32) -> (i32, i32, i32) {
    %c0_i32 = arith.constant 0 : i32
    %c0_i32_0 = arith.constant 0 : i32
    return %arg0, %arg1, %c0_i32 : i32, i32, i32
  }
}

</mosaic_0001>

<llo_original>
// kernel: tpu_custom_call.1
$region0: #{tpu_custom_call.1}
  #allocation0 [shape = 'u32[]', space=smem, size = 0x4, offset = 0x4, fixed_abs, tag = 'smem constant byte address 0x4 - core index']
  #allocation1 [shape = 'u32[72,128]{1,0:T(1,128)}', space=vmem, size = 0x9000, scoped, tag = 'internal scratch']
  %s0 = inlined_call_operand.hbm [shape: f32[2,256,128], index: 0, kind: input, shape index: {}]
  %s1 = inlined_call_operand.hbm [shape: f32[2,256,128], index: 1, kind: input, shape index: {}]
  %s2 = inlined_call_operand.hbm [shape: bf16[2,2,128,256], index: 2, kind: input, shape index: {}]
  %s3 = inlined_call_operand.hbm [shape: bf16[2,2,256,128], index: 3, kind: input, shape index: {}]
  %s4 = inlined_call_operand.hbm [shape: f32[2,2,1,256], index: 4, kind: input, shape index: {}]
  %s5 = inlined_call_operand.hbm [shape: bf16[128,128], index: 5, kind: input, shape index: {}]
  %s6 = inlined_call_operand.hbm [shape: bf16[128,128], index: 6, kind: input, shape index: {}]
  %s7 = inlined_call_operand.vmem [shape: f32[1,128], index: 7, kind: input, shape index: {}]
  %s8 = inlined_call_operand.vmem [shape: f32[1,128], index: 8, kind: input, shape index: {}]
  %s9 = inlined_call_operand.hbm [shape: bf16[128,256], index: 9, kind: input, shape index: {}]
  %s10 = inlined_call_operand.vmem [shape: f32[1,256], index: 10, kind: input, shape index: {}]
  %s11 = inlined_call_operand.hbm [shape: bf16[256,128], index: 11, kind: input, shape index: {}]
  %s12 = inlined_call_operand.vmem [shape: f32[1,128], index: 12, kind: input, shape index: {}]
  %s13 = inlined_call_operand.vmem [shape: f32[1,128], index: 13, kind: input, shape index: {}]
  %s14 = inlined_call_operand.vmem [shape: f32[1,128], index: 14, kind: input, shape index: {}]
  %s15 = inlined_call_operand.hbm [shape: f32[2,256,128], index: 15, kind: output, shape index: {}]
  %s16 = sld [smem:[#allocation0]]
  $region136: #{tpu_custom_call.1} parent=0
    _
  %s18 = ssub.s32 1, %s16
  %s19 = scalar_select 0, %s18, %s16
  $region1: #{tpu_custom_call.1} parent=0
    #allocation2 [shape = 'u8[131072]{0}', space=vmem, size = 0x20000, scoped, tag = 'input window, operand 0']
    #allocation3 [shape = 's32[2]{0}', space=sflag, size = 0x8, scoped, tag = 'scoped memory for tpu_custom_call.1']
    #allocation4 [shape = 's32[2]{0}', space=sflag, size = 0x8, scoped, tag = 'scoped memory for tpu_custom_call.1']
    #allocation5 [shape = 'u8[131072]{0}', space=vmem, size = 0x20000, scoped, tag = 'input window, operand 1']
    #allocation6 [shape = 's32[2]{0}', space=sflag, size = 0x8, scoped, tag = 'scoped memory for tpu_custom_call.1']
    #allocation7 [shape = 'u8[131072]{0}', space=vmem, size = 0x20000, scoped, tag = 'input window, operand 2, single buffered']
    #allocation8 [shape = 'u8[131072]{0}', space=vmem, size = 0x20000, scoped, tag = 'input window, operand 3, single buffered']
    #allocation9 [shape = 's32[1]{0}', space=sflag, size = 0x4, scoped, tag = 'scoped memory for tpu_custom_call.1']
    #allocation10 [shape = 'u8[2048]{0}', space=vmem, size = 0x800, scoped, tag = 'input window, operand 4, single buffered']
    #allocation11 [shape = 'u8[32768]{0}', space=vmem, size = 0x8000, scoped, tag = 'input window, operand 5, single buffered']
    #allocation12 [shape = 's32[1]{0}', space=sflag, size = 0x4, scoped, tag = 'scoped memory for tpu_custom_call.1']
    #allocation13 [shape = 'u8[32768]{0}', space=vmem, size = 0x8000, scoped, tag = 'input window, operand 6, single buffered']
    #allocation14 [shape = 'u8[65536]{0}', space=vmem, size = 0x10000, scoped, tag = 'input window, operand 9, single buffered']
    #allocation15 [shape = 's32[1]{0}', space=sflag, size = 0x4, scoped, tag = 'scoped memory for tpu_custom_call.1']
    #allocation16 [shape = 'u8[65536]{0}', space=vmem, size = 0x10000, scoped, tag = 'input window, operand 11, single buffered']
    #allocation17 [shape = 'u8[131072]{0}', space=vmem, size = 0x20000, scoped, tag = 'output window, operand 0']
    %20 = vsyncpa [#allocation3], 0
    %s21 = scalar_lea.sflag [#allocation3], 1
    %22 = vsyncpa %s21, 0
    %23 = vsyncpa [#allocation6], 0
    %s24 = scalar_lea.sflag [#allocation6], 1
    %25 = vsyncpa %s24, 0
    %26 = vsyncpa [#allocation9], 0
    %27 = vsyncpa [#allocation12], 0
    %28 = vsyncpa [#allocation15], 0
    %29 = vsyncpa [#allocation4], 0
    %s30 = scalar_lea.sflag [#allocation4], 1
    %31 = vsyncpa %s30, 0
    loop: start=0, step=1, limit=6
    $region2: #{tpu_custom_call.1} parent=1 // loop_pre_header
      _
    $region3: #{tpu_custom_call.1} parent=1 // loop_header
      %s33 = sphi 0, %s37
      %p34 = scmp.ge.s32.totalorder %s33, 6
      %s40 = sphi 0, %s52
      %s41 = sphi 0, %s48
      %s42 = sphi 0, %s40
      %s43 = sphi 0, %s41
      %s44 = sphi 0, %s42
      %s45 = sphi 0, %s43
      %s57 = sphi 0, %s59
      %s60 = sphi 0, %s57
      %s61 = sphi 0, %s60
      %s77 = sphi 0, %s61
      %s85 = sphi 0, %s87
      %s88 = sphi 0, %s85
      %s89 = sphi 0, %s88
      %s105 = sphi 0, %s89
      %s111 = sphi 0, %s113
      %s114 = sphi 0, %s111
      %s115 = sphi 0, %s114
      %s131 = sphi 0, %s115
      %s137 = sphi 0, %s139
      %s140 = sphi 0, %s137
      %s141 = sphi 0, %s140
      %s157 = sphi 0, %s141
      %s163 = sphi 0, %s165
      %s166 = sphi 0, %s163
      %s167 = sphi 0, %s166
      %s183 = sphi 0, %s167
      %s187 = sphi 0, %s187
      %s189 = sphi 0, %s187
      %s190 = sphi 0, %s189
      %s204 = sphi 0, %s190
      %s208 = sphi 0, %s208
      %s210 = sphi 0, %s208
      %s211 = sphi 0, %s210
      %s225 = sphi 0, %s211
      %s229 = sphi 0, %s229
      %s231 = sphi 0, %s229
      %s232 = sphi 0, %s231
      %s246 = sphi 0, %s232
      %s250 = sphi 0, %s250
      %s252 = sphi 0, %s250
      %s253 = sphi 0, %s252
      %s267 = sphi 0, %s253
      %s271 = sphi 0, %s271
      %s273 = sphi 0, %s271
      %s274 = sphi 0, %s273
      %s288 = sphi 0, %s274
      %s292 = sphi 0, %s292
      %s294 = sphi 0, %s292
      %s295 = sphi 0, %s294
      %s309 = sphi 0, %s295
      %s313 = sphi 0, %s313
      %s315 = sphi 0, %s313
      %s316 = sphi 0, %s315
      %s330 = sphi 0, %s316
      %s334 = sphi 0, %s334
      %s336 = sphi 0, %s334
      %s337 = sphi 0, %s336
      %s351 = sphi 0, %s337
      %s355 = sphi 0, %s355
      %s357 = sphi 0, %s355
      %s358 = sphi 0, %s357
      %s372 = sphi 0, %s358
      %s376 = sphi 0, %s376
      %s378 = sphi 0, %s376
      %s379 = sphi 0, %s378
      %s393 = sphi 0, %s379
      %s401 = sphi 0, %s403
      %s404 = sphi 0, %s401
      %s405 = sphi 0, %s404
      %s421 = sphi 0, %s405
    $region4: #{tpu_custom_call.1} parent=1 // loop_header_branch
      %36 = sbr.rel (%p34) target = $region8
    $region5: #{tpu_custom_call.1} parent=1 // loop_body
      %s38 = ssub.s32 %s33, 1
      %s39 = ssub.s32 %s33, 2
      %s46 = sadd.s32 1, %s41
      %p47 = scmp.ge.s32.totalorder %s46, 2
      %s48 = scalar_select %p47, 0, %s46
      %s49 = sadd.s32 1, %s40
      %s50 = scalar_select %p47, %s49, %s40
      %p51 = scmp.ge.s32.totalorder %s50, 2
      %s52 = scalar_select %p51, 0, %s50
      %s53 = ssub.s32 %s40, %s52
      %s54 = ssub.s32 %s41, %s48
      %s55 = sor.u32 %s53, %s54
      %p56 = scmp.eq.s32.totalorder %s55, 0
      %s58 = sadd.s32 %s57, 1
      %s59 = scalar_select %p56, %s57, %s58
      %p62 = pneg %p56
      %p63 = scmp.eq.s32.totalorder %s33, 3
      %p64 = por %p62, %p63
      %p65 = scmp.ne.s32.totalorder %s57, %s60
      %p66 = scmp.eq.s32.totalorder %s33, 0
      %p67 = por %p65, %p66
      %p68 = scmp.ne.s32.totalorder %s57, %s60
      %p69 = scmp.eq.s32.totalorder %s38, 3
      %p70 = por %p68, %p69
      %p71 = scmp.ne.s32.totalorder %s60, %s61
      %p72 = scmp.eq.s32.totalorder %s38, 0
      %p73 = por %p71, %p72
      %p74 = scmp.ne.s32.totalorder %s60, %s61
      %p75 = scmp.eq.s32.totalorder %s39, 3
      %p76 = por %p74, %p75
      %p78 = scmp.ne.s32.totalorder %s61, %s77
      %p79 = scmp.eq.s32.totalorder %s39, 0
      %p80 = por %p78, %p79
      %s81 = ssub.s32 %s40, %s52
      %s82 = ssub.s32 %s41, %s48
      %s83 = sor.u32 %s81, %s82
      %p84 = scmp.eq.s32.totalorder %s83, 0
      %s86 = sadd.s32 %s85, 1
      %s87 = scalar_select %p84, %s85, %s86
      %p90 = pneg %p84
      %p91 = scmp.eq.s32.totalorder %s33, 3
      %p92 = por %p90, %p91
      %p93 = scmp.ne.s32.totalorder %s85, %s88
      %p94 = scmp.eq.s32.totalorder %s33, 0
      %p95 = por %p93, %p94
      %p96 = scmp.ne.s32.totalorder %s85, %s88
      %p97 = scmp.eq.s32.totalorder %s38, 3
      %p98 = por %p96, %p97
      %p99 = scmp.ne.s32.totalorder %s88, %s89
      %p100 = scmp.eq.s32.totalorder %s38, 0
      %p101 = por %p99, %p100
      %p102 = scmp.ne.s32.totalorder %s88, %s89
      %p103 = scmp.eq.s32.totalorder %s39, 3
      %p104 = por %p102, %p103
      %p106 = scmp.ne.s32.totalorder %s89, %s105
      %p107 = scmp.eq.s32.totalorder %s39, 0
      %p108 = por %p106, %p107
      %s109 = ssub.s32 %s40, %s52
      %p110 = scmp.eq.s32.totalorder %s109, 0
      %s112 = sadd.s32 %s111, 1
      %s113 = scalar_select %p110, %s111, %s112
      %p116 = pneg %p110
      %p117 = scmp.eq.s32.totalorder %s33, 3
      %p118 = por %p116, %p117
      %p119 = scmp.ne.s32.totalorder %s111, %s114
      %p120 = scmp.eq.s32.totalorder %s33, 0
      %p121 = por %p119, %p120
      %p122 = scmp.ne.s32.totalorder %s111, %s114
      %p123 = scmp.eq.s32.totalorder %s38, 3
      %p124 = por %p122, %p123
      %p125 = scmp.ne.s32.totalorder %s114, %s115
      %p126 = scmp.eq.s32.totalorder %s38, 0
      %p127 = por %p125, %p126
      %p128 = scmp.ne.s32.totalorder %s114, %s115
      %p129 = scmp.eq.s32.totalorder %s39, 3
      %p130 = por %p128, %p129
      %p132 = scmp.ne.s32.totalorder %s115, %s131
      %p133 = scmp.eq.s32.totalorder %s39, 0
      %p134 = por %p132, %p133
      %s135 = ssub.s32 %s40, %s52
      %p136 = scmp.eq.s32.totalorder %s135, 0
      %s138 = sadd.s32 %s137, 1
      %s139 = scalar_select %p136, %s137, %s138
      %p142 = pneg %p136
      %p143 = scmp.eq.s32.totalorder %s33, 3
      %p144 = por %p142, %p143
      %p145 = scmp.ne.s32.totalorder %s137, %s140
      %p146 = scmp.eq.s32.totalorder %s33, 0
      %p147 = por %p145, %p146
      %p148 = scmp.ne.s32.totalorder %s137, %s140
      %p149 = scmp.eq.s32.totalorder %s38, 3
      %p150 = por %p148, %p149
      %p151 = scmp.ne.s32.totalorder %s140, %s141
      %p152 = scmp.eq.s32.totalorder %s38, 0
      %p153 = por %p151, %p152
      %p154 = scmp.ne.s32.totalorder %s140, %s141
      %p155 = scmp.eq.s32.totalorder %s39, 3
      %p156 = por %p154, %p155
      %p158 = scmp.ne.s32.totalorder %s141, %s157
      %p159 = scmp.eq.s32.totalorder %s39, 0
      %p160 = por %p158, %p159
      %s161 = ssub.s32 %s40, %s52
      %p162 = scmp.eq.s32.totalorder %s161, 0
      %s164 = sadd.s32 %s163, 1
      %s165 = scalar_select %p162, %s163, %s164
      %p168 = pneg %p162
      %p169 = scmp.eq.s32.totalorder %s33, 3
      %p170 = por %p168, %p169
      %p171 = scmp.ne.s32.totalorder %s163, %s166
      %p172 = scmp.eq.s32.totalorder %s33, 0
      %p173 = por %p171, %p172
      %p174 = scmp.ne.s32.totalorder %s163, %s166
      %p175 = scmp.eq.s32.totalorder %s38, 3
      %p176 = por %p174, %p175
      %p177 = scmp.ne.s32.totalorder %s166, %s167
      %p178 = scmp.eq.s32.totalorder %s38, 0
      %p179 = por %p177, %p178
      %p180 = scmp.ne.s32.totalorder %s166, %s167
      %p181 = scmp.eq.s32.totalorder %s39, 3
      %p182 = por %p180, %p181
      %p184 = scmp.ne.s32.totalorder %s167, %s183
      %p185 = scmp.eq.s32.totalorder %s39, 0
      %p186 = por %p184, %p185
      %s188 = sadd.s32 %s187, 1
      %p191 = scmp.eq.s32.totalorder %s33, 3
      %p192 = scmp.ne.s32.totalorder %s187, %s189
      %p193 = scmp.eq.s32.totalorder %s33, 0
      %p194 = por %p192, %p193
      %p195 = scmp.ne.s32.totalorder %s187, %s189
      %p196 = scmp.eq.s32.totalorder %s38, 3
      %p197 = por %p195, %p196
      %p198 = scmp.ne.s32.totalorder %s189, %s190
      %p199 = scmp.eq.s32.totalorder %s38, 0
      %p200 = por %p198, %p199
      %p201 = scmp.ne.s32.totalorder %s189, %s190
      %p202 = scmp.eq.s32.totalorder %s39, 3
      %p203 = por %p201, %p202
      %p205 = scmp.ne.s32.totalorder %s190, %s204
      %p206 = scmp.eq.s32.totalorder %s39, 0
      %p207 = por %p205, %p206
      %s209 = sadd.s32 %s208, 1
      %p212 = scmp.eq.s32.totalorder %s33, 3
      %p213 = scmp.ne.s32.totalorder %s208, %s210
      %p214 = scmp.eq.s32.totalorder %s33, 0
      %p215 = por %p213, %p214
      %p216 = scmp.ne.s32.totalorder %s208, %s210
      %p217 = scmp.eq.s32.totalorder %s38, 3
      %p218 = por %p216, %p217
      %p219 = scmp.ne.s32.totalorder %s210, %s211
      %p220 = scmp.eq.s32.totalorder %s38, 0
      %p221 = por %p219, %p220
      %p222 = scmp.ne.s32.totalorder %s210, %s211
      %p223 = scmp.eq.s32.totalorder %s39, 3
      %p224 = por %p222, %p223
      %p226 = scmp.ne.s32.totalorder %s211, %s225
      %p227 = scmp.eq.s32.totalorder %s39, 0
      %p228 = por %p226, %p227
      %s230 = sadd.s32 %s229, 1
      %p233 = scmp.eq.s32.totalorder %s33, 3
      %p234 = scmp.ne.s32.totalorder %s229, %s231
      %p235 = scmp.eq.s32.totalorder %s33, 0
      %p236 = por %p234, %p235
      %p237 = scmp.ne.s32.totalorder %s229, %s231
      %p238 = scmp.eq.s32.totalorder %s38, 3
      %p239 = por %p237, %p238
      %p240 = scmp.ne.s32.totalorder %s231, %s232
      %p241 = scmp.eq.s32.totalorder %s38, 0
      %p242 = por %p240, %p241
      %p243 = scmp.ne.s32.totalorder %s231, %s232
      %p244 = scmp.eq.s32.totalorder %s39, 3
      %p245 = por %p243, %p244
      %p247 = scmp.ne.s32.totalorder %s232, %s246
      %p248 = scmp.eq.s32.totalorder %s39, 0
      %p249 = por %p247, %p248
      %s251 = sadd.s32 %s250, 1
      %p254 = scmp.eq.s32.totalorder %s33, 3
      %p255 = scmp.ne.s32.totalorder %s250, %s252
      %p256 = scmp.eq.s32.totalorder %s33, 0
      %p257 = por %p255, %p256
      %p258 = scmp.ne.s32.totalorder %s250, %s252
      %p259 = scmp.eq.s32.totalorder %s38, 3
      %p260 = por %p258, %p259
      %p261 = scmp.ne.s32.totalorder %s252, %s253
      %p262 = scmp.eq.s32.totalorder %s38, 0
      %p263 = por %p261, %p262
      %p264 = scmp.ne.s32.totalorder %s252, %s253
      %p265 = scmp.eq.s32.totalorder %s39, 3
      %p266 = por %p264, %p265
      %p268 = scmp.ne.s32.totalorder %s253, %s267
      %p269 = scmp.eq.s32.totalorder %s39, 0
      %p270 = por %p268, %p269
      %s272 = sadd.s32 %s271, 1
      %p275 = scmp.eq.s32.totalorder %s33, 3
      %p276 = scmp.ne.s32.totalorder %s271, %s273
      %p277 = scmp.eq.s32.totalorder %s33, 0
      %p278 = por %p276, %p277
      %p279 = scmp.ne.s32.totalorder %s271, %s273
      %p280 = scmp.eq.s32.totalorder %s38, 3
      %p281 = por %p279, %p280
      %p282 = scmp.ne.s32.totalorder %s273, %s274
      %p283 = scmp.eq.s32.totalorder %s38, 0
      %p284 = por %p282, %p283
      %p285 = scmp.ne.s32.totalorder %s273, %s274
      %p286 = scmp.eq.s32.totalorder %s39, 3
      %p287 = por %p285, %p286
      %p289 = scmp.ne.s32.totalorder %s274, %s288
      %p290 = scmp.eq.s32.totalorder %s39, 0
      %p291 = por %p289, %p290
      %s293 = sadd.s32 %s292, 1
      %p296 = scmp.eq.s32.totalorder %s33, 3
      %p297 = scmp.ne.s32.totalorder %s292, %s294
      %p298 = scmp.eq.s32.totalorder %s33, 0
      %p299 = por %p297, %p298
      %p300 = scmp.ne.s32.totalorder %s292, %s294
      %p301 = scmp.eq.s32.totalorder %s38, 3
      %p302 = por %p300, %p301
      %p303 = scmp.ne.s32.totalorder %s294, %s295
      %p304 = scmp.eq.s32.totalorder %s38, 0
      %p305 = por %p303, %p304
      %p306 = scmp.ne.s32.totalorder %s294, %s295
      %p307 = scmp.eq.s32.totalorder %s39, 3
      %p308 = por %p306, %p307
      %p310 = scmp.ne.s32.totalorder %s295, %s309
      %p311 = scmp.eq.s32.totalorder %s39, 0
      %p312 = por %p310, %p311
      %s314 = sadd.s32 %s313, 1
      %p317 = scmp.eq.s32.totalorder %s33, 3
      %p318 = scmp.ne.s32.totalorder %s313, %s315
      %p319 = scmp.eq.s32.totalorder %s33, 0
      %p320 = por %p318, %p319
      %p321 = scmp.ne.s32.totalorder %s313, %s315
      %p322 = scmp.eq.s32.totalorder %s38, 3
      %p323 = por %p321, %p322
      %p324 = scmp.ne.s32.totalorder %s315, %s316
      %p325 = scmp.eq.s32.totalorder %s38, 0
      %p326 = por %p324, %p325
      %p327 = scmp.ne.s32.totalorder %s315, %s316
      %p328 = scmp.eq.s32.totalorder %s39, 3
      %p329 = por %p327, %p328
      %p331 = scmp.ne.s32.totalorder %s316, %s330
      %p332 = scmp.eq.s32.totalorder %s39, 0
      %p333 = por %p331, %p332
      %s335 = sadd.s32 %s334, 1
      %p338 = scmp.eq.s32.totalorder %s33, 3
      %p339 = scmp.ne.s32.totalorder %s334, %s336
      %p340 = scmp.eq.s32.totalorder %s33, 0
      %p341 = por %p339, %p340
      %p342 = scmp.ne.s32.totalorder %s334, %s336
      %p343 = scmp.eq.s32.totalorder %s38, 3
      %p344 = por %p342, %p343
      %p345 = scmp.ne.s32.totalorder %s336, %s337
      %p346 = scmp.eq.s32.totalorder %s38, 0
      %p347 = por %p345, %p346
      %p348 = scmp.ne.s32.totalorder %s336, %s337
      %p349 = scmp.eq.s32.totalorder %s39, 3
      %p350 = por %p348, %p349
      %p352 = scmp.ne.s32.totalorder %s337, %s351
      %p353 = scmp.eq.s32.totalorder %s39, 0
      %p354 = por %p352, %p353
      %s356 = sadd.s32 %s355, 1
      %p359 = scmp.eq.s32.totalorder %s33, 3
      %p360 = scmp.ne.s32.totalorder %s355, %s357
      %p361 = scmp.eq.s32.totalorder %s33, 0
      %p362 = por %p360, %p361
      %p363 = scmp.ne.s32.totalorder %s355, %s357
      %p364 = scmp.eq.s32.totalorder %s38, 3
      %p365 = por %p363, %p364
      %p366 = scmp.ne.s32.totalorder %s357, %s358
      %p367 = scmp.eq.s32.totalorder %s38, 0
      %p368 = por %p366, %p367
      %p369 = scmp.ne.s32.totalorder %s357, %s358
      %p370 = scmp.eq.s32.totalorder %s39, 3
      %p371 = por %p369, %p370
      %p373 = scmp.ne.s32.totalorder %s358, %s372
      %p374 = scmp.eq.s32.totalorder %s39, 0
      %p375 = por %p373, %p374
      %s377 = sadd.s32 %s376, 1
      %p380 = scmp.eq.s32.totalorder %s33, 3
      %p381 = scmp.ne.s32.totalorder %s376, %s378
      %p382 = scmp.eq.s32.totalorder %s33, 0
      %p383 = por %p381, %p382
      %p384 = scmp.ne.s32.totalorder %s376, %s378
      %p385 = scmp.eq.s32.totalorder %s38, 3
      %p386 = por %p384, %p385
      %p387 = scmp.ne.s32.totalorder %s378, %s379
      %p388 = scmp.eq.s32.totalorder %s38, 0
      %p389 = por %p387, %p388
      %p390 = scmp.ne.s32.totalorder %s378, %s379
      %p391 = scmp.eq.s32.totalorder %s39, 3
      %p392 = por %p390, %p391
      %p394 = scmp.ne.s32.totalorder %s379, %s393
      %p395 = scmp.eq.s32.totalorder %s39, 0
      %p396 = por %p394, %p395
      %s397 = ssub.s32 %s40, %s52
      %s398 = ssub.s32 %s41, %s48
      %s399 = sor.u32 %s397, %s398
      %p400 = scmp.eq.s32.totalorder %s399, 0
      %s402 = sadd.s32 %s401, 1
      %s403 = scalar_select %p400, %s401, %s402
      %p406 = pneg %p400
      %p407 = scmp.eq.s32.totalorder %s33, 3
      %p408 = por %p406, %p407
      %p409 = scmp.ne.s32.totalorder %s401, %s404
      %p410 = scmp.eq.s32.totalorder %s33, 0
      %p411 = por %p409, %p410
      %p412 = scmp.ne.s32.totalorder %s401, %s404
      %p413 = scmp.eq.s32.totalorder %s38, 3
      %p414 = por %p412, %p413
      %p415 = scmp.ne.s32.totalorder %s404, %s405
      %p416 = scmp.eq.s32.totalorder %s38, 0
      %p417 = por %p415, %p416
      %p418 = scmp.ne.s32.totalorder %s404, %s405
      %p419 = scmp.eq.s32.totalorder %s39, 3
      %p420 = por %p418, %p419
      %p422 = scmp.ne.s32.totalorder %s405, %s421
      %p423 = scmp.eq.s32.totalorder %s39, 0
      %p424 = por %p422, %p423
      %p425 = scmp.le.s32.totalorder 1, %s33
      %p426 = scmp.lt.s32.totalorder %s33, 5
      %p427 = pnand %p425, %p426
      %p428 = pneg %p427
      // Predicated region
      $region9: #{tpu_custom_call.1} parent=5 // pred_check
        _
      $region10: #{tpu_custom_call.1} parent=5 // pred_check_branch
        %430 = sbr.rel (%p427) target = $region12
      $region11: #{tpu_custom_call.1} parent=5 // pred_region
        %s431 = ssub.s32 %s33, 1
        // Predicated region
        $region13: #{tpu_custom_call.1} parent=11 // pred_check
          %p432 = pneg %p127
        $region14: #{tpu_custom_call.1} parent=11 // pred_check_branch
          %434 = sbr.rel (%p432) target = $region16
        $region15: #{tpu_custom_call.1} parent=11 // pred_region
          %436 = vsyncadd [#allocation6], 0
          %s437 = smul.addr %s42, 64
          %s438 = smul.addr %s437, 4
          %s439 = scalar_lea.hbm %s2, %s438
          %s440 = sshll.u32 %s439, 4
          %s441 = int_to_ptr.hbm [resolvable:$true] %s440
          %s442 = sshll.u32 [#allocation7], 4
          %s443 = int_to_ptr.vmem [resolvable:$true] %s442
          %448 = dma.hbm_to_vmem [thread:$0]  %s441, 4096, %s443, [#allocation6], 128, 128, 8
        $region16: #{tpu_custom_call.1} parent=11 // pred_fallthru
          _
        // Predicated region
        $region17: #{tpu_custom_call.1} parent=11 // pred_check
          %p449 = pneg %p153
        $region18: #{tpu_custom_call.1} parent=11 // pred_check_branch
          %451 = sbr.rel (%p449) target = $region20
        $region19: #{tpu_custom_call.1} parent=11 // pred_region
          %453 = vsyncadd [#allocation9], 0
          %s454 = smul.addr %s42, 64
          %s455 = smul.addr %s454, 4
          %s456 = scalar_lea.hbm %s3, %s455
          %s457 = sshll.u32 %s456, 4
          %s458 = int_to_ptr.hbm [resolvable:$true] %s457
          %s459 = sshll.u32 [#allocation8], 4
          %s460 = int_to_ptr.vmem [resolvable:$true] %s459
          %465 = dma.hbm_to_vmem [thread:$0]  %s458, 4096, %s460, [#allocation9], 64, 64, 4
        $region20: #{tpu_custom_call.1} parent=11 // pred_fallthru
          _
        // Predicated region
        $region21: #{tpu_custom_call.1} parent=11 // pred_check
          %p466 = pneg %p179
        $region22: #{tpu_custom_call.1} parent=11 // pred_check_branch
          %468 = sbr.rel (%p466) target = $region24
        $region23: #{tpu_custom_call.1} parent=11 // pred_region
          %470 = vsyncadd [#allocation9], 0
          %s471 = smul.addr %s42, 4
          %s472 = scalar_lea.hbm %s4, %s471
          %s473 = sshll.u32 %s472, 4
          %s474 = int_to_ptr.hbm [resolvable:$true] %s473
          %s475 = sshll.u32 [#allocation10], 4
          %s476 = int_to_ptr.vmem [resolvable:$true] %s475
          %481 = dma.hbm_to_vmem [thread:$0]  %s474, 64, %s476, [#allocation9], 32, 32, 2
        $region24: #{tpu_custom_call.1} parent=11 // pred_fallthru
          _
        // Predicated region
        $region25: #{tpu_custom_call.1} parent=11 // pred_check
          %p482 = pneg %p200
        $region26: #{tpu_custom_call.1} parent=11 // pred_check_branch
          %484 = sbr.rel (%p482) target = $region28
        $region27: #{tpu_custom_call.1} parent=11 // pred_region
          %486 = vsyncadd [#allocation12], 0
          %s487 = sshll.u32 %s5, 4
          %s488 = int_to_ptr.hbm [resolvable:$true] %s487
          %s489 = sshll.u32 [#allocation11], 4
          %s490 = int_to_ptr.vmem [resolvable:$true] %s489
          %495 = dma.hbm_to_vmem [thread:$0]  %s488, 1024, %s490, [#allocation12], 64, 64, 4
        $region28: #{tpu_custom_call.1} parent=11 // pred_fallthru
          _
        // Predicated region
        $region29: #{tpu_custom_call.1} parent=11 // pred_check
          %p496 = pneg %p221
        $region30: #{tpu_custom_call.1} parent=11 // pred_check_branch
          %498 = sbr.rel (%p496) target = $region32
        $region31: #{tpu_custom_call.1} parent=11 // pred_region
          %500 = vsyncadd [#allocation12], 0
          %s501 = sshll.u32 %s6, 4
          %s502 = int_to_ptr.hbm [resolvable:$true] %s501
          %s503 = sshll.u32 [#allocation13], 4
          %s504 = int_to_ptr.vmem [resolvable:$true] %s503
          %509 = dma.hbm_to_vmem [thread:$0]  %s502, 1024, %s504, [#allocation12], 64, 64, 4
        $region32: #{tpu_custom_call.1} parent=11 // pred_fallthru
          _
        // Predicated region
        $region33: #{tpu_custom_call.1} parent=11 // pred_check
          %p510 = pneg %p242
        $region34: #{tpu_custom_call.1} parent=11 // pred_check_branch
          %512 = sbr.rel (%p510) target = $region36
        $region35: #{tpu_custom_call.1} parent=11 // pred_region
          _
        $region36: #{tpu_custom_call.1} parent=11 // pred_fallthru
          _
        // Predicated region
        $region37: #{tpu_custom_call.1} parent=11 // pred_check
          %p513 = pneg %p263
        $region38: #{tpu_custom_call.1} parent=11 // pred_check_branch
          %515 = sbr.rel (%p513) target = $region40
        $region39: #{tpu_custom_call.1} parent=11 // pred_region
          _
        $region40: #{tpu_custom_call.1} parent=11 // pred_fallthru
          _
        // Predicated region
        $region41: #{tpu_custom_call.1} parent=11 // pred_check
          %p516 = pneg %p284
        $region42: #{tpu_custom_call.1} parent=11 // pred_check_branch
          %518 = sbr.rel (%p516) target = $region44
        $region43: #{tpu_custom_call.1} parent=11 // pred_region
          %520 = vsyncadd [#allocation15], 0
          %s521 = sshll.u32 %s9, 4
          %s522 = int_to_ptr.hbm [resolvable:$true] %s521
          %s523 = sshll.u32 [#allocation14], 4
          %s524 = int_to_ptr.vmem [resolvable:$true] %s523
          %529 = dma.hbm_to_vmem [thread:$0]  %s522, 2048, %s524, [#allocation15], 128, 128, 8
        $region44: #{tpu_custom_call.1} parent=11 // pred_fallthru
          _
        // Predicated region
        $region45: #{tpu_custom_call.1} parent=11 // pred_check
          %p530 = pneg %p305
        $region46: #{tpu_custom_call.1} parent=11 // pred_check_branch
          %532 = sbr.rel (%p530) target = $region48
        $region47: #{tpu_custom_call.1} parent=11 // pred_region
          _
        $region48: #{tpu_custom_call.1} parent=11 // pred_fallthru
          _
        // Predicated region
        $region49: #{tpu_custom_call.1} parent=11 // pred_check
          %p533 = pneg %p326
        $region50: #{tpu_custom_call.1} parent=11 // pred_check_branch
          %535 = sbr.rel (%p533) target = $region52
        $region51: #{tpu_custom_call.1} parent=11 // pred_region
          %537 = vsyncadd [#allocation15], 0
          %s538 = sshll.u32 %s11, 4
          %s539 = int_to_ptr.hbm [resolvable:$true] %s538
          %s540 = sshll.u32 [#allocation16], 4
          %s541 = int_to_ptr.vmem [resolvable:$true] %s540
          %546 = dma.hbm_to_vmem [thread:$0]  %s539, 2048, %s541, [#allocation15], 64, 64, 4
        $region52: #{tpu_custom_call.1} parent=11 // pred_fallthru
          _
        // Predicated region
        $region53: #{tpu_custom_call.1} parent=11 // pred_check
          %p547 = pneg %p347
        $region54: #{tpu_custom_call.1} parent=11 // pred_check_branch
          %549 = sbr.rel (%p547) target = $region56
        $region55: #{tpu_custom_call.1} parent=11 // pred_region
          _
        $region56: #{tpu_custom_call.1} parent=11 // pred_fallthru
          _
        // Predicated region
        $region57: #{tpu_custom_call.1} parent=11 // pred_check
          %p550 = pneg %p368
        $region58: #{tpu_custom_call.1} parent=11 // pred_check_branch
          %552 = sbr.rel (%p550) target = $region60
        $region59: #{tpu_custom_call.1} parent=11 // pred_region
          _
        $region60: #{tpu_custom_call.1} parent=11 // pred_fallthru
          _
        // Predicated region
        $region61: #{tpu_custom_call.1} parent=11 // pred_check
          %p553 = pneg %p389
        $region62: #{tpu_custom_call.1} parent=11 // pred_check_branch
          %555 = sbr.rel (%p553) target = $region64
        $region63: #{tpu_custom_call.1} parent=11 // pred_region
          _
        $region64: #{tpu_custom_call.1} parent=11 // pred_fallthru
          _
      $region12: #{tpu_custom_call.1} parent=5 // pred_fallthru
        _
      %p556 = scmp.lt.s32.totalorder %s33, 4
      // Predicated region
      $region65: #{tpu_custom_call.1} parent=5 // pred_check
        %p557 = pneg %p556
      $region66: #{tpu_custom_call.1} parent=5 // pred_check_branch
        %559 = sbr.rel (%p557) target = $region68
      $region67: #{tpu_custom_call.1} parent=5 // pred_region
        // Predicated region
        $region69: #{tpu_custom_call.1} parent=67 // pred_check
          %p560 = pneg %p67
        $region70: #{tpu_custom_call.1} parent=67 // pred_check_branch
          %562 = sbr.rel (%p560) target = $region72
        $region71: #{tpu_custom_call.1} parent=67 // pred_region
          %s563 = sand.u32 %s57, 1
          %s564 = scalar_lea.sflag [#allocation3], %s563
          %s565 = sand.u32 %s57, 1
          %s566 = smul.addr %s565, 128
          %s567 = scalar_lea.vmem [#allocation2], %s566
          %s568 = smul.u32 16, %s41
          %570 = vsyncadd %s564, 0
          %s571 = smul.addr %s40, 32
          %s572 = sadd.s32 %s568, %s571
          %s573 = smul.addr %s572, 8
          %s574 = scalar_lea.hbm %s0, %s573
          %s575 = sshll.u32 %s574, 4
          %s576 = int_to_ptr.hbm [resolvable:$true] %s575
          %s577 = sshll.u32 %s567, 4
          %s578 = int_to_ptr.vmem [resolvable:$true] %s577
          %583 = dma.hbm_to_vmem [thread:$0]  %s576, 2048, %s578, %s564, 128, 128, 8
        $region72: #{tpu_custom_call.1} parent=67 // pred_fallthru
          _
        // Predicated region
        $region73: #{tpu_custom_call.1} parent=67 // pred_check
          %p584 = pneg %p95
        $region74: #{tpu_custom_call.1} parent=67 // pred_check_branch
          %586 = sbr.rel (%p584) target = $region76
        $region75: #{tpu_custom_call.1} parent=67 // pred_region
          %s587 = sand.u32 %s33, 1
          %s588 = scalar_lea.sflag [#allocation6], %s587
          %s589 = sand.u32 %s85, 1
          %s590 = smul.addr %s589, 128
          %s591 = scalar_lea.vmem [#allocation5], %s590
          %s592 = smul.u32 16, %s41
          %594 = vsyncadd %s588, 0
          %s595 = smul.addr %s40, 32
          %s596 = sadd.s32 %s592, %s595
          %s597 = smul.addr %s596, 8
          %s598 = scalar_lea.hbm %s1, %s597
          %s599 = sshll.u32 %s598, 4
          %s600 = int_to_ptr.hbm [resolvable:$true] %s599
          %s601 = sshll.u32 %s591, 4
          %s602 = int_to_ptr.vmem [resolvable:$true] %s601
          %607 = dma.hbm_to_vmem [thread:$0]  %s600, 2048, %s602, %s588, 128, 128, 8
        $region76: #{tpu_custom_call.1} parent=67 // pred_fallthru
          _
      $region68: #{tpu_custom_call.1} parent=5 // pred_fallthru
        _
      %p608 = scmp.le.s32.totalorder 1, %s33
      %p609 = scmp.lt.s32.totalorder %s33, 5
      %p610 = pnand %p608, %p609
      %p611 = pneg %p610
      // Predicated region
      $region77: #{tpu_custom_call.1} parent=5 // pred_check
        _
      $region78: #{tpu_custom_call.1} parent=5 // pred_check_branch
        %613 = sbr.rel (%p610) target = $region80
      $region79: #{tpu_custom_call.1} parent=5 // pred_region
        %s614 = ssub.s32 %s33, 1
        %s615 = sand.u32 %s60, 1
        %s616 = scalar_lea.sflag [#allocation3], %s615
        %s617 = sand.u32 %s60, 1
        %s618 = smul.addr %s617, 128
        %s619 = scalar_lea.vmem [#allocation2], %s618
        // Predicated region
        $region81: #{tpu_custom_call.1} parent=79 // pred_check
          %p620 = pneg %p73
        $region82: #{tpu_custom_call.1} parent=79 // pred_check_branch
          %622 = sbr.rel (%p620) target = $region84
        $region83: #{tpu_custom_call.1} parent=79 // pred_region
          %624 = dma.done %s616, 2048
        $region84: #{tpu_custom_call.1} parent=79 // pred_fallthru
          _
        %s625 = sand.u32 %s38, 1
        %s626 = scalar_lea.sflag [#allocation6], %s625
        %s627 = sand.u32 %s88, 1
        %s628 = smul.addr %s627, 128
        %s629 = scalar_lea.vmem [#allocation5], %s628
        // Predicated region
        $region85: #{tpu_custom_call.1} parent=79 // pred_check
          %p630 = pneg %p101
        $region86: #{tpu_custom_call.1} parent=79 // pred_check_branch
          %632 = sbr.rel (%p630) target = $region88
        $region87: #{tpu_custom_call.1} parent=79 // pred_region
          %634 = dma.done %s626, 2048
        $region88: #{tpu_custom_call.1} parent=79 // pred_fallthru
          _
        // Predicated region
        $region89: #{tpu_custom_call.1} parent=79 // pred_check
          %p635 = pneg %p127
        $region90: #{tpu_custom_call.1} parent=79 // pred_check_branch
          %637 = sbr.rel (%p635) target = $region92
        $region91: #{tpu_custom_call.1} parent=79 // pred_region
          %639 = dma.done [#allocation6], 4096
        $region92: #{tpu_custom_call.1} parent=79 // pred_fallthru
          _
        // Predicated region
        $region93: #{tpu_custom_call.1} parent=79 // pred_check
          %p640 = pneg %p153
        $region94: #{tpu_custom_call.1} parent=79 // pred_check_branch
          %642 = sbr.rel (%p640) target = $region96
        $region95: #{tpu_custom_call.1} parent=79 // pred_region
          %644 = dma.done [#allocation9], 4096
        $region96: #{tpu_custom_call.1} parent=79 // pred_fallthru
          _
        // Predicated region
        $region97: #{tpu_custom_call.1} parent=79 // pred_check
          %p645 = pneg %p179
        $region98: #{tpu_custom_call.1} parent=79 // pred_check_branch
          %647 = sbr.rel (%p645) target = $region100
        $region99: #{tpu_custom_call.1} parent=79 // pred_region
          %649 = dma.done [#allocation9], 64
        $region100: #{tpu_custom_call.1} parent=79 // pred_fallthru
          _
        // Predicated region
        $region101: #{tpu_custom_call.1} parent=79 // pred_check
          %p650 = pneg %p200
        $region102: #{tpu_custom_call.1} parent=79 // pred_check_branch
          %652 = sbr.rel (%p650) target = $region104
        $region103: #{tpu_custom_call.1} parent=79 // pred_region
          %654 = dma.done [#allocation12], 1024
        $region104: #{tpu_custom_call.1} parent=79 // pred_fallthru
          _
        // Predicated region
        $region105: #{tpu_custom_call.1} parent=79 // pred_check
          %p655 = pneg %p221
        $region106: #{tpu_custom_call.1} parent=79 // pred_check_branch
          %657 = sbr.rel (%p655) target = $region108
        $region107: #{tpu_custom_call.1} parent=79 // pred_region
          %659 = dma.done [#allocation12], 1024
        $region108: #{tpu_custom_call.1} parent=79 // pred_fallthru
          _
        // Predicated region
        $region109: #{tpu_custom_call.1} parent=79 // pred_check
          %p660 = pneg %p284
        $region110: #{tpu_custom_call.1} parent=79 // pred_check_branch
          %662 = sbr.rel (%p660) target = $region112
        $region111: #{tpu_custom_call.1} parent=79 // pred_region
          %664 = dma.done [#allocation15], 2048
        $region112: #{tpu_custom_call.1} parent=79 // pred_fallthru
          _
        // Predicated region
        $region113: #{tpu_custom_call.1} parent=79 // pred_check
          %p665 = pneg %p326
        $region114: #{tpu_custom_call.1} parent=79 // pred_check_branch
          %667 = sbr.rel (%p665) target = $region116
        $region115: #{tpu_custom_call.1} parent=79 // pred_region
          %669 = dma.done [#allocation15], 2048
        $region116: #{tpu_custom_call.1} parent=79 // pred_fallthru
          _
        %s670 = sand.u32 %s60, 1
        %s671 = scalar_lea.sflag [#allocation3], %s670
        %s672 = sand.u32 %s60, 1
        %s673 = smul.addr %s672, 128
        %s674 = scalar_lea.vmem [#allocation2], %s673
        %p675 = pneg %p73
        %p676 = pneg %p70
        %s677 = sand.u32 %s38, 1
        %s678 = scalar_lea.sflag [#allocation6], %s677
        %s679 = sand.u32 %s88, 1
        %s680 = smul.addr %s679, 128
        %s681 = scalar_lea.vmem [#allocation5], %s680
        %p682 = pneg %p101
        %p683 = pneg %p98
        %p684 = pneg %p127
        %p685 = pneg %p124
        %p686 = pneg %p153
        %p687 = pneg %p150
        %p688 = pneg %p179
        %p689 = pneg %p176
        %p690 = pneg %p200
        %p691 = pneg %p197
        %p692 = pneg %p221
        %p693 = pneg %p218
        %p694 = pneg %p242
        %p695 = pneg %p239
        %p696 = pneg %p263
        %p697 = pneg %p260
        %p698 = pneg %p284
        %p699 = pneg %p281
        %p700 = pneg %p305
        %p701 = pneg %p302
        %p702 = pneg %p326
        %p703 = pneg %p323
        %p704 = pneg %p347
        %p705 = pneg %p344
        %p706 = pneg %p368
        %p707 = pneg %p365
        %p708 = pneg %p389
        %p709 = pneg %p386
        %p710 = pneg %p417
        %p711 = pneg %p414
        %s712 = sand.u32 %s404, 1
        %s713 = scalar_lea.sflag [#allocation4], %s712
        %s714 = sand.u32 %s404, 1
        %s715 = smul.addr %s714, 128
        %s716 = scalar_lea.vmem [#allocation17], %s715
        %s717 = smul.u32 16, %s43
        %s718 = smul.u32 16, %s43
        %s719 = smul.u32 16, %s43
        %v720 = vld [vmem:[%s619] sm:$0xff]
        %v721 = vld [vmem:[%s619 + $0x8] sm:$0xff]
        %v722 = vld [vmem:[%s619 + $0x10] sm:$0xff]
        %v723 = vld [vmem:[%s619 + $0x18] sm:$0xff]
        %v724 = vld [vmem:[%s619 + $0x20] sm:$0xff]
        %v725 = vld [vmem:[%s619 + $0x28] sm:$0xff]
        %v726 = vld [vmem:[%s619 + $0x30] sm:$0xff]
        %v727 = vld [vmem:[%s619 + $0x38] sm:$0xff]
        %v728 = vld [vmem:[%s619 + $0x40] sm:$0xff]
        %v729 = vld [vmem:[%s619 + $0x48] sm:$0xff]
        %v730 = vld [vmem:[%s619 + $0x50] sm:$0xff]
        %v731 = vld [vmem:[%s619 + $0x58] sm:$0xff]
        %v732 = vld [vmem:[%s619 + $0x60] sm:$0xff]
        %v733 = vld [vmem:[%s619 + $0x68] sm:$0xff]
        %v734 = vld [vmem:[%s619 + $0x70] sm:$0xff]
        %v735 = vld [vmem:[%s619 + $0x78] sm:$0xff]
        loop: start=0, step=1, limit=2
        $region117: #{tpu_custom_call.1} parent=79 // loop_pre_header
          _
        $region118: #{tpu_custom_call.1} parent=79 // loop_header
          %s737 = sphi 0, %s741
          %p738 = scmp.ge.s32.totalorder %s737, 2
          %v742 = vphi %v720, %v3812
          %v743 = vphi %v721, %v3813
          %v744 = vphi %v722, %v3814
          %v745 = vphi %v723, %v3815
          %v746 = vphi %v724, %v3816
          %v747 = vphi %v725, %v3817
          %v748 = vphi %v726, %v3818
          %v749 = vphi %v727, %v3819
          %v750 = vphi %v728, %v3820
          %v751 = vphi %v729, %v3821
          %v752 = vphi %v730, %v3822
          %v753 = vphi %v731, %v3823
          %v754 = vphi %v732, %v3824
          %v755 = vphi %v733, %v3825
          %v756 = vphi %v734, %v3826
          %v757 = vphi %v735, %v3827
        $region119: #{tpu_custom_call.1} parent=79 // loop_header_branch
          %740 = sbr.rel (%p738) target = $region123
        $region120: #{tpu_custom_call.1} parent=79 // loop_body
          %v758 = vld [vmem:[%s629] sm:$0xff]
          %v759 = vld [vmem:[%s629 + $0x8] sm:$0xff]
          %v760 = vld [vmem:[%s629 + $0x10] sm:$0xff]
          %v761 = vld [vmem:[%s629 + $0x18] sm:$0xff]
          %v762 = vld [vmem:[%s629 + $0x20] sm:$0xff]
          %v763 = vld [vmem:[%s629 + $0x28] sm:$0xff]
          %v764 = vld [vmem:[%s629 + $0x30] sm:$0xff]
          %v765 = vld [vmem:[%s629 + $0x38] sm:$0xff]
          %v766 = vld [vmem:[%s629 + $0x40] sm:$0xff]
          %v767 = vld [vmem:[%s629 + $0x48] sm:$0xff]
          %v768 = vld [vmem:[%s629 + $0x50] sm:$0xff]
          %v769 = vld [vmem:[%s629 + $0x58] sm:$0xff]
          %v770 = vld [vmem:[%s629 + $0x60] sm:$0xff]
          %v771 = vld [vmem:[%s629 + $0x68] sm:$0xff]
          %v772 = vld [vmem:[%s629 + $0x70] sm:$0xff]
          %v773 = vld [vmem:[%s629 + $0x78] sm:$0xff]
          %v774 = vadd.f32 %v742, %v758
          %v775 = vadd.f32 %v743, %v759
          %v776 = vadd.f32 %v744, %v760
          %v777 = vadd.f32 %v745, %v761
          %v778 = vadd.f32 %v746, %v762
          %v779 = vadd.f32 %v747, %v763
          %v780 = vadd.f32 %v748, %v764
          %v781 = vadd.f32 %v749, %v765
          %v782 = vadd.f32 %v750, %v766
          %v783 = vadd.f32 %v751, %v767
          %v784 = vadd.f32 %v752, %v768
          %v785 = vadd.f32 %v753, %v769
          %v786 = vadd.f32 %v754, %v770
          %v787 = vadd.f32 %v755, %v771
          %v788 = vadd.f32 %v756, %v772
          %v789 = vadd.f32 %v757, %v773
          %v790 = vpack.c.bf16 %v775, %v774
          %v791 = vpack.c.bf16 %v777, %v776
          %v792 = vpack.c.bf16 %v779, %v778
          %v793 = vpack.c.bf16 %v781, %v780
          %v794 = vpack.c.bf16 %v783, %v782
          %v795 = vpack.c.bf16 %v785, %v784
          %v796 = vpack.c.bf16 %v787, %v786
          %v797 = vpack.c.bf16 %v789, %v788
          %v798 = vld [vmem:[#allocation11] sm:$0xf]
          %v799 = vld [vmem:[#allocation11 + $0x4] sm:$0xf]
          %v800 = vld [vmem:[#allocation11 + $0x8] sm:$0xf]
          %v801 = vld [vmem:[#allocation11 + $0xc] sm:$0xf]
          %v802 = vld [vmem:[#allocation11 + $0x10] sm:$0xf]
          %v803 = vld [vmem:[#allocation11 + $0x14] sm:$0xf]
          %v804 = vld [vmem:[#allocation11 + $0x18] sm:$0xf]
          %v805 = vld [vmem:[#allocation11 + $0x1c] sm:$0xf]
          %v806 = vld [vmem:[#allocation11 + $0x20] sm:$0xf]
          %v807 = vld [vmem:[#allocation11 + $0x24] sm:$0xf]
          %v808 = vld [vmem:[#allocation11 + $0x28] sm:$0xf]
          %v809 = vld [vmem:[#allocation11 + $0x2c] sm:$0xf]
          %v810 = vld [vmem:[#allocation11 + $0x30] sm:$0xf]
          %v811 = vld [vmem:[#allocation11 + $0x34] sm:$0xf]
          %v812 = vld [vmem:[#allocation11 + $0x38] sm:$0xf]
          %v813 = vld [vmem:[#allocation11 + $0x3c] sm:$0xf]
          %v830 = vunpack.c.l.b16 %v798
          %v831 = vunpack.c.l.b16 %v799
          %v832 = vunpack.c.l.b16 %v800
          %v833 = vunpack.c.l.b16 %v801
          %v834 = vunpack.c.l.b16 %v802
          %v835 = vunpack.c.l.b16 %v803
          %v836 = vunpack.c.l.b16 %v804
          %v837 = vunpack.c.l.b16 %v805
          %v838 = vunpack.c.l.b16 %v806
          %v839 = vunpack.c.l.b16 %v807
          %v840 = vunpack.c.l.b16 %v808
          %v841 = vunpack.c.l.b16 %v809
          %v842 = vunpack.c.l.b16 %v810
          %v843 = vunpack.c.l.b16 %v811
          %v844 = vunpack.c.l.b16 %v812
          %v845 = vunpack.c.l.b16 %v813
          %v846 = vpack.c.b16 %v831, %v830
          %v847 = vpack.c.b16 %v833, %v832
          %v848 = vpack.c.b16 %v835, %v834
          %v849 = vpack.c.b16 %v837, %v836
          %v850 = vpack.c.b16 %v839, %v838
          %v851 = vpack.c.b16 %v841, %v840
          %v852 = vpack.c.b16 %v843, %v842
          %v853 = vpack.c.b16 %v845, %v844
          %862 = vmatpush.bf16.msra.mxu0 %v853
          %863 = vmatpush.bf16.msra.mxu0 %v852
          %864 = vmatpush.bf16.msra.mxu0 %v851
          %865 = vmatpush.bf16.msra.mxu0 %v850
          %866 = vmatpush.bf16.msra.mxu0 %v849
          %867 = vmatpush.bf16.msra.mxu0 %v848
          %868 = vmatpush.bf16.msra.mxu0 %v847
          %869 = vmatpush.bf16.msra.mxu0 %v846
          %870 = vmatmul.bf16.gmra.mxu0 %v790
          %v871 = vpop.f32.mrf.mxu0
          %v872 = vadd.f32 0.0, %v871
          %v873 = vpop.f32.mrf.mxu0
          %v874 = vadd.f32 0.0, %v873
          %875 = vmatmul.bf16.gmra.mxu0 %v791
          %v876 = vpop.f32.mrf.mxu0
          %v877 = vadd.f32 0.0, %v876
          %v878 = vpop.f32.mrf.mxu0
          %v879 = vadd.f32 0.0, %v878
          %880 = vmatmul.bf16.gmra.mxu0 %v792
          %v881 = vpop.f32.mrf.mxu0
          %v882 = vadd.f32 0.0, %v881
          %v883 = vpop.f32.mrf.mxu0
          %v884 = vadd.f32 0.0, %v883
          %885 = vmatmul.bf16.gmra.mxu0 %v793
          %v886 = vpop.f32.mrf.mxu0
          %v887 = vadd.f32 0.0, %v886
          %v888 = vpop.f32.mrf.mxu0
          %v889 = vadd.f32 0.0, %v888
          %890 = vmatmul.bf16.gmra.mxu0 %v794
          %v891 = vpop.f32.mrf.mxu0
          %v892 = vadd.f32 0.0, %v891
          %v893 = vpop.f32.mrf.mxu0
          %v894 = vadd.f32 0.0, %v893
          %895 = vmatmul.bf16.gmra.mxu0 %v795
          %v896 = vpop.f32.mrf.mxu0
          %v897 = vadd.f32 0.0, %v896
          %v898 = vpop.f32.mrf.mxu0
          %v899 = vadd.f32 0.0, %v898
          %900 = vmatmul.bf16.gmra.mxu0 %v796
          %v901 = vpop.f32.mrf.mxu0
          %v902 = vadd.f32 0.0, %v901
          %v903 = vpop.f32.mrf.mxu0
          %v904 = vadd.f32 0.0, %v903
          %905 = vmatmul.bf16.gmra.mxu0 %v797
          %v906 = vpop.f32.mrf.mxu0
          %v907 = vadd.f32 0.0, %v906
          %v908 = vpop.f32.mrf.mxu0
          %v909 = vadd.f32 0.0, %v908
          %910 = vdwg.mxu0
          %v911 = vmul.f32 %v872, 0.088388346
          %v912 = vmul.f32 %v874, 0.088388346
          %v913 = vmul.f32 %v877, 0.088388346
          %v914 = vmul.f32 %v879, 0.088388346
          %v915 = vmul.f32 %v882, 0.088388346
          %v916 = vmul.f32 %v884, 0.088388346
          %v917 = vmul.f32 %v887, 0.088388346
          %v918 = vmul.f32 %v889, 0.088388346
          %v919 = vmul.f32 %v892, 0.088388346
          %v920 = vmul.f32 %v894, 0.088388346
          %v921 = vmul.f32 %v897, 0.088388346
          %v922 = vmul.f32 %v899, 0.088388346
          %v923 = vmul.f32 %v902, 0.088388346
          %v924 = vmul.f32 %v904, 0.088388346
          %v925 = vmul.f32 %v907, 0.088388346
          %v926 = vmul.f32 %v909, 0.088388346
          %v927 = vpack.c.bf16 %v912, %v911
          %v928 = vpack.c.bf16 %v914, %v913
          %v929 = vpack.c.bf16 %v916, %v915
          %v930 = vpack.c.bf16 %v918, %v917
          %v931 = vpack.c.bf16 %v920, %v919
          %v932 = vpack.c.bf16 %v922, %v921
          %v933 = vpack.c.bf16 %v924, %v923
          %v934 = vpack.c.bf16 %v926, %v925
          %v935 = vld [vmem:[#allocation7] sm:$0xff]
          %v936 = vld [vmem:[#allocation7 + $0x8] sm:$0xff]
          %v937 = vld [vmem:[#allocation7 + $0x10] sm:$0xff]
          %v938 = vld [vmem:[#allocation7 + $0x18] sm:$0xff]
          %v939 = vld [vmem:[#allocation7 + $0x20] sm:$0xff]
          %v940 = vld [vmem:[#allocation7 + $0x28] sm:$0xff]
          %v941 = vld [vmem:[#allocation7 + $0x30] sm:$0xff]
          %v942 = vld [vmem:[#allocation7 + $0x38] sm:$0xff]
          %v943 = vld [vmem:[#allocation7 + $0x40] sm:$0xff]
          %v944 = vld [vmem:[#allocation7 + $0x48] sm:$0xff]
          %v945 = vld [vmem:[#allocation7 + $0x50] sm:$0xff]
          %v946 = vld [vmem:[#allocation7 + $0x58] sm:$0xff]
          %v947 = vld [vmem:[#allocation7 + $0x60] sm:$0xff]
          %v948 = vld [vmem:[#allocation7 + $0x68] sm:$0xff]
          %v949 = vld [vmem:[#allocation7 + $0x70] sm:$0xff]
          %v950 = vld [vmem:[#allocation7 + $0x78] sm:$0xff]
          %v951 = vld [vmem:[#allocation8] sm:$0xf]
          %v952 = vld [vmem:[#allocation8 + $0x4] sm:$0xf]
          %v953 = vld [vmem:[#allocation8 + $0x8] sm:$0xf]
          %v954 = vld [vmem:[#allocation8 + $0xc] sm:$0xf]
          %v955 = vld [vmem:[#allocation8 + $0x10] sm:$0xf]
          %v956 = vld [vmem:[#allocation8 + $0x14] sm:$0xf]
          %v957 = vld [vmem:[#allocation8 + $0x18] sm:$0xf]
          %v958 = vld [vmem:[#allocation8 + $0x1c] sm:$0xf]
          %v959 = vld [vmem:[#allocation8 + $0x20] sm:$0xf]
          %v960 = vld [vmem:[#allocation8 + $0x24] sm:$0xf]
          %v961 = vld [vmem:[#allocation8 + $0x28] sm:$0xf]
          %v962 = vld [vmem:[#allocation8 + $0x2c] sm:$0xf]
          %v963 = vld [vmem:[#allocation8 + $0x30] sm:$0xf]
          %v964 = vld [vmem:[#allocation8 + $0x34] sm:$0xf]
          %v965 = vld [vmem:[#allocation8 + $0x38] sm:$0xf]
          %v966 = vld [vmem:[#allocation8 + $0x3c] sm:$0xf]
          %v967 = vld [vmem:[#allocation8 + $0x40] sm:$0xf]
          %v968 = vld [vmem:[#allocation8 + $0x44] sm:$0xf]
          %v969 = vld [vmem:[#allocation8 + $0x48] sm:$0xf]
          %v970 = vld [vmem:[#allocation8 + $0x4c] sm:$0xf]
          %v971 = vld [vmem:[#allocation8 + $0x50] sm:$0xf]
          %v972 = vld [vmem:[#allocation8 + $0x54] sm:$0xf]
          %v973 = vld [vmem:[#allocation8 + $0x58] sm:$0xf]
          %v974 = vld [vmem:[#allocation8 + $0x5c] sm:$0xf]
          %v975 = vld [vmem:[#allocation8 + $0x60] sm:$0xf]
          %v976 = vld [vmem:[#allocation8 + $0x64] sm:$0xf]
          %v977 = vld [vmem:[#allocation8 + $0x68] sm:$0xf]
          %v978 = vld [vmem:[#allocation8 + $0x6c] sm:$0xf]
          %v979 = vld [vmem:[#allocation8 + $0x70] sm:$0xf]
          %v980 = vld [vmem:[#allocation8 + $0x74] sm:$0xf]
          %v981 = vld [vmem:[#allocation8 + $0x78] sm:$0xf]
          %v982 = vld [vmem:[#allocation8 + $0x7c] sm:$0xf]
          %v983 = vld [vmem:[#allocation10] sm:$0x3]
          %v985 = vperm.slane %v983, 0
          %v986 = vperm.slane %v983, 1
          %v1005 = vunpack.c.l.b16 %v935
          %v1006 = vunpack.c.h.b16 %v935
          %v1007 = vunpack.c.l.b16 %v936
          %v1008 = vunpack.c.h.b16 %v936
          %v1009 = vunpack.c.l.b16 %v937
          %v1010 = vunpack.c.h.b16 %v937
          %v1011 = vunpack.c.l.b16 %v938
          %v1012 = vunpack.c.h.b16 %v938
          %v1013 = vunpack.c.l.b16 %v939
          %v1014 = vunpack.c.h.b16 %v939
          %v1015 = vunpack.c.l.b16 %v940
          %v1016 = vunpack.c.h.b16 %v940
          %v1017 = vunpack.c.l.b16 %v941
          %v1018 = vunpack.c.h.b16 %v941
          %v1019 = vunpack.c.l.b16 %v942
          %v1020 = vunpack.c.h.b16 %v942
          %v1021 = vunpack.c.l.b16 %v943
          %v1022 = vunpack.c.h.b16 %v943
          %v1023 = vunpack.c.l.b16 %v944
          %v1024 = vunpack.c.h.b16 %v944
          %v1025 = vunpack.c.l.b16 %v945
          %v1026 = vunpack.c.h.b16 %v945
          %v1027 = vunpack.c.l.b16 %v946
          %v1028 = vunpack.c.h.b16 %v946
          %v1029 = vunpack.c.l.b16 %v947
          %v1030 = vunpack.c.h.b16 %v947
          %v1031 = vunpack.c.l.b16 %v948
          %v1032 = vunpack.c.h.b16 %v948
          %v1033 = vunpack.c.l.b16 %v949
          %v1034 = vunpack.c.h.b16 %v949
          %v1035 = vunpack.c.l.b16 %v950
          %v1036 = vunpack.c.h.b16 %v950
          %v1037 = vpack.c.b16 %v1007, %v1005
          %v1038 = vpack.c.b16 %v1008, %v1006
          %v1039 = vpack.c.b16 %v1011, %v1009
          %v1040 = vpack.c.b16 %v1012, %v1010
          %v1041 = vpack.c.b16 %v1015, %v1013
          %v1042 = vpack.c.b16 %v1016, %v1014
          %v1043 = vpack.c.b16 %v1019, %v1017
          %v1044 = vpack.c.b16 %v1020, %v1018
          %v1045 = vpack.c.b16 %v1023, %v1021
          %v1046 = vpack.c.b16 %v1024, %v1022
          %v1047 = vpack.c.b16 %v1027, %v1025
          %v1048 = vpack.c.b16 %v1028, %v1026
          %v1049 = vpack.c.b16 %v1031, %v1029
          %v1050 = vpack.c.b16 %v1032, %v1030
          %v1051 = vpack.c.b16 %v1035, %v1033
          %v1052 = vpack.c.b16 %v1036, %v1034
          %1069 = vmatpush.bf16.msra.mxu0 %v1051
          %1070 = vmatpush.bf16.msra.mxu0 %v1049
          %1071 = vmatpush.bf16.msra.mxu0 %v1047
          %1072 = vmatpush.bf16.msra.mxu0 %v1045
          %1073 = vmatpush.bf16.msra.mxu0 %v1043
          %1074 = vmatpush.bf16.msra.mxu0 %v1041
          %1075 = vmatpush.bf16.msra.mxu0 %v1039
          %1076 = vmatpush.bf16.msra.mxu0 %v1037
          %1077 = vmatmul.bf16.gmra.mxu0 %v927
          %v1078 = vpop.f32.mrf.mxu0
          %v1079 = vadd.f32 %v985, %v1078
          %v1080 = vpop.f32.mrf.mxu0
          %v1081 = vadd.f32 %v985, %v1080
          %1082 = vmatmul.bf16.gmra.mxu0 %v928
          %v1083 = vpop.f32.mrf.mxu0
          %v1084 = vadd.f32 %v985, %v1083
          %v1085 = vpop.f32.mrf.mxu0
          %v1086 = vadd.f32 %v985, %v1085
          %1087 = vmatmul.bf16.gmra.mxu0 %v929
          %v1088 = vpop.f32.mrf.mxu0
          %v1089 = vadd.f32 %v985, %v1088
          %v1090 = vpop.f32.mrf.mxu0
          %v1091 = vadd.f32 %v985, %v1090
          %1092 = vmatmul.bf16.gmra.mxu0 %v930
          %v1093 = vpop.f32.mrf.mxu0
          %v1094 = vadd.f32 %v985, %v1093
          %v1095 = vpop.f32.mrf.mxu0
          %v1096 = vadd.f32 %v985, %v1095
          %1097 = vmatmul.bf16.gmra.mxu0 %v931
          %v1098 = vpop.f32.mrf.mxu0
          %v1099 = vadd.f32 %v985, %v1098
          %v1100 = vpop.f32.mrf.mxu0
          %v1101 = vadd.f32 %v985, %v1100
          %1102 = vmatmul.bf16.gmra.mxu0 %v932
          %v1103 = vpop.f32.mrf.mxu0
          %v1104 = vadd.f32 %v985, %v1103
          %v1105 = vpop.f32.mrf.mxu0
          %v1106 = vadd.f32 %v985, %v1105
          %1107 = vmatmul.bf16.gmra.mxu0 %v933
          %v1108 = vpop.f32.mrf.mxu0
          %v1109 = vadd.f32 %v985, %v1108
          %v1110 = vpop.f32.mrf.mxu0
          %v1111 = vadd.f32 %v985, %v1110
          %1112 = vmatmul.bf16.gmra.mxu0 %v934
          %v1113 = vpop.f32.mrf.mxu0
          %v1114 = vadd.f32 %v985, %v1113
          %v1115 = vpop.f32.mrf.mxu0
          %v1116 = vadd.f32 %v985, %v1115
          %1117 = vdwg.mxu0
          %1118 = vmatpush.bf16.msra.mxu0 %v1052
          %1119 = vmatpush.bf16.msra.mxu0 %v1050
          %1120 = vmatpush.bf16.msra.mxu0 %v1048
          %1121 = vmatpush.bf16.msra.mxu0 %v1046
          %1122 = vmatpush.bf16.msra.mxu0 %v1044
          %1123 = vmatpush.bf16.msra.mxu0 %v1042
          %1124 = vmatpush.bf16.msra.mxu0 %v1040
          %1125 = vmatpush.bf16.msra.mxu0 %v1038
          %1126 = vmatmul.bf16.gmra.mxu0 %v927
          %v1127 = vpop.f32.mrf.mxu0
          %v1128 = vadd.f32 %v986, %v1127
          %v1129 = vpop.f32.mrf.mxu0
          %v1130 = vadd.f32 %v986, %v1129
          %1131 = vmatmul.bf16.gmra.mxu0 %v928
          %v1132 = vpop.f32.mrf.mxu0
          %v1133 = vadd.f32 %v986, %v1132
          %v1134 = vpop.f32.mrf.mxu0
          %v1135 = vadd.f32 %v986, %v1134
          %1136 = vmatmul.bf16.gmra.mxu0 %v929
          %v1137 = vpop.f32.mrf.mxu0
          %v1138 = vadd.f32 %v986, %v1137
          %v1139 = vpop.f32.mrf.mxu0
          %v1140 = vadd.f32 %v986, %v1139
          %1141 = vmatmul.bf16.gmra.mxu0 %v930
          %v1142 = vpop.f32.mrf.mxu0
          %v1143 = vadd.f32 %v986, %v1142
          %v1144 = vpop.f32.mrf.mxu0
          %v1145 = vadd.f32 %v986, %v1144
          %1146 = vmatmul.bf16.gmra.mxu0 %v931
          %v1147 = vpop.f32.mrf.mxu0
          %v1148 = vadd.f32 %v986, %v1147
          %v1149 = vpop.f32.mrf.mxu0
          %v1150 = vadd.f32 %v986, %v1149
          %1151 = vmatmul.bf16.gmra.mxu0 %v932
          %v1152 = vpop.f32.mrf.mxu0
          %v1153 = vadd.f32 %v986, %v1152
          %v1154 = vpop.f32.mrf.mxu0
          %v1155 = vadd.f32 %v986, %v1154
          %1156 = vmatmul.bf16.gmra.mxu0 %v933
          %v1157 = vpop.f32.mrf.mxu0
          %v1158 = vadd.f32 %v986, %v1157
          %v1159 = vpop.f32.mrf.mxu0
          %v1160 = vadd.f32 %v986, %v1159
          %1161 = vmatmul.bf16.gmra.mxu0 %v934
          %v1162 = vpop.f32.mrf.mxu0
          %v1163 = vadd.f32 %v986, %v1162
          %v1164 = vpop.f32.mrf.mxu0
          %v1165 = vadd.f32 %v986, %v1164
          %1166 = vdwg.mxu0
          %v1167 = vmax.f32 %v1079, %v1128
          %1168 = vmax.xlane.f32.xlu0 %v1167
          %v1169 = vpop.xlane.xlu0 %1168
          %v1170 = vmax.f32 %v1081, %v1130
          %1171 = vmax.xlane.f32.xlu0 %v1170
          %v1172 = vpop.xlane.xlu0 %1171
          %v1173 = vmax.f32 %v1084, %v1133
          %1174 = vmax.xlane.f32.xlu0 %v1173
          %v1175 = vpop.xlane.xlu0 %1174
          %v1176 = vmax.f32 %v1086, %v1135
          %1177 = vmax.xlane.f32.xlu0 %v1176
          %v1178 = vpop.xlane.xlu0 %1177
          %v1179 = vmax.f32 %v1089, %v1138
          %1180 = vmax.xlane.f32.xlu0 %v1179
          %v1181 = vpop.xlane.xlu0 %1180
          %v1182 = vmax.f32 %v1091, %v1140
          %1183 = vmax.xlane.f32.xlu0 %v1182
          %v1184 = vpop.xlane.xlu0 %1183
          %v1185 = vmax.f32 %v1094, %v1143
          %1186 = vmax.xlane.f32.xlu0 %v1185
          %v1187 = vpop.xlane.xlu0 %1186
          %v1188 = vmax.f32 %v1096, %v1145
          %1189 = vmax.xlane.f32.xlu0 %v1188
          %v1190 = vpop.xlane.xlu0 %1189
          %v1191 = vmax.f32 %v1099, %v1148
          %1192 = vmax.xlane.f32.xlu0 %v1191
          %v1193 = vpop.xlane.xlu0 %1192
          %v1194 = vmax.f32 %v1101, %v1150
          %1195 = vmax.xlane.f32.xlu0 %v1194
          %v1196 = vpop.xlane.xlu0 %1195
          %v1197 = vmax.f32 %v1104, %v1153
          %1198 = vmax.xlane.f32.xlu0 %v1197
          %v1199 = vpop.xlane.xlu0 %1198
          %v1200 = vmax.f32 %v1106, %v1155
          %1201 = vmax.xlane.f32.xlu0 %v1200
          %v1202 = vpop.xlane.xlu0 %1201
          %v1203 = vmax.f32 %v1109, %v1158
          %1204 = vmax.xlane.f32.xlu0 %v1203
          %v1205 = vpop.xlane.xlu0 %1204
          %v1206 = vmax.f32 %v1111, %v1160
          %1207 = vmax.xlane.f32.xlu0 %v1206
          %v1208 = vpop.xlane.xlu0 %1207
          %v1209 = vmax.f32 %v1114, %v1163
          %1210 = vmax.xlane.f32.xlu0 %v1209
          %v1211 = vpop.xlane.xlu0 %1210
          %v1212 = vmax.f32 %v1116, %v1165
          %1213 = vmax.xlane.f32.xlu0 %v1212
          %v1214 = vpop.xlane.xlu0 %1213
          %v1215 = vsub.f32 -inf, %v1169
          %v1216 = vsub.f32 -inf, %v1172
          %v1217 = vsub.f32 -inf, %v1175
          %v1218 = vsub.f32 -inf, %v1178
          %v1219 = vsub.f32 -inf, %v1181
          %v1220 = vsub.f32 -inf, %v1184
          %v1221 = vsub.f32 -inf, %v1187
          %v1222 = vsub.f32 -inf, %v1190
          %v1223 = vsub.f32 -inf, %v1193
          %v1224 = vsub.f32 -inf, %v1196
          %v1225 = vsub.f32 -inf, %v1199
          %v1226 = vsub.f32 -inf, %v1202
          %v1227 = vsub.f32 -inf, %v1205
          %v1228 = vsub.f32 -inf, %v1208
          %v1229 = vsub.f32 -inf, %v1211
          %v1230 = vsub.f32 -inf, %v1214
          %v1231 = vmul.f32 %v1215, 1.442695
          %v1232 = vpow.pop %v1231
          %v1233 = vmul.f32 %v1216, 1.442695
          %v1234 = vpow.pop %v1233
          %v1235 = vmul.f32 %v1217, 1.442695
          %v1236 = vpow.pop %v1235
          %v1237 = vmul.f32 %v1218, 1.442695
          %v1238 = vpow.pop %v1237
          %v1239 = vmul.f32 %v1219, 1.442695
          %v1240 = vpow.pop %v1239
          %v1241 = vmul.f32 %v1220, 1.442695
          %v1242 = vpow.pop %v1241
          %v1243 = vmul.f32 %v1221, 1.442695
          %v1244 = vpow.pop %v1243
          %v1245 = vmul.f32 %v1222, 1.442695
          %v1246 = vpow.pop %v1245
          %v1247 = vmul.f32 %v1223, 1.442695
          %v1248 = vpow.pop %v1247
          %v1249 = vmul.f32 %v1224, 1.442695
          %v1250 = vpow.pop %v1249
          %v1251 = vmul.f32 %v1225, 1.442695
          %v1252 = vpow.pop %v1251
          %v1253 = vmul.f32 %v1226, 1.442695
          %v1254 = vpow.pop %v1253
          %v1255 = vmul.f32 %v1227, 1.442695
          %v1256 = vpow.pop %v1255
          %v1257 = vmul.f32 %v1228, 1.442695
          %v1258 = vpow.pop %v1257
          %v1259 = vmul.f32 %v1229, 1.442695
          %v1260 = vpow.pop %v1259
          %v1261 = vmul.f32 %v1230, 1.442695
          %v1262 = vpow.pop %v1261
          %v1263 = vsub.f32 %v1079, %v1169
          %v1264 = vsub.f32 %v1128, %v1169
          %v1265 = vsub.f32 %v1081, %v1172
          %v1266 = vsub.f32 %v1130, %v1172
          %v1267 = vsub.f32 %v1084, %v1175
          %v1268 = vsub.f32 %v1133, %v1175
          %v1269 = vsub.f32 %v1086, %v1178
          %v1270 = vsub.f32 %v1135, %v1178
          %v1271 = vsub.f32 %v1089, %v1181
          %v1272 = vsub.f32 %v1138, %v1181
          %v1273 = vsub.f32 %v1091, %v1184
          %v1274 = vsub.f32 %v1140, %v1184
          %v1275 = vsub.f32 %v1094, %v1187
          %v1276 = vsub.f32 %v1143, %v1187
          %v1277 = vsub.f32 %v1096, %v1190
          %v1278 = vsub.f32 %v1145, %v1190
          %v1279 = vsub.f32 %v1099, %v1193
          %v1280 = vsub.f32 %v1148, %v1193
          %v1281 = vsub.f32 %v1101, %v1196
          %v1282 = vsub.f32 %v1150, %v1196
          %v1283 = vsub.f32 %v1104, %v1199
          %v1284 = vsub.f32 %v1153, %v1199
          %v1285 = vsub.f32 %v1106, %v1202
          %v1286 = vsub.f32 %v1155, %v1202
          %v1287 = vsub.f32 %v1109, %v1205
          %v1288 = vsub.f32 %v1158, %v1205
          %v1289 = vsub.f32 %v1111, %v1208
          %v1290 = vsub.f32 %v1160, %v1208
          %v1291 = vsub.f32 %v1114, %v1211
          %v1292 = vsub.f32 %v1163, %v1211
          %v1293 = vsub.f32 %v1116, %v1214
          %v1294 = vsub.f32 %v1165, %v1214
          %v1295 = vmul.f32 %v1263, 1.442695
          %v1296 = vpow.pop %v1295
          %v1297 = vmul.f32 %v1264, 1.442695
          %v1298 = vpow.pop %v1297
          %v1299 = vmul.f32 %v1265, 1.442695
          %v1300 = vpow.pop %v1299
          %v1301 = vmul.f32 %v1266, 1.442695
          %v1302 = vpow.pop %v1301
          %v1303 = vmul.f32 %v1267, 1.442695
          %v1304 = vpow.pop %v1303
          %v1305 = vmul.f32 %v1268, 1.442695
          %v1306 = vpow.pop %v1305
          %v1307 = vmul.f32 %v1269, 1.442695
          %v1308 = vpow.pop %v1307
          %v1309 = vmul.f32 %v1270, 1.442695
          %v1310 = vpow.pop %v1309
          %v1311 = vmul.f32 %v1271, 1.442695
          %v1312 = vpow.pop %v1311
          %v1313 = vmul.f32 %v1272, 1.442695
          %v1314 = vpow.pop %v1313
          %v1315 = vmul.f32 %v1273, 1.442695
          %v1316 = vpow.pop %v1315
          %v1317 = vmul.f32 %v1274, 1.442695
          %v1318 = vpow.pop %v1317
          %v1319 = vmul.f32 %v1275, 1.442695
          %v1320 = vpow.pop %v1319
          %v1321 = vmul.f32 %v1276, 1.442695
          %v1322 = vpow.pop %v1321
          %v1323 = vmul.f32 %v1277, 1.442695
          %v1324 = vpow.pop %v1323
          %v1325 = vmul.f32 %v1278, 1.442695
          %v1326 = vpow.pop %v1325
          %v1327 = vmul.f32 %v1279, 1.442695
          %v1328 = vpow.pop %v1327
          %v1329 = vmul.f32 %v1280, 1.442695
          %v1330 = vpow.pop %v1329
          %v1331 = vmul.f32 %v1281, 1.442695
          %v1332 = vpow.pop %v1331
          %v1333 = vmul.f32 %v1282, 1.442695
          %v1334 = vpow.pop %v1333
          %v1335 = vmul.f32 %v1283, 1.442695
          %v1336 = vpow.pop %v1335
          %v1337 = vmul.f32 %v1284, 1.442695
          %v1338 = vpow.pop %v1337
          %v1339 = vmul.f32 %v1285, 1.442695
          %v1340 = vpow.pop %v1339
          %v1341 = vmul.f32 %v1286, 1.442695
          %v1342 = vpow.pop %v1341
          %v1343 = vmul.f32 %v1287, 1.442695
          %v1344 = vpow.pop %v1343
          %v1345 = vmul.f32 %v1288, 1.442695
          %v1346 = vpow.pop %v1345
          %v1347 = vmul.f32 %v1289, 1.442695
          %v1348 = vpow.pop %v1347
          %v1349 = vmul.f32 %v1290, 1.442695
          %v1350 = vpow.pop %v1349
          %v1351 = vmul.f32 %v1291, 1.442695
          %v1352 = vpow.pop %v1351
          %v1353 = vmul.f32 %v1292, 1.442695
          %v1354 = vpow.pop %v1353
          %v1355 = vmul.f32 %v1293, 1.442695
          %v1356 = vpow.pop %v1355
          %v1357 = vmul.f32 %v1294, 1.442695
          %v1358 = vpow.pop %v1357
          %v1359 = vmul.f32 %v1232, 0.0
          %v1360 = vmul.f32 %v1234, 0.0
          %v1361 = vmul.f32 %v1236, 0.0
          %v1362 = vmul.f32 %v1238, 0.0
          %v1363 = vmul.f32 %v1240, 0.0
          %v1364 = vmul.f32 %v1242, 0.0
          %v1365 = vmul.f32 %v1244, 0.0
          %v1366 = vmul.f32 %v1246, 0.0
          %v1367 = vmul.f32 %v1248, 0.0
          %v1368 = vmul.f32 %v1250, 0.0
          %v1369 = vmul.f32 %v1252, 0.0
          %v1370 = vmul.f32 %v1254, 0.0
          %v1371 = vmul.f32 %v1256, 0.0
          %v1372 = vmul.f32 %v1258, 0.0
          %v1373 = vmul.f32 %v1260, 0.0
          %v1374 = vmul.f32 %v1262, 0.0
          %v1375 = vadd.f32 %v1296, %v1298
          %1376 = vadd.xlane.f32.xlu0 %v1375
          %v1377 = vpop.xlane.xlu0 %1376
          %v1378 = vadd.f32 %v1300, %v1302
          %1379 = vadd.xlane.f32.xlu0 %v1378
          %v1380 = vpop.xlane.xlu0 %1379
          %v1381 = vadd.f32 %v1304, %v1306
          %1382 = vadd.xlane.f32.xlu0 %v1381
          %v1383 = vpop.xlane.xlu0 %1382
          %v1384 = vadd.f32 %v1308, %v1310
          %1385 = vadd.xlane.f32.xlu0 %v1384
          %v1386 = vpop.xlane.xlu0 %1385
          %v1387 = vadd.f32 %v1312, %v1314
          %1388 = vadd.xlane.f32.xlu0 %v1387
          %v1389 = vpop.xlane.xlu0 %1388
          %v1390 = vadd.f32 %v1316, %v1318
          %1391 = vadd.xlane.f32.xlu0 %v1390
          %v1392 = vpop.xlane.xlu0 %1391
          %v1393 = vadd.f32 %v1320, %v1322
          %1394 = vadd.xlane.f32.xlu0 %v1393
          %v1395 = vpop.xlane.xlu0 %1394
          %v1396 = vadd.f32 %v1324, %v1326
          %1397 = vadd.xlane.f32.xlu0 %v1396
          %v1398 = vpop.xlane.xlu0 %1397
          %v1399 = vadd.f32 %v1328, %v1330
          %1400 = vadd.xlane.f32.xlu0 %v1399
          %v1401 = vpop.xlane.xlu0 %1400
          %v1402 = vadd.f32 %v1332, %v1334
          %1403 = vadd.xlane.f32.xlu0 %v1402
          %v1404 = vpop.xlane.xlu0 %1403
          %v1405 = vadd.f32 %v1336, %v1338
          %1406 = vadd.xlane.f32.xlu0 %v1405
          %v1407 = vpop.xlane.xlu0 %1406
          %v1408 = vadd.f32 %v1340, %v1342
          %1409 = vadd.xlane.f32.xlu0 %v1408
          %v1410 = vpop.xlane.xlu0 %1409
          %v1411 = vadd.f32 %v1344, %v1346
          %1412 = vadd.xlane.f32.xlu0 %v1411
          %v1413 = vpop.xlane.xlu0 %1412
          %v1414 = vadd.f32 %v1348, %v1350
          %1415 = vadd.xlane.f32.xlu0 %v1414
          %v1416 = vpop.xlane.xlu0 %1415
          %v1417 = vadd.f32 %v1352, %v1354
          %1418 = vadd.xlane.f32.xlu0 %v1417
          %v1419 = vpop.xlane.xlu0 %1418
          %v1420 = vadd.f32 %v1356, %v1358
          %1421 = vadd.xlane.f32.xlu0 %v1420
          %v1422 = vpop.xlane.xlu0 %1421
          %v1423 = vadd.f32 %v1359, %v1377
          %v1424 = vadd.f32 %v1360, %v1380
          %v1425 = vadd.f32 %v1361, %v1383
          %v1426 = vadd.f32 %v1362, %v1386
          %v1427 = vadd.f32 %v1363, %v1389
          %v1428 = vadd.f32 %v1364, %v1392
          %v1429 = vadd.f32 %v1365, %v1395
          %v1430 = vadd.f32 %v1366, %v1398
          %v1431 = vadd.f32 %v1367, %v1401
          %v1432 = vadd.f32 %v1368, %v1404
          %v1433 = vadd.f32 %v1369, %v1407
          %v1434 = vadd.f32 %v1370, %v1410
          %v1435 = vadd.f32 %v1371, %v1413
          %v1436 = vadd.f32 %v1372, %v1416
          %v1437 = vadd.f32 %v1373, %v1419
          %v1438 = vadd.f32 %v1374, %v1422
          %v1439 = vpack.c.bf16 %v1300, %v1296
          %v1440 = vpack.c.bf16 %v1302, %v1298
          %v1441 = vpack.c.bf16 %v1308, %v1304
          %v1442 = vpack.c.bf16 %v1310, %v1306
          %v1443 = vpack.c.bf16 %v1316, %v1312
          %v1444 = vpack.c.bf16 %v1318, %v1314
          %v1445 = vpack.c.bf16 %v1324, %v1320
          %v1446 = vpack.c.bf16 %v1326, %v1322
          %v1447 = vpack.c.bf16 %v1332, %v1328
          %v1448 = vpack.c.bf16 %v1334, %v1330
          %v1449 = vpack.c.bf16 %v1340, %v1336
          %v1450 = vpack.c.bf16 %v1342, %v1338
          %v1451 = vpack.c.bf16 %v1348, %v1344
          %v1452 = vpack.c.bf16 %v1350, %v1346
          %v1453 = vpack.c.bf16 %v1356, %v1352
          %v1454 = vpack.c.bf16 %v1358, %v1354
          %v1487 = vunpack.c.l.b16 %v951
          %v1488 = vunpack.c.l.b16 %v952
          %v1489 = vunpack.c.l.b16 %v953
          %v1490 = vunpack.c.l.b16 %v954
          %v1491 = vunpack.c.l.b16 %v955
          %v1492 = vunpack.c.l.b16 %v956
          %v1493 = vunpack.c.l.b16 %v957
          %v1494 = vunpack.c.l.b16 %v958
          %v1495 = vunpack.c.l.b16 %v959
          %v1496 = vunpack.c.l.b16 %v960
          %v1497 = vunpack.c.l.b16 %v961
          %v1498 = vunpack.c.l.b16 %v962
          %v1499 = vunpack.c.l.b16 %v963
          %v1500 = vunpack.c.l.b16 %v964
          %v1501 = vunpack.c.l.b16 %v965
          %v1502 = vunpack.c.l.b16 %v966
          %v1503 = vunpack.c.l.b16 %v967
          %v1504 = vunpack.c.l.b16 %v968
          %v1505 = vunpack.c.l.b16 %v969
          %v1506 = vunpack.c.l.b16 %v970
          %v1507 = vunpack.c.l.b16 %v971
          %v1508 = vunpack.c.l.b16 %v972
          %v1509 = vunpack.c.l.b16 %v973
          %v1510 = vunpack.c.l.b16 %v974
          %v1511 = vunpack.c.l.b16 %v975
          %v1512 = vunpack.c.l.b16 %v976
          %v1513 = vunpack.c.l.b16 %v977
          %v1514 = vunpack.c.l.b16 %v978
          %v1515 = vunpack.c.l.b16 %v979
          %v1516 = vunpack.c.l.b16 %v980
          %v1517 = vunpack.c.l.b16 %v981
          %v1518 = vunpack.c.l.b16 %v982
          %v1519 = vpack.c.b16 %v1488, %v1487
          %v1520 = vpack.c.b16 %v1490, %v1489
          %v1521 = vpack.c.b16 %v1492, %v1491
          %v1522 = vpack.c.b16 %v1494, %v1493
          %v1523 = vpack.c.b16 %v1496, %v1495
          %v1524 = vpack.c.b16 %v1498, %v1497
          %v1525 = vpack.c.b16 %v1500, %v1499
          %v1526 = vpack.c.b16 %v1502, %v1501
          %v1527 = vpack.c.b16 %v1504, %v1503
          %v1528 = vpack.c.b16 %v1506, %v1505
          %v1529 = vpack.c.b16 %v1508, %v1507
          %v1530 = vpack.c.b16 %v1510, %v1509
          %v1531 = vpack.c.b16 %v1512, %v1511
          %v1532 = vpack.c.b16 %v1514, %v1513
          %v1533 = vpack.c.b16 %v1516, %v1515
          %v1534 = vpack.c.b16 %v1518, %v1517
          %1551 = vmatpush.bf16.msra.mxu0 %v1526
          %1552 = vmatpush.bf16.msra.mxu0 %v1525
          %1553 = vmatpush.bf16.msra.mxu0 %v1524
          %1554 = vmatpush.bf16.msra.mxu0 %v1523
          %1555 = vmatpush.bf16.msra.mxu0 %v1522
          %1556 = vmatpush.bf16.msra.mxu0 %v1521
          %1557 = vmatpush.bf16.msra.mxu0 %v1520
          %1558 = vmatpush.bf16.msra.mxu0 %v1519
          %1559 = vmatmul.bf16.gmra.mxu0 %v1439
          %v1560 = vpop.f32.mrf.mxu0
          %v1561 = vadd.f32 0.0, %v1560
          %v1562 = vpop.f32.mrf.mxu0
          %v1563 = vadd.f32 0.0, %v1562
          %1564 = vmatmul.bf16.gmra.mxu0 %v1441
          %v1565 = vpop.f32.mrf.mxu0
          %v1566 = vadd.f32 0.0, %v1565
          %v1567 = vpop.f32.mrf.mxu0
          %v1568 = vadd.f32 0.0, %v1567
          %1569 = vmatmul.bf16.gmra.mxu0 %v1443
          %v1570 = vpop.f32.mrf.mxu0
          %v1571 = vadd.f32 0.0, %v1570
          %v1572 = vpop.f32.mrf.mxu0
          %v1573 = vadd.f32 0.0, %v1572
          %1574 = vmatmul.bf16.gmra.mxu0 %v1445
          %v1575 = vpop.f32.mrf.mxu0
          %v1576 = vadd.f32 0.0, %v1575
          %v1577 = vpop.f32.mrf.mxu0
          %v1578 = vadd.f32 0.0, %v1577
          %1579 = vmatmul.bf16.gmra.mxu0 %v1447
          %v1580 = vpop.f32.mrf.mxu0
          %v1581 = vadd.f32 0.0, %v1580
          %v1582 = vpop.f32.mrf.mxu0
          %v1583 = vadd.f32 0.0, %v1582
          %1584 = vmatmul.bf16.gmra.mxu0 %v1449
          %v1585 = vpop.f32.mrf.mxu0
          %v1586 = vadd.f32 0.0, %v1585
          %v1587 = vpop.f32.mrf.mxu0
          %v1588 = vadd.f32 0.0, %v1587
          %1589 = vmatmul.bf16.gmra.mxu0 %v1451
          %v1590 = vpop.f32.mrf.mxu0
          %v1591 = vadd.f32 0.0, %v1590
          %v1592 = vpop.f32.mrf.mxu0
          %v1593 = vadd.f32 0.0, %v1592
          %1594 = vmatmul.bf16.gmra.mxu0 %v1453
          %v1595 = vpop.f32.mrf.mxu0
          %v1596 = vadd.f32 0.0, %v1595
          %v1597 = vpop.f32.mrf.mxu0
          %v1598 = vadd.f32 0.0, %v1597
          %1599 = vdwg.mxu0
          %1600 = vmatpush.bf16.msra.mxu0 %v1534
          %1601 = vmatpush.bf16.msra.mxu0 %v1533
          %1602 = vmatpush.bf16.msra.mxu0 %v1532
          %1603 = vmatpush.bf16.msra.mxu0 %v1531
          %1604 = vmatpush.bf16.msra.mxu0 %v1530
          %1605 = vmatpush.bf16.msra.mxu0 %v1529
          %1606 = vmatpush.bf16.msra.mxu0 %v1528
          %1607 = vmatpush.bf16.msra.mxu0 %v1527
          %1608 = vmatmul.bf16.gmra.mxu0 %v1440
          %v1609 = vpop.f32.mrf.mxu0
          %v1610 = vadd.f32 %v1561, %v1609
          %v1611 = vpop.f32.mrf.mxu0
          %v1612 = vadd.f32 %v1563, %v1611
          %1613 = vmatmul.bf16.gmra.mxu0 %v1442
          %v1614 = vpop.f32.mrf.mxu0
          %v1615 = vadd.f32 %v1566, %v1614
          %v1616 = vpop.f32.mrf.mxu0
          %v1617 = vadd.f32 %v1568, %v1616
          %1618 = vmatmul.bf16.gmra.mxu0 %v1444
          %v1619 = vpop.f32.mrf.mxu0
          %v1620 = vadd.f32 %v1571, %v1619
          %v1621 = vpop.f32.mrf.mxu0
          %v1622 = vadd.f32 %v1573, %v1621
          %1623 = vmatmul.bf16.gmra.mxu0 %v1446
          %v1624 = vpop.f32.mrf.mxu0
          %v1625 = vadd.f32 %v1576, %v1624
          %v1626 = vpop.f32.mrf.mxu0
          %v1627 = vadd.f32 %v1578, %v1626
          %1628 = vmatmul.bf16.gmra.mxu0 %v1448
          %v1629 = vpop.f32.mrf.mxu0
          %v1630 = vadd.f32 %v1581, %v1629
          %v1631 = vpop.f32.mrf.mxu0
          %v1632 = vadd.f32 %v1583, %v1631
          %1633 = vmatmul.bf16.gmra.mxu0 %v1450
          %v1634 = vpop.f32.mrf.mxu0
          %v1635 = vadd.f32 %v1586, %v1634
          %v1636 = vpop.f32.mrf.mxu0
          %v1637 = vadd.f32 %v1588, %v1636
          %1638 = vmatmul.bf16.gmra.mxu0 %v1452
          %v1639 = vpop.f32.mrf.mxu0
          %v1640 = vadd.f32 %v1591, %v1639
          %v1641 = vpop.f32.mrf.mxu0
          %v1642 = vadd.f32 %v1593, %v1641
          %1643 = vmatmul.bf16.gmra.mxu0 %v1454
          %v1644 = vpop.f32.mrf.mxu0
          %v1645 = vadd.f32 %v1596, %v1644
          %v1646 = vpop.f32.mrf.mxu0
          %v1647 = vadd.f32 %v1598, %v1646
          %1648 = vdwg.mxu0
          %v1649 = vadd.f32 %v1359, %v1610
          %v1650 = vadd.f32 %v1360, %v1612
          %v1651 = vadd.f32 %v1361, %v1615
          %v1652 = vadd.f32 %v1362, %v1617
          %v1653 = vadd.f32 %v1363, %v1620
          %v1654 = vadd.f32 %v1364, %v1622
          %v1655 = vadd.f32 %v1365, %v1625
          %v1656 = vadd.f32 %v1366, %v1627
          %v1657 = vadd.f32 %v1367, %v1630
          %v1658 = vadd.f32 %v1368, %v1632
          %v1659 = vadd.f32 %v1369, %v1635
          %v1660 = vadd.f32 %v1370, %v1637
          %v1661 = vadd.f32 %v1371, %v1640
          %v1662 = vadd.f32 %v1372, %v1642
          %v1663 = vadd.f32 %v1373, %v1645
          %v1664 = vadd.f32 %v1374, %v1647
          %s1665 = scalar_lea.vmem [#allocation7], 128
          %v1666 = vld [vmem:[%s1665] sm:$0xff]
          %v1667 = vld [vmem:[%s1665 + $0x8] sm:$0xff]
          %v1668 = vld [vmem:[%s1665 + $0x10] sm:$0xff]
          %v1669 = vld [vmem:[%s1665 + $0x18] sm:$0xff]
          %v1670 = vld [vmem:[%s1665 + $0x20] sm:$0xff]
          %v1671 = vld [vmem:[%s1665 + $0x28] sm:$0xff]
          %v1672 = vld [vmem:[%s1665 + $0x30] sm:$0xff]
          %v1673 = vld [vmem:[%s1665 + $0x38] sm:$0xff]
          %v1674 = vld [vmem:[%s1665 + $0x40] sm:$0xff]
          %v1675 = vld [vmem:[%s1665 + $0x48] sm:$0xff]
          %v1676 = vld [vmem:[%s1665 + $0x50] sm:$0xff]
          %v1677 = vld [vmem:[%s1665 + $0x58] sm:$0xff]
          %v1678 = vld [vmem:[%s1665 + $0x60] sm:$0xff]
          %v1679 = vld [vmem:[%s1665 + $0x68] sm:$0xff]
          %v1680 = vld [vmem:[%s1665 + $0x70] sm:$0xff]
          %v1681 = vld [vmem:[%s1665 + $0x78] sm:$0xff]
          %s1682 = scalar_lea.vmem [#allocation8], 128
          %v1683 = vld [vmem:[%s1682] sm:$0xf]
          %v1684 = vld [vmem:[%s1682 + $0x4] sm:$0xf]
          %v1685 = vld [vmem:[%s1682 + $0x8] sm:$0xf]
          %v1686 = vld [vmem:[%s1682 + $0xc] sm:$0xf]
          %v1687 = vld [vmem:[%s1682 + $0x10] sm:$0xf]
          %v1688 = vld [vmem:[%s1682 + $0x14] sm:$0xf]
          %v1689 = vld [vmem:[%s1682 + $0x18] sm:$0xf]
          %v1690 = vld [vmem:[%s1682 + $0x1c] sm:$0xf]
          %v1691 = vld [vmem:[%s1682 + $0x20] sm:$0xf]
          %v1692 = vld [vmem:[%s1682 + $0x24] sm:$0xf]
          %v1693 = vld [vmem:[%s1682 + $0x28] sm:$0xf]
          %v1694 = vld [vmem:[%s1682 + $0x2c] sm:$0xf]
          %v1695 = vld [vmem:[%s1682 + $0x30] sm:$0xf]
          %v1696 = vld [vmem:[%s1682 + $0x34] sm:$0xf]
          %v1697 = vld [vmem:[%s1682 + $0x38] sm:$0xf]
          %v1698 = vld [vmem:[%s1682 + $0x3c] sm:$0xf]
          %v1699 = vld [vmem:[%s1682 + $0x40] sm:$0xf]
          %v1700 = vld [vmem:[%s1682 + $0x44] sm:$0xf]
          %v1701 = vld [vmem:[%s1682 + $0x48] sm:$0xf]
          %v1702 = vld [vmem:[%s1682 + $0x4c] sm:$0xf]
          %v1703 = vld [vmem:[%s1682 + $0x50] sm:$0xf]
          %v1704 = vld [vmem:[%s1682 + $0x54] sm:$0xf]
          %v1705 = vld [vmem:[%s1682 + $0x58] sm:$0xf]
          %v1706 = vld [vmem:[%s1682 + $0x5c] sm:$0xf]
          %v1707 = vld [vmem:[%s1682 + $0x60] sm:$0xf]
          %v1708 = vld [vmem:[%s1682 + $0x64] sm:$0xf]
          %v1709 = vld [vmem:[%s1682 + $0x68] sm:$0xf]
          %v1710 = vld [vmem:[%s1682 + $0x6c] sm:$0xf]
          %v1711 = vld [vmem:[%s1682 + $0x70] sm:$0xf]
          %v1712 = vld [vmem:[%s1682 + $0x74] sm:$0xf]
          %v1713 = vld [vmem:[%s1682 + $0x78] sm:$0xf]
          %v1714 = vld [vmem:[%s1682 + $0x7c] sm:$0xf]
          %s1715 = scalar_lea.vmem [#allocation10], 2
          %v1716 = vld [vmem:[%s1715] sm:$0x3]
          %v1718 = vperm.slane %v1716, 0
          %v1719 = vperm.slane %v1716, 1
          %v1738 = vunpack.c.l.b16 %v1666
          %v1739 = vunpack.c.h.b16 %v1666
          %v1740 = vunpack.c.l.b16 %v1667
          %v1741 = vunpack.c.h.b16 %v1667
          %v1742 = vunpack.c.l.b16 %v1668
          %v1743 = vunpack.c.h.b16 %v1668
          %v1744 = vunpack.c.l.b16 %v1669
          %v1745 = vunpack.c.h.b16 %v1669
          %v1746 = vunpack.c.l.b16 %v1670
          %v1747 = vunpack.c.h.b16 %v1670
          %v1748 = vunpack.c.l.b16 %v1671
          %v1749 = vunpack.c.h.b16 %v1671
          %v1750 = vunpack.c.l.b16 %v1672
          %v1751 = vunpack.c.h.b16 %v1672
          %v1752 = vunpack.c.l.b16 %v1673
          %v1753 = vunpack.c.h.b16 %v1673
          %v1754 = vunpack.c.l.b16 %v1674
          %v1755 = vunpack.c.h.b16 %v1674
          %v1756 = vunpack.c.l.b16 %v1675
          %v1757 = vunpack.c.h.b16 %v1675
          %v1758 = vunpack.c.l.b16 %v1676
          %v1759 = vunpack.c.h.b16 %v1676
          %v1760 = vunpack.c.l.b16 %v1677
          %v1761 = vunpack.c.h.b16 %v1677
          %v1762 = vunpack.c.l.b16 %v1678
          %v1763 = vunpack.c.h.b16 %v1678
          %v1764 = vunpack.c.l.b16 %v1679
          %v1765 = vunpack.c.h.b16 %v1679
          %v1766 = vunpack.c.l.b16 %v1680
          %v1767 = vunpack.c.h.b16 %v1680
          %v1768 = vunpack.c.l.b16 %v1681
          %v1769 = vunpack.c.h.b16 %v1681
          %v1770 = vpack.c.b16 %v1740, %v1738
          %v1771 = vpack.c.b16 %v1741, %v1739
          %v1772 = vpack.c.b16 %v1744, %v1742
          %v1773 = vpack.c.b16 %v1745, %v1743
          %v1774 = vpack.c.b16 %v1748, %v1746
          %v1775 = vpack.c.b16 %v1749, %v1747
          %v1776 = vpack.c.b16 %v1752, %v1750
          %v1777 = vpack.c.b16 %v1753, %v1751
          %v1778 = vpack.c.b16 %v1756, %v1754
          %v1779 = vpack.c.b16 %v1757, %v1755
          %v1780 = vpack.c.b16 %v1760, %v1758
          %v1781 = vpack.c.b16 %v1761, %v1759
          %v1782 = vpack.c.b16 %v1764, %v1762
          %v1783 = vpack.c.b16 %v1765, %v1763
          %v1784 = vpack.c.b16 %v1768, %v1766
          %v1785 = vpack.c.b16 %v1769, %v1767
          %1802 = vmatpush.bf16.msra.mxu0 %v1784
          %1803 = vmatpush.bf16.msra.mxu0 %v1782
          %1804 = vmatpush.bf16.msra.mxu0 %v1780
          %1805 = vmatpush.bf16.msra.mxu0 %v1778
          %1806 = vmatpush.bf16.msra.mxu0 %v1776
          %1807 = vmatpush.bf16.msra.mxu0 %v1774
          %1808 = vmatpush.bf16.msra.mxu0 %v1772
          %1809 = vmatpush.bf16.msra.mxu0 %v1770
          %1810 = vmatmul.bf16.gmra.mxu0 %v927
          %v1811 = vpop.f32.mrf.mxu0
          %v1812 = vadd.f32 %v1718, %v1811
          %v1813 = vpop.f32.mrf.mxu0
          %v1814 = vadd.f32 %v1718, %v1813
          %1815 = vmatmul.bf16.gmra.mxu0 %v928
          %v1816 = vpop.f32.mrf.mxu0
          %v1817 = vadd.f32 %v1718, %v1816
          %v1818 = vpop.f32.mrf.mxu0
          %v1819 = vadd.f32 %v1718, %v1818
          %1820 = vmatmul.bf16.gmra.mxu0 %v929
          %v1821 = vpop.f32.mrf.mxu0
          %v1822 = vadd.f32 %v1718, %v1821
          %v1823 = vpop.f32.mrf.mxu0
          %v1824 = vadd.f32 %v1718, %v1823
          %1825 = vmatmul.bf16.gmra.mxu0 %v930
          %v1826 = vpop.f32.mrf.mxu0
          %v1827 = vadd.f32 %v1718, %v1826
          %v1828 = vpop.f32.mrf.mxu0
          %v1829 = vadd.f32 %v1718, %v1828
          %1830 = vmatmul.bf16.gmra.mxu0 %v931
          %v1831 = vpop.f32.mrf.mxu0
          %v1832 = vadd.f32 %v1718, %v1831
          %v1833 = vpop.f32.mrf.mxu0
          %v1834 = vadd.f32 %v1718, %v1833
          %1835 = vmatmul.bf16.gmra.mxu0 %v932
          %v1836 = vpop.f32.mrf.mxu0
          %v1837 = vadd.f32 %v1718, %v1836
          %v1838 = vpop.f32.mrf.mxu0
          %v1839 = vadd.f32 %v1718, %v1838
          %1840 = vmatmul.bf16.gmra.mxu0 %v933
          %v1841 = vpop.f32.mrf.mxu0
          %v1842 = vadd.f32 %v1718, %v1841
          %v1843 = vpop.f32.mrf.mxu0
          %v1844 = vadd.f32 %v1718, %v1843
          %1845 = vmatmul.bf16.gmra.mxu0 %v934
          %v1846 = vpop.f32.mrf.mxu0
          %v1847 = vadd.f32 %v1718, %v1846
          %v1848 = vpop.f32.mrf.mxu0
          %v1849 = vadd.f32 %v1718, %v1848
          %1850 = vdwg.mxu0
          %1851 = vmatpush.bf16.msra.mxu0 %v1785
          %1852 = vmatpush.bf16.msra.mxu0 %v1783
          %1853 = vmatpush.bf16.msra.mxu0 %v1781
          %1854 = vmatpush.bf16.msra.mxu0 %v1779
          %1855 = vmatpush.bf16.msra.mxu0 %v1777
          %1856 = vmatpush.bf16.msra.mxu0 %v1775
          %1857 = vmatpush.bf16.msra.mxu0 %v1773
          %1858 = vmatpush.bf16.msra.mxu0 %v1771
          %1859 = vmatmul.bf16.gmra.mxu0 %v927
          %v1860 = vpop.f32.mrf.mxu0
          %v1861 = vadd.f32 %v1719, %v1860
          %v1862 = vpop.f32.mrf.mxu0
          %v1863 = vadd.f32 %v1719, %v1862
          %1864 = vmatmul.bf16.gmra.mxu0 %v928
          %v1865 = vpop.f32.mrf.mxu0
          %v1866 = vadd.f32 %v1719, %v1865
          %v1867 = vpop.f32.mrf.mxu0
          %v1868 = vadd.f32 %v1719, %v1867
          %1869 = vmatmul.bf16.gmra.mxu0 %v929
          %v1870 = vpop.f32.mrf.mxu0
          %v1871 = vadd.f32 %v1719, %v1870
          %v1872 = vpop.f32.mrf.mxu0
          %v1873 = vadd.f32 %v1719, %v1872
          %1874 = vmatmul.bf16.gmra.mxu0 %v930
          %v1875 = vpop.f32.mrf.mxu0
          %v1876 = vadd.f32 %v1719, %v1875
          %v1877 = vpop.f32.mrf.mxu0
          %v1878 = vadd.f32 %v1719, %v1877
          %1879 = vmatmul.bf16.gmra.mxu0 %v931
          %v1880 = vpop.f32.mrf.mxu0
          %v1881 = vadd.f32 %v1719, %v1880
          %v1882 = vpop.f32.mrf.mxu0
          %v1883 = vadd.f32 %v1719, %v1882
          %1884 = vmatmul.bf16.gmra.mxu0 %v932
          %v1885 = vpop.f32.mrf.mxu0
          %v1886 = vadd.f32 %v1719, %v1885
          %v1887 = vpop.f32.mrf.mxu0
          %v1888 = vadd.f32 %v1719, %v1887
          %1889 = vmatmul.bf16.gmra.mxu0 %v933
          %v1890 = vpop.f32.mrf.mxu0
          %v1891 = vadd.f32 %v1719, %v1890
          %v1892 = vpop.f32.mrf.mxu0
          %v1893 = vadd.f32 %v1719, %v1892
          %1894 = vmatmul.bf16.gmra.mxu0 %v934
          %v1895 = vpop.f32.mrf.mxu0
          %v1896 = vadd.f32 %v1719, %v1895
          %v1897 = vpop.f32.mrf.mxu0
          %v1898 = vadd.f32 %v1719, %v1897
          %1899 = vdwg.mxu0
          %v1900 = vmax.f32 %v1812, %v1861
          %1901 = vmax.xlane.f32.xlu0 %v1900
          %v1902 = vpop.xlane.xlu0 %1901
          %v1903 = vmax.f32 %v1814, %v1863
          %1904 = vmax.xlane.f32.xlu0 %v1903
          %v1905 = vpop.xlane.xlu0 %1904
          %v1906 = vmax.f32 %v1817, %v1866
          %1907 = vmax.xlane.f32.xlu0 %v1906
          %v1908 = vpop.xlane.xlu0 %1907
          %v1909 = vmax.f32 %v1819, %v1868
          %1910 = vmax.xlane.f32.xlu0 %v1909
          %v1911 = vpop.xlane.xlu0 %1910
          %v1912 = vmax.f32 %v1822, %v1871
          %1913 = vmax.xlane.f32.xlu0 %v1912
          %v1914 = vpop.xlane.xlu0 %1913
          %v1915 = vmax.f32 %v1824, %v1873
          %1916 = vmax.xlane.f32.xlu0 %v1915
          %v1917 = vpop.xlane.xlu0 %1916
          %v1918 = vmax.f32 %v1827, %v1876
          %1919 = vmax.xlane.f32.xlu0 %v1918
          %v1920 = vpop.xlane.xlu0 %1919
          %v1921 = vmax.f32 %v1829, %v1878
          %1922 = vmax.xlane.f32.xlu0 %v1921
          %v1923 = vpop.xlane.xlu0 %1922
          %v1924 = vmax.f32 %v1832, %v1881
          %1925 = vmax.xlane.f32.xlu0 %v1924
          %v1926 = vpop.xlane.xlu0 %1925
          %v1927 = vmax.f32 %v1834, %v1883
          %1928 = vmax.xlane.f32.xlu0 %v1927
          %v1929 = vpop.xlane.xlu0 %1928
          %v1930 = vmax.f32 %v1837, %v1886
          %1931 = vmax.xlane.f32.xlu0 %v1930
          %v1932 = vpop.xlane.xlu0 %1931
          %v1933 = vmax.f32 %v1839, %v1888
          %1934 = vmax.xlane.f32.xlu0 %v1933
          %v1935 = vpop.xlane.xlu0 %1934
          %v1936 = vmax.f32 %v1842, %v1891
          %1937 = vmax.xlane.f32.xlu0 %v1936
          %v1938 = vpop.xlane.xlu0 %1937
          %v1939 = vmax.f32 %v1844, %v1893
          %1940 = vmax.xlane.f32.xlu0 %v1939
          %v1941 = vpop.xlane.xlu0 %1940
          %v1942 = vmax.f32 %v1847, %v1896
          %1943 = vmax.xlane.f32.xlu0 %v1942
          %v1944 = vpop.xlane.xlu0 %1943
          %v1945 = vmax.f32 %v1849, %v1898
          %1946 = vmax.xlane.f32.xlu0 %v1945
          %v1947 = vpop.xlane.xlu0 %1946
          %v1948 = vmax.f32 %v1169, %v1902
          %v1949 = vmax.f32 %v1172, %v1905
          %v1950 = vmax.f32 %v1175, %v1908
          %v1951 = vmax.f32 %v1178, %v1911
          %v1952 = vmax.f32 %v1181, %v1914
          %v1953 = vmax.f32 %v1184, %v1917
          %v1954 = vmax.f32 %v1187, %v1920
          %v1955 = vmax.f32 %v1190, %v1923
          %v1956 = vmax.f32 %v1193, %v1926
          %v1957 = vmax.f32 %v1196, %v1929
          %v1958 = vmax.f32 %v1199, %v1932
          %v1959 = vmax.f32 %v1202, %v1935
          %v1960 = vmax.f32 %v1205, %v1938
          %v1961 = vmax.f32 %v1208, %v1941
          %v1962 = vmax.f32 %v1211, %v1944
          %v1963 = vmax.f32 %v1214, %v1947
          %v1964 = vsub.f32 %v1169, %v1948
          %v1965 = vsub.f32 %v1172, %v1949
          %v1966 = vsub.f32 %v1175, %v1950
          %v1967 = vsub.f32 %v1178, %v1951
          %v1968 = vsub.f32 %v1181, %v1952
          %v1969 = vsub.f32 %v1184, %v1953
          %v1970 = vsub.f32 %v1187, %v1954
          %v1971 = vsub.f32 %v1190, %v1955
          %v1972 = vsub.f32 %v1193, %v1956
          %v1973 = vsub.f32 %v1196, %v1957
          %v1974 = vsub.f32 %v1199, %v1958
          %v1975 = vsub.f32 %v1202, %v1959
          %v1976 = vsub.f32 %v1205, %v1960
          %v1977 = vsub.f32 %v1208, %v1961
          %v1978 = vsub.f32 %v1211, %v1962
          %v1979 = vsub.f32 %v1214, %v1963
          %v1980 = vmul.f32 %v1964, 1.442695
          %v1981 = vpow.pop %v1980
          %v1982 = vmul.f32 %v1965, 1.442695
          %v1983 = vpow.pop %v1982
          %v1984 = vmul.f32 %v1966, 1.442695
          %v1985 = vpow.pop %v1984
          %v1986 = vmul.f32 %v1967, 1.442695
          %v1987 = vpow.pop %v1986
          %v1988 = vmul.f32 %v1968, 1.442695
          %v1989 = vpow.pop %v1988
          %v1990 = vmul.f32 %v1969, 1.442695
          %v1991 = vpow.pop %v1990
          %v1992 = vmul.f32 %v1970, 1.442695
          %v1993 = vpow.pop %v1992
          %v1994 = vmul.f32 %v1971, 1.442695
          %v1995 = vpow.pop %v1994
          %v1996 = vmul.f32 %v1972, 1.442695
          %v1997 = vpow.pop %v1996
          %v1998 = vmul.f32 %v1973, 1.442695
          %v1999 = vpow.pop %v1998
          %v2000 = vmul.f32 %v1974, 1.442695
          %v2001 = vpow.pop %v2000
          %v2002 = vmul.f32 %v1975, 1.442695
          %v2003 = vpow.pop %v2002
          %v2004 = vmul.f32 %v1976, 1.442695
          %v2005 = vpow.pop %v2004
          %v2006 = vmul.f32 %v1977, 1.442695
          %v2007 = vpow.pop %v2006
          %v2008 = vmul.f32 %v1978, 1.442695
          %v2009 = vpow.pop %v2008
          %v2010 = vmul.f32 %v1979, 1.442695
          %v2011 = vpow.pop %v2010
          %v2012 = vsub.f32 %v1812, %v1948
          %v2013 = vsub.f32 %v1861, %v1948
          %v2014 = vsub.f32 %v1814, %v1949
          %v2015 = vsub.f32 %v1863, %v1949
          %v2016 = vsub.f32 %v1817, %v1950
          %v2017 = vsub.f32 %v1866, %v1950
          %v2018 = vsub.f32 %v1819, %v1951
          %v2019 = vsub.f32 %v1868, %v1951
          %v2020 = vsub.f32 %v1822, %v1952
          %v2021 = vsub.f32 %v1871, %v1952
          %v2022 = vsub.f32 %v1824, %v1953
          %v2023 = vsub.f32 %v1873, %v1953
          %v2024 = vsub.f32 %v1827, %v1954
          %v2025 = vsub.f32 %v1876, %v1954
          %v2026 = vsub.f32 %v1829, %v1955
          %v2027 = vsub.f32 %v1878, %v1955
          %v2028 = vsub.f32 %v1832, %v1956
          %v2029 = vsub.f32 %v1881, %v1956
          %v2030 = vsub.f32 %v1834, %v1957
          %v2031 = vsub.f32 %v1883, %v1957
          %v2032 = vsub.f32 %v1837, %v1958
          %v2033 = vsub.f32 %v1886, %v1958
          %v2034 = vsub.f32 %v1839, %v1959
          %v2035 = vsub.f32 %v1888, %v1959
          %v2036 = vsub.f32 %v1842, %v1960
          %v2037 = vsub.f32 %v1891, %v1960
          %v2038 = vsub.f32 %v1844, %v1961
          %v2039 = vsub.f32 %v1893, %v1961
          %v2040 = vsub.f32 %v1847, %v1962
          %v2041 = vsub.f32 %v1896, %v1962
          %v2042 = vsub.f32 %v1849, %v1963
          %v2043 = vsub.f32 %v1898, %v1963
          %v2044 = vmul.f32 %v2012, 1.442695
          %v2045 = vpow.pop %v2044
          %v2046 = vmul.f32 %v2013, 1.442695
          %v2047 = vpow.pop %v2046
          %v2048 = vmul.f32 %v2014, 1.442695
          %v2049 = vpow.pop %v2048
          %v2050 = vmul.f32 %v2015, 1.442695
          %v2051 = vpow.pop %v2050
          %v2052 = vmul.f32 %v2016, 1.442695
          %v2053 = vpow.pop %v2052
          %v2054 = vmul.f32 %v2017, 1.442695
          %v2055 = vpow.pop %v2054
          %v2056 = vmul.f32 %v2018, 1.442695
          %v2057 = vpow.pop %v2056
          %v2058 = vmul.f32 %v2019, 1.442695
          %v2059 = vpow.pop %v2058
          %v2060 = vmul.f32 %v2020, 1.442695
          %v2061 = vpow.pop %v2060
          %v2062 = vmul.f32 %v2021, 1.442695
          %v2063 = vpow.pop %v2062
          %v2064 = vmul.f32 %v2022, 1.442695
          %v2065 = vpow.pop %v2064
          %v2066 = vmul.f32 %v2023, 1.442695
          %v2067 = vpow.pop %v2066
          %v2068 = vmul.f32 %v2024, 1.442695
          %v2069 = vpow.pop %v2068
          %v2070 = vmul.f32 %v2025, 1.442695
          %v2071 = vpow.pop %v2070
          %v2072 = vmul.f32 %v2026, 1.442695
          %v2073 = vpow.pop %v2072
          %v2074 = vmul.f32 %v2027, 1.442695
          %v2075 = vpow.pop %v2074
          %v2076 = vmul.f32 %v2028, 1.442695
          %v2077 = vpow.pop %v2076
          %v2078 = vmul.f32 %v2029, 1.442695
          %v2079 = vpow.pop %v2078
          %v2080 = vmul.f32 %v2030, 1.442695
          %v2081 = vpow.pop %v2080
          %v2082 = vmul.f32 %v2031, 1.442695
          %v2083 = vpow.pop %v2082
          %v2084 = vmul.f32 %v2032, 1.442695
          %v2085 = vpow.pop %v2084
          %v2086 = vmul.f32 %v2033, 1.442695
          %v2087 = vpow.pop %v2086
          %v2088 = vmul.f32 %v2034, 1.442695
          %v2089 = vpow.pop %v2088
          %v2090 = vmul.f32 %v2035, 1.442695
          %v2091 = vpow.pop %v2090
          %v2092 = vmul.f32 %v2036, 1.442695
          %v2093 = vpow.pop %v2092
          %v2094 = vmul.f32 %v2037, 1.442695
          %v2095 = vpow.pop %v2094
          %v2096 = vmul.f32 %v2038, 1.442695
          %v2097 = vpow.pop %v2096
          %v2098 = vmul.f32 %v2039, 1.442695
          %v2099 = vpow.pop %v2098
          %v2100 = vmul.f32 %v2040, 1.442695
          %v2101 = vpow.pop %v2100
          %v2102 = vmul.f32 %v2041, 1.442695
          %v2103 = vpow.pop %v2102
          %v2104 = vmul.f32 %v2042, 1.442695
          %v2105 = vpow.pop %v2104
          %v2106 = vmul.f32 %v2043, 1.442695
          %v2107 = vpow.pop %v2106
          %v2108 = vmul.f32 %v1981, %v1423
          %v2109 = vmul.f32 %v1983, %v1424
          %v2110 = vmul.f32 %v1985, %v1425
          %v2111 = vmul.f32 %v1987, %v1426
          %v2112 = vmul.f32 %v1989, %v1427
          %v2113 = vmul.f32 %v1991, %v1428
          %v2114 = vmul.f32 %v1993, %v1429
          %v2115 = vmul.f32 %v1995, %v1430
          %v2116 = vmul.f32 %v1997, %v1431
          %v2117 = vmul.f32 %v1999, %v1432
          %v2118 = vmul.f32 %v2001, %v1433
          %v2119 = vmul.f32 %v2003, %v1434
          %v2120 = vmul.f32 %v2005, %v1435
          %v2121 = vmul.f32 %v2007, %v1436
          %v2122 = vmul.f32 %v2009, %v1437
          %v2123 = vmul.f32 %v2011, %v1438
          %v2124 = vadd.f32 %v2045, %v2047
          %2125 = vadd.xlane.f32.xlu0 %v2124
          %v2126 = vpop.xlane.xlu0 %2125
          %v2127 = vadd.f32 %v2049, %v2051
          %2128 = vadd.xlane.f32.xlu0 %v2127
          %v2129 = vpop.xlane.xlu0 %2128
          %v2130 = vadd.f32 %v2053, %v2055
          %2131 = vadd.xlane.f32.xlu0 %v2130
          %v2132 = vpop.xlane.xlu0 %2131
          %v2133 = vadd.f32 %v2057, %v2059
          %2134 = vadd.xlane.f32.xlu0 %v2133
          %v2135 = vpop.xlane.xlu0 %2134
          %v2136 = vadd.f32 %v2061, %v2063
          %2137 = vadd.xlane.f32.xlu0 %v2136
          %v2138 = vpop.xlane.xlu0 %2137
          %v2139 = vadd.f32 %v2065, %v2067
          %2140 = vadd.xlane.f32.xlu0 %v2139
          %v2141 = vpop.xlane.xlu0 %2140
          %v2142 = vadd.f32 %v2069, %v2071
          %2143 = vadd.xlane.f32.xlu0 %v2142
          %v2144 = vpop.xlane.xlu0 %2143
          %v2145 = vadd.f32 %v2073, %v2075
          %2146 = vadd.xlane.f32.xlu0 %v2145
          %v2147 = vpop.xlane.xlu0 %2146
          %v2148 = vadd.f32 %v2077, %v2079
          %2149 = vadd.xlane.f32.xlu0 %v2148
          %v2150 = vpop.xlane.xlu0 %2149
          %v2151 = vadd.f32 %v2081, %v2083
          %2152 = vadd.xlane.f32.xlu0 %v2151
          %v2153 = vpop.xlane.xlu0 %2152
          %v2154 = vadd.f32 %v2085, %v2087
          %2155 = vadd.xlane.f32.xlu0 %v2154
          %v2156 = vpop.xlane.xlu0 %2155
          %v2157 = vadd.f32 %v2089, %v2091
          %2158 = vadd.xlane.f32.xlu0 %v2157
          %v2159 = vpop.xlane.xlu0 %2158
          %v2160 = vadd.f32 %v2093, %v2095
          %2161 = vadd.xlane.f32.xlu0 %v2160
          %v2162 = vpop.xlane.xlu0 %2161
          %v2163 = vadd.f32 %v2097, %v2099
          %2164 = vadd.xlane.f32.xlu0 %v2163
          %v2165 = vpop.xlane.xlu0 %2164
          %v2166 = vadd.f32 %v2101, %v2103
          %2167 = vadd.xlane.f32.xlu0 %v2166
          %v2168 = vpop.xlane.xlu0 %2167
          %v2169 = vadd.f32 %v2105, %v2107
          %2170 = vadd.xlane.f32.xlu0 %v2169
          %v2171 = vpop.xlane.xlu0 %2170
          %v2172 = vadd.f32 %v2108, %v2126
          %v2173 = vadd.f32 %v2109, %v2129
          %v2174 = vadd.f32 %v2110, %v2132
          %v2175 = vadd.f32 %v2111, %v2135
          %v2176 = vadd.f32 %v2112, %v2138
          %v2177 = vadd.f32 %v2113, %v2141
          %v2178 = vadd.f32 %v2114, %v2144
          %v2179 = vadd.f32 %v2115, %v2147
          %v2180 = vadd.f32 %v2116, %v2150
          %v2181 = vadd.f32 %v2117, %v2153
          %v2182 = vadd.f32 %v2118, %v2156
          %v2183 = vadd.f32 %v2119, %v2159
          %v2184 = vadd.f32 %v2120, %v2162
          %v2185 = vadd.f32 %v2121, %v2165
          %v2186 = vadd.f32 %v2122, %v2168
          %v2187 = vadd.f32 %v2123, %v2171
          %v2188 = vmul.f32 %v1981, %v1649
          %v2189 = vmul.f32 %v1983, %v1650
          %v2190 = vmul.f32 %v1985, %v1651
          %v2191 = vmul.f32 %v1987, %v1652
          %v2192 = vmul.f32 %v1989, %v1653
          %v2193 = vmul.f32 %v1991, %v1654
          %v2194 = vmul.f32 %v1993, %v1655
          %v2195 = vmul.f32 %v1995, %v1656
          %v2196 = vmul.f32 %v1997, %v1657
          %v2197 = vmul.f32 %v1999, %v1658
          %v2198 = vmul.f32 %v2001, %v1659
          %v2199 = vmul.f32 %v2003, %v1660
          %v2200 = vmul.f32 %v2005, %v1661
          %v2201 = vmul.f32 %v2007, %v1662
          %v2202 = vmul.f32 %v2009, %v1663
          %v2203 = vmul.f32 %v2011, %v1664
          %v2204 = vpack.c.bf16 %v2049, %v2045
          %v2205 = vpack.c.bf16 %v2051, %v2047
          %v2206 = vpack.c.bf16 %v2057, %v2053
          %v2207 = vpack.c.bf16 %v2059, %v2055
          %v2208 = vpack.c.bf16 %v2065, %v2061
          %v2209 = vpack.c.bf16 %v2067, %v2063
          %v2210 = vpack.c.bf16 %v2073, %v2069
          %v2211 = vpack.c.bf16 %v2075, %v2071
          %v2212 = vpack.c.bf16 %v2081, %v2077
          %v2213 = vpack.c.bf16 %v2083, %v2079
          %v2214 = vpack.c.bf16 %v2089, %v2085
          %v2215 = vpack.c.bf16 %v2091, %v2087
          %v2216 = vpack.c.bf16 %v2097, %v2093
          %v2217 = vpack.c.bf16 %v2099, %v2095
          %v2218 = vpack.c.bf16 %v2105, %v2101
          %v2219 = vpack.c.bf16 %v2107, %v2103
          %v2252 = vunpack.c.l.b16 %v1683
          %v2253 = vunpack.c.l.b16 %v1684
          %v2254 = vunpack.c.l.b16 %v1685
          %v2255 = vunpack.c.l.b16 %v1686
          %v2256 = vunpack.c.l.b16 %v1687
          %v2257 = vunpack.c.l.b16 %v1688
          %v2258 = vunpack.c.l.b16 %v1689
          %v2259 = vunpack.c.l.b16 %v1690
          %v2260 = vunpack.c.l.b16 %v1691
          %v2261 = vunpack.c.l.b16 %v1692
          %v2262 = vunpack.c.l.b16 %v1693
          %v2263 = vunpack.c.l.b16 %v1694
          %v2264 = vunpack.c.l.b16 %v1695
          %v2265 = vunpack.c.l.b16 %v1696
          %v2266 = vunpack.c.l.b16 %v1697
          %v2267 = vunpack.c.l.b16 %v1698
          %v2268 = vunpack.c.l.b16 %v1699
          %v2269 = vunpack.c.l.b16 %v1700
          %v2270 = vunpack.c.l.b16 %v1701
          %v2271 = vunpack.c.l.b16 %v1702
          %v2272 = vunpack.c.l.b16 %v1703
          %v2273 = vunpack.c.l.b16 %v1704
          %v2274 = vunpack.c.l.b16 %v1705
          %v2275 = vunpack.c.l.b16 %v1706
          %v2276 = vunpack.c.l.b16 %v1707
          %v2277 = vunpack.c.l.b16 %v1708
          %v2278 = vunpack.c.l.b16 %v1709
          %v2279 = vunpack.c.l.b16 %v1710
          %v2280 = vunpack.c.l.b16 %v1711
          %v2281 = vunpack.c.l.b16 %v1712
          %v2282 = vunpack.c.l.b16 %v1713
          %v2283 = vunpack.c.l.b16 %v1714
          %v2284 = vpack.c.b16 %v2253, %v2252
          %v2285 = vpack.c.b16 %v2255, %v2254
          %v2286 = vpack.c.b16 %v2257, %v2256
          %v2287 = vpack.c.b16 %v2259, %v2258
          %v2288 = vpack.c.b16 %v2261, %v2260
          %v2289 = vpack.c.b16 %v2263, %v2262
          %v2290 = vpack.c.b16 %v2265, %v2264
          %v2291 = vpack.c.b16 %v2267, %v2266
          %v2292 = vpack.c.b16 %v2269, %v2268
          %v2293 = vpack.c.b16 %v2271, %v2270
          %v2294 = vpack.c.b16 %v2273, %v2272
          %v2295 = vpack.c.b16 %v2275, %v2274
          %v2296 = vpack.c.b16 %v2277, %v2276
          %v2297 = vpack.c.b16 %v2279, %v2278
          %v2298 = vpack.c.b16 %v2281, %v2280
          %v2299 = vpack.c.b16 %v2283, %v2282
          %2316 = vmatpush.bf16.msra.mxu0 %v2291
          %2317 = vmatpush.bf16.msra.mxu0 %v2290
          %2318 = vmatpush.bf16.msra.mxu0 %v2289
          %2319 = vmatpush.bf16.msra.mxu0 %v2288
          %2320 = vmatpush.bf16.msra.mxu0 %v2287
          %2321 = vmatpush.bf16.msra.mxu0 %v2286
          %2322 = vmatpush.bf16.msra.mxu0 %v2285
          %2323 = vmatpush.bf16.msra.mxu0 %v2284
          %2324 = vmatmul.bf16.gmra.mxu0 %v2204
          %v2325 = vpop.f32.mrf.mxu0
          %v2326 = vadd.f32 0.0, %v2325
          %v2327 = vpop.f32.mrf.mxu0
          %v2328 = vadd.f32 0.0, %v2327
          %2329 = vmatmul.bf16.gmra.mxu0 %v2206
          %v2330 = vpop.f32.mrf.mxu0
          %v2331 = vadd.f32 0.0, %v2330
          %v2332 = vpop.f32.mrf.mxu0
          %v2333 = vadd.f32 0.0, %v2332
          %2334 = vmatmul.bf16.gmra.mxu0 %v2208
          %v2335 = vpop.f32.mrf.mxu0
          %v2336 = vadd.f32 0.0, %v2335
          %v2337 = vpop.f32.mrf.mxu0
          %v2338 = vadd.f32 0.0, %v2337
          %2339 = vmatmul.bf16.gmra.mxu0 %v2210
          %v2340 = vpop.f32.mrf.mxu0
          %v2341 = vadd.f32 0.0, %v2340
          %v2342 = vpop.f32.mrf.mxu0
          %v2343 = vadd.f32 0.0, %v2342
          %2344 = vmatmul.bf16.gmra.mxu0 %v2212
          %v2345 = vpop.f32.mrf.mxu0
          %v2346 = vadd.f32 0.0, %v2345
          %v2347 = vpop.f32.mrf.mxu0
          %v2348 = vadd.f32 0.0, %v2347
          %2349 = vmatmul.bf16.gmra.mxu0 %v2214
          %v2350 = vpop.f32.mrf.mxu0
          %v2351 = vadd.f32 0.0, %v2350
          %v2352 = vpop.f32.mrf.mxu0
          %v2353 = vadd.f32 0.0, %v2352
          %2354 = vmatmul.bf16.gmra.mxu0 %v2216
          %v2355 = vpop.f32.mrf.mxu0
          %v2356 = vadd.f32 0.0, %v2355
          %v2357 = vpop.f32.mrf.mxu0
          %v2358 = vadd.f32 0.0, %v2357
          %2359 = vmatmul.bf16.gmra.mxu0 %v2218
          %v2360 = vpop.f32.mrf.mxu0
          %v2361 = vadd.f32 0.0, %v2360
          %v2362 = vpop.f32.mrf.mxu0
          %v2363 = vadd.f32 0.0, %v2362
          %2364 = vdwg.mxu0
          %2365 = vmatpush.bf16.msra.mxu0 %v2299
          %2366 = vmatpush.bf16.msra.mxu0 %v2298
          %2367 = vmatpush.bf16.msra.mxu0 %v2297
          %2368 = vmatpush.bf16.msra.mxu0 %v2296
          %2369 = vmatpush.bf16.msra.mxu0 %v2295
          %2370 = vmatpush.bf16.msra.mxu0 %v2294
          %2371 = vmatpush.bf16.msra.mxu0 %v2293
          %2372 = vmatpush.bf16.msra.mxu0 %v2292
          %2373 = vmatmul.bf16.gmra.mxu0 %v2205
          %v2374 = vpop.f32.mrf.mxu0
          %v2375 = vadd.f32 %v2326, %v2374
          %v2376 = vpop.f32.mrf.mxu0
          %v2377 = vadd.f32 %v2328, %v2376
          %2378 = vmatmul.bf16.gmra.mxu0 %v2207
          %v2379 = vpop.f32.mrf.mxu0
          %v2380 = vadd.f32 %v2331, %v2379
          %v2381 = vpop.f32.mrf.mxu0
          %v2382 = vadd.f32 %v2333, %v2381
          %2383 = vmatmul.bf16.gmra.mxu0 %v2209
          %v2384 = vpop.f32.mrf.mxu0
          %v2385 = vadd.f32 %v2336, %v2384
          %v2386 = vpop.f32.mrf.mxu0
          %v2387 = vadd.f32 %v2338, %v2386
          %2388 = vmatmul.bf16.gmra.mxu0 %v2211
          %v2389 = vpop.f32.mrf.mxu0
          %v2390 = vadd.f32 %v2341, %v2389
          %v2391 = vpop.f32.mrf.mxu0
          %v2392 = vadd.f32 %v2343, %v2391
          %2393 = vmatmul.bf16.gmra.mxu0 %v2213
          %v2394 = vpop.f32.mrf.mxu0
          %v2395 = vadd.f32 %v2346, %v2394
          %v2396 = vpop.f32.mrf.mxu0
          %v2397 = vadd.f32 %v2348, %v2396
          %2398 = vmatmul.bf16.gmra.mxu0 %v2215
          %v2399 = vpop.f32.mrf.mxu0
          %v2400 = vadd.f32 %v2351, %v2399
          %v2401 = vpop.f32.mrf.mxu0
          %v2402 = vadd.f32 %v2353, %v2401
          %2403 = vmatmul.bf16.gmra.mxu0 %v2217
          %v2404 = vpop.f32.mrf.mxu0
          %v2405 = vadd.f32 %v2356, %v2404
          %v2406 = vpop.f32.mrf.mxu0
          %v2407 = vadd.f32 %v2358, %v2406
          %2408 = vmatmul.bf16.gmra.mxu0 %v2219
          %v2409 = vpop.f32.mrf.mxu0
          %v2410 = vadd.f32 %v2361, %v2409
          %v2411 = vpop.f32.mrf.mxu0
          %v2412 = vadd.f32 %v2363, %v2411
          %2413 = vdwg.mxu0
          %v2414 = vadd.f32 %v2188, %v2375
          %v2415 = vadd.f32 %v2189, %v2377
          %v2416 = vadd.f32 %v2190, %v2380
          %v2417 = vadd.f32 %v2191, %v2382
          %v2418 = vadd.f32 %v2192, %v2385
          %v2419 = vadd.f32 %v2193, %v2387
          %v2420 = vadd.f32 %v2194, %v2390
          %v2421 = vadd.f32 %v2195, %v2392
          %v2422 = vadd.f32 %v2196, %v2395
          %v2423 = vadd.f32 %v2197, %v2397
          %v2424 = vadd.f32 %v2198, %v2400
          %v2425 = vadd.f32 %v2199, %v2402
          %v2426 = vadd.f32 %v2200, %v2405
          %v2427 = vadd.f32 %v2201, %v2407
          %v2428 = vadd.f32 %v2202, %v2410
          %v2429 = vadd.f32 %v2203, %v2412
          %v2430 = vrcp.pop %v2172
          %v2431 = vrcp.pop %v2173
          %v2432 = vrcp.pop %v2174
          %v2433 = vrcp.pop %v2175
          %v2434 = vrcp.pop %v2176
          %v2435 = vrcp.pop %v2177
          %v2436 = vrcp.pop %v2178
          %v2437 = vrcp.pop %v2179
          %v2438 = vrcp.pop %v2180
          %v2439 = vrcp.pop %v2181
          %v2440 = vrcp.pop %v2182
          %v2441 = vrcp.pop %v2183
          %v2442 = vrcp.pop %v2184
          %v2443 = vrcp.pop %v2185
          %v2444 = vrcp.pop %v2186
          %v2445 = vrcp.pop %v2187
          %v2446 = vmul.f32 %v2414, %v2430
          %v2447 = vmul.f32 %v2415, %v2431
          %v2448 = vmul.f32 %v2416, %v2432
          %v2449 = vmul.f32 %v2417, %v2433
          %v2450 = vmul.f32 %v2418, %v2434
          %v2451 = vmul.f32 %v2419, %v2435
          %v2452 = vmul.f32 %v2420, %v2436
          %v2453 = vmul.f32 %v2421, %v2437
          %v2454 = vmul.f32 %v2422, %v2438
          %v2455 = vmul.f32 %v2423, %v2439
          %v2456 = vmul.f32 %v2424, %v2440
          %v2457 = vmul.f32 %v2425, %v2441
          %v2458 = vmul.f32 %v2426, %v2442
          %v2459 = vmul.f32 %v2427, %v2443
          %v2460 = vmul.f32 %v2428, %v2444
          %v2461 = vmul.f32 %v2429, %v2445
          %v2462 = vpack.c.bf16 %v2447, %v2446
          %v2463 = vpack.c.bf16 %v2449, %v2448
          %v2464 = vpack.c.bf16 %v2451, %v2450
          %v2465 = vpack.c.bf16 %v2453, %v2452
          %v2466 = vpack.c.bf16 %v2455, %v2454
          %v2467 = vpack.c.bf16 %v2457, %v2456
          %v2468 = vpack.c.bf16 %v2459, %v2458
          %v2469 = vpack.c.bf16 %v2461, %v2460
          %v2470 = vld [vmem:[#allocation13] sm:$0xf]
          %v2471 = vld [vmem:[#allocation13 + $0x4] sm:$0xf]
          %v2472 = vld [vmem:[#allocation13 + $0x8] sm:$0xf]
          %v2473 = vld [vmem:[#allocation13 + $0xc] sm:$0xf]
          %v2474 = vld [vmem:[#allocation13 + $0x10] sm:$0xf]
          %v2475 = vld [vmem:[#allocation13 + $0x14] sm:$0xf]
          %v2476 = vld [vmem:[#allocation13 + $0x18] sm:$0xf]
          %v2477 = vld [vmem:[#allocation13 + $0x1c] sm:$0xf]
          %v2478 = vld [vmem:[#allocation13 + $0x20] sm:$0xf]
          %v2479 = vld [vmem:[#allocation13 + $0x24] sm:$0xf]
          %v2480 = vld [vmem:[#allocation13 + $0x28] sm:$0xf]
          %v2481 = vld [vmem:[#allocation13 + $0x2c] sm:$0xf]
          %v2482 = vld [vmem:[#allocation13 + $0x30] sm:$0xf]
          %v2483 = vld [vmem:[#allocation13 + $0x34] sm:$0xf]
          %v2484 = vld [vmem:[#allocation13 + $0x38] sm:$0xf]
          %v2485 = vld [vmem:[#allocation13 + $0x3c] sm:$0xf]
          %v2502 = vunpack.c.l.b16 %v2470
          %v2503 = vunpack.c.l.b16 %v2471
          %v2504 = vunpack.c.l.b16 %v2472
          %v2505 = vunpack.c.l.b16 %v2473
          %v2506 = vunpack.c.l.b16 %v2474
          %v2507 = vunpack.c.l.b16 %v2475
          %v2508 = vunpack.c.l.b16 %v2476
          %v2509 = vunpack.c.l.b16 %v2477
          %v2510 = vunpack.c.l.b16 %v2478
          %v2511 = vunpack.c.l.b16 %v2479
          %v2512 = vunpack.c.l.b16 %v2480
          %v2513 = vunpack.c.l.b16 %v2481
          %v2514 = vunpack.c.l.b16 %v2482
          %v2515 = vunpack.c.l.b16 %v2483
          %v2516 = vunpack.c.l.b16 %v2484
          %v2517 = vunpack.c.l.b16 %v2485
          %v2518 = vpack.c.b16 %v2503, %v2502
          %v2519 = vpack.c.b16 %v2505, %v2504
          %v2520 = vpack.c.b16 %v2507, %v2506
          %v2521 = vpack.c.b16 %v2509, %v2508
          %v2522 = vpack.c.b16 %v2511, %v2510
          %v2523 = vpack.c.b16 %v2513, %v2512
          %v2524 = vpack.c.b16 %v2515, %v2514
          %v2525 = vpack.c.b16 %v2517, %v2516
          %2534 = vmatpush.bf16.msra.mxu0 %v2525
          %2535 = vmatpush.bf16.msra.mxu0 %v2524
          %2536 = vmatpush.bf16.msra.mxu0 %v2523
          %2537 = vmatpush.bf16.msra.mxu0 %v2522
          %2538 = vmatpush.bf16.msra.mxu0 %v2521
          %2539 = vmatpush.bf16.msra.mxu0 %v2520
          %2540 = vmatpush.bf16.msra.mxu0 %v2519
          %2541 = vmatpush.bf16.msra.mxu0 %v2518
          %2542 = vmatmul.bf16.gmra.mxu0 %v2462
          %v2543 = vpop.f32.mrf.mxu0
          %v2544 = vadd.f32 0.0, %v2543
          %v2545 = vpop.f32.mrf.mxu0
          %v2546 = vadd.f32 0.0, %v2545
          %2547 = vmatmul.bf16.gmra.mxu0 %v2463
          %v2548 = vpop.f32.mrf.mxu0
          %v2549 = vadd.f32 0.0, %v2548
          %v2550 = vpop.f32.mrf.mxu0
          %v2551 = vadd.f32 0.0, %v2550
          %2552 = vmatmul.bf16.gmra.mxu0 %v2464
          %v2553 = vpop.f32.mrf.mxu0
          %v2554 = vadd.f32 0.0, %v2553
          %v2555 = vpop.f32.mrf.mxu0
          %v2556 = vadd.f32 0.0, %v2555
          %2557 = vmatmul.bf16.gmra.mxu0 %v2465
          %v2558 = vpop.f32.mrf.mxu0
          %v2559 = vadd.f32 0.0, %v2558
          %v2560 = vpop.f32.mrf.mxu0
          %v2561 = vadd.f32 0.0, %v2560
          %2562 = vmatmul.bf16.gmra.mxu0 %v2466
          %v2563 = vpop.f32.mrf.mxu0
          %v2564 = vadd.f32 0.0, %v2563
          %v2565 = vpop.f32.mrf.mxu0
          %v2566 = vadd.f32 0.0, %v2565
          %2567 = vmatmul.bf16.gmra.mxu0 %v2467
          %v2568 = vpop.f32.mrf.mxu0
          %v2569 = vadd.f32 0.0, %v2568
          %v2570 = vpop.f32.mrf.mxu0
          %v2571 = vadd.f32 0.0, %v2570
          %2572 = vmatmul.bf16.gmra.mxu0 %v2468
          %v2573 = vpop.f32.mrf.mxu0
          %v2574 = vadd.f32 0.0, %v2573
          %v2575 = vpop.f32.mrf.mxu0
          %v2576 = vadd.f32 0.0, %v2575
          %2577 = vmatmul.bf16.gmra.mxu0 %v2469
          %v2578 = vpop.f32.mrf.mxu0
          %v2579 = vadd.f32 0.0, %v2578
          %v2580 = vpop.f32.mrf.mxu0
          %v2581 = vadd.f32 0.0, %v2580
          %2582 = vdwg.mxu0
          %v2583 = vadd.f32 %v742, %v2544
          %v2584 = vadd.f32 %v743, %v2546
          %v2585 = vadd.f32 %v744, %v2549
          %v2586 = vadd.f32 %v745, %v2551
          %v2587 = vadd.f32 %v746, %v2554
          %v2588 = vadd.f32 %v747, %v2556
          %v2589 = vadd.f32 %v748, %v2559
          %v2590 = vadd.f32 %v749, %v2561
          %v2591 = vadd.f32 %v750, %v2564
          %v2592 = vadd.f32 %v751, %v2566
          %v2593 = vadd.f32 %v752, %v2569
          %v2594 = vadd.f32 %v753, %v2571
          %v2595 = vadd.f32 %v754, %v2574
          %v2596 = vadd.f32 %v755, %v2576
          %v2597 = vadd.f32 %v756, %v2579
          %v2598 = vadd.f32 %v757, %v2581
          %2599 = vadd.xlane.f32.xlu0 %v2583
          %v2600 = vpop.xlane.xlu0 %2599
          %2601 = vadd.xlane.f32.xlu0 %v2584
          %v2602 = vpop.xlane.xlu0 %2601
          %2603 = vadd.xlane.f32.xlu0 %v2585
          %v2604 = vpop.xlane.xlu0 %2603
          %2605 = vadd.xlane.f32.xlu0 %v2586
          %v2606 = vpop.xlane.xlu0 %2605
          %2607 = vadd.xlane.f32.xlu0 %v2587
          %v2608 = vpop.xlane.xlu0 %2607
          %2609 = vadd.xlane.f32.xlu0 %v2588
          %v2610 = vpop.xlane.xlu0 %2609
          %2611 = vadd.xlane.f32.xlu0 %v2589
          %v2612 = vpop.xlane.xlu0 %2611
          %2613 = vadd.xlane.f32.xlu0 %v2590
          %v2614 = vpop.xlane.xlu0 %2613
          %2615 = vadd.xlane.f32.xlu0 %v2591
          %v2616 = vpop.xlane.xlu0 %2615
          %2617 = vadd.xlane.f32.xlu0 %v2592
          %v2618 = vpop.xlane.xlu0 %2617
          %2619 = vadd.xlane.f32.xlu0 %v2593
          %v2620 = vpop.xlane.xlu0 %2619
          %2621 = vadd.xlane.f32.xlu0 %v2594
          %v2622 = vpop.xlane.xlu0 %2621
          %2623 = vadd.xlane.f32.xlu0 %v2595
          %v2624 = vpop.xlane.xlu0 %2623
          %2625 = vadd.xlane.f32.xlu0 %v2596
          %v2626 = vpop.xlane.xlu0 %2625
          %2627 = vadd.xlane.f32.xlu0 %v2597
          %v2628 = vpop.xlane.xlu0 %2627
          %2629 = vadd.xlane.f32.xlu0 %v2598
          %v2630 = vpop.xlane.xlu0 %2629
          %v2631 = vrcp.pop 128.0
          %v2632 = vmul.f32 128.0, %v2631
          %v2633 = vsub.f32 1.0, %v2632
          %v2634 = vmul.f32 %v2631, %v2633
          %v2635 = vadd.f32 %v2631, %v2634
          %vm2636 = vweird.f32 %v2631
          %v2637 = vsel %vm2636, %v2631, %v2635
          %v2638 = vmul.f32 %v2600, %v2637
          %v2639 = vmul.f32 %v2602, %v2637
          %v2640 = vmul.f32 %v2604, %v2637
          %v2641 = vmul.f32 %v2606, %v2637
          %v2642 = vmul.f32 %v2608, %v2637
          %v2643 = vmul.f32 %v2610, %v2637
          %v2644 = vmul.f32 %v2612, %v2637
          %v2645 = vmul.f32 %v2614, %v2637
          %v2646 = vmul.f32 %v2616, %v2637
          %v2647 = vmul.f32 %v2618, %v2637
          %v2648 = vmul.f32 %v2620, %v2637
          %v2649 = vmul.f32 %v2622, %v2637
          %v2650 = vmul.f32 %v2624, %v2637
          %v2651 = vmul.f32 %v2626, %v2637
          %v2652 = vmul.f32 %v2628, %v2637
          %v2653 = vmul.f32 %v2630, %v2637
          %v2654 = vsub.f32 %v2583, %v2638
          %v2655 = vsub.f32 %v2584, %v2639
          %v2656 = vsub.f32 %v2585, %v2640
          %v2657 = vsub.f32 %v2586, %v2641
          %v2658 = vsub.f32 %v2587, %v2642
          %v2659 = vsub.f32 %v2588, %v2643
          %v2660 = vsub.f32 %v2589, %v2644
          %v2661 = vsub.f32 %v2590, %v2645
          %v2662 = vsub.f32 %v2591, %v2646
          %v2663 = vsub.f32 %v2592, %v2647
          %v2664 = vsub.f32 %v2593, %v2648
          %v2665 = vsub.f32 %v2594, %v2649
          %v2666 = vsub.f32 %v2595, %v2650
          %v2667 = vsub.f32 %v2596, %v2651
          %v2668 = vsub.f32 %v2597, %v2652
          %v2669 = vsub.f32 %v2598, %v2653
          %v2670 = vmul.f32 %v2654, %v2654
          %v2671 = vmul.f32 %v2655, %v2655
          %v2672 = vmul.f32 %v2656, %v2656
          %v2673 = vmul.f32 %v2657, %v2657
          %v2674 = vmul.f32 %v2658, %v2658
          %v2675 = vmul.f32 %v2659, %v2659
          %v2676 = vmul.f32 %v2660, %v2660
          %v2677 = vmul.f32 %v2661, %v2661
          %v2678 = vmul.f32 %v2662, %v2662
          %v2679 = vmul.f32 %v2663, %v2663
          %v2680 = vmul.f32 %v2664, %v2664
          %v2681 = vmul.f32 %v2665, %v2665
          %v2682 = vmul.f32 %v2666, %v2666
          %v2683 = vmul.f32 %v2667, %v2667
          %v2684 = vmul.f32 %v2668, %v2668
          %v2685 = vmul.f32 %v2669, %v2669
          %2686 = vadd.xlane.f32.xlu0 %v2670
          %v2687 = vpop.xlane.xlu0 %2686
          %2688 = vadd.xlane.f32.xlu0 %v2671
          %v2689 = vpop.xlane.xlu0 %2688
          %2690 = vadd.xlane.f32.xlu0 %v2672
          %v2691 = vpop.xlane.xlu0 %2690
          %2692 = vadd.xlane.f32.xlu0 %v2673
          %v2693 = vpop.xlane.xlu0 %2692
          %2694 = vadd.xlane.f32.xlu0 %v2674
          %v2695 = vpop.xlane.xlu0 %2694
          %2696 = vadd.xlane.f32.xlu0 %v2675
          %v2697 = vpop.xlane.xlu0 %2696
          %2698 = vadd.xlane.f32.xlu0 %v2676
          %v2699 = vpop.xlane.xlu0 %2698
          %2700 = vadd.xlane.f32.xlu0 %v2677
          %v2701 = vpop.xlane.xlu0 %2700
          %2702 = vadd.xlane.f32.xlu0 %v2678
          %v2703 = vpop.xlane.xlu0 %2702
          %2704 = vadd.xlane.f32.xlu0 %v2679
          %v2705 = vpop.xlane.xlu0 %2704
          %2706 = vadd.xlane.f32.xlu0 %v2680
          %v2707 = vpop.xlane.xlu0 %2706
          %2708 = vadd.xlane.f32.xlu0 %v2681
          %v2709 = vpop.xlane.xlu0 %2708
          %2710 = vadd.xlane.f32.xlu0 %v2682
          %v2711 = vpop.xlane.xlu0 %2710
          %2712 = vadd.xlane.f32.xlu0 %v2683
          %v2713 = vpop.xlane.xlu0 %2712
          %2714 = vadd.xlane.f32.xlu0 %v2684
          %v2715 = vpop.xlane.xlu0 %2714
          %2716 = vadd.xlane.f32.xlu0 %v2685
          %v2717 = vpop.xlane.xlu0 %2716
          %v2718 = vmul.f32 %v2687, %v2637
          %v2719 = vmul.f32 %v2689, %v2637
          %v2720 = vmul.f32 %v2691, %v2637
          %v2721 = vmul.f32 %v2693, %v2637
          %v2722 = vmul.f32 %v2695, %v2637
          %v2723 = vmul.f32 %v2697, %v2637
          %v2724 = vmul.f32 %v2699, %v2637
          %v2725 = vmul.f32 %v2701, %v2637
          %v2726 = vmul.f32 %v2703, %v2637
          %v2727 = vmul.f32 %v2705, %v2637
          %v2728 = vmul.f32 %v2707, %v2637
          %v2729 = vmul.f32 %v2709, %v2637
          %v2730 = vmul.f32 %v2711, %v2637
          %v2731 = vmul.f32 %v2713, %v2637
          %v2732 = vmul.f32 %v2715, %v2637
          %v2733 = vmul.f32 %v2717, %v2637
          %v2734 = vadd.f32 %v2718, 1e-05
          %v2735 = vadd.f32 %v2719, 1e-05
          %v2736 = vadd.f32 %v2720, 1e-05
          %v2737 = vadd.f32 %v2721, 1e-05
          %v2738 = vadd.f32 %v2722, 1e-05
          %v2739 = vadd.f32 %v2723, 1e-05
          %v2740 = vadd.f32 %v2724, 1e-05
          %v2741 = vadd.f32 %v2725, 1e-05
          %v2742 = vadd.f32 %v2726, 1e-05
          %v2743 = vadd.f32 %v2727, 1e-05
          %v2744 = vadd.f32 %v2728, 1e-05
          %v2745 = vadd.f32 %v2729, 1e-05
          %v2746 = vadd.f32 %v2730, 1e-05
          %v2747 = vadd.f32 %v2731, 1e-05
          %v2748 = vadd.f32 %v2732, 1e-05
          %v2749 = vadd.f32 %v2733, 1e-05
          %v2750 = vrsqrt.pop %v2734
          %v2751 = vmul.f32 %v2750, %v2734
          %v2752 = vmul.f32 %v2751, %v2750
          %v2753 = vmul.f32 0.5, %v2752
          %v2754 = vsub.f32 1.5, %v2753
          %v2755 = vmul.f32 %v2750, %v2754
          %vm2756 = vweird.f32 %v2734
          %vm2757 = vweird.f32 %v2750
          %vm2758 = vmor %vm2756, %vm2757
          %v2759 = vsel %vm2758, %v2750, %v2755
          %v2760 = vrsqrt.pop %v2735
          %v2761 = vmul.f32 %v2760, %v2735
          %v2762 = vmul.f32 %v2761, %v2760
          %v2763 = vmul.f32 0.5, %v2762
          %v2764 = vsub.f32 1.5, %v2763
          %v2765 = vmul.f32 %v2760, %v2764
          %vm2766 = vweird.f32 %v2735
          %vm2767 = vweird.f32 %v2760
          %vm2768 = vmor %vm2766, %vm2767
          %v2769 = vsel %vm2768, %v2760, %v2765
          %v2770 = vrsqrt.pop %v2736
          %v2771 = vmul.f32 %v2770, %v2736
          %v2772 = vmul.f32 %v2771, %v2770
          %v2773 = vmul.f32 0.5, %v2772
          %v2774 = vsub.f32 1.5, %v2773
          %v2775 = vmul.f32 %v2770, %v2774
          %vm2776 = vweird.f32 %v2736
          %vm2777 = vweird.f32 %v2770
          %vm2778 = vmor %vm2776, %vm2777
          %v2779 = vsel %vm2778, %v2770, %v2775
          %v2780 = vrsqrt.pop %v2737
          %v2781 = vmul.f32 %v2780, %v2737
          %v2782 = vmul.f32 %v2781, %v2780
          %v2783 = vmul.f32 0.5, %v2782
          %v2784 = vsub.f32 1.5, %v2783
          %v2785 = vmul.f32 %v2780, %v2784
          %vm2786 = vweird.f32 %v2737
          %vm2787 = vweird.f32 %v2780
          %vm2788 = vmor %vm2786, %vm2787
          %v2789 = vsel %vm2788, %v2780, %v2785
          %v2790 = vrsqrt.pop %v2738
          %v2791 = vmul.f32 %v2790, %v2738
          %v2792 = vmul.f32 %v2791, %v2790
          %v2793 = vmul.f32 0.5, %v2792
          %v2794 = vsub.f32 1.5, %v2793
          %v2795 = vmul.f32 %v2790, %v2794
          %vm2796 = vweird.f32 %v2738
          %vm2797 = vweird.f32 %v2790
          %vm2798 = vmor %vm2796, %vm2797
          %v2799 = vsel %vm2798, %v2790, %v2795
          %v2800 = vrsqrt.pop %v2739
          %v2801 = vmul.f32 %v2800, %v2739
          %v2802 = vmul.f32 %v2801, %v2800
          %v2803 = vmul.f32 0.5, %v2802
          %v2804 = vsub.f32 1.5, %v2803
          %v2805 = vmul.f32 %v2800, %v2804
          %vm2806 = vweird.f32 %v2739
          %vm2807 = vweird.f32 %v2800
          %vm2808 = vmor %vm2806, %vm2807
          %v2809 = vsel %vm2808, %v2800, %v2805
          %v2810 = vrsqrt.pop %v2740
          %v2811 = vmul.f32 %v2810, %v2740
          %v2812 = vmul.f32 %v2811, %v2810
          %v2813 = vmul.f32 0.5, %v2812
          %v2814 = vsub.f32 1.5, %v2813
          %v2815 = vmul.f32 %v2810, %v2814
          %vm2816 = vweird.f32 %v2740
          %vm2817 = vweird.f32 %v2810
          %vm2818 = vmor %vm2816, %vm2817
          %v2819 = vsel %vm2818, %v2810, %v2815
          %v2820 = vrsqrt.pop %v2741
          %v2821 = vmul.f32 %v2820, %v2741
          %v2822 = vmul.f32 %v2821, %v2820
          %v2823 = vmul.f32 0.5, %v2822
          %v2824 = vsub.f32 1.5, %v2823
          %v2825 = vmul.f32 %v2820, %v2824
          %vm2826 = vweird.f32 %v2741
          %vm2827 = vweird.f32 %v2820
          %vm2828 = vmor %vm2826, %vm2827
          %v2829 = vsel %vm2828, %v2820, %v2825
          %v2830 = vrsqrt.pop %v2742
          %v2831 = vmul.f32 %v2830, %v2742
          %v2832 = vmul.f32 %v2831, %v2830
          %v2833 = vmul.f32 0.5, %v2832
          %v2834 = vsub.f32 1.5, %v2833
          %v2835 = vmul.f32 %v2830, %v2834
          %vm2836 = vweird.f32 %v2742
          %vm2837 = vweird.f32 %v2830
          %vm2838 = vmor %vm2836, %vm2837
          %v2839 = vsel %vm2838, %v2830, %v2835
          %v2840 = vrsqrt.pop %v2743
          %v2841 = vmul.f32 %v2840, %v2743
          %v2842 = vmul.f32 %v2841, %v2840
          %v2843 = vmul.f32 0.5, %v2842
          %v2844 = vsub.f32 1.5, %v2843
          %v2845 = vmul.f32 %v2840, %v2844
          %vm2846 = vweird.f32 %v2743
          %vm2847 = vweird.f32 %v2840
          %vm2848 = vmor %vm2846, %vm2847
          %v2849 = vsel %vm2848, %v2840, %v2845
          %v2850 = vrsqrt.pop %v2744
          %v2851 = vmul.f32 %v2850, %v2744
          %v2852 = vmul.f32 %v2851, %v2850
          %v2853 = vmul.f32 0.5, %v2852
          %v2854 = vsub.f32 1.5, %v2853
          %v2855 = vmul.f32 %v2850, %v2854
          %vm2856 = vweird.f32 %v2744
          %vm2857 = vweird.f32 %v2850
          %vm2858 = vmor %vm2856, %vm2857
          %v2859 = vsel %vm2858, %v2850, %v2855
          %v2860 = vrsqrt.pop %v2745
          %v2861 = vmul.f32 %v2860, %v2745
          %v2862 = vmul.f32 %v2861, %v2860
          %v2863 = vmul.f32 0.5, %v2862
          %v2864 = vsub.f32 1.5, %v2863
          %v2865 = vmul.f32 %v2860, %v2864
          %vm2866 = vweird.f32 %v2745
          %vm2867 = vweird.f32 %v2860
          %vm2868 = vmor %vm2866, %vm2867
          %v2869 = vsel %vm2868, %v2860, %v2865
          %v2870 = vrsqrt.pop %v2746
          %v2871 = vmul.f32 %v2870, %v2746
          %v2872 = vmul.f32 %v2871, %v2870
          %v2873 = vmul.f32 0.5, %v2872
          %v2874 = vsub.f32 1.5, %v2873
          %v2875 = vmul.f32 %v2870, %v2874
          %vm2876 = vweird.f32 %v2746
          %vm2877 = vweird.f32 %v2870
          %vm2878 = vmor %vm2876, %vm2877
          %v2879 = vsel %vm2878, %v2870, %v2875
          %v2880 = vrsqrt.pop %v2747
          %v2881 = vmul.f32 %v2880, %v2747
          %v2882 = vmul.f32 %v2881, %v2880
          %v2883 = vmul.f32 0.5, %v2882
          %v2884 = vsub.f32 1.5, %v2883
          %v2885 = vmul.f32 %v2880, %v2884
          %vm2886 = vweird.f32 %v2747
          %vm2887 = vweird.f32 %v2880
          %vm2888 = vmor %vm2886, %vm2887
          %v2889 = vsel %vm2888, %v2880, %v2885
          %v2890 = vrsqrt.pop %v2748
          %v2891 = vmul.f32 %v2890, %v2748
          %v2892 = vmul.f32 %v2891, %v2890
          %v2893 = vmul.f32 0.5, %v2892
          %v2894 = vsub.f32 1.5, %v2893
          %v2895 = vmul.f32 %v2890, %v2894
          %vm2896 = vweird.f32 %v2748
          %vm2897 = vweird.f32 %v2890
          %vm2898 = vmor %vm2896, %vm2897
          %v2899 = vsel %vm2898, %v2890, %v2895
          %v2900 = vrsqrt.pop %v2749
          %v2901 = vmul.f32 %v2900, %v2749
          %v2902 = vmul.f32 %v2901, %v2900
          %v2903 = vmul.f32 0.5, %v2902
          %v2904 = vsub.f32 1.5, %v2903
          %v2905 = vmul.f32 %v2900, %v2904
          %vm2906 = vweird.f32 %v2749
          %vm2907 = vweird.f32 %v2900
          %vm2908 = vmor %vm2906, %vm2907
          %v2909 = vsel %vm2908, %v2900, %v2905
          %v2910 = vmul.f32 %v2654, %v2759
          %v2911 = vmul.f32 %v2655, %v2769
          %v2912 = vmul.f32 %v2656, %v2779
          %v2913 = vmul.f32 %v2657, %v2789
          %v2914 = vmul.f32 %v2658, %v2799
          %v2915 = vmul.f32 %v2659, %v2809
          %v2916 = vmul.f32 %v2660, %v2819
          %v2917 = vmul.f32 %v2661, %v2829
          %v2918 = vmul.f32 %v2662, %v2839
          %v2919 = vmul.f32 %v2663, %v2849
          %v2920 = vmul.f32 %v2664, %v2859
          %v2921 = vmul.f32 %v2665, %v2869
          %v2922 = vmul.f32 %v2666, %v2879
          %v2923 = vmul.f32 %v2667, %v2889
          %v2924 = vmul.f32 %v2668, %v2899
          %v2925 = vmul.f32 %v2669, %v2909
          %v2926 = vld [vmem:[%s7] sm:$0x1]
          %v2928 = vperm.slane %v2926, 0
          %v2930 = vmul.f32 %v2910, %v2928
          %v2931 = vmul.f32 %v2911, %v2928
          %v2932 = vmul.f32 %v2912, %v2928
          %v2933 = vmul.f32 %v2913, %v2928
          %v2934 = vmul.f32 %v2914, %v2928
          %v2935 = vmul.f32 %v2915, %v2928
          %v2936 = vmul.f32 %v2916, %v2928
          %v2937 = vmul.f32 %v2917, %v2928
          %v2938 = vmul.f32 %v2918, %v2928
          %v2939 = vmul.f32 %v2919, %v2928
          %v2940 = vmul.f32 %v2920, %v2928
          %v2941 = vmul.f32 %v2921, %v2928
          %v2942 = vmul.f32 %v2922, %v2928
          %v2943 = vmul.f32 %v2923, %v2928
          %v2944 = vmul.f32 %v2924, %v2928
          %v2945 = vmul.f32 %v2925, %v2928
          %v2946 = vld [vmem:[%s8] sm:$0x1]
          %v2948 = vperm.slane %v2946, 0
          %v2950 = vadd.f32 %v2930, %v2948
          %v2951 = vadd.f32 %v2931, %v2948
          %v2952 = vadd.f32 %v2932, %v2948
          %v2953 = vadd.f32 %v2933, %v2948
          %v2954 = vadd.f32 %v2934, %v2948
          %v2955 = vadd.f32 %v2935, %v2948
          %v2956 = vadd.f32 %v2936, %v2948
          %v2957 = vadd.f32 %v2937, %v2948
          %v2958 = vadd.f32 %v2938, %v2948
          %v2959 = vadd.f32 %v2939, %v2948
          %v2960 = vadd.f32 %v2940, %v2948
          %v2961 = vadd.f32 %v2941, %v2948
          %v2962 = vadd.f32 %v2942, %v2948
          %v2963 = vadd.f32 %v2943, %v2948
          %v2964 = vadd.f32 %v2944, %v2948
          %v2965 = vadd.f32 %v2945, %v2948
          %v2966 = vpack.c.bf16 %v2951, %v2950
          %v2967 = vpack.c.bf16 %v2953, %v2952
          %v2968 = vpack.c.bf16 %v2955, %v2954
          %v2969 = vpack.c.bf16 %v2957, %v2956
          %v2970 = vpack.c.bf16 %v2959, %v2958
          %v2971 = vpack.c.bf16 %v2961, %v2960
          %v2972 = vpack.c.bf16 %v2963, %v2962
          %v2973 = vpack.c.bf16 %v2965, %v2964
          %v2974 = vld [vmem:[#allocation14] sm:$0xff]
          %v2975 = vld [vmem:[#allocation14 + $0x8] sm:$0xff]
          %v2976 = vld [vmem:[#allocation14 + $0x10] sm:$0xff]
          %v2977 = vld [vmem:[#allocation14 + $0x18] sm:$0xff]
          %v2978 = vld [vmem:[#allocation14 + $0x20] sm:$0xff]
          %v2979 = vld [vmem:[#allocation14 + $0x28] sm:$0xff]
          %v2980 = vld [vmem:[#allocation14 + $0x30] sm:$0xff]
          %v2981 = vld [vmem:[#allocation14 + $0x38] sm:$0xff]
          %v2982 = vld [vmem:[#allocation14 + $0x40] sm:$0xff]
          %v2983 = vld [vmem:[#allocation14 + $0x48] sm:$0xff]
          %v2984 = vld [vmem:[#allocation14 + $0x50] sm:$0xff]
          %v2985 = vld [vmem:[#allocation14 + $0x58] sm:$0xff]
          %v2986 = vld [vmem:[#allocation14 + $0x60] sm:$0xff]
          %v2987 = vld [vmem:[#allocation14 + $0x68] sm:$0xff]
          %v2988 = vld [vmem:[#allocation14 + $0x70] sm:$0xff]
          %v2989 = vld [vmem:[#allocation14 + $0x78] sm:$0xff]
          %v2990 = vld [vmem:[%s10] sm:$0x3]
          %v2992 = vperm.slane %v2990, 0
          %v2993 = vperm.slane %v2990, 1
          %v3012 = vunpack.c.l.b16 %v2974
          %v3013 = vunpack.c.h.b16 %v2974
          %v3014 = vunpack.c.l.b16 %v2975
          %v3015 = vunpack.c.h.b16 %v2975
          %v3016 = vunpack.c.l.b16 %v2976
          %v3017 = vunpack.c.h.b16 %v2976
          %v3018 = vunpack.c.l.b16 %v2977
          %v3019 = vunpack.c.h.b16 %v2977
          %v3020 = vunpack.c.l.b16 %v2978
          %v3021 = vunpack.c.h.b16 %v2978
          %v3022 = vunpack.c.l.b16 %v2979
          %v3023 = vunpack.c.h.b16 %v2979
          %v3024 = vunpack.c.l.b16 %v2980
          %v3025 = vunpack.c.h.b16 %v2980
          %v3026 = vunpack.c.l.b16 %v2981
          %v3027 = vunpack.c.h.b16 %v2981
          %v3028 = vunpack.c.l.b16 %v2982
          %v3029 = vunpack.c.h.b16 %v2982
          %v3030 = vunpack.c.l.b16 %v2983
          %v3031 = vunpack.c.h.b16 %v2983
          %v3032 = vunpack.c.l.b16 %v2984
          %v3033 = vunpack.c.h.b16 %v2984
          %v3034 = vunpack.c.l.b16 %v2985
          %v3035 = vunpack.c.h.b16 %v2985
          %v3036 = vunpack.c.l.b16 %v2986
          %v3037 = vunpack.c.h.b16 %v2986
          %v3038 = vunpack.c.l.b16 %v2987
          %v3039 = vunpack.c.h.b16 %v2987
          %v3040 = vunpack.c.l.b16 %v2988
          %v3041 = vunpack.c.h.b16 %v2988
          %v3042 = vunpack.c.l.b16 %v2989
          %v3043 = vunpack.c.h.b16 %v2989
          %v3044 = vpack.c.b16 %v3014, %v3012
          %v3045 = vpack.c.b16 %v3015, %v3013
          %v3046 = vpack.c.b16 %v3018, %v3016
          %v3047 = vpack.c.b16 %v3019, %v3017
          %v3048 = vpack.c.b16 %v3022, %v3020
          %v3049 = vpack.c.b16 %v3023, %v3021
          %v3050 = vpack.c.b16 %v3026, %v3024
          %v3051 = vpack.c.b16 %v3027, %v3025
          %v3052 = vpack.c.b16 %v3030, %v3028
          %v3053 = vpack.c.b16 %v3031, %v3029
          %v3054 = vpack.c.b16 %v3034, %v3032
          %v3055 = vpack.c.b16 %v3035, %v3033
          %v3056 = vpack.c.b16 %v3038, %v3036
          %v3057 = vpack.c.b16 %v3039, %v3037
          %v3058 = vpack.c.b16 %v3042, %v3040
          %v3059 = vpack.c.b16 %v3043, %v3041
          %3076 = vmatpush.bf16.msra.mxu0 %v3058
          %3077 = vmatpush.bf16.msra.mxu0 %v3056
          %3078 = vmatpush.bf16.msra.mxu0 %v3054
          %3079 = vmatpush.bf16.msra.mxu0 %v3052
          %3080 = vmatpush.bf16.msra.mxu0 %v3050
          %3081 = vmatpush.bf16.msra.mxu0 %v3048
          %3082 = vmatpush.bf16.msra.mxu0 %v3046
          %3083 = vmatpush.bf16.msra.mxu0 %v3044
          %3084 = vmatmul.bf16.gmra.mxu0 %v2966
          %v3085 = vpop.f32.mrf.mxu0
          %v3086 = vadd.f32 %v2992, %v3085
          %v3087 = vpop.f32.mrf.mxu0
          %v3088 = vadd.f32 %v2992, %v3087
          %3089 = vmatmul.bf16.gmra.mxu0 %v2967
          %v3090 = vpop.f32.mrf.mxu0
          %v3091 = vadd.f32 %v2992, %v3090
          %v3092 = vpop.f32.mrf.mxu0
          %v3093 = vadd.f32 %v2992, %v3092
          %3094 = vmatmul.bf16.gmra.mxu0 %v2968
          %v3095 = vpop.f32.mrf.mxu0
          %v3096 = vadd.f32 %v2992, %v3095
          %v3097 = vpop.f32.mrf.mxu0
          %v3098 = vadd.f32 %v2992, %v3097
          %3099 = vmatmul.bf16.gmra.mxu0 %v2969
          %v3100 = vpop.f32.mrf.mxu0
          %v3101 = vadd.f32 %v2992, %v3100
          %v3102 = vpop.f32.mrf.mxu0
          %v3103 = vadd.f32 %v2992, %v3102
          %3104 = vmatmul.bf16.gmra.mxu0 %v2970
          %v3105 = vpop.f32.mrf.mxu0
          %v3106 = vadd.f32 %v2992, %v3105
          %v3107 = vpop.f32.mrf.mxu0
          %v3108 = vadd.f32 %v2992, %v3107
          %3109 = vmatmul.bf16.gmra.mxu0 %v2971
          %v3110 = vpop.f32.mrf.mxu0
          %v3111 = vadd.f32 %v2992, %v3110
          %v3112 = vpop.f32.mrf.mxu0
          %v3113 = vadd.f32 %v2992, %v3112
          %3114 = vmatmul.bf16.gmra.mxu0 %v2972
          %v3115 = vpop.f32.mrf.mxu0
          %v3116 = vadd.f32 %v2992, %v3115
          %v3117 = vpop.f32.mrf.mxu0
          %v3118 = vadd.f32 %v2992, %v3117
          %3119 = vmatmul.bf16.gmra.mxu0 %v2973
          %v3120 = vpop.f32.mrf.mxu0
          %v3121 = vadd.f32 %v2992, %v3120
          %v3122 = vpop.f32.mrf.mxu0
          %v3123 = vadd.f32 %v2992, %v3122
          %3124 = vdwg.mxu0
          %3125 = vmatpush.bf16.msra.mxu0 %v3059
          %3126 = vmatpush.bf16.msra.mxu0 %v3057
          %3127 = vmatpush.bf16.msra.mxu0 %v3055
          %3128 = vmatpush.bf16.msra.mxu0 %v3053
          %3129 = vmatpush.bf16.msra.mxu0 %v3051
          %3130 = vmatpush.bf16.msra.mxu0 %v3049
          %3131 = vmatpush.bf16.msra.mxu0 %v3047
          %3132 = vmatpush.bf16.msra.mxu0 %v3045
          %3133 = vmatmul.bf16.gmra.mxu0 %v2966
          %v3134 = vpop.f32.mrf.mxu0
          %v3135 = vadd.f32 %v2993, %v3134
          %v3136 = vpop.f32.mrf.mxu0
          %v3137 = vadd.f32 %v2993, %v3136
          %3138 = vmatmul.bf16.gmra.mxu0 %v2967
          %v3139 = vpop.f32.mrf.mxu0
          %v3140 = vadd.f32 %v2993, %v3139
          %v3141 = vpop.f32.mrf.mxu0
          %v3142 = vadd.f32 %v2993, %v3141
          %3143 = vmatmul.bf16.gmra.mxu0 %v2968
          %v3144 = vpop.f32.mrf.mxu0
          %v3145 = vadd.f32 %v2993, %v3144
          %v3146 = vpop.f32.mrf.mxu0
          %v3147 = vadd.f32 %v2993, %v3146
          %3148 = vmatmul.bf16.gmra.mxu0 %v2969
          %v3149 = vpop.f32.mrf.mxu0
          %v3150 = vadd.f32 %v2993, %v3149
          %v3151 = vpop.f32.mrf.mxu0
          %v3152 = vadd.f32 %v2993, %v3151
          %3153 = vmatmul.bf16.gmra.mxu0 %v2970
          %v3154 = vpop.f32.mrf.mxu0
          %v3155 = vadd.f32 %v2993, %v3154
          %v3156 = vpop.f32.mrf.mxu0
          %v3157 = vadd.f32 %v2993, %v3156
          %3158 = vmatmul.bf16.gmra.mxu0 %v2971
          %v3159 = vpop.f32.mrf.mxu0
          %v3160 = vadd.f32 %v2993, %v3159
          %v3161 = vpop.f32.mrf.mxu0
          %v3162 = vadd.f32 %v2993, %v3161
          %3163 = vmatmul.bf16.gmra.mxu0 %v2972
          %v3164 = vpop.f32.mrf.mxu0
          %v3165 = vadd.f32 %v2993, %v3164
          %v3166 = vpop.f32.mrf.mxu0
          %v3167 = vadd.f32 %v2993, %v3166
          %3168 = vmatmul.bf16.gmra.mxu0 %v2973
          %v3169 = vpop.f32.mrf.mxu0
          %v3170 = vadd.f32 %v2993, %v3169
          %v3171 = vpop.f32.mrf.mxu0
          %v3172 = vadd.f32 %v2993, %v3171
          %3173 = vdwg.mxu0
          %v3174 = vmax.f32 %v3086, 0.0
          %v3175 = vmax.f32 %v3135, 0.0
          %v3176 = vmax.f32 %v3088, 0.0
          %v3177 = vmax.f32 %v3137, 0.0
          %v3178 = vmax.f32 %v3091, 0.0
          %v3179 = vmax.f32 %v3140, 0.0
          %v3180 = vmax.f32 %v3093, 0.0
          %v3181 = vmax.f32 %v3142, 0.0
          %v3182 = vmax.f32 %v3096, 0.0
          %v3183 = vmax.f32 %v3145, 0.0
          %v3184 = vmax.f32 %v3098, 0.0
          %v3185 = vmax.f32 %v3147, 0.0
          %v3186 = vmax.f32 %v3101, 0.0
          %v3187 = vmax.f32 %v3150, 0.0
          %v3188 = vmax.f32 %v3103, 0.0
          %v3189 = vmax.f32 %v3152, 0.0
          %v3190 = vmax.f32 %v3106, 0.0
          %v3191 = vmax.f32 %v3155, 0.0
          %v3192 = vmax.f32 %v3108, 0.0
          %v3193 = vmax.f32 %v3157, 0.0
          %v3194 = vmax.f32 %v3111, 0.0
          %v3195 = vmax.f32 %v3160, 0.0
          %v3196 = vmax.f32 %v3113, 0.0
          %v3197 = vmax.f32 %v3162, 0.0
          %v3198 = vmax.f32 %v3116, 0.0
          %v3199 = vmax.f32 %v3165, 0.0
          %v3200 = vmax.f32 %v3118, 0.0
          %v3201 = vmax.f32 %v3167, 0.0
          %v3202 = vmax.f32 %v3121, 0.0
          %v3203 = vmax.f32 %v3170, 0.0
          %v3204 = vmax.f32 %v3123, 0.0
          %v3205 = vmax.f32 %v3172, 0.0
          %v3206 = vpack.c.bf16 %v3176, %v3174
          %v3207 = vpack.c.bf16 %v3177, %v3175
          %v3208 = vpack.c.bf16 %v3180, %v3178
          %v3209 = vpack.c.bf16 %v3181, %v3179
          %v3210 = vpack.c.bf16 %v3184, %v3182
          %v3211 = vpack.c.bf16 %v3185, %v3183
          %v3212 = vpack.c.bf16 %v3188, %v3186
          %v3213 = vpack.c.bf16 %v3189, %v3187
          %v3214 = vpack.c.bf16 %v3192, %v3190
          %v3215 = vpack.c.bf16 %v3193, %v3191
          %v3216 = vpack.c.bf16 %v3196, %v3194
          %v3217 = vpack.c.bf16 %v3197, %v3195
          %v3218 = vpack.c.bf16 %v3200, %v3198
          %v3219 = vpack.c.bf16 %v3201, %v3199
          %v3220 = vpack.c.bf16 %v3204, %v3202
          %v3221 = vpack.c.bf16 %v3205, %v3203
          %v3222 = vld [vmem:[#allocation16] sm:$0xf]
          %v3223 = vld [vmem:[#allocation16 + $0x4] sm:$0xf]
          %v3224 = vld [vmem:[#allocation16 + $0x8] sm:$0xf]
          %v3225 = vld [vmem:[#allocation16 + $0xc] sm:$0xf]
          %v3226 = vld [vmem:[#allocation16 + $0x10] sm:$0xf]
          %v3227 = vld [vmem:[#allocation16 + $0x14] sm:$0xf]
          %v3228 = vld [vmem:[#allocation16 + $0x18] sm:$0xf]
          %v3229 = vld [vmem:[#allocation16 + $0x1c] sm:$0xf]
          %v3230 = vld [vmem:[#allocation16 + $0x20] sm:$0xf]
          %v3231 = vld [vmem:[#allocation16 + $0x24] sm:$0xf]
          %v3232 = vld [vmem:[#allocation16 + $0x28] sm:$0xf]
          %v3233 = vld [vmem:[#allocation16 + $0x2c] sm:$0xf]
          %v3234 = vld [vmem:[#allocation16 + $0x30] sm:$0xf]
          %v3235 = vld [vmem:[#allocation16 + $0x34] sm:$0xf]
          %v3236 = vld [vmem:[#allocation16 + $0x38] sm:$0xf]
          %v3237 = vld [vmem:[#allocation16 + $0x3c] sm:$0xf]
          %v3238 = vld [vmem:[#allocation16 + $0x40] sm:$0xf]
          %v3239 = vld [vmem:[#allocation16 + $0x44] sm:$0xf]
          %v3240 = vld [vmem:[#allocation16 + $0x48] sm:$0xf]
          %v3241 = vld [vmem:[#allocation16 + $0x4c] sm:$0xf]
          %v3242 = vld [vmem:[#allocation16 + $0x50] sm:$0xf]
          %v3243 = vld [vmem:[#allocation16 + $0x54] sm:$0xf]
          %v3244 = vld [vmem:[#allocation16 + $0x58] sm:$0xf]
          %v3245 = vld [vmem:[#allocation16 + $0x5c] sm:$0xf]
          %v3246 = vld [vmem:[#allocation16 + $0x60] sm:$0xf]
          %v3247 = vld [vmem:[#allocation16 + $0x64] sm:$0xf]
          %v3248 = vld [vmem:[#allocation16 + $0x68] sm:$0xf]
          %v3249 = vld [vmem:[#allocation16 + $0x6c] sm:$0xf]
          %v3250 = vld [vmem:[#allocation16 + $0x70] sm:$0xf]
          %v3251 = vld [vmem:[#allocation16 + $0x74] sm:$0xf]
          %v3252 = vld [vmem:[#allocation16 + $0x78] sm:$0xf]
          %v3253 = vld [vmem:[#allocation16 + $0x7c] sm:$0xf]
          %v3254 = vld [vmem:[%s12] sm:$0x1]
          %v3256 = vperm.slane %v3254, 0
          %v3290 = vunpack.c.l.b16 %v3222
          %v3291 = vunpack.c.l.b16 %v3223
          %v3292 = vunpack.c.l.b16 %v3224
          %v3293 = vunpack.c.l.b16 %v3225
          %v3294 = vunpack.c.l.b16 %v3226
          %v3295 = vunpack.c.l.b16 %v3227
          %v3296 = vunpack.c.l.b16 %v3228
          %v3297 = vunpack.c.l.b16 %v3229
          %v3298 = vunpack.c.l.b16 %v3230
          %v3299 = vunpack.c.l.b16 %v3231
          %v3300 = vunpack.c.l.b16 %v3232
          %v3301 = vunpack.c.l.b16 %v3233
          %v3302 = vunpack.c.l.b16 %v3234
          %v3303 = vunpack.c.l.b16 %v3235
          %v3304 = vunpack.c.l.b16 %v3236
          %v3305 = vunpack.c.l.b16 %v3237
          %v3306 = vunpack.c.l.b16 %v3238
          %v3307 = vunpack.c.l.b16 %v3239
          %v3308 = vunpack.c.l.b16 %v3240
          %v3309 = vunpack.c.l.b16 %v3241
          %v3310 = vunpack.c.l.b16 %v3242
          %v3311 = vunpack.c.l.b16 %v3243
          %v3312 = vunpack.c.l.b16 %v3244
          %v3313 = vunpack.c.l.b16 %v3245
          %v3314 = vunpack.c.l.b16 %v3246
          %v3315 = vunpack.c.l.b16 %v3247
          %v3316 = vunpack.c.l.b16 %v3248
          %v3317 = vunpack.c.l.b16 %v3249
          %v3318 = vunpack.c.l.b16 %v3250
          %v3319 = vunpack.c.l.b16 %v3251
          %v3320 = vunpack.c.l.b16 %v3252
          %v3321 = vunpack.c.l.b16 %v3253
          %v3322 = vpack.c.b16 %v3291, %v3290
          %v3323 = vpack.c.b16 %v3293, %v3292
          %v3324 = vpack.c.b16 %v3295, %v3294
          %v3325 = vpack.c.b16 %v3297, %v3296
          %v3326 = vpack.c.b16 %v3299, %v3298
          %v3327 = vpack.c.b16 %v3301, %v3300
          %v3328 = vpack.c.b16 %v3303, %v3302
          %v3329 = vpack.c.b16 %v3305, %v3304
          %v3330 = vpack.c.b16 %v3307, %v3306
          %v3331 = vpack.c.b16 %v3309, %v3308
          %v3332 = vpack.c.b16 %v3311, %v3310
          %v3333 = vpack.c.b16 %v3313, %v3312
          %v3334 = vpack.c.b16 %v3315, %v3314
          %v3335 = vpack.c.b16 %v3317, %v3316
          %v3336 = vpack.c.b16 %v3319, %v3318
          %v3337 = vpack.c.b16 %v3321, %v3320
          %3354 = vmatpush.bf16.msra.mxu0 %v3329
          %3355 = vmatpush.bf16.msra.mxu0 %v3328
          %3356 = vmatpush.bf16.msra.mxu0 %v3327
          %3357 = vmatpush.bf16.msra.mxu0 %v3326
          %3358 = vmatpush.bf16.msra.mxu0 %v3325
          %3359 = vmatpush.bf16.msra.mxu0 %v3324
          %3360 = vmatpush.bf16.msra.mxu0 %v3323
          %3361 = vmatpush.bf16.msra.mxu0 %v3322
          %3362 = vmatmul.bf16.gmra.mxu0 %v3206
          %v3363 = vpop.f32.mrf.mxu0
          %v3364 = vadd.f32 %v3256, %v3363
          %v3365 = vpop.f32.mrf.mxu0
          %v3366 = vadd.f32 %v3256, %v3365
          %3367 = vmatmul.bf16.gmra.mxu0 %v3208
          %v3368 = vpop.f32.mrf.mxu0
          %v3369 = vadd.f32 %v3256, %v3368
          %v3370 = vpop.f32.mrf.mxu0
          %v3371 = vadd.f32 %v3256, %v3370
          %3372 = vmatmul.bf16.gmra.mxu0 %v3210
          %v3373 = vpop.f32.mrf.mxu0
          %v3374 = vadd.f32 %v3256, %v3373
          %v3375 = vpop.f32.mrf.mxu0
          %v3376 = vadd.f32 %v3256, %v3375
          %3377 = vmatmul.bf16.gmra.mxu0 %v3212
          %v3378 = vpop.f32.mrf.mxu0
          %v3379 = vadd.f32 %v3256, %v3378
          %v3380 = vpop.f32.mrf.mxu0
          %v3381 = vadd.f32 %v3256, %v3380
          %3382 = vmatmul.bf16.gmra.mxu0 %v3214
          %v3383 = vpop.f32.mrf.mxu0
          %v3384 = vadd.f32 %v3256, %v3383
          %v3385 = vpop.f32.mrf.mxu0
          %v3386 = vadd.f32 %v3256, %v3385
          %3387 = vmatmul.bf16.gmra.mxu0 %v3216
          %v3388 = vpop.f32.mrf.mxu0
          %v3389 = vadd.f32 %v3256, %v3388
          %v3390 = vpop.f32.mrf.mxu0
          %v3391 = vadd.f32 %v3256, %v3390
          %3392 = vmatmul.bf16.gmra.mxu0 %v3218
          %v3393 = vpop.f32.mrf.mxu0
          %v3394 = vadd.f32 %v3256, %v3393
          %v3395 = vpop.f32.mrf.mxu0
          %v3396 = vadd.f32 %v3256, %v3395
          %3397 = vmatmul.bf16.gmra.mxu0 %v3220
          %v3398 = vpop.f32.mrf.mxu0
          %v3399 = vadd.f32 %v3256, %v3398
          %v3400 = vpop.f32.mrf.mxu0
          %v3401 = vadd.f32 %v3256, %v3400
          %3402 = vdwg.mxu0
          %3403 = vmatpush.bf16.msra.mxu0 %v3337
          %3404 = vmatpush.bf16.msra.mxu0 %v3336
          %3405 = vmatpush.bf16.msra.mxu0 %v3335
          %3406 = vmatpush.bf16.msra.mxu0 %v3334
          %3407 = vmatpush.bf16.msra.mxu0 %v3333
          %3408 = vmatpush.bf16.msra.mxu0 %v3332
          %3409 = vmatpush.bf16.msra.mxu0 %v3331
          %3410 = vmatpush.bf16.msra.mxu0 %v3330
          %3411 = vmatmul.bf16.gmra.mxu0 %v3207
          %v3412 = vpop.f32.mrf.mxu0
          %v3413 = vadd.f32 %v3364, %v3412
          %v3414 = vpop.f32.mrf.mxu0
          %v3415 = vadd.f32 %v3366, %v3414
          %3416 = vmatmul.bf16.gmra.mxu0 %v3209
          %v3417 = vpop.f32.mrf.mxu0
          %v3418 = vadd.f32 %v3369, %v3417
          %v3419 = vpop.f32.mrf.mxu0
          %v3420 = vadd.f32 %v3371, %v3419
          %3421 = vmatmul.bf16.gmra.mxu0 %v3211
          %v3422 = vpop.f32.mrf.mxu0
          %v3423 = vadd.f32 %v3374, %v3422
          %v3424 = vpop.f32.mrf.mxu0
          %v3425 = vadd.f32 %v3376, %v3424
          %3426 = vmatmul.bf16.gmra.mxu0 %v3213
          %v3427 = vpop.f32.mrf.mxu0
          %v3428 = vadd.f32 %v3379, %v3427
          %v3429 = vpop.f32.mrf.mxu0
          %v3430 = vadd.f32 %v3381, %v3429
          %3431 = vmatmul.bf16.gmra.mxu0 %v3215
          %v3432 = vpop.f32.mrf.mxu0
          %v3433 = vadd.f32 %v3384, %v3432
          %v3434 = vpop.f32.mrf.mxu0
          %v3435 = vadd.f32 %v3386, %v3434
          %3436 = vmatmul.bf16.gmra.mxu0 %v3217
          %v3437 = vpop.f32.mrf.mxu0
          %v3438 = vadd.f32 %v3389, %v3437
          %v3439 = vpop.f32.mrf.mxu0
          %v3440 = vadd.f32 %v3391, %v3439
          %3441 = vmatmul.bf16.gmra.mxu0 %v3219
          %v3442 = vpop.f32.mrf.mxu0
          %v3443 = vadd.f32 %v3394, %v3442
          %v3444 = vpop.f32.mrf.mxu0
          %v3445 = vadd.f32 %v3396, %v3444
          %3446 = vmatmul.bf16.gmra.mxu0 %v3221
          %v3447 = vpop.f32.mrf.mxu0
          %v3448 = vadd.f32 %v3399, %v3447
          %v3449 = vpop.f32.mrf.mxu0
          %v3450 = vadd.f32 %v3401, %v3449
          %3451 = vdwg.mxu0
          %v3452 = vadd.f32 %v2950, %v3413
          %v3453 = vadd.f32 %v2951, %v3415
          %v3454 = vadd.f32 %v2952, %v3418
          %v3455 = vadd.f32 %v2953, %v3420
          %v3456 = vadd.f32 %v2954, %v3423
          %v3457 = vadd.f32 %v2955, %v3425
          %v3458 = vadd.f32 %v2956, %v3428
          %v3459 = vadd.f32 %v2957, %v3430
          %v3460 = vadd.f32 %v2958, %v3433
          %v3461 = vadd.f32 %v2959, %v3435
          %v3462 = vadd.f32 %v2960, %v3438
          %v3463 = vadd.f32 %v2961, %v3440
          %v3464 = vadd.f32 %v2962, %v3443
          %v3465 = vadd.f32 %v2963, %v3445
          %v3466 = vadd.f32 %v2964, %v3448
          %v3467 = vadd.f32 %v2965, %v3450
          %3468 = vadd.xlane.f32.xlu0 %v3452
          %v3469 = vpop.xlane.xlu0 %3468
          %3470 = vadd.xlane.f32.xlu0 %v3453
          %v3471 = vpop.xlane.xlu0 %3470
          %3472 = vadd.xlane.f32.xlu0 %v3454
          %v3473 = vpop.xlane.xlu0 %3472
          %3474 = vadd.xlane.f32.xlu0 %v3455
          %v3475 = vpop.xlane.xlu0 %3474
          %3476 = vadd.xlane.f32.xlu0 %v3456
          %v3477 = vpop.xlane.xlu0 %3476
          %3478 = vadd.xlane.f32.xlu0 %v3457
          %v3479 = vpop.xlane.xlu0 %3478
          %3480 = vadd.xlane.f32.xlu0 %v3458
          %v3481 = vpop.xlane.xlu0 %3480
          %3482 = vadd.xlane.f32.xlu0 %v3459
          %v3483 = vpop.xlane.xlu0 %3482
          %3484 = vadd.xlane.f32.xlu0 %v3460
          %v3485 = vpop.xlane.xlu0 %3484
          %3486 = vadd.xlane.f32.xlu0 %v3461
          %v3487 = vpop.xlane.xlu0 %3486
          %3488 = vadd.xlane.f32.xlu0 %v3462
          %v3489 = vpop.xlane.xlu0 %3488
          %3490 = vadd.xlane.f32.xlu0 %v3463
          %v3491 = vpop.xlane.xlu0 %3490
          %3492 = vadd.xlane.f32.xlu0 %v3464
          %v3493 = vpop.xlane.xlu0 %3492
          %3494 = vadd.xlane.f32.xlu0 %v3465
          %v3495 = vpop.xlane.xlu0 %3494
          %3496 = vadd.xlane.f32.xlu0 %v3466
          %v3497 = vpop.xlane.xlu0 %3496
          %3498 = vadd.xlane.f32.xlu0 %v3467
          %v3499 = vpop.xlane.xlu0 %3498
          %v3500 = vmul.f32 %v3469, %v2637
          %v3501 = vmul.f32 %v3471, %v2637
          %v3502 = vmul.f32 %v3473, %v2637
          %v3503 = vmul.f32 %v3475, %v2637
          %v3504 = vmul.f32 %v3477, %v2637
          %v3505 = vmul.f32 %v3479, %v2637
          %v3506 = vmul.f32 %v3481, %v2637
          %v3507 = vmul.f32 %v3483, %v2637
          %v3508 = vmul.f32 %v3485, %v2637
          %v3509 = vmul.f32 %v3487, %v2637
          %v3510 = vmul.f32 %v3489, %v2637
          %v3511 = vmul.f32 %v3491, %v2637
          %v3512 = vmul.f32 %v3493, %v2637
          %v3513 = vmul.f32 %v3495, %v2637
          %v3514 = vmul.f32 %v3497, %v2637
          %v3515 = vmul.f32 %v3499, %v2637
          %v3516 = vsub.f32 %v3452, %v3500
          %v3517 = vsub.f32 %v3453, %v3501
          %v3518 = vsub.f32 %v3454, %v3502
          %v3519 = vsub.f32 %v3455, %v3503
          %v3520 = vsub.f32 %v3456, %v3504
          %v3521 = vsub.f32 %v3457, %v3505
          %v3522 = vsub.f32 %v3458, %v3506
          %v3523 = vsub.f32 %v3459, %v3507
          %v3524 = vsub.f32 %v3460, %v3508
          %v3525 = vsub.f32 %v3461, %v3509
          %v3526 = vsub.f32 %v3462, %v3510
          %v3527 = vsub.f32 %v3463, %v3511
          %v3528 = vsub.f32 %v3464, %v3512
          %v3529 = vsub.f32 %v3465, %v3513
          %v3530 = vsub.f32 %v3466, %v3514
          %v3531 = vsub.f32 %v3467, %v3515
          %v3532 = vmul.f32 %v3516, %v3516
          %v3533 = vmul.f32 %v3517, %v3517
          %v3534 = vmul.f32 %v3518, %v3518
          %v3535 = vmul.f32 %v3519, %v3519
          %v3536 = vmul.f32 %v3520, %v3520
          %v3537 = vmul.f32 %v3521, %v3521
          %v3538 = vmul.f32 %v3522, %v3522
          %v3539 = vmul.f32 %v3523, %v3523
          %v3540 = vmul.f32 %v3524, %v3524
          %v3541 = vmul.f32 %v3525, %v3525
          %v3542 = vmul.f32 %v3526, %v3526
          %v3543 = vmul.f32 %v3527, %v3527
          %v3544 = vmul.f32 %v3528, %v3528
          %v3545 = vmul.f32 %v3529, %v3529
          %v3546 = vmul.f32 %v3530, %v3530
          %v3547 = vmul.f32 %v3531, %v3531
          %3548 = vadd.xlane.f32.xlu0 %v3532
          %v3549 = vpop.xlane.xlu0 %3548
          %3550 = vadd.xlane.f32.xlu0 %v3533
          %v3551 = vpop.xlane.xlu0 %3550
          %3552 = vadd.xlane.f32.xlu0 %v3534
          %v3553 = vpop.xlane.xlu0 %3552
          %3554 = vadd.xlane.f32.xlu0 %v3535
          %v3555 = vpop.xlane.xlu0 %3554
          %3556 = vadd.xlane.f32.xlu0 %v3536
          %v3557 = vpop.xlane.xlu0 %3556
          %3558 = vadd.xlane.f32.xlu0 %v3537
          %v3559 = vpop.xlane.xlu0 %3558
          %3560 = vadd.xlane.f32.xlu0 %v3538
          %v3561 = vpop.xlane.xlu0 %3560
          %3562 = vadd.xlane.f32.xlu0 %v3539
          %v3563 = vpop.xlane.xlu0 %3562
          %3564 = vadd.xlane.f32.xlu0 %v3540
          %v3565 = vpop.xlane.xlu0 %3564
          %3566 = vadd.xlane.f32.xlu0 %v3541
          %v3567 = vpop.xlane.xlu0 %3566
          %3568 = vadd.xlane.f32.xlu0 %v3542
          %v3569 = vpop.xlane.xlu0 %3568
          %3570 = vadd.xlane.f32.xlu0 %v3543
          %v3571 = vpop.xlane.xlu0 %3570
          %3572 = vadd.xlane.f32.xlu0 %v3544
          %v3573 = vpop.xlane.xlu0 %3572
          %3574 = vadd.xlane.f32.xlu0 %v3545
          %v3575 = vpop.xlane.xlu0 %3574
          %3576 = vadd.xlane.f32.xlu0 %v3546
          %v3577 = vpop.xlane.xlu0 %3576
          %3578 = vadd.xlane.f32.xlu0 %v3547
          %v3579 = vpop.xlane.xlu0 %3578
          %v3580 = vmul.f32 %v3549, %v2637
          %v3581 = vmul.f32 %v3551, %v2637
          %v3582 = vmul.f32 %v3553, %v2637
          %v3583 = vmul.f32 %v3555, %v2637
          %v3584 = vmul.f32 %v3557, %v2637
          %v3585 = vmul.f32 %v3559, %v2637
          %v3586 = vmul.f32 %v3561, %v2637
          %v3587 = vmul.f32 %v3563, %v2637
          %v3588 = vmul.f32 %v3565, %v2637
          %v3589 = vmul.f32 %v3567, %v2637
          %v3590 = vmul.f32 %v3569, %v2637
          %v3591 = vmul.f32 %v3571, %v2637
          %v3592 = vmul.f32 %v3573, %v2637
          %v3593 = vmul.f32 %v3575, %v2637
          %v3594 = vmul.f32 %v3577, %v2637
          %v3595 = vmul.f32 %v3579, %v2637
          %v3596 = vadd.f32 %v3580, 1e-05
          %v3597 = vadd.f32 %v3581, 1e-05
          %v3598 = vadd.f32 %v3582, 1e-05
          %v3599 = vadd.f32 %v3583, 1e-05
          %v3600 = vadd.f32 %v3584, 1e-05
          %v3601 = vadd.f32 %v3585, 1e-05
          %v3602 = vadd.f32 %v3586, 1e-05
          %v3603 = vadd.f32 %v3587, 1e-05
          %v3604 = vadd.f32 %v3588, 1e-05
          %v3605 = vadd.f32 %v3589, 1e-05
          %v3606 = vadd.f32 %v3590, 1e-05
          %v3607 = vadd.f32 %v3591, 1e-05
          %v3608 = vadd.f32 %v3592, 1e-05
          %v3609 = vadd.f32 %v3593, 1e-05
          %v3610 = vadd.f32 %v3594, 1e-05
          %v3611 = vadd.f32 %v3595, 1e-05
          %v3612 = vrsqrt.pop %v3596
          %v3613 = vmul.f32 %v3612, %v3596
          %v3614 = vmul.f32 %v3613, %v3612
          %v3615 = vmul.f32 0.5, %v3614
          %v3616 = vsub.f32 1.5, %v3615
          %v3617 = vmul.f32 %v3612, %v3616
          %vm3618 = vweird.f32 %v3596
          %vm3619 = vweird.f32 %v3612
          %vm3620 = vmor %vm3618, %vm3619
          %v3621 = vsel %vm3620, %v3612, %v3617
          %v3622 = vrsqrt.pop %v3597
          %v3623 = vmul.f32 %v3622, %v3597
          %v3624 = vmul.f32 %v3623, %v3622
          %v3625 = vmul.f32 0.5, %v3624
          %v3626 = vsub.f32 1.5, %v3625
          %v3627 = vmul.f32 %v3622, %v3626
          %vm3628 = vweird.f32 %v3597
          %vm3629 = vweird.f32 %v3622
          %vm3630 = vmor %vm3628, %vm3629
          %v3631 = vsel %vm3630, %v3622, %v3627
          %v3632 = vrsqrt.pop %v3598
          %v3633 = vmul.f32 %v3632, %v3598
          %v3634 = vmul.f32 %v3633, %v3632
          %v3635 = vmul.f32 0.5, %v3634
          %v3636 = vsub.f32 1.5, %v3635
          %v3637 = vmul.f32 %v3632, %v3636
          %vm3638 = vweird.f32 %v3598
          %vm3639 = vweird.f32 %v3632
          %vm3640 = vmor %vm3638, %vm3639
          %v3641 = vsel %vm3640, %v3632, %v3637
          %v3642 = vrsqrt.pop %v3599
          %v3643 = vmul.f32 %v3642, %v3599
          %v3644 = vmul.f32 %v3643, %v3642
          %v3645 = vmul.f32 0.5, %v3644
          %v3646 = vsub.f32 1.5, %v3645
          %v3647 = vmul.f32 %v3642, %v3646
          %vm3648 = vweird.f32 %v3599
          %vm3649 = vweird.f32 %v3642
          %vm3650 = vmor %vm3648, %vm3649
          %v3651 = vsel %vm3650, %v3642, %v3647
          %v3652 = vrsqrt.pop %v3600
          %v3653 = vmul.f32 %v3652, %v3600
          %v3654 = vmul.f32 %v3653, %v3652
          %v3655 = vmul.f32 0.5, %v3654
          %v3656 = vsub.f32 1.5, %v3655
          %v3657 = vmul.f32 %v3652, %v3656
          %vm3658 = vweird.f32 %v3600
          %vm3659 = vweird.f32 %v3652
          %vm3660 = vmor %vm3658, %vm3659
          %v3661 = vsel %vm3660, %v3652, %v3657
          %v3662 = vrsqrt.pop %v3601
          %v3663 = vmul.f32 %v3662, %v3601
          %v3664 = vmul.f32 %v3663, %v3662
          %v3665 = vmul.f32 0.5, %v3664
          %v3666 = vsub.f32 1.5, %v3665
          %v3667 = vmul.f32 %v3662, %v3666
          %vm3668 = vweird.f32 %v3601
          %vm3669 = vweird.f32 %v3662
          %vm3670 = vmor %vm3668, %vm3669
          %v3671 = vsel %vm3670, %v3662, %v3667
          %v3672 = vrsqrt.pop %v3602
          %v3673 = vmul.f32 %v3672, %v3602
          %v3674 = vmul.f32 %v3673, %v3672
          %v3675 = vmul.f32 0.5, %v3674
          %v3676 = vsub.f32 1.5, %v3675
          %v3677 = vmul.f32 %v3672, %v3676
          %vm3678 = vweird.f32 %v3602
          %vm3679 = vweird.f32 %v3672
          %vm3680 = vmor %vm3678, %vm3679
          %v3681 = vsel %vm3680, %v3672, %v3677
          %v3682 = vrsqrt.pop %v3603
          %v3683 = vmul.f32 %v3682, %v3603
          %v3684 = vmul.f32 %v3683, %v3682
          %v3685 = vmul.f32 0.5, %v3684
          %v3686 = vsub.f32 1.5, %v3685
          %v3687 = vmul.f32 %v3682, %v3686
          %vm3688 = vweird.f32 %v3603
          %vm3689 = vweird.f32 %v3682
          %vm3690 = vmor %vm3688, %vm3689
          %v3691 = vsel %vm3690, %v3682, %v3687
          %v3692 = vrsqrt.pop %v3604
          %v3693 = vmul.f32 %v3692, %v3604
          %v3694 = vmul.f32 %v3693, %v3692
          %v3695 = vmul.f32 0.5, %v3694
          %v3696 = vsub.f32 1.5, %v3695
          %v3697 = vmul.f32 %v3692, %v3696
          %vm3698 = vweird.f32 %v3604
          %vm3699 = vweird.f32 %v3692
          %vm3700 = vmor %vm3698, %vm3699
          %v3701 = vsel %vm3700, %v3692, %v3697
          %v3702 = vrsqrt.pop %v3605
          %v3703 = vmul.f32 %v3702, %v3605
          %v3704 = vmul.f32 %v3703, %v3702
          %v3705 = vmul.f32 0.5, %v3704
          %v3706 = vsub.f32 1.5, %v3705
          %v3707 = vmul.f32 %v3702, %v3706
          %vm3708 = vweird.f32 %v3605
          %vm3709 = vweird.f32 %v3702
          %vm3710 = vmor %vm3708, %vm3709
          %v3711 = vsel %vm3710, %v3702, %v3707
          %v3712 = vrsqrt.pop %v3606
          %v3713 = vmul.f32 %v3712, %v3606
          %v3714 = vmul.f32 %v3713, %v3712
          %v3715 = vmul.f32 0.5, %v3714
          %v3716 = vsub.f32 1.5, %v3715
          %v3717 = vmul.f32 %v3712, %v3716
          %vm3718 = vweird.f32 %v3606
          %vm3719 = vweird.f32 %v3712
          %vm3720 = vmor %vm3718, %vm3719
          %v3721 = vsel %vm3720, %v3712, %v3717
          %v3722 = vrsqrt.pop %v3607
          %v3723 = vmul.f32 %v3722, %v3607
          %v3724 = vmul.f32 %v3723, %v3722
          %v3725 = vmul.f32 0.5, %v3724
          %v3726 = vsub.f32 1.5, %v3725
          %v3727 = vmul.f32 %v3722, %v3726
          %vm3728 = vweird.f32 %v3607
          %vm3729 = vweird.f32 %v3722
          %vm3730 = vmor %vm3728, %vm3729
          %v3731 = vsel %vm3730, %v3722, %v3727
          %v3732 = vrsqrt.pop %v3608
          %v3733 = vmul.f32 %v3732, %v3608
          %v3734 = vmul.f32 %v3733, %v3732
          %v3735 = vmul.f32 0.5, %v3734
          %v3736 = vsub.f32 1.5, %v3735
          %v3737 = vmul.f32 %v3732, %v3736
          %vm3738 = vweird.f32 %v3608
          %vm3739 = vweird.f32 %v3732
          %vm3740 = vmor %vm3738, %vm3739
          %v3741 = vsel %vm3740, %v3732, %v3737
          %v3742 = vrsqrt.pop %v3609
          %v3743 = vmul.f32 %v3742, %v3609
          %v3744 = vmul.f32 %v3743, %v3742
          %v3745 = vmul.f32 0.5, %v3744
          %v3746 = vsub.f32 1.5, %v3745
          %v3747 = vmul.f32 %v3742, %v3746
          %vm3748 = vweird.f32 %v3609
          %vm3749 = vweird.f32 %v3742
          %vm3750 = vmor %vm3748, %vm3749
          %v3751 = vsel %vm3750, %v3742, %v3747
          %v3752 = vrsqrt.pop %v3610
          %v3753 = vmul.f32 %v3752, %v3610
          %v3754 = vmul.f32 %v3753, %v3752
          %v3755 = vmul.f32 0.5, %v3754
          %v3756 = vsub.f32 1.5, %v3755
          %v3757 = vmul.f32 %v3752, %v3756
          %vm3758 = vweird.f32 %v3610
          %vm3759 = vweird.f32 %v3752
          %vm3760 = vmor %vm3758, %vm3759
          %v3761 = vsel %vm3760, %v3752, %v3757
          %v3762 = vrsqrt.pop %v3611
          %v3763 = vmul.f32 %v3762, %v3611
          %v3764 = vmul.f32 %v3763, %v3762
          %v3765 = vmul.f32 0.5, %v3764
          %v3766 = vsub.f32 1.5, %v3765
          %v3767 = vmul.f32 %v3762, %v3766
          %vm3768 = vweird.f32 %v3611
          %vm3769 = vweird.f32 %v3762
          %vm3770 = vmor %vm3768, %vm3769
          %v3771 = vsel %vm3770, %v3762, %v3767
          %v3772 = vmul.f32 %v3516, %v3621
          %v3773 = vmul.f32 %v3517, %v3631
          %v3774 = vmul.f32 %v3518, %v3641
          %v3775 = vmul.f32 %v3519, %v3651
          %v3776 = vmul.f32 %v3520, %v3661
          %v3777 = vmul.f32 %v3521, %v3671
          %v3778 = vmul.f32 %v3522, %v3681
          %v3779 = vmul.f32 %v3523, %v3691
          %v3780 = vmul.f32 %v3524, %v3701
          %v3781 = vmul.f32 %v3525, %v3711
          %v3782 = vmul.f32 %v3526, %v3721
          %v3783 = vmul.f32 %v3527, %v3731
          %v3784 = vmul.f32 %v3528, %v3741
          %v3785 = vmul.f32 %v3529, %v3751
          %v3786 = vmul.f32 %v3530, %v3761
          %v3787 = vmul.f32 %v3531, %v3771
          %v3788 = vld [vmem:[%s13] sm:$0x1]
          %v3790 = vperm.slane %v3788, 0
          %v3792 = vmul.f32 %v3772, %v3790
          %v3793 = vmul.f32 %v3773, %v3790
          %v3794 = vmul.f32 %v3774, %v3790
          %v3795 = vmul.f32 %v3775, %v3790
          %v3796 = vmul.f32 %v3776, %v3790
          %v3797 = vmul.f32 %v3777, %v3790
          %v3798 = vmul.f32 %v3778, %v3790
          %v3799 = vmul.f32 %v3779, %v3790
          %v3800 = vmul.f32 %v3780, %v3790
          %v3801 = vmul.f32 %v3781, %v3790
          %v3802 = vmul.f32 %v3782, %v3790
          %v3803 = vmul.f32 %v3783, %v3790
          %v3804 = vmul.f32 %v3784, %v3790
          %v3805 = vmul.f32 %v3785, %v3790
          %v3806 = vmul.f32 %v3786, %v3790
          %v3807 = vmul.f32 %v3787, %v3790
          %v3808 = vld [vmem:[%s14] sm:$0x1]
          %v3810 = vperm.slane %v3808, 0
          %v3812 = vadd.f32 %v3792, %v3810
          %v3813 = vadd.f32 %v3793, %v3810
          %v3814 = vadd.f32 %v3794, %v3810
          %v3815 = vadd.f32 %v3795, %v3810
          %v3816 = vadd.f32 %v3796, %v3810
          %v3817 = vadd.f32 %v3797, %v3810
          %v3818 = vadd.f32 %v3798, %v3810
          %v3819 = vadd.f32 %v3799, %v3810
          %v3820 = vadd.f32 %v3800, %v3810
          %v3821 = vadd.f32 %v3801, %v3810
          %v3822 = vadd.f32 %v3802, %v3810
          %v3823 = vadd.f32 %v3803, %v3810
          %v3824 = vadd.f32 %v3804, %v3810
          %v3825 = vadd.f32 %v3805, %v3810
          %v3826 = vadd.f32 %v3806, %v3810
          %v3827 = vadd.f32 %v3807, %v3810
        $region121: #{tpu_custom_call.1} parent=79 // loop_footer
          %s741 = sadd.s32 1, %s737
        $region122: #{tpu_custom_call.1} parent=79 // loop_footer_branch
          %736 = sbr.rel target = $region118
        $region123: #{tpu_custom_call.1} parent=79 // loop_exit
          _
        %3828 = vst [vmem:[%s716] sm:$0xff] %v742
        %3829 = vst [vmem:[%s716 + $0x8] sm:$0xff] %v743
        %3830 = vst [vmem:[%s716 + $0x10] sm:$0xff] %v744
        %3831 = vst [vmem:[%s716 + $0x18] sm:$0xff] %v745
        %3832 = vst [vmem:[%s716 + $0x20] sm:$0xff] %v746
        %3833 = vst [vmem:[%s716 + $0x28] sm:$0xff] %v747
        %3834 = vst [vmem:[%s716 + $0x30] sm:$0xff] %v748
        %3835 = vst [vmem:[%s716 + $0x38] sm:$0xff] %v749
        %3836 = vst [vmem:[%s716 + $0x40] sm:$0xff] %v750
        %3837 = vst [vmem:[%s716 + $0x48] sm:$0xff] %v751
        %3838 = vst [vmem:[%s716 + $0x50] sm:$0xff] %v752
        %3839 = vst [vmem:[%s716 + $0x58] sm:$0xff] %v753
        %3840 = vst [vmem:[%s716 + $0x60] sm:$0xff] %v754
        %3841 = vst [vmem:[%s716 + $0x68] sm:$0xff] %v755
        %3842 = vst [vmem:[%s716 + $0x70] sm:$0xff] %v756
        %3843 = vst [vmem:[%s716 + $0x78] sm:$0xff] %v757
        %s3844 = sand.u32 %s404, 1
        %s3845 = scalar_lea.sflag [#allocation4], %s3844
        %s3846 = sand.u32 %s404, 1
        %s3847 = smul.addr %s3846, 128
        %s3848 = scalar_lea.vmem [#allocation17], %s3847
        // Predicated region
        $region124: #{tpu_custom_call.1} parent=79 // pred_check
          %p3849 = pneg %p414
        $region125: #{tpu_custom_call.1} parent=79 // pred_check_branch
          %3851 = sbr.rel (%p3849) target = $region127
        $region126: #{tpu_custom_call.1} parent=79 // pred_region
          %s3852 = smul.u32 16, %s43
          %3854 = vsyncadd %s3845, 0
          %s3855 = smul.addr %s42, 32
          %s3856 = sadd.s32 %s3852, %s3855
          %s3857 = smul.addr %s3856, 8
          %s3858 = scalar_lea.hbm %s15, %s3857
          %s3859 = sshll.u32 %s3848, 4
          %s3860 = int_to_ptr.vmem [resolvable:$true] %s3859
          %s3861 = sshll.u32 %s3858, 4
          %s3862 = int_to_ptr.hbm [resolvable:$true] %s3861
          %3867 = dma.vmem_to_hbm [thread:$0]  %s3860, 2048, %s3862, %s3845, 128, 128, 8
        $region127: #{tpu_custom_call.1} parent=79 // pred_fallthru
          _
      $region80: #{tpu_custom_call.1} parent=5 // pred_fallthru
        _
      %p3868 = scmp.le.s32.totalorder 2, %s33
      // Predicated region
      $region128: #{tpu_custom_call.1} parent=5 // pred_check
        %p3869 = pneg %p3868
      $region129: #{tpu_custom_call.1} parent=5 // pred_check_branch
        %3871 = sbr.rel (%p3869) target = $region131
      $region130: #{tpu_custom_call.1} parent=5 // pred_region
        %s3872 = ssub.s32 %s33, 2
        // Predicated region
        $region132: #{tpu_custom_call.1} parent=130 // pred_check
          %p3873 = pneg %p420
        $region133: #{tpu_custom_call.1} parent=130 // pred_check_branch
          %3875 = sbr.rel (%p3873) target = $region135
        $region134: #{tpu_custom_call.1} parent=130 // pred_region
          %s3876 = sand.u32 %s405, 1
          %s3877 = scalar_lea.sflag [#allocation4], %s3876
          %s3878 = sand.u32 %s405, 1
          %s3879 = smul.addr %s3878, 128
          %s3880 = scalar_lea.vmem [#allocation17], %s3879
          %3882 = dma.done %s3877, 2048
        $region135: #{tpu_custom_call.1} parent=130 // pred_fallthru
          _
      $region131: #{tpu_custom_call.1} parent=5 // pred_fallthru
        _
    $region6: #{tpu_custom_call.1} parent=1 // loop_footer
      %s37 = sadd.s32 1, %s33
    $region7: #{tpu_custom_call.1} parent=1 // loop_footer_branch
      %32 = sbr.rel target = $region3
    $region8: #{tpu_custom_call.1} parent=1 // loop_exit
      _
    %3883 = vsyncpa [#allocation3], 1
    %s3884 = scalar_lea.sflag [#allocation3], 1
    %3885 = vsyncpa %s3884, 1
    %3886 = vsyncpa [#allocation6], 1
    %s3887 = scalar_lea.sflag [#allocation6], 1
    %3888 = vsyncpa %s3887, 1
    %3889 = vsyncpa [#allocation9], 1
    %3890 = vsyncpa [#allocation12], 1
    %3891 = vsyncpa [#allocation15], 1
    %3892 = vsyncpa [#allocation4], 1
    %s3893 = scalar_lea.sflag [#allocation4], 1
    %3894 = vsyncpa %s3893, 1

// kernel: tpu_custom_call.1
$region0: #{tpu_custom_call.1}
  #allocation0 [shape = 'u32[]', space=smem, size = 0x4, offset = 0x4, fixed_abs, tag = 'smem constant byte address 0x4 - core index']
  #allocation1 [shape = 'u32[72,128]{1,0:T(1,128)}', space=vmem, size = 0x9000, scoped, tag = 'internal scratch']
  %s0 = inlined_call_operand.hbm [shape: f32[2,256,128], index: 0, kind: input, shape index: {}]
  %s1 = inlined_call_operand.hbm [shape: f32[2,256,128], index: 1, kind: input, shape index: {}]
  %s2 = inlined_call_operand.hbm [shape: bf16[2,2,128,256], index: 2, kind: input, shape index: {}]
  %s3 = inlined_call_operand.hbm [shape: bf16[2,2,256,128], index: 3, kind: input, shape index: {}]
  %s4 = inlined_call_operand.hbm [shape: f32[2,2,1,256], index: 4, kind: input, shape index: {}]
  %s5 = inlined_call_operand.hbm [shape: bf16[128,128], index: 5, kind: input, shape index: {}]
  %s6 = inlined_call_operand.hbm [shape: bf16[128,128], index: 6, kind: input, shape index: {}]
  %s7 = inlined_call_operand.vmem [shape: f32[1,128], index: 7, kind: input, shape index: {}]
  %s8 = inlined_call_operand.vmem [shape: f32[1,128], index: 8, kind: input, shape index: {}]
  %s9 = inlined_call_operand.hbm [shape: bf16[128,256], index: 9, kind: input, shape index: {}]
  %s10 = inlined_call_operand.vmem [shape: f32[1,256], index: 10, kind: input, shape index: {}]
  %s11 = inlined_call_operand.hbm [shape: bf16[256,128], index: 11, kind: input, shape index: {}]
  %s12 = inlined_call_operand.vmem [shape: f32[1,128], index: 12, kind: input, shape index: {}]
  %s13 = inlined_call_operand.vmem [shape: f32[1,128], index: 13, kind: input, shape index: {}]
  %s14 = inlined_call_operand.vmem [shape: f32[1,128], index: 14, kind: input, shape index: {}]
  %s15 = inlined_call_operand.hbm [shape: f32[2,256,128], index: 15, kind: output, shape index: {}]
  %s16 = sld [smem:[#allocation0]]
  $region136: #{tpu_custom_call.1} parent=0
    _
  %s18 = ssub.s32 1, %s16
  %s19 = scalar_select 0, %s18, %s16
  $region1: #{tpu_custom_call.1} parent=0
    #allocation2 [shape = 'u8[131072]{0}', space=vmem, size = 0x20000, scoped, tag = 'input window, operand 0']
    #allocation3 [shape = 's32[2]{0}', space=sflag, size = 0x8, scoped, tag = 'scoped memory for tpu_custom_call.1']
    #allocation4 [shape = 's32[2]{0}', space=sflag, size = 0x8, scoped, tag = 'scoped memory for tpu_custom_call.1']
    #allocation5 [shape = 'u8[131072]{0}', space=vmem, size = 0x20000, scoped, tag = 'input window, operand 1']
    #allocation6 [shape = 's32[2]{0}', space=sflag, size = 0x8, scoped, tag = 'scoped memory for tpu_custom_call.1']
    #allocation7 [shape = 'u8[262144]{0}', space=vmem, size = 0x40000, scoped, tag = 'input window, operand 2']
    #allocation8 [shape = 'u8[262144]{0}', space=vmem, size = 0x40000, scoped, tag = 'input window, operand 3']
    #allocation9 [shape = 's32[2]{0}', space=sflag, size = 0x8, scoped, tag = 'scoped memory for tpu_custom_call.1']
    #allocation10 [shape = 'u8[4096]{0}', space=vmem, size = 0x1000, scoped, tag = 'input window, operand 4']
    #allocation11 [shape = 'u8[32768]{0}', space=vmem, size = 0x8000, scoped, tag = 'input window, operand 5, single buffered']
    #allocation12 [shape = 's32[1]{0}', space=sflag, size = 0x4, scoped, tag = 'scoped memory for tpu_custom_call.1']
    #allocation13 [shape = 'u8[32768]{0}', space=vmem, size = 0x8000, scoped, tag = 'input window, operand 6, single buffered']
    #allocation14 [shape = 'u8[65536]{0}', space=vmem, size = 0x10000, scoped, tag = 'input window, operand 9, single buffered']
    #allocation15 [shape = 's32[1]{0}', space=sflag, size = 0x4, scoped, tag = 'scoped memory for tpu_custom_call.1']
    #allocation16 [shape = 'u8[65536]{0}', space=vmem, size = 0x10000, scoped, tag = 'input window, operand 11, single buffered']
    #allocation17 [shape = 'u8[131072]{0}', space=vmem, size = 0x20000, scoped, tag = 'output window, operand 0']
    %20 = vsyncpa [#allocation3], 0
    %s21 = scalar_lea.sflag [#allocation3], 1
    %22 = vsyncpa %s21, 0
    %23 = vsyncpa [#allocation6], 0
    %s24 = scalar_lea.sflag [#allocation6], 1
    %25 = vsyncpa %s24, 0
    %26 = vsyncpa [#allocation9], 0
    %s27 = scalar_lea.sflag [#allocation9], 1
    %28 = vsyncpa %s27, 0
    %29 = vsyncpa [#allocation12], 0
    %30 = vsyncpa [#allocation15], 0
    %31 = vsyncpa [#allocation4], 0
    %s32 = scalar_lea.sflag [#allocation4], 1
    %33 = vsyncpa %s32, 0
    loop: start=0, step=1, limit=6
    $region2: #{tpu_custom_call.1} parent=1 // loop_pre_header
      _
    $region3: #{tpu_custom_call.1} parent=1 // loop_header
      %s35 = sphi 0, %s39
      %p36 = scmp.ge.s32.totalorder %s35, 6
      %s42 = sphi 0, %s54
      %s43 = sphi 0, %s50
      %s44 = sphi 0, %s42
      %s45 = sphi 0, %s43
      %s46 = sphi 0, %s44
      %s47 = sphi 0, %s45
      %s59 = sphi 0, %s61
      %s62 = sphi 0, %s59
      %s63 = sphi 0, %s62
      %s79 = sphi 0, %s63
      %s87 = sphi 0, %s89
      %s90 = sphi 0, %s87
      %s91 = sphi 0, %s90
      %s107 = sphi 0, %s91
      %s113 = sphi 0, %s115
      %s116 = sphi 0, %s113
      %s117 = sphi 0, %s116
      %s133 = sphi 0, %s117
      %s139 = sphi 0, %s141
      %s142 = sphi 0, %s139
      %s143 = sphi 0, %s142
      %s159 = sphi 0, %s143
      %s165 = sphi 0, %s167
      %s168 = sphi 0, %s165
      %s169 = sphi 0, %s168
      %s185 = sphi 0, %s169
      %s189 = sphi 0, %s189
      %s191 = sphi 0, %s189
      %s192 = sphi 0, %s191
      %s206 = sphi 0, %s192
      %s210 = sphi 0, %s210
      %s212 = sphi 0, %s210
      %s213 = sphi 0, %s212
      %s227 = sphi 0, %s213
      %s231 = sphi 0, %s231
      %s233 = sphi 0, %s231
      %s234 = sphi 0, %s233
      %s248 = sphi 0, %s234
      %s252 = sphi 0, %s252
      %s254 = sphi 0, %s252
      %s255 = sphi 0, %s254
      %s269 = sphi 0, %s255
      %s273 = sphi 0, %s273
      %s275 = sphi 0, %s273
      %s276 = sphi 0, %s275
      %s290 = sphi 0, %s276
      %s294 = sphi 0, %s294
      %s296 = sphi 0, %s294
      %s297 = sphi 0, %s296
      %s311 = sphi 0, %s297
      %s315 = sphi 0, %s315
      %s317 = sphi 0, %s315
      %s318 = sphi 0, %s317
      %s332 = sphi 0, %s318
      %s336 = sphi 0, %s336
      %s338 = sphi 0, %s336
      %s339 = sphi 0, %s338
      %s353 = sphi 0, %s339
      %s357 = sphi 0, %s357
      %s359 = sphi 0, %s357
      %s360 = sphi 0, %s359
      %s374 = sphi 0, %s360
      %s378 = sphi 0, %s378
      %s380 = sphi 0, %s378
      %s381 = sphi 0, %s380
      %s395 = sphi 0, %s381
      %s403 = sphi 0, %s405
      %s406 = sphi 0, %s403
      %s407 = sphi 0, %s406
      %s423 = sphi 0, %s407
    $region4: #{tpu_custom_call.1} parent=1 // loop_header_branch
      %38 = sbr.rel (%p36) target = $region8
    $region5: #{tpu_custom_call.1} parent=1 // loop_body
      %s40 = ssub.s32 %s35, 1
      %s41 = ssub.s32 %s35, 2
      %s48 = sadd.s32 1, %s43
      %p49 = scmp.ge.s32.totalorder %s48, 2
      %s50 = scalar_select %p49, 0, %s48
      %s51 = sadd.s32 1, %s42
      %s52 = scalar_select %p49, %s51, %s42
      %p53 = scmp.ge.s32.totalorder %s52, 2
      %s54 = scalar_select %p53, 0, %s52
      %s55 = ssub.s32 %s42, %s54
      %s56 = ssub.s32 %s43, %s50
      %s57 = sor.u32 %s55, %s56
      %p58 = scmp.eq.s32.totalorder %s57, 0
      %s60 = sadd.s32 %s59, 1
      %s61 = scalar_select %p58, %s59, %s60
      %p64 = pneg %p58
      %p65 = scmp.eq.s32.totalorder %s35, 3
      %p66 = por %p64, %p65
      %p67 = scmp.ne.s32.totalorder %s59, %s62
      %p68 = scmp.eq.s32.totalorder %s35, 0
      %p69 = por %p67, %p68
      %p70 = scmp.ne.s32.totalorder %s59, %s62
      %p71 = scmp.eq.s32.totalorder %s40, 3
      %p72 = por %p70, %p71
      %p73 = scmp.ne.s32.totalorder %s62, %s63
      %p74 = scmp.eq.s32.totalorder %s40, 0
      %p75 = por %p73, %p74
      %p76 = scmp.ne.s32.totalorder %s62, %s63
      %p77 = scmp.eq.s32.totalorder %s41, 3
      %p78 = por %p76, %p77
      %p80 = scmp.ne.s32.totalorder %s63, %s79
      %p81 = scmp.eq.s32.totalorder %s41, 0
      %p82 = por %p80, %p81
      %s83 = ssub.s32 %s42, %s54
      %s84 = ssub.s32 %s43, %s50
      %s85 = sor.u32 %s83, %s84
      %p86 = scmp.eq.s32.totalorder %s85, 0
      %s88 = sadd.s32 %s87, 1
      %s89 = scalar_select %p86, %s87, %s88
      %p92 = pneg %p86
      %p93 = scmp.eq.s32.totalorder %s35, 3
      %p94 = por %p92, %p93
      %p95 = scmp.ne.s32.totalorder %s87, %s90
      %p96 = scmp.eq.s32.totalorder %s35, 0
      %p97 = por %p95, %p96
      %p98 = scmp.ne.s32.totalorder %s87, %s90
      %p99 = scmp.eq.s32.totalorder %s40, 3
      %p100 = por %p98, %p99
      %p101 = scmp.ne.s32.totalorder %s90, %s91
      %p102 = scmp.eq.s32.totalorder %s40, 0
      %p103 = por %p101, %p102
      %p104 = scmp.ne.s32.totalorder %s90, %s91
      %p105 = scmp.eq.s32.totalorder %s41, 3
      %p106 = por %p104, %p105
      %p108 = scmp.ne.s32.totalorder %s91, %s107
      %p109 = scmp.eq.s32.totalorder %s41, 0
      %p110 = por %p108, %p109
      %s111 = ssub.s32 %s42, %s54
      %p112 = scmp.eq.s32.totalorder %s111, 0
      %s114 = sadd.s32 %s113, 1
      %s115 = scalar_select %p112, %s113, %s114
      %p118 = pneg %p112
      %p119 = scmp.eq.s32.totalorder %s35, 3
      %p120 = por %p118, %p119
      %p121 = scmp.ne.s32.totalorder %s113, %s116
      %p122 = scmp.eq.s32.totalorder %s35, 0
      %p123 = por %p121, %p122
      %p124 = scmp.ne.s32.totalorder %s113, %s116
      %p125 = scmp.eq.s32.totalorder %s40, 3
      %p126 = por %p124, %p125
      %p127 = scmp.ne.s32.totalorder %s116, %s117
      %p128 = scmp.eq.s32.totalorder %s40, 0
      %p129 = por %p127, %p128
      %p130 = scmp.ne.s32.totalorder %s116, %s117
      %p131 = scmp.eq.s32.totalorder %s41, 3
      %p132 = por %p130, %p131
      %p134 = scmp.ne.s32.totalorder %s117, %s133
      %p135 = scmp.eq.s32.totalorder %s41, 0
      %p136 = por %p134, %p135
      %s137 = ssub.s32 %s42, %s54
      %p138 = scmp.eq.s32.totalorder %s137, 0
      %s140 = sadd.s32 %s139, 1
      %s141 = scalar_select %p138, %s139, %s140
      %p144 = pneg %p138
      %p145 = scmp.eq.s32.totalorder %s35, 3
      %p146 = por %p144, %p145
      %p147 = scmp.ne.s32.totalorder %s139, %s142
      %p148 = scmp.eq.s32.totalorder %s35, 0
      %p149 = por %p147, %p148
      %p150 = scmp.ne.s32.totalorder %s139, %s142
      %p151 = scmp.eq.s32.totalorder %s40, 3
      %p152 = por %p150, %p151
      %p153 = scmp.ne.s32.totalorder %s142, %s143
      %p154 = scmp.eq.s32.totalorder %s40, 0
      %p155 = por %p153, %p154
      %p156 = scmp.ne.s32.totalorder %s142, %s143
      %p157 = scmp.eq.s32.totalorder %s41, 3
      %p158 = por %p156, %p157
      %p160 = scmp.ne.s32.totalorder %s143, %s159
      %p161 = scmp.eq.s32.totalorder %s41, 0
      %p162 = por %p160, %p161
      %s163 = ssub.s32 %s42, %s54
      %p164 = scmp.eq.s32.totalorder %s163, 0
      %s166 = sadd.s32 %s165, 1
      %s167 = scalar_select %p164, %s165, %s166
      %p170 = pneg %p164
      %p171 = scmp.eq.s32.totalorder %s35, 3
      %p172 = por %p170, %p171
      %p173 = scmp.ne.s32.totalorder %s165, %s168
      %p174 = scmp.eq.s32.totalorder %s35, 0
      %p175 = por %p173, %p174
      %p176 = scmp.ne.s32.totalorder %s165, %s168
      %p177 = scmp.eq.s32.totalorder %s40, 3
      %p178 = por %p176, %p177
      %p179 = scmp.ne.s32.totalorder %s168, %s169
      %p180 = scmp.eq.s32.totalorder %s40, 0
      %p181 = por %p179, %p180
      %p182 = scmp.ne.s32.totalorder %s168, %s169
      %p183 = scmp.eq.s32.totalorder %s41, 3
      %p184 = por %p182, %p183
      %p186 = scmp.ne.s32.totalorder %s169, %s185
      %p187 = scmp.eq.s32.totalorder %s41, 0
      %p188 = por %p186, %p187
      %s190 = sadd.s32 %s189, 1
      %p193 = scmp.eq.s32.totalorder %s35, 3
      %p194 = scmp.ne.s32.totalorder %s189, %s191
      %p195 = scmp.eq.s32.totalorder %s35, 0
      %p196 = por %p194, %p195
      %p197 = scmp.ne.s32.totalorder %s189, %s191
      %p198 = scmp.eq.s32.totalorder %s40, 3
      %p199 = por %p197, %p198
      %p200 = scmp.ne.s32.totalorder %s191, %s192
      %p201 = scmp.eq.s32.totalorder %s40, 0
      %p202 = por %p200, %p201
      %p203 = scmp.ne.s32.totalorder %s191, %s192
      %p204 = scmp.eq.s32.totalorder %s41, 3
      %p205 = por %p203, %p204
      %p207 = scmp.ne.s32.totalorder %s192, %s206
      %p208 = scmp.eq.s32.totalorder %s41, 0
      %p209 = por %p207, %p208
      %s211 = sadd.s32 %s210, 1
      %p214 = scmp.eq.s32.totalorder %s35, 3
      %p215 = scmp.ne.s32.totalorder %s210, %s212
      %p216 = scmp.eq.s32.totalorder %s35, 0
      %p217 = por %p215, %p216
      %p218 = scmp.ne.s32.totalorder %s210, %s212
      %p219 = scmp.eq.s32.totalorder %s40, 3
      %p220 = por %p218, %p219
      %p221 = scmp.ne.s32.totalorder %s212, %s213
      %p222 = scmp.eq.s32.totalorder %s40, 0
      %p223 = por %p221, %p222
      %p224 = scmp.ne.s32.totalorder %s212, %s213
      %p225 = scmp.eq.s32.totalorder %s41, 3
      %p226 = por %p224, %p225
      %p228 = scmp.ne.s32.totalorder %s213, %s227
      %p229 = scmp.eq.s32.totalorder %s41, 0
      %p230 = por %p228, %p229
      %s232 = sadd.s32 %s231, 1
      %p235 = scmp.eq.s32.totalorder %s35, 3
      %p236 = scmp.ne.s32.totalorder %s231, %s233
      %p237 = scmp.eq.s32.totalorder %s35, 0
      %p238 = por %p236, %p237
      %p239 = scmp.ne.s32.totalorder %s231, %s233
      %p240 = scmp.eq.s32.totalorder %s40, 3
      %p241 = por %p239, %p240
      %p242 = scmp.ne.s32.totalorder %s233, %s234
      %p243 = scmp.eq.s32.totalorder %s40, 0
      %p244 = por %p242, %p243
      %p245 = scmp.ne.s32.totalorder %s233, %s234
      %p246 = scmp.eq.s32.totalorder %s41, 3
      %p247 = por %p245, %p246
      %p249 = scmp.ne.s32.totalorder %s234, %s248
      %p250 = scmp.eq.s32.totalorder %s41, 0
      %p251 = por %p249, %p250
      %s253 = sadd.s32 %s252, 1
      %p256 = scmp.eq.s32.totalorder %s35, 3
      %p257 = scmp.ne.s32.totalorder %s252, %s254
      %p258 = scmp.eq.s32.totalorder %s35, 0
      %p259 = por %p257, %p258
      %p260 = scmp.ne.s32.totalorder %s252, %s254
      %p261 = scmp.eq.s32.totalorder %s40, 3
      %p262 = por %p260, %p261
      %p263 = scmp.ne.s32.totalorder %s254, %s255
      %p264 = scmp.eq.s32.totalorder %s40, 0
      %p265 = por %p263, %p264
      %p266 = scmp.ne.s32.totalorder %s254, %s255
      %p267 = scmp.eq.s32.totalorder %s41, 3
      %p268 = por %p266, %p267
      %p270 = scmp.ne.s32.totalorder %s255, %s269
      %p271 = scmp.eq.s32.totalorder %s41, 0
      %p272 = por %p270, %p271
      %s274 = sadd.s32 %s273, 1
      %p277 = scmp.eq.s32.totalorder %s35, 3
      %p278 = scmp.ne.s32.totalorder %s273, %s275
      %p279 = scmp.eq.s32.totalorder %s35, 0
      %p280 = por %p278, %p279
      %p281 = scmp.ne.s32.totalorder %s273, %s275
      %p282 = scmp.eq.s32.totalorder %s40, 3
      %p283 = por %p281, %p282
      %p284 = scmp.ne.s32.totalorder %s275, %s276
      %p285 = scmp.eq.s32.totalorder %s40, 0
      %p286 = por %p284, %p285
      %p287 = scmp.ne.s32.totalorder %s275, %s276
      %p288 = scmp.eq.s32.totalorder %s41, 3
      %p289 = por %p287, %p288
      %p291 = scmp.ne.s32.totalorder %s276, %s290
      %p292 = scmp.eq.s32.totalorder %s41, 0
      %p293 = por %p291, %p292
      %s295 = sadd.s32 %s294, 1
      %p298 = scmp.eq.s32.totalorder %s35, 3
      %p299 = scmp.ne.s32.totalorder %s294, %s296
      %p300 = scmp.eq.s32.totalorder %s35, 0
      %p301 = por %p299, %p300
      %p302 = scmp.ne.s32.totalorder %s294, %s296
      %p303 = scmp.eq.s32.totalorder %s40, 3
      %p304 = por %p302, %p303
      %p305 = scmp.ne.s32.totalorder %s296, %s297
      %p306 = scmp.eq.s32.totalorder %s40, 0
      %p307 = por %p305, %p306
      %p308 = scmp.ne.s32.totalorder %s296, %s297
      %p309 = scmp.eq.s32.totalorder %s41, 3
      %p310 = por %p308, %p309
      %p312 = scmp.ne.s32.totalorder %s297, %s311
      %p313 = scmp.eq.s32.totalorder %s41, 0
      %p314 = por %p312, %p313
      %s316 = sadd.s32 %s315, 1
      %p319 = scmp.eq.s32.totalorder %s35, 3
      %p320 = scmp.ne.s32.totalorder %s315, %s317
      %p321 = scmp.eq.s32.totalorder %s35, 0
      %p322 = por %p320, %p321
      %p323 = scmp.ne.s32.totalorder %s315, %s317
      %p324 = scmp.eq.s32.totalorder %s40, 3
      %p325 = por %p323, %p324
      %p326 = scmp.ne.s32.totalorder %s317, %s318
      %p327 = scmp.eq.s32.totalorder %s40, 0
      %p328 = por %p326, %p327
      %p329 = scmp.ne.s32.totalorder %s317, %s318
      %p330 = scmp.eq.s32.totalorder %s41, 3
      %p331 = por %p329, %p330
      %p333 = scmp.ne.s32.totalorder %s318, %s332
      %p334 = scmp.eq.s32.totalorder %s41, 0
      %p335 = por %p333, %p334
      %s337 = sadd.s32 %s336, 1
      %p340 = scmp.eq.s32.totalorder %s35, 3
      %p341 = scmp.ne.s32.totalorder %s336, %s338
      %p342 = scmp.eq.s32.totalorder %s35, 0
      %p343 = por %p341, %p342
      %p344 = scmp.ne.s32.totalorder %s336, %s338
      %p345 = scmp.eq.s32.totalorder %s40, 3
      %p346 = por %p344, %p345
      %p347 = scmp.ne.s32.totalorder %s338, %s339
      %p348 = scmp.eq.s32.totalorder %s40, 0
      %p349 = por %p347, %p348
      %p350 = scmp.ne.s32.totalorder %s338, %s339
      %p351 = scmp.eq.s32.totalorder %s41, 3
      %p352 = por %p350, %p351
      %p354 = scmp.ne.s32.totalorder %s339, %s353
      %p355 = scmp.eq.s32.totalorder %s41, 0
      %p356 = por %p354, %p355
      %s358 = sadd.s32 %s357, 1
      %p361 = scmp.eq.s32.totalorder %s35, 3
      %p362 = scmp.ne.s32.totalorder %s357, %s359
      %p363 = scmp.eq.s32.totalorder %s35, 0
      %p364 = por %p362, %p363
      %p365 = scmp.ne.s32.totalorder %s357, %s359
      %p366 = scmp.eq.s32.totalorder %s40, 3
      %p367 = por %p365, %p366
      %p368 = scmp.ne.s32.totalorder %s359, %s360
      %p369 = scmp.eq.s32.totalorder %s40, 0
      %p370 = por %p368, %p369
      %p371 = scmp.ne.s32.totalorder %s359, %s360
      %p372 = scmp.eq.s32.totalorder %s41, 3
      %p373 = por %p371, %p372
      %p375 = scmp.ne.s32.totalorder %s360, %s374
      %p376 = scmp.eq.s32.totalorder %s41, 0
      %p377 = por %p375, %p376
      %s379 = sadd.s32 %s378, 1
      %p382 = scmp.eq.s32.totalorder %s35, 3
      %p383 = scmp.ne.s32.totalorder %s378, %s380
      %p384 = scmp.eq.s32.totalorder %s35, 0
      %p385 = por %p383, %p384
      %p386 = scmp.ne.s32.totalorder %s378, %s380
      %p387 = scmp.eq.s32.totalorder %s40, 3
      %p388 = por %p386, %p387
      %p389 = scmp.ne.s32.totalorder %s380, %s381
      %p390 = scmp.eq.s32.totalorder %s40, 0
      %p391 = por %p389, %p390
      %p392 = scmp.ne.s32.totalorder %s380, %s381
      %p393 = scmp.eq.s32.totalorder %s41, 3
      %p394 = por %p392, %p393
      %p396 = scmp.ne.s32.totalorder %s381, %s395
      %p397 = scmp.eq.s32.totalorder %s41, 0
      %p398 = por %p396, %p397
      %s399 = ssub.s32 %s42, %s54
      %s400 = ssub.s32 %s43, %s50
      %s401 = sor.u32 %s399, %s400
      %p402 = scmp.eq.s32.totalorder %s401, 0
      %s404 = sadd.s32 %s403, 1
      %s405 = scalar_select %p402, %s403, %s404
      %p408 = pneg %p402
      %p409 = scmp.eq.s32.totalorder %s35, 3
      %p410 = por %p408, %p409
      %p411 = scmp.ne.s32.totalorder %s403, %s406
      %p412 = scmp.eq.s32.totalorder %s35, 0
      %p413 = por %p411, %p412
      %p414 = scmp.ne.s32.totalorder %s403, %s406
      %p415 = scmp.eq.s32.totalorder %s40, 3
      %p416 = por %p414, %p415
      %p417 = scmp.ne.s32.totalorder %s406, %s407
      %p418 = scmp.eq.s32.totalorder %s40, 0
      %p419 = por %p417, %p418
      %p420 = scmp.ne.s32.totalorder %s406, %s407
      %p421 = scmp.eq.s32.totalorder %s41, 3
      %p422 = por %p420, %p421
      %p424 = scmp.ne.s32.totalorder %s407, %s423
      %p425 = scmp.eq.s32.totalorder %s41, 0
      %p426 = por %p424, %p425
      %p427 = scmp.le.s32.totalorder 1, %s35
      %p428 = scmp.lt.s32.totalorder %s35, 5
      %p429 = pnand %p427, %p428
      %p430 = pneg %p429
      // Predicated region
      $region9: #{tpu_custom_call.1} parent=5 // pred_check
        _
      $region10: #{tpu_custom_call.1} parent=5 // pred_check_branch
        %432 = sbr.rel (%p429) target = $region12
      $region11: #{tpu_custom_call.1} parent=5 // pred_region
        %s433 = ssub.s32 %s35, 1
        // Predicated region
        $region13: #{tpu_custom_call.1} parent=11 // pred_check
          %p434 = pneg %p202
        $region14: #{tpu_custom_call.1} parent=11 // pred_check_branch
          %436 = sbr.rel (%p434) target = $region16
        $region15: #{tpu_custom_call.1} parent=11 // pred_region
          %438 = vsyncadd [#allocation12], 0
          %s439 = sshll.u32 %s5, 4
          %s440 = int_to_ptr.hbm [resolvable:$true] %s439
          %s441 = sshll.u32 [#allocation11], 4
          %s442 = int_to_ptr.vmem [resolvable:$true] %s441
          %447 = dma.hbm_to_vmem [thread:$0]  %s440, 1024, %s442, [#allocation12], 64, 64, 4
        $region16: #{tpu_custom_call.1} parent=11 // pred_fallthru
          _
        // Predicated region
        $region17: #{tpu_custom_call.1} parent=11 // pred_check
          %p448 = pneg %p223
        $region18: #{tpu_custom_call.1} parent=11 // pred_check_branch
          %450 = sbr.rel (%p448) target = $region20
        $region19: #{tpu_custom_call.1} parent=11 // pred_region
          %452 = vsyncadd [#allocation12], 0
          %s453 = sshll.u32 %s6, 4
          %s454 = int_to_ptr.hbm [resolvable:$true] %s453
          %s455 = sshll.u32 [#allocation13], 4
          %s456 = int_to_ptr.vmem [resolvable:$true] %s455
          %461 = dma.hbm_to_vmem [thread:$0]  %s454, 1024, %s456, [#allocation12], 64, 64, 4
        $region20: #{tpu_custom_call.1} parent=11 // pred_fallthru
          _
        // Predicated region
        $region21: #{tpu_custom_call.1} parent=11 // pred_check
          %p462 = pneg %p244
        $region22: #{tpu_custom_call.1} parent=11 // pred_check_branch
          %464 = sbr.rel (%p462) target = $region24
        $region23: #{tpu_custom_call.1} parent=11 // pred_region
          _
        $region24: #{tpu_custom_call.1} parent=11 // pred_fallthru
          _
        // Predicated region
        $region25: #{tpu_custom_call.1} parent=11 // pred_check
          %p465 = pneg %p265
        $region26: #{tpu_custom_call.1} parent=11 // pred_check_branch
          %467 = sbr.rel (%p465) target = $region28
        $region27: #{tpu_custom_call.1} parent=11 // pred_region
          _
        $region28: #{tpu_custom_call.1} parent=11 // pred_fallthru
          _
        // Predicated region
        $region29: #{tpu_custom_call.1} parent=11 // pred_check
          %p468 = pneg %p286
        $region30: #{tpu_custom_call.1} parent=11 // pred_check_branch
          %470 = sbr.rel (%p468) target = $region32
        $region31: #{tpu_custom_call.1} parent=11 // pred_region
          %472 = vsyncadd [#allocation15], 0
          %s473 = sshll.u32 %s9, 4
          %s474 = int_to_ptr.hbm [resolvable:$true] %s473
          %s475 = sshll.u32 [#allocation14], 4
          %s476 = int_to_ptr.vmem [resolvable:$true] %s475
          %481 = dma.hbm_to_vmem [thread:$0]  %s474, 2048, %s476, [#allocation15], 128, 128, 8
        $region32: #{tpu_custom_call.1} parent=11 // pred_fallthru
          _
        // Predicated region
        $region33: #{tpu_custom_call.1} parent=11 // pred_check
          %p482 = pneg %p307
        $region34: #{tpu_custom_call.1} parent=11 // pred_check_branch
          %484 = sbr.rel (%p482) target = $region36
        $region35: #{tpu_custom_call.1} parent=11 // pred_region
          _
        $region36: #{tpu_custom_call.1} parent=11 // pred_fallthru
          _
        // Predicated region
        $region37: #{tpu_custom_call.1} parent=11 // pred_check
          %p485 = pneg %p328
        $region38: #{tpu_custom_call.1} parent=11 // pred_check_branch
          %487 = sbr.rel (%p485) target = $region40
        $region39: #{tpu_custom_call.1} parent=11 // pred_region
          %489 = vsyncadd [#allocation15], 0
          %s490 = sshll.u32 %s11, 4
          %s491 = int_to_ptr.hbm [resolvable:$true] %s490
          %s492 = sshll.u32 [#allocation16], 4
          %s493 = int_to_ptr.vmem [resolvable:$true] %s492
          %498 = dma.hbm_to_vmem [thread:$0]  %s491, 2048, %s493, [#allocation15], 64, 64, 4
        $region40: #{tpu_custom_call.1} parent=11 // pred_fallthru
          _
        // Predicated region
        $region41: #{tpu_custom_call.1} parent=11 // pred_check
          %p499 = pneg %p349
        $region42: #{tpu_custom_call.1} parent=11 // pred_check_branch
          %501 = sbr.rel (%p499) target = $region44
        $region43: #{tpu_custom_call.1} parent=11 // pred_region
          _
        $region44: #{tpu_custom_call.1} parent=11 // pred_fallthru
          _
        // Predicated region
        $region45: #{tpu_custom_call.1} parent=11 // pred_check
          %p502 = pneg %p370
        $region46: #{tpu_custom_call.1} parent=11 // pred_check_branch
          %504 = sbr.rel (%p502) target = $region48
        $region47: #{tpu_custom_call.1} parent=11 // pred_region
          _
        $region48: #{tpu_custom_call.1} parent=11 // pred_fallthru
          _
        // Predicated region
        $region49: #{tpu_custom_call.1} parent=11 // pred_check
          %p505 = pneg %p391
        $region50: #{tpu_custom_call.1} parent=11 // pred_check_branch
          %507 = sbr.rel (%p505) target = $region52
        $region51: #{tpu_custom_call.1} parent=11 // pred_region
          _
        $region52: #{tpu_custom_call.1} parent=11 // pred_fallthru
          _
      $region12: #{tpu_custom_call.1} parent=5 // pred_fallthru
        _
      %p508 = scmp.lt.s32.totalorder %s35, 4
      // Predicated region
      $region53: #{tpu_custom_call.1} parent=5 // pred_check
        %p509 = pneg %p508
      $region54: #{tpu_custom_call.1} parent=5 // pred_check_branch
        %511 = sbr.rel (%p509) target = $region56
      $region55: #{tpu_custom_call.1} parent=5 // pred_region
        // Predicated region
        $region57: #{tpu_custom_call.1} parent=55 // pred_check
          %p512 = pneg %p69
        $region58: #{tpu_custom_call.1} parent=55 // pred_check_branch
          %514 = sbr.rel (%p512) target = $region60
        $region59: #{tpu_custom_call.1} parent=55 // pred_region
          %s515 = sand.u32 %s59, 1
          %s516 = scalar_lea.sflag [#allocation3], %s515
          %s517 = sand.u32 %s59, 1
          %s518 = smul.addr %s517, 128
          %s519 = scalar_lea.vmem [#allocation2], %s518
          %s520 = smul.u32 16, %s43
          %522 = vsyncadd %s516, 0
          %s523 = smul.addr %s42, 32
          %s524 = sadd.s32 %s520, %s523
          %s525 = smul.addr %s524, 8
          %s526 = scalar_lea.hbm %s0, %s525
          %s527 = sshll.u32 %s526, 4
          %s528 = int_to_ptr.hbm [resolvable:$true] %s527
          %s529 = sshll.u32 %s519, 4
          %s530 = int_to_ptr.vmem [resolvable:$true] %s529
          %535 = dma.hbm_to_vmem [thread:$0]  %s528, 2048, %s530, %s516, 128, 128, 8
        $region60: #{tpu_custom_call.1} parent=55 // pred_fallthru
          _
        // Predicated region
        $region61: #{tpu_custom_call.1} parent=55 // pred_check
          %p536 = pneg %p97
        $region62: #{tpu_custom_call.1} parent=55 // pred_check_branch
          %538 = sbr.rel (%p536) target = $region64
        $region63: #{tpu_custom_call.1} parent=55 // pred_region
          %s539 = sand.u32 %s35, 1
          %s540 = scalar_lea.sflag [#allocation6], %s539
          %s541 = sand.u32 %s87, 1
          %s542 = smul.addr %s541, 128
          %s543 = scalar_lea.vmem [#allocation5], %s542
          %s544 = smul.u32 16, %s43
          %546 = vsyncadd %s540, 0
          %s547 = smul.addr %s42, 32
          %s548 = sadd.s32 %s544, %s547
          %s549 = smul.addr %s548, 8
          %s550 = scalar_lea.hbm %s1, %s549
          %s551 = sshll.u32 %s550, 4
          %s552 = int_to_ptr.hbm [resolvable:$true] %s551
          %s553 = sshll.u32 %s543, 4
          %s554 = int_to_ptr.vmem [resolvable:$true] %s553
          %559 = dma.hbm_to_vmem [thread:$0]  %s552, 2048, %s554, %s540, 128, 128, 8
        $region64: #{tpu_custom_call.1} parent=55 // pred_fallthru
          _
        // Predicated region
        $region65: #{tpu_custom_call.1} parent=55 // pred_check
          %p560 = pneg %p123
        $region66: #{tpu_custom_call.1} parent=55 // pred_check_branch
          %562 = sbr.rel (%p560) target = $region68
        $region67: #{tpu_custom_call.1} parent=55 // pred_region
          %s563 = sand.u32 %s35, 1
          %s564 = scalar_lea.sflag [#allocation6], %s563
          %s565 = sand.u32 %s113, 1
          %s566 = smul.addr %s565, 256
          %s567 = scalar_lea.vmem [#allocation7], %s566
          %569 = vsyncadd %s564, 0
          %s570 = smul.addr %s42, 64
          %s571 = smul.addr %s570, 4
          %s572 = scalar_lea.hbm %s2, %s571
          %s573 = sshll.u32 %s572, 4
          %s574 = int_to_ptr.hbm [resolvable:$true] %s573
          %s575 = sshll.u32 %s567, 4
          %s576 = int_to_ptr.vmem [resolvable:$true] %s575
          %581 = dma.hbm_to_vmem [thread:$0]  %s574, 4096, %s576, %s564, 128, 128, 8
        $region68: #{tpu_custom_call.1} parent=55 // pred_fallthru
          _
        // Predicated region
        $region69: #{tpu_custom_call.1} parent=55 // pred_check
          %p582 = pneg %p149
        $region70: #{tpu_custom_call.1} parent=55 // pred_check_branch
          %584 = sbr.rel (%p582) target = $region72
        $region71: #{tpu_custom_call.1} parent=55 // pred_region
          %s585 = sand.u32 %s35, 1
          %s586 = scalar_lea.sflag [#allocation9], %s585
          %s587 = sand.u32 %s139, 1
          %s588 = smul.addr %s587, 256
          %s589 = scalar_lea.vmem [#allocation8], %s588
          %591 = vsyncadd %s586, 0
          %s592 = smul.addr %s42, 64
          %s593 = smul.addr %s592, 4
          %s594 = scalar_lea.hbm %s3, %s593
          %s595 = sshll.u32 %s594, 4
          %s596 = int_to_ptr.hbm [resolvable:$true] %s595
          %s597 = sshll.u32 %s589, 4
          %s598 = int_to_ptr.vmem [resolvable:$true] %s597
          %603 = dma.hbm_to_vmem [thread:$0]  %s596, 4096, %s598, %s586, 64, 64, 4
        $region72: #{tpu_custom_call.1} parent=55 // pred_fallthru
          _
        // Predicated region
        $region73: #{tpu_custom_call.1} parent=55 // pred_check
          %p604 = pneg %p175
        $region74: #{tpu_custom_call.1} parent=55 // pred_check_branch
          %606 = sbr.rel (%p604) target = $region76
        $region75: #{tpu_custom_call.1} parent=55 // pred_region
          %s607 = sand.u32 %s35, 1
          %s608 = scalar_lea.sflag [#allocation9], %s607
          %s609 = sand.u32 %s165, 1
          %s610 = smul.addr %s609, 4
          %s611 = scalar_lea.vmem [#allocation10], %s610
          %613 = vsyncadd %s608, 0
          %s614 = smul.addr %s42, 4
          %s615 = scalar_lea.hbm %s4, %s614
          %s616 = sshll.u32 %s615, 4
          %s617 = int_to_ptr.hbm [resolvable:$true] %s616
          %s618 = sshll.u32 %s611, 4
          %s619 = int_to_ptr.vmem [resolvable:$true] %s618
          %624 = dma.hbm_to_vmem [thread:$0]  %s617, 64, %s619, %s608, 32, 32, 2
        $region76: #{tpu_custom_call.1} parent=55 // pred_fallthru
          _
      $region56: #{tpu_custom_call.1} parent=5 // pred_fallthru
        _
      %p625 = scmp.le.s32.totalorder 1, %s35
      %p626 = scmp.lt.s32.totalorder %s35, 5
      %p627 = pnand %p625, %p626
      %p628 = pneg %p627
      // Predicated region
      $region77: #{tpu_custom_call.1} parent=5 // pred_check
        _
      $region78: #{tpu_custom_call.1} parent=5 // pred_check_branch
        %630 = sbr.rel (%p627) target = $region80
      $region79: #{tpu_custom_call.1} parent=5 // pred_region
        %s631 = ssub.s32 %s35, 1
        %s632 = sand.u32 %s62, 1
        %s633 = scalar_lea.sflag [#allocation3], %s632
        %s634 = sand.u32 %s62, 1
        %s635 = smul.addr %s634, 128
        %s636 = scalar_lea.vmem [#allocation2], %s635
        // Predicated region
        $region81: #{tpu_custom_call.1} parent=79 // pred_check
          %p637 = pneg %p75
        $region82: #{tpu_custom_call.1} parent=79 // pred_check_branch
          %639 = sbr.rel (%p637) target = $region84
        $region83: #{tpu_custom_call.1} parent=79 // pred_region
          %641 = dma.done %s633, 2048
        $region84: #{tpu_custom_call.1} parent=79 // pred_fallthru
          _
        %s642 = sand.u32 %s40, 1
        %s643 = scalar_lea.sflag [#allocation6], %s642
        %s644 = sand.u32 %s90, 1
        %s645 = smul.addr %s644, 128
        %s646 = scalar_lea.vmem [#allocation5], %s645
        // Predicated region
        $region85: #{tpu_custom_call.1} parent=79 // pred_check
          %p647 = pneg %p103
        $region86: #{tpu_custom_call.1} parent=79 // pred_check_branch
          %649 = sbr.rel (%p647) target = $region88
        $region87: #{tpu_custom_call.1} parent=79 // pred_region
          %651 = dma.done %s643, 2048
        $region88: #{tpu_custom_call.1} parent=79 // pred_fallthru
          _
        %s652 = sand.u32 %s40, 1
        %s653 = scalar_lea.sflag [#allocation6], %s652
        %s654 = sand.u32 %s116, 1
        %s655 = smul.addr %s654, 256
        %s656 = scalar_lea.vmem [#allocation7], %s655
        // Predicated region
        $region89: #{tpu_custom_call.1} parent=79 // pred_check
          %p657 = pneg %p129
        $region90: #{tpu_custom_call.1} parent=79 // pred_check_branch
          %659 = sbr.rel (%p657) target = $region92
        $region91: #{tpu_custom_call.1} parent=79 // pred_region
          %661 = dma.done %s653, 4096
        $region92: #{tpu_custom_call.1} parent=79 // pred_fallthru
          _
        %s662 = sand.u32 %s40, 1
        %s663 = scalar_lea.sflag [#allocation9], %s662
        %s664 = sand.u32 %s142, 1
        %s665 = smul.addr %s664, 256
        %s666 = scalar_lea.vmem [#allocation8], %s665
        // Predicated region
        $region93: #{tpu_custom_call.1} parent=79 // pred_check
          %p667 = pneg %p155
        $region94: #{tpu_custom_call.1} parent=79 // pred_check_branch
          %669 = sbr.rel (%p667) target = $region96
        $region95: #{tpu_custom_call.1} parent=79 // pred_region
          %671 = dma.done %s663, 4096
        $region96: #{tpu_custom_call.1} parent=79 // pred_fallthru
          _
        %s672 = sand.u32 %s40, 1
        %s673 = scalar_lea.sflag [#allocation9], %s672
        %s674 = sand.u32 %s168, 1
        %s675 = smul.addr %s674, 4
        %s676 = scalar_lea.vmem [#allocation10], %s675
        // Predicated region
        $region97: #{tpu_custom_call.1} parent=79 // pred_check
          %p677 = pneg %p181
        $region98: #{tpu_custom_call.1} parent=79 // pred_check_branch
          %679 = sbr.rel (%p677) target = $region100
        $region99: #{tpu_custom_call.1} parent=79 // pred_region
          %681 = dma.done %s673, 64
        $region100: #{tpu_custom_call.1} parent=79 // pred_fallthru
          _
        // Predicated region
        $region101: #{tpu_custom_call.1} parent=79 // pred_check
          %p682 = pneg %p202
        $region102: #{tpu_custom_call.1} parent=79 // pred_check_branch
          %684 = sbr.rel (%p682) target = $region104
        $region103: #{tpu_custom_call.1} parent=79 // pred_region
          %686 = dma.done [#allocation12], 1024
        $region104: #{tpu_custom_call.1} parent=79 // pred_fallthru
          _
        // Predicated region
        $region105: #{tpu_custom_call.1} parent=79 // pred_check
          %p687 = pneg %p223
        $region106: #{tpu_custom_call.1} parent=79 // pred_check_branch
          %689 = sbr.rel (%p687) target = $region108
        $region107: #{tpu_custom_call.1} parent=79 // pred_region
          %691 = dma.done [#allocation12], 1024
        $region108: #{tpu_custom_call.1} parent=79 // pred_fallthru
          _
        // Predicated region
        $region109: #{tpu_custom_call.1} parent=79 // pred_check
          %p692 = pneg %p286
        $region110: #{tpu_custom_call.1} parent=79 // pred_check_branch
          %694 = sbr.rel (%p692) target = $region112
        $region111: #{tpu_custom_call.1} parent=79 // pred_region
          %696 = dma.done [#allocation15], 2048
        $region112: #{tpu_custom_call.1} parent=79 // pred_fallthru
          _
        // Predicated region
        $region113: #{tpu_custom_call.1} parent=79 // pred_check
          %p697 = pneg %p328
        $region114: #{tpu_custom_call.1} parent=79 // pred_check_branch
          %699 = sbr.rel (%p697) target = $region116
        $region115: #{tpu_custom_call.1} parent=79 // pred_region
          %701 = dma.done [#allocation15], 2048
        $region116: #{tpu_custom_call.1} parent=79 // pred_fallthru
          _
        %s702 = sand.u32 %s62, 1
        %s703 = scalar_lea.sflag [#allocation3], %s702
        %s704 = sand.u32 %s62, 1
        %s705 = smul.addr %s704, 128
        %s706 = scalar_lea.vmem [#allocation2], %s705
        %p707 = pneg %p75
        %p708 = pneg %p72
        %s709 = sand.u32 %s40, 1
        %s710 = scalar_lea.sflag [#allocation6], %s709
        %s711 = sand.u32 %s90, 1
        %s712 = smul.addr %s711, 128
        %s713 = scalar_lea.vmem [#allocation5], %s712
        %p714 = pneg %p103
        %p715 = pneg %p100
        %s716 = sand.u32 %s40, 1
        %s717 = scalar_lea.sflag [#allocation6], %s716
        %s718 = sand.u32 %s116, 1
        %s719 = smul.addr %s718, 256
        %s720 = scalar_lea.vmem [#allocation7], %s719
        %p721 = pneg %p129
        %p722 = pneg %p126
        %s723 = sand.u32 %s40, 1
        %s724 = scalar_lea.sflag [#allocation9], %s723
        %s725 = sand.u32 %s142, 1
        %s726 = smul.addr %s725, 256
        %s727 = scalar_lea.vmem [#allocation8], %s726
        %p728 = pneg %p155
        %p729 = pneg %p152
        %s730 = sand.u32 %s40, 1
        %s731 = scalar_lea.sflag [#allocation9], %s730
        %s732 = sand.u32 %s168, 1
        %s733 = smul.addr %s732, 4
        %s734 = scalar_lea.vmem [#allocation10], %s733
        %p735 = pneg %p181
        %p736 = pneg %p178
        %p737 = pneg %p202
        %p738 = pneg %p199
        %p739 = pneg %p223
        %p740 = pneg %p220
        %p741 = pneg %p244
        %p742 = pneg %p241
        %p743 = pneg %p265
        %p744 = pneg %p262
        %p745 = pneg %p286
        %p746 = pneg %p283
        %p747 = pneg %p307
        %p748 = pneg %p304
        %p749 = pneg %p328
        %p750 = pneg %p325
        %p751 = pneg %p349
        %p752 = pneg %p346
        %p753 = pneg %p370
        %p754 = pneg %p367
        %p755 = pneg %p391
        %p756 = pneg %p388
        %p757 = pneg %p419
        %p758 = pneg %p416
        %s759 = sand.u32 %s406, 1
        %s760 = scalar_lea.sflag [#allocation4], %s759
        %s761 = sand.u32 %s406, 1
        %s762 = smul.addr %s761, 128
        %s763 = scalar_lea.vmem [#allocation17], %s762
        %s764 = smul.u32 16, %s45
        %s765 = smul.u32 16, %s45
        %s766 = smul.u32 16, %s45
        %v767 = vld [vmem:[%s636] sm:$0xff]
        %v768 = vld [vmem:[%s636 + $0x8] sm:$0xff]
        %v769 = vld [vmem:[%s636 + $0x10] sm:$0xff]
        %v770 = vld [vmem:[%s636 + $0x18] sm:$0xff]
        %v771 = vld [vmem:[%s636 + $0x20] sm:$0xff]
        %v772 = vld [vmem:[%s636 + $0x28] sm:$0xff]
        %v773 = vld [vmem:[%s636 + $0x30] sm:$0xff]
        %v774 = vld [vmem:[%s636 + $0x38] sm:$0xff]
        %v775 = vld [vmem:[%s636 + $0x40] sm:$0xff]
        %v776 = vld [vmem:[%s636 + $0x48] sm:$0xff]
        %v777 = vld [vmem:[%s636 + $0x50] sm:$0xff]
        %v778 = vld [vmem:[%s636 + $0x58] sm:$0xff]
        %v779 = vld [vmem:[%s636 + $0x60] sm:$0xff]
        %v780 = vld [vmem:[%s636 + $0x68] sm:$0xff]
        %v781 = vld [vmem:[%s636 + $0x70] sm:$0xff]
        %v782 = vld [vmem:[%s636 + $0x78] sm:$0xff]
        loop: start=0, step=1, limit=2
        $region117: #{tpu_custom_call.1} parent=79 // loop_pre_header
          _
        $region118: #{tpu_custom_call.1} parent=79 // loop_header
          %s784 = sphi 0, %s788
          %p785 = scmp.ge.s32.totalorder %s784, 2
          %v789 = vphi %v767, %v3859
          %v790 = vphi %v768, %v3860
          %v791 = vphi %v769, %v3861
          %v792 = vphi %v770, %v3862
          %v793 = vphi %v771, %v3863
          %v794 = vphi %v772, %v3864
          %v795 = vphi %v773, %v3865
          %v796 = vphi %v774, %v3866
          %v797 = vphi %v775, %v3867
          %v798 = vphi %v776, %v3868
          %v799 = vphi %v777, %v3869
          %v800 = vphi %v778, %v3870
          %v801 = vphi %v779, %v3871
          %v802 = vphi %v780, %v3872
          %v803 = vphi %v781, %v3873
          %v804 = vphi %v782, %v3874
        $region119: #{tpu_custom_call.1} parent=79 // loop_header_branch
          %787 = sbr.rel (%p785) target = $region123
        $region120: #{tpu_custom_call.1} parent=79 // loop_body
          %v805 = vld [vmem:[%s646] sm:$0xff]
          %v806 = vld [vmem:[%s646 + $0x8] sm:$0xff]
          %v807 = vld [vmem:[%s646 + $0x10] sm:$0xff]
          %v808 = vld [vmem:[%s646 + $0x18] sm:$0xff]
          %v809 = vld [vmem:[%s646 + $0x20] sm:$0xff]
          %v810 = vld [vmem:[%s646 + $0x28] sm:$0xff]
          %v811 = vld [vmem:[%s646 + $0x30] sm:$0xff]
          %v812 = vld [vmem:[%s646 + $0x38] sm:$0xff]
          %v813 = vld [vmem:[%s646 + $0x40] sm:$0xff]
          %v814 = vld [vmem:[%s646 + $0x48] sm:$0xff]
          %v815 = vld [vmem:[%s646 + $0x50] sm:$0xff]
          %v816 = vld [vmem:[%s646 + $0x58] sm:$0xff]
          %v817 = vld [vmem:[%s646 + $0x60] sm:$0xff]
          %v818 = vld [vmem:[%s646 + $0x68] sm:$0xff]
          %v819 = vld [vmem:[%s646 + $0x70] sm:$0xff]
          %v820 = vld [vmem:[%s646 + $0x78] sm:$0xff]
          %v821 = vadd.f32 %v789, %v805
          %v822 = vadd.f32 %v790, %v806
          %v823 = vadd.f32 %v791, %v807
          %v824 = vadd.f32 %v792, %v808
          %v825 = vadd.f32 %v793, %v809
          %v826 = vadd.f32 %v794, %v810
          %v827 = vadd.f32 %v795, %v811
          %v828 = vadd.f32 %v796, %v812
          %v829 = vadd.f32 %v797, %v813
          %v830 = vadd.f32 %v798, %v814
          %v831 = vadd.f32 %v799, %v815
          %v832 = vadd.f32 %v800, %v816
          %v833 = vadd.f32 %v801, %v817
          %v834 = vadd.f32 %v802, %v818
          %v835 = vadd.f32 %v803, %v819
          %v836 = vadd.f32 %v804, %v820
          %v837 = vpack.c.bf16 %v822, %v821
          %v838 = vpack.c.bf16 %v824, %v823
          %v839 = vpack.c.bf16 %v826, %v825
          %v840 = vpack.c.bf16 %v828, %v827
          %v841 = vpack.c.bf16 %v830, %v829
          %v842 = vpack.c.bf16 %v832, %v831
          %v843 = vpack.c.bf16 %v834, %v833
          %v844 = vpack.c.bf16 %v836, %v835
          %v845 = vld [vmem:[#allocation11] sm:$0xf]
          %v846 = vld [vmem:[#allocation11 + $0x4] sm:$0xf]
          %v847 = vld [vmem:[#allocation11 + $0x8] sm:$0xf]
          %v848 = vld [vmem:[#allocation11 + $0xc] sm:$0xf]
          %v849 = vld [vmem:[#allocation11 + $0x10] sm:$0xf]
          %v850 = vld [vmem:[#allocation11 + $0x14] sm:$0xf]
          %v851 = vld [vmem:[#allocation11 + $0x18] sm:$0xf]
          %v852 = vld [vmem:[#allocation11 + $0x1c] sm:$0xf]
          %v853 = vld [vmem:[#allocation11 + $0x20] sm:$0xf]
          %v854 = vld [vmem:[#allocation11 + $0x24] sm:$0xf]
          %v855 = vld [vmem:[#allocation11 + $0x28] sm:$0xf]
          %v856 = vld [vmem:[#allocation11 + $0x2c] sm:$0xf]
          %v857 = vld [vmem:[#allocation11 + $0x30] sm:$0xf]
          %v858 = vld [vmem:[#allocation11 + $0x34] sm:$0xf]
          %v859 = vld [vmem:[#allocation11 + $0x38] sm:$0xf]
          %v860 = vld [vmem:[#allocation11 + $0x3c] sm:$0xf]
          %v877 = vunpack.c.l.b16 %v845
          %v878 = vunpack.c.l.b16 %v846
          %v879 = vunpack.c.l.b16 %v847
          %v880 = vunpack.c.l.b16 %v848
          %v881 = vunpack.c.l.b16 %v849
          %v882 = vunpack.c.l.b16 %v850
          %v883 = vunpack.c.l.b16 %v851
          %v884 = vunpack.c.l.b16 %v852
          %v885 = vunpack.c.l.b16 %v853
          %v886 = vunpack.c.l.b16 %v854
          %v887 = vunpack.c.l.b16 %v855
          %v888 = vunpack.c.l.b16 %v856
          %v889 = vunpack.c.l.b16 %v857
          %v890 = vunpack.c.l.b16 %v858
          %v891 = vunpack.c.l.b16 %v859
          %v892 = vunpack.c.l.b16 %v860
          %v893 = vpack.c.b16 %v878, %v877
          %v894 = vpack.c.b16 %v880, %v879
          %v895 = vpack.c.b16 %v882, %v881
          %v896 = vpack.c.b16 %v884, %v883
          %v897 = vpack.c.b16 %v886, %v885
          %v898 = vpack.c.b16 %v888, %v887
          %v899 = vpack.c.b16 %v890, %v889
          %v900 = vpack.c.b16 %v892, %v891
          %909 = vmatpush.bf16.msra.mxu0 %v900
          %910 = vmatpush.bf16.msra.mxu0 %v899
          %911 = vmatpush.bf16.msra.mxu0 %v898
          %912 = vmatpush.bf16.msra.mxu0 %v897
          %913 = vmatpush.bf16.msra.mxu0 %v896
          %914 = vmatpush.bf16.msra.mxu0 %v895
          %915 = vmatpush.bf16.msra.mxu0 %v894
          %916 = vmatpush.bf16.msra.mxu0 %v893
          %917 = vmatmul.bf16.gmra.mxu0 %v837
          %v918 = vpop.f32.mrf.mxu0
          %v919 = vadd.f32 0.0, %v918
          %v920 = vpop.f32.mrf.mxu0
          %v921 = vadd.f32 0.0, %v920
          %922 = vmatmul.bf16.gmra.mxu0 %v838
          %v923 = vpop.f32.mrf.mxu0
          %v924 = vadd.f32 0.0, %v923
          %v925 = vpop.f32.mrf.mxu0
          %v926 = vadd.f32 0.0, %v925
          %927 = vmatmul.bf16.gmra.mxu0 %v839
          %v928 = vpop.f32.mrf.mxu0
          %v929 = vadd.f32 0.0, %v928
          %v930 = vpop.f32.mrf.mxu0
          %v931 = vadd.f32 0.0, %v930
          %932 = vmatmul.bf16.gmra.mxu0 %v840
          %v933 = vpop.f32.mrf.mxu0
          %v934 = vadd.f32 0.0, %v933
          %v935 = vpop.f32.mrf.mxu0
          %v936 = vadd.f32 0.0, %v935
          %937 = vmatmul.bf16.gmra.mxu0 %v841
          %v938 = vpop.f32.mrf.mxu0
          %v939 = vadd.f32 0.0, %v938
          %v940 = vpop.f32.mrf.mxu0
          %v941 = vadd.f32 0.0, %v940
          %942 = vmatmul.bf16.gmra.mxu0 %v842
          %v943 = vpop.f32.mrf.mxu0
          %v944 = vadd.f32 0.0, %v943
          %v945 = vpop.f32.mrf.mxu0
          %v946 = vadd.f32 0.0, %v945
          %947 = vmatmul.bf16.gmra.mxu0 %v843
          %v948 = vpop.f32.mrf.mxu0
          %v949 = vadd.f32 0.0, %v948
          %v950 = vpop.f32.mrf.mxu0
          %v951 = vadd.f32 0.0, %v950
          %952 = vmatmul.bf16.gmra.mxu0 %v844
          %v953 = vpop.f32.mrf.mxu0
          %v954 = vadd.f32 0.0, %v953
          %v955 = vpop.f32.mrf.mxu0
          %v956 = vadd.f32 0.0, %v955
          %957 = vdwg.mxu0
          %v958 = vmul.f32 %v919, 0.088388346
          %v959 = vmul.f32 %v921, 0.088388346
          %v960 = vmul.f32 %v924, 0.088388346
          %v961 = vmul.f32 %v926, 0.088388346
          %v962 = vmul.f32 %v929, 0.088388346
          %v963 = vmul.f32 %v931, 0.088388346
          %v964 = vmul.f32 %v934, 0.088388346
          %v965 = vmul.f32 %v936, 0.088388346
          %v966 = vmul.f32 %v939, 0.088388346
          %v967 = vmul.f32 %v941, 0.088388346
          %v968 = vmul.f32 %v944, 0.088388346
          %v969 = vmul.f32 %v946, 0.088388346
          %v970 = vmul.f32 %v949, 0.088388346
          %v971 = vmul.f32 %v951, 0.088388346
          %v972 = vmul.f32 %v954, 0.088388346
          %v973 = vmul.f32 %v956, 0.088388346
          %v974 = vpack.c.bf16 %v959, %v958
          %v975 = vpack.c.bf16 %v961, %v960
          %v976 = vpack.c.bf16 %v963, %v962
          %v977 = vpack.c.bf16 %v965, %v964
          %v978 = vpack.c.bf16 %v967, %v966
          %v979 = vpack.c.bf16 %v969, %v968
          %v980 = vpack.c.bf16 %v971, %v970
          %v981 = vpack.c.bf16 %v973, %v972
          %v982 = vld [vmem:[%s656] sm:$0xff]
          %v983 = vld [vmem:[%s656 + $0x8] sm:$0xff]
          %v984 = vld [vmem:[%s656 + $0x10] sm:$0xff]
          %v985 = vld [vmem:[%s656 + $0x18] sm:$0xff]
          %v986 = vld [vmem:[%s656 + $0x20] sm:$0xff]
          %v987 = vld [vmem:[%s656 + $0x28] sm:$0xff]
          %v988 = vld [vmem:[%s656 + $0x30] sm:$0xff]
          %v989 = vld [vmem:[%s656 + $0x38] sm:$0xff]
          %v990 = vld [vmem:[%s656 + $0x40] sm:$0xff]
          %v991 = vld [vmem:[%s656 + $0x48] sm:$0xff]
          %v992 = vld [vmem:[%s656 + $0x50] sm:$0xff]
          %v993 = vld [vmem:[%s656 + $0x58] sm:$0xff]
          %v994 = vld [vmem:[%s656 + $0x60] sm:$0xff]
          %v995 = vld [vmem:[%s656 + $0x68] sm:$0xff]
          %v996 = vld [vmem:[%s656 + $0x70] sm:$0xff]
          %v997 = vld [vmem:[%s656 + $0x78] sm:$0xff]
          %v998 = vld [vmem:[%s666] sm:$0xf]
          %v999 = vld [vmem:[%s666 + $0x4] sm:$0xf]
          %v1000 = vld [vmem:[%s666 + $0x8] sm:$0xf]
          %v1001 = vld [vmem:[%s666 + $0xc] sm:$0xf]
          %v1002 = vld [vmem:[%s666 + $0x10] sm:$0xf]
          %v1003 = vld [vmem:[%s666 + $0x14] sm:$0xf]
          %v1004 = vld [vmem:[%s666 + $0x18] sm:$0xf]
          %v1005 = vld [vmem:[%s666 + $0x1c] sm:$0xf]
          %v1006 = vld [vmem:[%s666 + $0x20] sm:$0xf]
          %v1007 = vld [vmem:[%s666 + $0x24] sm:$0xf]
          %v1008 = vld [vmem:[%s666 + $0x28] sm:$0xf]
          %v1009 = vld [vmem:[%s666 + $0x2c] sm:$0xf]
          %v1010 = vld [vmem:[%s666 + $0x30] sm:$0xf]
          %v1011 = vld [vmem:[%s666 + $0x34] sm:$0xf]
          %v1012 = vld [vmem:[%s666 + $0x38] sm:$0xf]
          %v1013 = vld [vmem:[%s666 + $0x3c] sm:$0xf]
          %v1014 = vld [vmem:[%s666 + $0x40] sm:$0xf]
          %v1015 = vld [vmem:[%s666 + $0x44] sm:$0xf]
          %v1016 = vld [vmem:[%s666 + $0x48] sm:$0xf]
          %v1017 = vld [vmem:[%s666 + $0x4c] sm:$0xf]
          %v1018 = vld [vmem:[%s666 + $0x50] sm:$0xf]
          %v1019 = vld [vmem:[%s666 + $0x54] sm:$0xf]
          %v1020 = vld [vmem:[%s666 + $0x58] sm:$0xf]
          %v1021 = vld [vmem:[%s666 + $0x5c] sm:$0xf]
          %v1022 = vld [vmem:[%s666 + $0x60] sm:$0xf]
          %v1023 = vld [vmem:[%s666 + $0x64] sm:$0xf]
          %v1024 = vld [vmem:[%s666 + $0x68] sm:$0xf]
          %v1025 = vld [vmem:[%s666 + $0x6c] sm:$0xf]
          %v1026 = vld [vmem:[%s666 + $0x70] sm:$0xf]
          %v1027 = vld [vmem:[%s666 + $0x74] sm:$0xf]
          %v1028 = vld [vmem:[%s666 + $0x78] sm:$0xf]
          %v1029 = vld [vmem:[%s666 + $0x7c] sm:$0xf]
          %v1030 = vld [vmem:[%s676] sm:$0x3]
          %v1032 = vperm.slane %v1030, 0
          %v1033 = vperm.slane %v1030, 1
          %v1052 = vunpack.c.l.b16 %v982
          %v1053 = vunpack.c.h.b16 %v982
          %v1054 = vunpack.c.l.b16 %v983
          %v1055 = vunpack.c.h.b16 %v983
          %v1056 = vunpack.c.l.b16 %v984
          %v1057 = vunpack.c.h.b16 %v984
          %v1058 = vunpack.c.l.b16 %v985
          %v1059 = vunpack.c.h.b16 %v985
          %v1060 = vunpack.c.l.b16 %v986
          %v1061 = vunpack.c.h.b16 %v986
          %v1062 = vunpack.c.l.b16 %v987
          %v1063 = vunpack.c.h.b16 %v987
          %v1064 = vunpack.c.l.b16 %v988
          %v1065 = vunpack.c.h.b16 %v988
          %v1066 = vunpack.c.l.b16 %v989
          %v1067 = vunpack.c.h.b16 %v989
          %v1068 = vunpack.c.l.b16 %v990
          %v1069 = vunpack.c.h.b16 %v990
          %v1070 = vunpack.c.l.b16 %v991
          %v1071 = vunpack.c.h.b16 %v991
          %v1072 = vunpack.c.l.b16 %v992
          %v1073 = vunpack.c.h.b16 %v992
          %v1074 = vunpack.c.l.b16 %v993
          %v1075 = vunpack.c.h.b16 %v993
          %v1076 = vunpack.c.l.b16 %v994
          %v1077 = vunpack.c.h.b16 %v994
          %v1078 = vunpack.c.l.b16 %v995
          %v1079 = vunpack.c.h.b16 %v995
          %v1080 = vunpack.c.l.b16 %v996
          %v1081 = vunpack.c.h.b16 %v996
          %v1082 = vunpack.c.l.b16 %v997
          %v1083 = vunpack.c.h.b16 %v997
          %v1084 = vpack.c.b16 %v1054, %v1052
          %v1085 = vpack.c.b16 %v1055, %v1053
          %v1086 = vpack.c.b16 %v1058, %v1056
          %v1087 = vpack.c.b16 %v1059, %v1057
          %v1088 = vpack.c.b16 %v1062, %v1060
          %v1089 = vpack.c.b16 %v1063, %v1061
          %v1090 = vpack.c.b16 %v1066, %v1064
          %v1091 = vpack.c.b16 %v1067, %v1065
          %v1092 = vpack.c.b16 %v1070, %v1068
          %v1093 = vpack.c.b16 %v1071, %v1069
          %v1094 = vpack.c.b16 %v1074, %v1072
          %v1095 = vpack.c.b16 %v1075, %v1073
          %v1096 = vpack.c.b16 %v1078, %v1076
          %v1097 = vpack.c.b16 %v1079, %v1077
          %v1098 = vpack.c.b16 %v1082, %v1080
          %v1099 = vpack.c.b16 %v1083, %v1081
          %1116 = vmatpush.bf16.msra.mxu0 %v1098
          %1117 = vmatpush.bf16.msra.mxu0 %v1096
          %1118 = vmatpush.bf16.msra.mxu0 %v1094
          %1119 = vmatpush.bf16.msra.mxu0 %v1092
          %1120 = vmatpush.bf16.msra.mxu0 %v1090
          %1121 = vmatpush.bf16.msra.mxu0 %v1088
          %1122 = vmatpush.bf16.msra.mxu0 %v1086
          %1123 = vmatpush.bf16.msra.mxu0 %v1084
          %1124 = vmatmul.bf16.gmra.mxu0 %v974
          %v1125 = vpop.f32.mrf.mxu0
          %v1126 = vadd.f32 %v1032, %v1125
          %v1127 = vpop.f32.mrf.mxu0
          %v1128 = vadd.f32 %v1032, %v1127
          %1129 = vmatmul.bf16.gmra.mxu0 %v975
          %v1130 = vpop.f32.mrf.mxu0
          %v1131 = vadd.f32 %v1032, %v1130
          %v1132 = vpop.f32.mrf.mxu0
          %v1133 = vadd.f32 %v1032, %v1132
          %1134 = vmatmul.bf16.gmra.mxu0 %v976
          %v1135 = vpop.f32.mrf.mxu0
          %v1136 = vadd.f32 %v1032, %v1135
          %v1137 = vpop.f32.mrf.mxu0
          %v1138 = vadd.f32 %v1032, %v1137
          %1139 = vmatmul.bf16.gmra.mxu0 %v977
          %v1140 = vpop.f32.mrf.mxu0
          %v1141 = vadd.f32 %v1032, %v1140
          %v1142 = vpop.f32.mrf.mxu0
          %v1143 = vadd.f32 %v1032, %v1142
          %1144 = vmatmul.bf16.gmra.mxu0 %v978
          %v1145 = vpop.f32.mrf.mxu0
          %v1146 = vadd.f32 %v1032, %v1145
          %v1147 = vpop.f32.mrf.mxu0
          %v1148 = vadd.f32 %v1032, %v1147
          %1149 = vmatmul.bf16.gmra.mxu0 %v979
          %v1150 = vpop.f32.mrf.mxu0
          %v1151 = vadd.f32 %v1032, %v1150
          %v1152 = vpop.f32.mrf.mxu0
          %v1153 = vadd.f32 %v1032, %v1152
          %1154 = vmatmul.bf16.gmra.mxu0 %v980
          %v1155 = vpop.f32.mrf.mxu0
          %v1156 = vadd.f32 %v1032, %v1155
          %v1157 = vpop.f32.mrf.mxu0
          %v1158 = vadd.f32 %v1032, %v1157
          %1159 = vmatmul.bf16.gmra.mxu0 %v981
          %v1160 = vpop.f32.mrf.mxu0
          %v1161 = vadd.f32 %v1032, %v1160
          %v1162 = vpop.f32.mrf.mxu0
          %v1163 = vadd.f32 %v1032, %v1162
          %1164 = vdwg.mxu0
          %1165 = vmatpush.bf16.msra.mxu0 %v1099
          %1166 = vmatpush.bf16.msra.mxu0 %v1097
          %1167 = vmatpush.bf16.msra.mxu0 %v1095
          %1168 = vmatpush.bf16.msra.mxu0 %v1093
          %1169 = vmatpush.bf16.msra.mxu0 %v1091
          %1170 = vmatpush.bf16.msra.mxu0 %v1089
          %1171 = vmatpush.bf16.msra.mxu0 %v1087
          %1172 = vmatpush.bf16.msra.mxu0 %v1085
          %1173 = vmatmul.bf16.gmra.mxu0 %v974
          %v1174 = vpop.f32.mrf.mxu0
          %v1175 = vadd.f32 %v1033, %v1174
          %v1176 = vpop.f32.mrf.mxu0
          %v1177 = vadd.f32 %v1033, %v1176
          %1178 = vmatmul.bf16.gmra.mxu0 %v975
          %v1179 = vpop.f32.mrf.mxu0
          %v1180 = vadd.f32 %v1033, %v1179
          %v1181 = vpop.f32.mrf.mxu0
          %v1182 = vadd.f32 %v1033, %v1181
          %1183 = vmatmul.bf16.gmra.mxu0 %v976
          %v1184 = vpop.f32.mrf.mxu0
          %v1185 = vadd.f32 %v1033, %v1184
          %v1186 = vpop.f32.mrf.mxu0
          %v1187 = vadd.f32 %v1033, %v1186
          %1188 = vmatmul.bf16.gmra.mxu0 %v977
          %v1189 = vpop.f32.mrf.mxu0
          %v1190 = vadd.f32 %v1033, %v1189
          %v1191 = vpop.f32.mrf.mxu0
          %v1192 = vadd.f32 %v1033, %v1191
          %1193 = vmatmul.bf16.gmra.mxu0 %v978
          %v1194 = vpop.f32.mrf.mxu0
          %v1195 = vadd.f32 %v1033, %v1194
          %v1196 = vpop.f32.mrf.mxu0
          %v1197 = vadd.f32 %v1033, %v1196
          %1198 = vmatmul.bf16.gmra.mxu0 %v979
          %v1199 = vpop.f32.mrf.mxu0
          %v1200 = vadd.f32 %v1033, %v1199
          %v1201 = vpop.f32.mrf.mxu0
          %v1202 = vadd.f32 %v1033, %v1201
          %1203 = vmatmul.bf16.gmra.mxu0 %v980
          %v1204 = vpop.f32.mrf.mxu0
          %v1205 = vadd.f32 %v1033, %v1204
          %v1206 = vpop.f32.mrf.mxu0
          %v1207 = vadd.f32 %v1033, %v1206
          %1208 = vmatmul.bf16.gmra.mxu0 %v981
          %v1209 = vpop.f32.mrf.mxu0
          %v1210 = vadd.f32 %v1033, %v1209
          %v1211 = vpop.f32.mrf.mxu0
          %v1212 = vadd.f32 %v1033, %v1211
          %1213 = vdwg.mxu0
          %v1214 = vmax.f32 %v1126, %v1175
          %1215 = vmax.xlane.f32.xlu0 %v1214
          %v1216 = vpop.xlane.xlu0 %1215
          %v1217 = vmax.f32 %v1128, %v1177
          %1218 = vmax.xlane.f32.xlu0 %v1217
          %v1219 = vpop.xlane.xlu0 %1218
          %v1220 = vmax.f32 %v1131, %v1180
          %1221 = vmax.xlane.f32.xlu0 %v1220
          %v1222 = vpop.xlane.xlu0 %1221
          %v1223 = vmax.f32 %v1133, %v1182
          %1224 = vmax.xlane.f32.xlu0 %v1223
          %v1225 = vpop.xlane.xlu0 %1224
          %v1226 = vmax.f32 %v1136, %v1185
          %1227 = vmax.xlane.f32.xlu0 %v1226
          %v1228 = vpop.xlane.xlu0 %1227
          %v1229 = vmax.f32 %v1138, %v1187
          %1230 = vmax.xlane.f32.xlu0 %v1229
          %v1231 = vpop.xlane.xlu0 %1230
          %v1232 = vmax.f32 %v1141, %v1190
          %1233 = vmax.xlane.f32.xlu0 %v1232
          %v1234 = vpop.xlane.xlu0 %1233
          %v1235 = vmax.f32 %v1143, %v1192
          %1236 = vmax.xlane.f32.xlu0 %v1235
          %v1237 = vpop.xlane.xlu0 %1236
          %v1238 = vmax.f32 %v1146, %v1195
          %1239 = vmax.xlane.f32.xlu0 %v1238
          %v1240 = vpop.xlane.xlu0 %1239
          %v1241 = vmax.f32 %v1148, %v1197
          %1242 = vmax.xlane.f32.xlu0 %v1241
          %v1243 = vpop.xlane.xlu0 %1242
          %v1244 = vmax.f32 %v1151, %v1200
          %1245 = vmax.xlane.f32.xlu0 %v1244
          %v1246 = vpop.xlane.xlu0 %1245
          %v1247 = vmax.f32 %v1153, %v1202
          %1248 = vmax.xlane.f32.xlu0 %v1247
          %v1249 = vpop.xlane.xlu0 %1248
          %v1250 = vmax.f32 %v1156, %v1205
          %1251 = vmax.xlane.f32.xlu0 %v1250
          %v1252 = vpop.xlane.xlu0 %1251
          %v1253 = vmax.f32 %v1158, %v1207
          %1254 = vmax.xlane.f32.xlu0 %v1253
          %v1255 = vpop.xlane.xlu0 %1254
          %v1256 = vmax.f32 %v1161, %v1210
          %1257 = vmax.xlane.f32.xlu0 %v1256
          %v1258 = vpop.xlane.xlu0 %1257
          %v1259 = vmax.f32 %v1163, %v1212
          %1260 = vmax.xlane.f32.xlu0 %v1259
          %v1261 = vpop.xlane.xlu0 %1260
          %v1262 = vsub.f32 -inf, %v1216
          %v1263 = vsub.f32 -inf, %v1219
          %v1264 = vsub.f32 -inf, %v1222
          %v1265 = vsub.f32 -inf, %v1225
          %v1266 = vsub.f32 -inf, %v1228
          %v1267 = vsub.f32 -inf, %v1231
          %v1268 = vsub.f32 -inf, %v1234
          %v1269 = vsub.f32 -inf, %v1237
          %v1270 = vsub.f32 -inf, %v1240
          %v1271 = vsub.f32 -inf, %v1243
          %v1272 = vsub.f32 -inf, %v1246
          %v1273 = vsub.f32 -inf, %v1249
          %v1274 = vsub.f32 -inf, %v1252
          %v1275 = vsub.f32 -inf, %v1255
          %v1276 = vsub.f32 -inf, %v1258
          %v1277 = vsub.f32 -inf, %v1261
          %v1278 = vmul.f32 %v1262, 1.442695
          %v1279 = vpow.pop %v1278
          %v1280 = vmul.f32 %v1263, 1.442695
          %v1281 = vpow.pop %v1280
          %v1282 = vmul.f32 %v1264, 1.442695
          %v1283 = vpow.pop %v1282
          %v1284 = vmul.f32 %v1265, 1.442695
          %v1285 = vpow.pop %v1284
          %v1286 = vmul.f32 %v1266, 1.442695
          %v1287 = vpow.pop %v1286
          %v1288 = vmul.f32 %v1267, 1.442695
          %v1289 = vpow.pop %v1288
          %v1290 = vmul.f32 %v1268, 1.442695
          %v1291 = vpow.pop %v1290
          %v1292 = vmul.f32 %v1269, 1.442695
          %v1293 = vpow.pop %v1292
          %v1294 = vmul.f32 %v1270, 1.442695
          %v1295 = vpow.pop %v1294
          %v1296 = vmul.f32 %v1271, 1.442695
          %v1297 = vpow.pop %v1296
          %v1298 = vmul.f32 %v1272, 1.442695
          %v1299 = vpow.pop %v1298
          %v1300 = vmul.f32 %v1273, 1.442695
          %v1301 = vpow.pop %v1300
          %v1302 = vmul.f32 %v1274, 1.442695
          %v1303 = vpow.pop %v1302
          %v1304 = vmul.f32 %v1275, 1.442695
          %v1305 = vpow.pop %v1304
          %v1306 = vmul.f32 %v1276, 1.442695
          %v1307 = vpow.pop %v1306
          %v1308 = vmul.f32 %v1277, 1.442695
          %v1309 = vpow.pop %v1308
          %v1310 = vsub.f32 %v1126, %v1216
          %v1311 = vsub.f32 %v1175, %v1216
          %v1312 = vsub.f32 %v1128, %v1219
          %v1313 = vsub.f32 %v1177, %v1219
          %v1314 = vsub.f32 %v1131, %v1222
          %v1315 = vsub.f32 %v1180, %v1222
          %v1316 = vsub.f32 %v1133, %v1225
          %v1317 = vsub.f32 %v1182, %v1225
          %v1318 = vsub.f32 %v1136, %v1228
          %v1319 = vsub.f32 %v1185, %v1228
          %v1320 = vsub.f32 %v1138, %v1231
          %v1321 = vsub.f32 %v1187, %v1231
          %v1322 = vsub.f32 %v1141, %v1234
          %v1323 = vsub.f32 %v1190, %v1234
          %v1324 = vsub.f32 %v1143, %v1237
          %v1325 = vsub.f32 %v1192, %v1237
          %v1326 = vsub.f32 %v1146, %v1240
          %v1327 = vsub.f32 %v1195, %v1240
          %v1328 = vsub.f32 %v1148, %v1243
          %v1329 = vsub.f32 %v1197, %v1243
          %v1330 = vsub.f32 %v1151, %v1246
          %v1331 = vsub.f32 %v1200, %v1246
          %v1332 = vsub.f32 %v1153, %v1249
          %v1333 = vsub.f32 %v1202, %v1249
          %v1334 = vsub.f32 %v1156, %v1252
          %v1335 = vsub.f32 %v1205, %v1252
          %v1336 = vsub.f32 %v1158, %v1255
          %v1337 = vsub.f32 %v1207, %v1255
          %v1338 = vsub.f32 %v1161, %v1258
          %v1339 = vsub.f32 %v1210, %v1258
          %v1340 = vsub.f32 %v1163, %v1261
          %v1341 = vsub.f32 %v1212, %v1261
          %v1342 = vmul.f32 %v1310, 1.442695
          %v1343 = vpow.pop %v1342
          %v1344 = vmul.f32 %v1311, 1.442695
          %v1345 = vpow.pop %v1344
          %v1346 = vmul.f32 %v1312, 1.442695
          %v1347 = vpow.pop %v1346
          %v1348 = vmul.f32 %v1313, 1.442695
          %v1349 = vpow.pop %v1348
          %v1350 = vmul.f32 %v1314, 1.442695
          %v1351 = vpow.pop %v1350
          %v1352 = vmul.f32 %v1315, 1.442695
          %v1353 = vpow.pop %v1352
          %v1354 = vmul.f32 %v1316, 1.442695
          %v1355 = vpow.pop %v1354
          %v1356 = vmul.f32 %v1317, 1.442695
          %v1357 = vpow.pop %v1356
          %v1358 = vmul.f32 %v1318, 1.442695
          %v1359 = vpow.pop %v1358
          %v1360 = vmul.f32 %v1319, 1.442695
          %v1361 = vpow.pop %v1360
          %v1362 = vmul.f32 %v1320, 1.442695
          %v1363 = vpow.pop %v1362
          %v1364 = vmul.f32 %v1321, 1.442695
          %v1365 = vpow.pop %v1364
          %v1366 = vmul.f32 %v1322, 1.442695
          %v1367 = vpow.pop %v1366
          %v1368 = vmul.f32 %v1323, 1.442695
          %v1369 = vpow.pop %v1368
          %v1370 = vmul.f32 %v1324, 1.442695
          %v1371 = vpow.pop %v1370
          %v1372 = vmul.f32 %v1325, 1.442695
          %v1373 = vpow.pop %v1372
          %v1374 = vmul.f32 %v1326, 1.442695
          %v1375 = vpow.pop %v1374
          %v1376 = vmul.f32 %v1327, 1.442695
          %v1377 = vpow.pop %v1376
          %v1378 = vmul.f32 %v1328, 1.442695
          %v1379 = vpow.pop %v1378
          %v1380 = vmul.f32 %v1329, 1.442695
          %v1381 = vpow.pop %v1380
          %v1382 = vmul.f32 %v1330, 1.442695
          %v1383 = vpow.pop %v1382
          %v1384 = vmul.f32 %v1331, 1.442695
          %v1385 = vpow.pop %v1384
          %v1386 = vmul.f32 %v1332, 1.442695
          %v1387 = vpow.pop %v1386
          %v1388 = vmul.f32 %v1333, 1.442695
          %v1389 = vpow.pop %v1388
          %v1390 = vmul.f32 %v1334, 1.442695
          %v1391 = vpow.pop %v1390
          %v1392 = vmul.f32 %v1335, 1.442695
          %v1393 = vpow.pop %v1392
          %v1394 = vmul.f32 %v1336, 1.442695
          %v1395 = vpow.pop %v1394
          %v1396 = vmul.f32 %v1337, 1.442695
          %v1397 = vpow.pop %v1396
          %v1398 = vmul.f32 %v1338, 1.442695
          %v1399 = vpow.pop %v1398
          %v1400 = vmul.f32 %v1339, 1.442695
          %v1401 = vpow.pop %v1400
          %v1402 = vmul.f32 %v1340, 1.442695
          %v1403 = vpow.pop %v1402
          %v1404 = vmul.f32 %v1341, 1.442695
          %v1405 = vpow.pop %v1404
          %v1406 = vmul.f32 %v1279, 0.0
          %v1407 = vmul.f32 %v1281, 0.0
          %v1408 = vmul.f32 %v1283, 0.0
          %v1409 = vmul.f32 %v1285, 0.0
          %v1410 = vmul.f32 %v1287, 0.0
          %v1411 = vmul.f32 %v1289, 0.0
          %v1412 = vmul.f32 %v1291, 0.0
          %v1413 = vmul.f32 %v1293, 0.0
          %v1414 = vmul.f32 %v1295, 0.0
          %v1415 = vmul.f32 %v1297, 0.0
          %v1416 = vmul.f32 %v1299, 0.0
          %v1417 = vmul.f32 %v1301, 0.0
          %v1418 = vmul.f32 %v1303, 0.0
          %v1419 = vmul.f32 %v1305, 0.0
          %v1420 = vmul.f32 %v1307, 0.0
          %v1421 = vmul.f32 %v1309, 0.0
          %v1422 = vadd.f32 %v1343, %v1345
          %1423 = vadd.xlane.f32.xlu0 %v1422
          %v1424 = vpop.xlane.xlu0 %1423
          %v1425 = vadd.f32 %v1347, %v1349
          %1426 = vadd.xlane.f32.xlu0 %v1425
          %v1427 = vpop.xlane.xlu0 %1426
          %v1428 = vadd.f32 %v1351, %v1353
          %1429 = vadd.xlane.f32.xlu0 %v1428
          %v1430 = vpop.xlane.xlu0 %1429
          %v1431 = vadd.f32 %v1355, %v1357
          %1432 = vadd.xlane.f32.xlu0 %v1431
          %v1433 = vpop.xlane.xlu0 %1432
          %v1434 = vadd.f32 %v1359, %v1361
          %1435 = vadd.xlane.f32.xlu0 %v1434
          %v1436 = vpop.xlane.xlu0 %1435
          %v1437 = vadd.f32 %v1363, %v1365
          %1438 = vadd.xlane.f32.xlu0 %v1437
          %v1439 = vpop.xlane.xlu0 %1438
          %v1440 = vadd.f32 %v1367, %v1369
          %1441 = vadd.xlane.f32.xlu0 %v1440
          %v1442 = vpop.xlane.xlu0 %1441
          %v1443 = vadd.f32 %v1371, %v1373
          %1444 = vadd.xlane.f32.xlu0 %v1443
          %v1445 = vpop.xlane.xlu0 %1444
          %v1446 = vadd.f32 %v1375, %v1377
          %1447 = vadd.xlane.f32.xlu0 %v1446
          %v1448 = vpop.xlane.xlu0 %1447
          %v1449 = vadd.f32 %v1379, %v1381
          %1450 = vadd.xlane.f32.xlu0 %v1449
          %v1451 = vpop.xlane.xlu0 %1450
          %v1452 = vadd.f32 %v1383, %v1385
          %1453 = vadd.xlane.f32.xlu0 %v1452
          %v1454 = vpop.xlane.xlu0 %1453
          %v1455 = vadd.f32 %v1387, %v1389
          %1456 = vadd.xlane.f32.xlu0 %v1455
          %v1457 = vpop.xlane.xlu0 %1456
          %v1458 = vadd.f32 %v1391, %v1393
          %1459 = vadd.xlane.f32.xlu0 %v1458
          %v1460 = vpop.xlane.xlu0 %1459
          %v1461 = vadd.f32 %v1395, %v1397
          %1462 = vadd.xlane.f32.xlu0 %v1461
          %v1463 = vpop.xlane.xlu0 %1462
          %v1464 = vadd.f32 %v1399, %v1401
          %1465 = vadd.xlane.f32.xlu0 %v1464
          %v1466 = vpop.xlane.xlu0 %1465
          %v1467 = vadd.f32 %v1403, %v1405
          %1468 = vadd.xlane.f32.xlu0 %v1467
          %v1469 = vpop.xlane.xlu0 %1468
          %v1470 = vadd.f32 %v1406, %v1424
          %v1471 = vadd.f32 %v1407, %v1427
          %v1472 = vadd.f32 %v1408, %v1430
          %v1473 = vadd.f32 %v1409, %v1433
          %v1474 = vadd.f32 %v1410, %v1436
          %v1475 = vadd.f32 %v1411, %v1439
          %v1476 = vadd.f32 %v1412, %v1442
          %v1477 = vadd.f32 %v1413, %v1445
          %v1478 = vadd.f32 %v1414, %v1448
          %v1479 = vadd.f32 %v1415, %v1451
          %v1480 = vadd.f32 %v1416, %v1454
          %v1481 = vadd.f32 %v1417, %v1457
          %v1482 = vadd.f32 %v1418, %v1460
          %v1483 = vadd.f32 %v1419, %v1463
          %v1484 = vadd.f32 %v1420, %v1466
          %v1485 = vadd.f32 %v1421, %v1469
          %v1486 = vpack.c.bf16 %v1347, %v1343
          %v1487 = vpack.c.bf16 %v1349, %v1345
          %v1488 = vpack.c.bf16 %v1355, %v1351
          %v1489 = vpack.c.bf16 %v1357, %v1353
          %v1490 = vpack.c.bf16 %v1363, %v1359
          %v1491 = vpack.c.bf16 %v1365, %v1361
          %v1492 = vpack.c.bf16 %v1371, %v1367
          %v1493 = vpack.c.bf16 %v1373, %v1369
          %v1494 = vpack.c.bf16 %v1379, %v1375
          %v1495 = vpack.c.bf16 %v1381, %v1377
          %v1496 = vpack.c.bf16 %v1387, %v1383
          %v1497 = vpack.c.bf16 %v1389, %v1385
          %v1498 = vpack.c.bf16 %v1395, %v1391
          %v1499 = vpack.c.bf16 %v1397, %v1393
          %v1500 = vpack.c.bf16 %v1403, %v1399
          %v1501 = vpack.c.bf16 %v1405, %v1401
          %v1534 = vunpack.c.l.b16 %v998
          %v1535 = vunpack.c.l.b16 %v999
          %v1536 = vunpack.c.l.b16 %v1000
          %v1537 = vunpack.c.l.b16 %v1001
          %v1538 = vunpack.c.l.b16 %v1002
          %v1539 = vunpack.c.l.b16 %v1003
          %v1540 = vunpack.c.l.b16 %v1004
          %v1541 = vunpack.c.l.b16 %v1005
          %v1542 = vunpack.c.l.b16 %v1006
          %v1543 = vunpack.c.l.b16 %v1007
          %v1544 = vunpack.c.l.b16 %v1008
          %v1545 = vunpack.c.l.b16 %v1009
          %v1546 = vunpack.c.l.b16 %v1010
          %v1547 = vunpack.c.l.b16 %v1011
          %v1548 = vunpack.c.l.b16 %v1012
          %v1549 = vunpack.c.l.b16 %v1013
          %v1550 = vunpack.c.l.b16 %v1014
          %v1551 = vunpack.c.l.b16 %v1015
          %v1552 = vunpack.c.l.b16 %v1016
          %v1553 = vunpack.c.l.b16 %v1017
          %v1554 = vunpack.c.l.b16 %v1018
          %v1555 = vunpack.c.l.b16 %v1019
          %v1556 = vunpack.c.l.b16 %v1020
          %v1557 = vunpack.c.l.b16 %v1021
          %v1558 = vunpack.c.l.b16 %v1022
          %v1559 = vunpack.c.l.b16 %v1023
          %v1560 = vunpack.c.l.b16 %v1024
          %v1561 = vunpack.c.l.b16 %v1025
          %v1562 = vunpack.c.l.b16 %v1026
          %v1563 = vunpack.c.l.b16 %v1027
          %v1564 = vunpack.c.l.b16 %v1028
          %v1565 = vunpack.c.l.b16 %v1029
          %v1566 = vpack.c.b16 %v1535, %v1534
          %v1567 = vpack.c.b16 %v1537, %v1536
          %v1568 = vpack.c.b16 %v1539, %v1538
          %v1569 = vpack.c.b16 %v1541, %v1540
          %v1570 = vpack.c.b16 %v1543, %v1542
          %v1571 = vpack.c.b16 %v1545, %v1544
          %v1572 = vpack.c.b16 %v1547, %v1546
          %v1573 = vpack.c.b16 %v1549, %v1548
          %v1574 = vpack.c.b16 %v1551, %v1550
          %v1575 = vpack.c.b16 %v1553, %v1552
          %v1576 = vpack.c.b16 %v1555, %v1554
          %v1577 = vpack.c.b16 %v1557, %v1556
          %v1578 = vpack.c.b16 %v1559, %v1558
          %v1579 = vpack.c.b16 %v1561, %v1560
          %v1580 = vpack.c.b16 %v1563, %v1562
          %v1581 = vpack.c.b16 %v1565, %v1564
          %1598 = vmatpush.bf16.msra.mxu0 %v1573
          %1599 = vmatpush.bf16.msra.mxu0 %v1572
          %1600 = vmatpush.bf16.msra.mxu0 %v1571
          %1601 = vmatpush.bf16.msra.mxu0 %v1570
          %1602 = vmatpush.bf16.msra.mxu0 %v1569
          %1603 = vmatpush.bf16.msra.mxu0 %v1568
          %1604 = vmatpush.bf16.msra.mxu0 %v1567
          %1605 = vmatpush.bf16.msra.mxu0 %v1566
          %1606 = vmatmul.bf16.gmra.mxu0 %v1486
          %v1607 = vpop.f32.mrf.mxu0
          %v1608 = vadd.f32 0.0, %v1607
          %v1609 = vpop.f32.mrf.mxu0
          %v1610 = vadd.f32 0.0, %v1609
          %1611 = vmatmul.bf16.gmra.mxu0 %v1488
          %v1612 = vpop.f32.mrf.mxu0
          %v1613 = vadd.f32 0.0, %v1612
          %v1614 = vpop.f32.mrf.mxu0
          %v1615 = vadd.f32 0.0, %v1614
          %1616 = vmatmul.bf16.gmra.mxu0 %v1490
          %v1617 = vpop.f32.mrf.mxu0
          %v1618 = vadd.f32 0.0, %v1617
          %v1619 = vpop.f32.mrf.mxu0
          %v1620 = vadd.f32 0.0, %v1619
          %1621 = vmatmul.bf16.gmra.mxu0 %v1492
          %v1622 = vpop.f32.mrf.mxu0
          %v1623 = vadd.f32 0.0, %v1622
          %v1624 = vpop.f32.mrf.mxu0
          %v1625 = vadd.f32 0.0, %v1624
          %1626 = vmatmul.bf16.gmra.mxu0 %v1494
          %v1627 = vpop.f32.mrf.mxu0
          %v1628 = vadd.f32 0.0, %v1627
          %v1629 = vpop.f32.mrf.mxu0
          %v1630 = vadd.f32 0.0, %v1629
          %1631 = vmatmul.bf16.gmra.mxu0 %v1496
          %v1632 = vpop.f32.mrf.mxu0
          %v1633 = vadd.f32 0.0, %v1632
          %v1634 = vpop.f32.mrf.mxu0
          %v1635 = vadd.f32 0.0, %v1634
          %1636 = vmatmul.bf16.gmra.mxu0 %v1498
          %v1637 = vpop.f32.mrf.mxu0
          %v1638 = vadd.f32 0.0, %v1637
          %v1639 = vpop.f32.mrf.mxu0
          %v1640 = vadd.f32 0.0, %v1639
          %1641 = vmatmul.bf16.gmra.mxu0 %v1500
          %v1642 = vpop.f32.mrf.mxu0
          %v1643 = vadd.f32 0.0, %v1642
          %v1644 = vpop.f32.mrf.mxu0
          %v1645 = vadd.f32 0.0, %v1644
          %1646 = vdwg.mxu0
          %1647 = vmatpush.bf16.msra.mxu0 %v1581
          %1648 = vmatpush.bf16.msra.mxu0 %v1580
          %1649 = vmatpush.bf16.msra.mxu0 %v1579
          %1650 = vmatpush.bf16.msra.mxu0 %v1578
          %1651 = vmatpush.bf16.msra.mxu0 %v1577
          %1652 = vmatpush.bf16.msra.mxu0 %v1576
          %1653 = vmatpush.bf16.msra.mxu0 %v1575
          %1654 = vmatpush.bf16.msra.mxu0 %v1574
          %1655 = vmatmul.bf16.gmra.mxu0 %v1487
          %v1656 = vpop.f32.mrf.mxu0
          %v1657 = vadd.f32 %v1608, %v1656
          %v1658 = vpop.f32.mrf.mxu0
          %v1659 = vadd.f32 %v1610, %v1658
          %1660 = vmatmul.bf16.gmra.mxu0 %v1489
          %v1661 = vpop.f32.mrf.mxu0
          %v1662 = vadd.f32 %v1613, %v1661
          %v1663 = vpop.f32.mrf.mxu0
          %v1664 = vadd.f32 %v1615, %v1663
          %1665 = vmatmul.bf16.gmra.mxu0 %v1491
          %v1666 = vpop.f32.mrf.mxu0
          %v1667 = vadd.f32 %v1618, %v1666
          %v1668 = vpop.f32.mrf.mxu0
          %v1669 = vadd.f32 %v1620, %v1668
          %1670 = vmatmul.bf16.gmra.mxu0 %v1493
          %v1671 = vpop.f32.mrf.mxu0
          %v1672 = vadd.f32 %v1623, %v1671
          %v1673 = vpop.f32.mrf.mxu0
          %v1674 = vadd.f32 %v1625, %v1673
          %1675 = vmatmul.bf16.gmra.mxu0 %v1495
          %v1676 = vpop.f32.mrf.mxu0
          %v1677 = vadd.f32 %v1628, %v1676
          %v1678 = vpop.f32.mrf.mxu0
          %v1679 = vadd.f32 %v1630, %v1678
          %1680 = vmatmul.bf16.gmra.mxu0 %v1497
          %v1681 = vpop.f32.mrf.mxu0
          %v1682 = vadd.f32 %v1633, %v1681
          %v1683 = vpop.f32.mrf.mxu0
          %v1684 = vadd.f32 %v1635, %v1683
          %1685 = vmatmul.bf16.gmra.mxu0 %v1499
          %v1686 = vpop.f32.mrf.mxu0
          %v1687 = vadd.f32 %v1638, %v1686
          %v1688 = vpop.f32.mrf.mxu0
          %v1689 = vadd.f32 %v1640, %v1688
          %1690 = vmatmul.bf16.gmra.mxu0 %v1501
          %v1691 = vpop.f32.mrf.mxu0
          %v1692 = vadd.f32 %v1643, %v1691
          %v1693 = vpop.f32.mrf.mxu0
          %v1694 = vadd.f32 %v1645, %v1693
          %1695 = vdwg.mxu0
          %v1696 = vadd.f32 %v1406, %v1657
          %v1697 = vadd.f32 %v1407, %v1659
          %v1698 = vadd.f32 %v1408, %v1662
          %v1699 = vadd.f32 %v1409, %v1664
          %v1700 = vadd.f32 %v1410, %v1667
          %v1701 = vadd.f32 %v1411, %v1669
          %v1702 = vadd.f32 %v1412, %v1672
          %v1703 = vadd.f32 %v1413, %v1674
          %v1704 = vadd.f32 %v1414, %v1677
          %v1705 = vadd.f32 %v1415, %v1679
          %v1706 = vadd.f32 %v1416, %v1682
          %v1707 = vadd.f32 %v1417, %v1684
          %v1708 = vadd.f32 %v1418, %v1687
          %v1709 = vadd.f32 %v1419, %v1689
          %v1710 = vadd.f32 %v1420, %v1692
          %v1711 = vadd.f32 %v1421, %v1694
          %s1712 = scalar_lea.vmem %s656, 128 [#allocation7]
          %v1713 = vld [vmem:[%s1712] sm:$0xff]
          %v1714 = vld [vmem:[%s1712 + $0x8] sm:$0xff]
          %v1715 = vld [vmem:[%s1712 + $0x10] sm:$0xff]
          %v1716 = vld [vmem:[%s1712 + $0x18] sm:$0xff]
          %v1717 = vld [vmem:[%s1712 + $0x20] sm:$0xff]
          %v1718 = vld [vmem:[%s1712 + $0x28] sm:$0xff]
          %v1719 = vld [vmem:[%s1712 + $0x30] sm:$0xff]
          %v1720 = vld [vmem:[%s1712 + $0x38] sm:$0xff]
          %v1721 = vld [vmem:[%s1712 + $0x40] sm:$0xff]
          %v1722 = vld [vmem:[%s1712 + $0x48] sm:$0xff]
          %v1723 = vld [vmem:[%s1712 + $0x50] sm:$0xff]
          %v1724 = vld [vmem:[%s1712 + $0x58] sm:$0xff]
          %v1725 = vld [vmem:[%s1712 + $0x60] sm:$0xff]
          %v1726 = vld [vmem:[%s1712 + $0x68] sm:$0xff]
          %v1727 = vld [vmem:[%s1712 + $0x70] sm:$0xff]
          %v1728 = vld [vmem:[%s1712 + $0x78] sm:$0xff]
          %s1729 = scalar_lea.vmem %s666, 128 [#allocation8]
          %v1730 = vld [vmem:[%s1729] sm:$0xf]
          %v1731 = vld [vmem:[%s1729 + $0x4] sm:$0xf]
          %v1732 = vld [vmem:[%s1729 + $0x8] sm:$0xf]
          %v1733 = vld [vmem:[%s1729 + $0xc] sm:$0xf]
          %v1734 = vld [vmem:[%s1729 + $0x10] sm:$0xf]
          %v1735 = vld [vmem:[%s1729 + $0x14] sm:$0xf]
          %v1736 = vld [vmem:[%s1729 + $0x18] sm:$0xf]
          %v1737 = vld [vmem:[%s1729 + $0x1c] sm:$0xf]
          %v1738 = vld [vmem:[%s1729 + $0x20] sm:$0xf]
          %v1739 = vld [vmem:[%s1729 + $0x24] sm:$0xf]
          %v1740 = vld [vmem:[%s1729 + $0x28] sm:$0xf]
          %v1741 = vld [vmem:[%s1729 + $0x2c] sm:$0xf]
          %v1742 = vld [vmem:[%s1729 + $0x30] sm:$0xf]
          %v1743 = vld [vmem:[%s1729 + $0x34] sm:$0xf]
          %v1744 = vld [vmem:[%s1729 + $0x38] sm:$0xf]
          %v1745 = vld [vmem:[%s1729 + $0x3c] sm:$0xf]
          %v1746 = vld [vmem:[%s1729 + $0x40] sm:$0xf]
          %v1747 = vld [vmem:[%s1729 + $0x44] sm:$0xf]
          %v1748 = vld [vmem:[%s1729 + $0x48] sm:$0xf]
          %v1749 = vld [vmem:[%s1729 + $0x4c] sm:$0xf]
          %v1750 = vld [vmem:[%s1729 + $0x50] sm:$0xf]
          %v1751 = vld [vmem:[%s1729 + $0x54] sm:$0xf]
          %v1752 = vld [vmem:[%s1729 + $0x58] sm:$0xf]
          %v1753 = vld [vmem:[%s1729 + $0x5c] sm:$0xf]
          %v1754 = vld [vmem:[%s1729 + $0x60] sm:$0xf]
          %v1755 = vld [vmem:[%s1729 + $0x64] sm:$0xf]
          %v1756 = vld [vmem:[%s1729 + $0x68] sm:$0xf]
          %v1757 = vld [vmem:[%s1729 + $0x6c] sm:$0xf]
          %v1758 = vld [vmem:[%s1729 + $0x70] sm:$0xf]
          %v1759 = vld [vmem:[%s1729 + $0x74] sm:$0xf]
          %v1760 = vld [vmem:[%s1729 + $0x78] sm:$0xf]
          %v1761 = vld [vmem:[%s1729 + $0x7c] sm:$0xf]
          %s1762 = scalar_lea.vmem %s676, 2 [#allocation10]
          %v1763 = vld [vmem:[%s1762] sm:$0x3]
          %v1765 = vperm.slane %v1763, 0
          %v1766 = vperm.slane %v1763, 1
          %v1785 = vunpack.c.l.b16 %v1713
          %v1786 = vunpack.c.h.b16 %v1713
          %v1787 = vunpack.c.l.b16 %v1714
          %v1788 = vunpack.c.h.b16 %v1714
          %v1789 = vunpack.c.l.b16 %v1715
          %v1790 = vunpack.c.h.b16 %v1715
          %v1791 = vunpack.c.l.b16 %v1716
          %v1792 = vunpack.c.h.b16 %v1716
          %v1793 = vunpack.c.l.b16 %v1717
          %v1794 = vunpack.c.h.b16 %v1717
          %v1795 = vunpack.c.l.b16 %v1718
          %v1796 = vunpack.c.h.b16 %v1718
          %v1797 = vunpack.c.l.b16 %v1719
          %v1798 = vunpack.c.h.b16 %v1719
          %v1799 = vunpack.c.l.b16 %v1720
          %v1800 = vunpack.c.h.b16 %v1720
          %v1801 = vunpack.c.l.b16 %v1721
          %v1802 = vunpack.c.h.b16 %v1721
          %v1803 = vunpack.c.l.b16 %v1722
          %v1804 = vunpack.c.h.b16 %v1722
          %v1805 = vunpack.c.l.b16 %v1723
          %v1806 = vunpack.c.h.b16 %v1723
          %v1807 = vunpack.c.l.b16 %v1724
          %v1808 = vunpack.c.h.b16 %v1724
          %v1809 = vunpack.c.l.b16 %v1725
          %v1810 = vunpack.c.h.b16 %v1725
          %v1811 = vunpack.c.l.b16 %v1726
          %v1812 = vunpack.c.h.b16 %v1726
          %v1813 = vunpack.c.l.b16 %v1727
          %v1814 = vunpack.c.h.b16 %v1727
          %v1815 = vunpack.c.l.b16 %v1728
          %v1816 = vunpack.c.h.b16 %v1728
          %v1817 = vpack.c.b16 %v1787, %v1785
          %v1818 = vpack.c.b16 %v1788, %v1786
          %v1819 = vpack.c.b16 %v1791, %v1789
          %v1820 = vpack.c.b16 %v1792, %v1790
          %v1821 = vpack.c.b16 %v1795, %v1793
          %v1822 = vpack.c.b16 %v1796, %v1794
          %v1823 = vpack.c.b16 %v1799, %v1797
          %v1824 = vpack.c.b16 %v1800, %v1798
          %v1825 = vpack.c.b16 %v1803, %v1801
          %v1826 = vpack.c.b16 %v1804, %v1802
          %v1827 = vpack.c.b16 %v1807, %v1805
          %v1828 = vpack.c.b16 %v1808, %v1806
          %v1829 = vpack.c.b16 %v1811, %v1809
          %v1830 = vpack.c.b16 %v1812, %v1810
          %v1831 = vpack.c.b16 %v1815, %v1813
          %v1832 = vpack.c.b16 %v1816, %v1814
          %1849 = vmatpush.bf16.msra.mxu0 %v1831
          %1850 = vmatpush.bf16.msra.mxu0 %v1829
          %1851 = vmatpush.bf16.msra.mxu0 %v1827
          %1852 = vmatpush.bf16.msra.mxu0 %v1825
          %1853 = vmatpush.bf16.msra.mxu0 %v1823
          %1854 = vmatpush.bf16.msra.mxu0 %v1821
          %1855 = vmatpush.bf16.msra.mxu0 %v1819
          %1856 = vmatpush.bf16.msra.mxu0 %v1817
          %1857 = vmatmul.bf16.gmra.mxu0 %v974
          %v1858 = vpop.f32.mrf.mxu0
          %v1859 = vadd.f32 %v1765, %v1858
          %v1860 = vpop.f32.mrf.mxu0
          %v1861 = vadd.f32 %v1765, %v1860
          %1862 = vmatmul.bf16.gmra.mxu0 %v975
          %v1863 = vpop.f32.mrf.mxu0
          %v1864 = vadd.f32 %v1765, %v1863
          %v1865 = vpop.f32.mrf.mxu0
          %v1866 = vadd.f32 %v1765, %v1865
          %1867 = vmatmul.bf16.gmra.mxu0 %v976
          %v1868 = vpop.f32.mrf.mxu0
          %v1869 = vadd.f32 %v1765, %v1868
          %v1870 = vpop.f32.mrf.mxu0
          %v1871 = vadd.f32 %v1765, %v1870
          %1872 = vmatmul.bf16.gmra.mxu0 %v977
          %v1873 = vpop.f32.mrf.mxu0
          %v1874 = vadd.f32 %v1765, %v1873
          %v1875 = vpop.f32.mrf.mxu0
          %v1876 = vadd.f32 %v1765, %v1875
          %1877 = vmatmul.bf16.gmra.mxu0 %v978
          %v1878 = vpop.f32.mrf.mxu0
          %v1879 = vadd.f32 %v1765, %v1878
          %v1880 = vpop.f32.mrf.mxu0
          %v1881 = vadd.f32 %v1765, %v1880
          %1882 = vmatmul.bf16.gmra.mxu0 %v979
          %v1883 = vpop.f32.mrf.mxu0
          %v1884 = vadd.f32 %v1765, %v1883
          %v1885 = vpop.f32.mrf.mxu0
          %v1886 = vadd.f32 %v1765, %v1885
          %1887 = vmatmul.bf16.gmra.mxu0 %v980
          %v1888 = vpop.f32.mrf.mxu0
          %v1889 = vadd.f32 %v1765, %v1888
          %v1890 = vpop.f32.mrf.mxu0
          %v1891 = vadd.f32 %v1765, %v1890
          %1892 = vmatmul.bf16.gmra.mxu0 %v981
          %v1893 = vpop.f32.mrf.mxu0
          %v1894 = vadd.f32 %v1765, %v1893
          %v1895 = vpop.f32.mrf.mxu0
          %v1896 = vadd.f32 %v1765, %v1895
          %1897 = vdwg.mxu0
          %1898 = vmatpush.bf16.msra.mxu0 %v1832
          %1899 = vmatpush.bf16.msra.mxu0 %v1830
          %1900 = vmatpush.bf16.msra.mxu0 %v1828
          %1901 = vmatpush.bf16.msra.mxu0 %v1826
          %1902 = vmatpush.bf16.msra.mxu0 %v1824
          %1903 = vmatpush.bf16.msra.mxu0 %v1822
          %1904 = vmatpush.bf16.msra.mxu0 %v1820
          %1905 = vmatpush.bf16.msra.mxu0 %v1818
          %1906 = vmatmul.bf16.gmra.mxu0 %v974
          %v1907 = vpop.f32.mrf.mxu0
          %v1908 = vadd.f32 %v1766, %v1907
          %v1909 = vpop.f32.mrf.mxu0
          %v1910 = vadd.f32 %v1766, %v1909
          %1911 = vmatmul.bf16.gmra.mxu0 %v975
          %v1912 = vpop.f32.mrf.mxu0
          %v1913 = vadd.f32 %v1766, %v1912
          %v1914 = vpop.f32.mrf.mxu0
          %v1915 = vadd.f32 %v1766, %v1914
          %1916 = vmatmul.bf16.gmra.mxu0 %v976
          %v1917 = vpop.f32.mrf.mxu0
          %v1918 = vadd.f32 %v1766, %v1917
          %v1919 = vpop.f32.mrf.mxu0
          %v1920 = vadd.f32 %v1766, %v1919
          %1921 = vmatmul.bf16.gmra.mxu0 %v977
          %v1922 = vpop.f32.mrf.mxu0
          %v1923 = vadd.f32 %v1766, %v1922
          %v1924 = vpop.f32.mrf.mxu0
          %v1925 = vadd.f32 %v1766, %v1924
          %1926 = vmatmul.bf16.gmra.mxu0 %v978
          %v1927 = vpop.f32.mrf.mxu0
          %v1928 = vadd.f32 %v1766, %v1927
          %v1929 = vpop.f32.mrf.mxu0
          %v1930 = vadd.f32 %v1766, %v1929
          %1931 = vmatmul.bf16.gmra.mxu0 %v979
          %v1932 = vpop.f32.mrf.mxu0
          %v1933 = vadd.f32 %v1766, %v1932
          %v1934 = vpop.f32.mrf.mxu0
          %v1935 = vadd.f32 %v1766, %v1934
          %1936 = vmatmul.bf16.gmra.mxu0 %v980
          %v1937 = vpop.f32.mrf.mxu0
          %v1938 = vadd.f32 %v1766, %v1937
          %v1939 = vpop.f32.mrf.mxu0
          %v1940 = vadd.f32 %v1766, %v1939
          %1941 = vmatmul.bf16.gmra.mxu0 %v981
          %v1942 = vpop.f32.mrf.mxu0
          %v1943 = vadd.f32 %v1766, %v1942
          %v1944 = vpop.f32.mrf.mxu0
          %v1945 = vadd.f32 %v1766, %v1944
          %1946 = vdwg.mxu0
          %v1947 = vmax.f32 %v1859, %v1908
          %1948 = vmax.xlane.f32.xlu0 %v1947
          %v1949 = vpop.xlane.xlu0 %1948
          %v1950 = vmax.f32 %v1861, %v1910
          %1951 = vmax.xlane.f32.xlu0 %v1950
          %v1952 = vpop.xlane.xlu0 %1951
          %v1953 = vmax.f32 %v1864, %v1913
          %1954 = vmax.xlane.f32.xlu0 %v1953
          %v1955 = vpop.xlane.xlu0 %1954
          %v1956 = vmax.f32 %v1866, %v1915
          %1957 = vmax.xlane.f32.xlu0 %v1956
          %v1958 = vpop.xlane.xlu0 %1957
          %v1959 = vmax.f32 %v1869, %v1918
          %1960 = vmax.xlane.f32.xlu0 %v1959
          %v1961 = vpop.xlane.xlu0 %1960
          %v1962 = vmax.f32 %v1871, %v1920
          %1963 = vmax.xlane.f32.xlu0 %v1962
          %v1964 = vpop.xlane.xlu0 %1963
          %v1965 = vmax.f32 %v1874, %v1923
          %1966 = vmax.xlane.f32.xlu0 %v1965
          %v1967 = vpop.xlane.xlu0 %1966
          %v1968 = vmax.f32 %v1876, %v1925
          %1969 = vmax.xlane.f32.xlu0 %v1968
          %v1970 = vpop.xlane.xlu0 %1969
          %v1971 = vmax.f32 %v1879, %v1928
          %1972 = vmax.xlane.f32.xlu0 %v1971
          %v1973 = vpop.xlane.xlu0 %1972
          %v1974 = vmax.f32 %v1881, %v1930
          %1975 = vmax.xlane.f32.xlu0 %v1974
          %v1976 = vpop.xlane.xlu0 %1975
          %v1977 = vmax.f32 %v1884, %v1933
          %1978 = vmax.xlane.f32.xlu0 %v1977
          %v1979 = vpop.xlane.xlu0 %1978
          %v1980 = vmax.f32 %v1886, %v1935
          %1981 = vmax.xlane.f32.xlu0 %v1980
          %v1982 = vpop.xlane.xlu0 %1981
          %v1983 = vmax.f32 %v1889, %v1938
          %1984 = vmax.xlane.f32.xlu0 %v1983
          %v1985 = vpop.xlane.xlu0 %1984
          %v1986 = vmax.f32 %v1891, %v1940
          %1987 = vmax.xlane.f32.xlu0 %v1986
          %v1988 = vpop.xlane.xlu0 %1987
          %v1989 = vmax.f32 %v1894, %v1943
          %1990 = vmax.xlane.f32.xlu0 %v1989
          %v1991 = vpop.xlane.xlu0 %1990
          %v1992 = vmax.f32 %v1896, %v1945
          %1993 = vmax.xlane.f32.xlu0 %v1992
          %v1994 = vpop.xlane.xlu0 %1993
          %v1995 = vmax.f32 %v1216, %v1949
          %v1996 = vmax.f32 %v1219, %v1952
          %v1997 = vmax.f32 %v1222, %v1955
          %v1998 = vmax.f32 %v1225, %v1958
          %v1999 = vmax.f32 %v1228, %v1961
          %v2000 = vmax.f32 %v1231, %v1964
          %v2001 = vmax.f32 %v1234, %v1967
          %v2002 = vmax.f32 %v1237, %v1970
          %v2003 = vmax.f32 %v1240, %v1973
          %v2004 = vmax.f32 %v1243, %v1976
          %v2005 = vmax.f32 %v1246, %v1979
          %v2006 = vmax.f32 %v1249, %v1982
          %v2007 = vmax.f32 %v1252, %v1985
          %v2008 = vmax.f32 %v1255, %v1988
          %v2009 = vmax.f32 %v1258, %v1991
          %v2010 = vmax.f32 %v1261, %v1994
          %v2011 = vsub.f32 %v1216, %v1995
          %v2012 = vsub.f32 %v1219, %v1996
          %v2013 = vsub.f32 %v1222, %v1997
          %v2014 = vsub.f32 %v1225, %v1998
          %v2015 = vsub.f32 %v1228, %v1999
          %v2016 = vsub.f32 %v1231, %v2000
          %v2017 = vsub.f32 %v1234, %v2001
          %v2018 = vsub.f32 %v1237, %v2002
          %v2019 = vsub.f32 %v1240, %v2003
          %v2020 = vsub.f32 %v1243, %v2004
          %v2021 = vsub.f32 %v1246, %v2005
          %v2022 = vsub.f32 %v1249, %v2006
          %v2023 = vsub.f32 %v1252, %v2007
          %v2024 = vsub.f32 %v1255, %v2008
          %v2025 = vsub.f32 %v1258, %v2009
          %v2026 = vsub.f32 %v1261, %v2010
          %v2027 = vmul.f32 %v2011, 1.442695
          %v2028 = vpow.pop %v2027
          %v2029 = vmul.f32 %v2012, 1.442695
          %v2030 = vpow.pop %v2029
          %v2031 = vmul.f32 %v2013, 1.442695
          %v2032 = vpow.pop %v2031
          %v2033 = vmul.f32 %v2014, 1.442695
          %v2034 = vpow.pop %v2033
          %v2035 = vmul.f32 %v2015, 1.442695
          %v2036 = vpow.pop %v2035
          %v2037 = vmul.f32 %v2016, 1.442695
          %v2038 = vpow.pop %v2037
          %v2039 = vmul.f32 %v2017, 1.442695
          %v2040 = vpow.pop %v2039
          %v2041 = vmul.f32 %v2018, 1.442695
          %v2042 = vpow.pop %v2041
          %v2043 = vmul.f32 %v2019, 1.442695
          %v2044 = vpow.pop %v2043
          %v2045 = vmul.f32 %v2020, 1.442695
          %v2046 = vpow.pop %v2045
          %v2047 = vmul.f32 %v2021, 1.442695
          %v2048 = vpow.pop %v2047
          %v2049 = vmul.f32 %v2022, 1.442695
          %v2050 = vpow.pop %v2049
          %v2051 = vmul.f32 %v2023, 1.442695
          %v2052 = vpow.pop %v2051
          %v2053 = vmul.f32 %v2024, 1.442695
          %v2054 = vpow.pop %v2053
          %v2055 = vmul.f32 %v2025, 1.442695
          %v2056 = vpow.pop %v2055
          %v2057 = vmul.f32 %v2026, 1.442695
          %v2058 = vpow.pop %v2057
          %v2059 = vsub.f32 %v1859, %v1995
          %v2060 = vsub.f32 %v1908, %v1995
          %v2061 = vsub.f32 %v1861, %v1996
          %v2062 = vsub.f32 %v1910, %v1996
          %v2063 = vsub.f32 %v1864, %v1997
          %v2064 = vsub.f32 %v1913, %v1997
          %v2065 = vsub.f32 %v1866, %v1998
          %v2066 = vsub.f32 %v1915, %v1998
          %v2067 = vsub.f32 %v1869, %v1999
          %v2068 = vsub.f32 %v1918, %v1999
          %v2069 = vsub.f32 %v1871, %v2000
          %v2070 = vsub.f32 %v1920, %v2000
          %v2071 = vsub.f32 %v1874, %v2001
          %v2072 = vsub.f32 %v1923, %v2001
          %v2073 = vsub.f32 %v1876, %v2002
          %v2074 = vsub.f32 %v1925, %v2002
          %v2075 = vsub.f32 %v1879, %v2003
          %v2076 = vsub.f32 %v1928, %v2003
          %v2077 = vsub.f32 %v1881, %v2004
          %v2078 = vsub.f32 %v1930, %v2004
          %v2079 = vsub.f32 %v1884, %v2005
          %v2080 = vsub.f32 %v1933, %v2005
          %v2081 = vsub.f32 %v1886, %v2006
          %v2082 = vsub.f32 %v1935, %v2006
          %v2083 = vsub.f32 %v1889, %v2007
          %v2084 = vsub.f32 %v1938, %v2007
          %v2085 = vsub.f32 %v1891, %v2008
          %v2086 = vsub.f32 %v1940, %v2008
          %v2087 = vsub.f32 %v1894, %v2009
          %v2088 = vsub.f32 %v1943, %v2009
          %v2089 = vsub.f32 %v1896, %v2010
          %v2090 = vsub.f32 %v1945, %v2010
          %v2091 = vmul.f32 %v2059, 1.442695
          %v2092 = vpow.pop %v2091
          %v2093 = vmul.f32 %v2060, 1.442695
          %v2094 = vpow.pop %v2093
          %v2095 = vmul.f32 %v2061, 1.442695
          %v2096 = vpow.pop %v2095
          %v2097 = vmul.f32 %v2062, 1.442695
          %v2098 = vpow.pop %v2097
          %v2099 = vmul.f32 %v2063, 1.442695
          %v2100 = vpow.pop %v2099
          %v2101 = vmul.f32 %v2064, 1.442695
          %v2102 = vpow.pop %v2101
          %v2103 = vmul.f32 %v2065, 1.442695
          %v2104 = vpow.pop %v2103
          %v2105 = vmul.f32 %v2066, 1.442695
          %v2106 = vpow.pop %v2105
          %v2107 = vmul.f32 %v2067, 1.442695
          %v2108 = vpow.pop %v2107
          %v2109 = vmul.f32 %v2068, 1.442695
          %v2110 = vpow.pop %v2109
          %v2111 = vmul.f32 %v2069, 1.442695
          %v2112 = vpow.pop %v2111
          %v2113 = vmul.f32 %v2070, 1.442695
          %v2114 = vpow.pop %v2113
          %v2115 = vmul.f32 %v2071, 1.442695
          %v2116 = vpow.pop %v2115
          %v2117 = vmul.f32 %v2072, 1.442695
          %v2118 = vpow.pop %v2117
          %v2119 = vmul.f32 %v2073, 1.442695
          %v2120 = vpow.pop %v2119
          %v2121 = vmul.f32 %v2074, 1.442695
          %v2122 = vpow.pop %v2121
          %v2123 = vmul.f32 %v2075, 1.442695
          %v2124 = vpow.pop %v2123
          %v2125 = vmul.f32 %v2076, 1.442695
          %v2126 = vpow.pop %v2125
          %v2127 = vmul.f32 %v2077, 1.442695
          %v2128 = vpow.pop %v2127
          %v2129 = vmul.f32 %v2078, 1.442695
          %v2130 = vpow.pop %v2129
          %v2131 = vmul.f32 %v2079, 1.442695
          %v2132 = vpow.pop %v2131
          %v2133 = vmul.f32 %v2080, 1.442695
          %v2134 = vpow.pop %v2133
          %v2135 = vmul.f32 %v2081, 1.442695
          %v2136 = vpow.pop %v2135
          %v2137 = vmul.f32 %v2082, 1.442695
          %v2138 = vpow.pop %v2137
          %v2139 = vmul.f32 %v2083, 1.442695
          %v2140 = vpow.pop %v2139
          %v2141 = vmul.f32 %v2084, 1.442695
          %v2142 = vpow.pop %v2141
          %v2143 = vmul.f32 %v2085, 1.442695
          %v2144 = vpow.pop %v2143
          %v2145 = vmul.f32 %v2086, 1.442695
          %v2146 = vpow.pop %v2145
          %v2147 = vmul.f32 %v2087, 1.442695
          %v2148 = vpow.pop %v2147
          %v2149 = vmul.f32 %v2088, 1.442695
          %v2150 = vpow.pop %v2149
          %v2151 = vmul.f32 %v2089, 1.442695
          %v2152 = vpow.pop %v2151
          %v2153 = vmul.f32 %v2090, 1.442695
          %v2154 = vpow.pop %v2153
          %v2155 = vmul.f32 %v2028, %v1470
          %v2156 = vmul.f32 %v2030, %v1471
          %v2157 = vmul.f32 %v2032, %v1472
          %v2158 = vmul.f32 %v2034, %v1473
          %v2159 = vmul.f32 %v2036, %v1474
          %v2160 = vmul.f32 %v2038, %v1475
          %v2161 = vmul.f32 %v2040, %v1476
          %v2162 = vmul.f32 %v2042, %v1477
          %v2163 = vmul.f32 %v2044, %v1478
          %v2164 = vmul.f32 %v2046, %v1479
          %v2165 = vmul.f32 %v2048, %v1480
          %v2166 = vmul.f32 %v2050, %v1481
          %v2167 = vmul.f32 %v2052, %v1482
          %v2168 = vmul.f32 %v2054, %v1483
          %v2169 = vmul.f32 %v2056, %v1484
          %v2170 = vmul.f32 %v2058, %v1485
          %v2171 = vadd.f32 %v2092, %v2094
          %2172 = vadd.xlane.f32.xlu0 %v2171
          %v2173 = vpop.xlane.xlu0 %2172
          %v2174 = vadd.f32 %v2096, %v2098
          %2175 = vadd.xlane.f32.xlu0 %v2174
          %v2176 = vpop.xlane.xlu0 %2175
          %v2177 = vadd.f32 %v2100, %v2102
          %2178 = vadd.xlane.f32.xlu0 %v2177
          %v2179 = vpop.xlane.xlu0 %2178
          %v2180 = vadd.f32 %v2104, %v2106
          %2181 = vadd.xlane.f32.xlu0 %v2180
          %v2182 = vpop.xlane.xlu0 %2181
          %v2183 = vadd.f32 %v2108, %v2110
          %2184 = vadd.xlane.f32.xlu0 %v2183
          %v2185 = vpop.xlane.xlu0 %2184
          %v2186 = vadd.f32 %v2112, %v2114
          %2187 = vadd.xlane.f32.xlu0 %v2186
          %v2188 = vpop.xlane.xlu0 %2187
          %v2189 = vadd.f32 %v2116, %v2118
          %2190 = vadd.xlane.f32.xlu0 %v2189
          %v2191 = vpop.xlane.xlu0 %2190
          %v2192 = vadd.f32 %v2120, %v2122
          %2193 = vadd.xlane.f32.xlu0 %v2192
          %v2194 = vpop.xlane.xlu0 %2193
          %v2195 = vadd.f32 %v2124, %v2126
          %2196 = vadd.xlane.f32.xlu0 %v2195
          %v2197 = vpop.xlane.xlu0 %2196
          %v2198 = vadd.f32 %v2128, %v2130
          %2199 = vadd.xlane.f32.xlu0 %v2198
          %v2200 = vpop.xlane.xlu0 %2199
          %v2201 = vadd.f32 %v2132, %v2134
          %2202 = vadd.xlane.f32.xlu0 %v2201
          %v2203 = vpop.xlane.xlu0 %2202
          %v2204 = vadd.f32 %v2136, %v2138
          %2205 = vadd.xlane.f32.xlu0 %v2204
          %v2206 = vpop.xlane.xlu0 %2205
          %v2207 = vadd.f32 %v2140, %v2142
          %2208 = vadd.xlane.f32.xlu0 %v2207
          %v2209 = vpop.xlane.xlu0 %2208
          %v2210 = vadd.f32 %v2144, %v2146
          %2211 = vadd.xlane.f32.xlu0 %v2210
          %v2212 = vpop.xlane.xlu0 %2211
          %v2213 = vadd.f32 %v2148, %v2150
          %2214 = vadd.xlane.f32.xlu0 %v2213
          %v2215 = vpop.xlane.xlu0 %2214
          %v2216 = vadd.f32 %v2152, %v2154
          %2217 = vadd.xlane.f32.xlu0 %v2216
          %v2218 = vpop.xlane.xlu0 %2217
          %v2219 = vadd.f32 %v2155, %v2173
          %v2220 = vadd.f32 %v2156, %v2176
          %v2221 = vadd.f32 %v2157, %v2179
          %v2222 = vadd.f32 %v2158, %v2182
          %v2223 = vadd.f32 %v2159, %v2185
          %v2224 = vadd.f32 %v2160, %v2188
          %v2225 = vadd.f32 %v2161, %v2191
          %v2226 = vadd.f32 %v2162, %v2194
          %v2227 = vadd.f32 %v2163, %v2197
          %v2228 = vadd.f32 %v2164, %v2200
          %v2229 = vadd.f32 %v2165, %v2203
          %v2230 = vadd.f32 %v2166, %v2206
          %v2231 = vadd.f32 %v2167, %v2209
          %v2232 = vadd.f32 %v2168, %v2212
          %v2233 = vadd.f32 %v2169, %v2215
          %v2234 = vadd.f32 %v2170, %v2218
          %v2235 = vmul.f32 %v2028, %v1696
          %v2236 = vmul.f32 %v2030, %v1697
          %v2237 = vmul.f32 %v2032, %v1698
          %v2238 = vmul.f32 %v2034, %v1699
          %v2239 = vmul.f32 %v2036, %v1700
          %v2240 = vmul.f32 %v2038, %v1701
          %v2241 = vmul.f32 %v2040, %v1702
          %v2242 = vmul.f32 %v2042, %v1703
          %v2243 = vmul.f32 %v2044, %v1704
          %v2244 = vmul.f32 %v2046, %v1705
          %v2245 = vmul.f32 %v2048, %v1706
          %v2246 = vmul.f32 %v2050, %v1707
          %v2247 = vmul.f32 %v2052, %v1708
          %v2248 = vmul.f32 %v2054, %v1709
          %v2249 = vmul.f32 %v2056, %v1710
          %v2250 = vmul.f32 %v2058, %v1711
          %v2251 = vpack.c.bf16 %v2096, %v2092
          %v2252 = vpack.c.bf16 %v2098, %v2094
          %v2253 = vpack.c.bf16 %v2104, %v2100
          %v2254 = vpack.c.bf16 %v2106, %v2102
          %v2255 = vpack.c.bf16 %v2112, %v2108
          %v2256 = vpack.c.bf16 %v2114, %v2110
          %v2257 = vpack.c.bf16 %v2120, %v2116
          %v2258 = vpack.c.bf16 %v2122, %v2118
          %v2259 = vpack.c.bf16 %v2128, %v2124
          %v2260 = vpack.c.bf16 %v2130, %v2126
          %v2261 = vpack.c.bf16 %v2136, %v2132
          %v2262 = vpack.c.bf16 %v2138, %v2134
          %v2263 = vpack.c.bf16 %v2144, %v2140
          %v2264 = vpack.c.bf16 %v2146, %v2142
          %v2265 = vpack.c.bf16 %v2152, %v2148
          %v2266 = vpack.c.bf16 %v2154, %v2150
          %v2299 = vunpack.c.l.b16 %v1730
          %v2300 = vunpack.c.l.b16 %v1731
          %v2301 = vunpack.c.l.b16 %v1732
          %v2302 = vunpack.c.l.b16 %v1733
          %v2303 = vunpack.c.l.b16 %v1734
          %v2304 = vunpack.c.l.b16 %v1735
          %v2305 = vunpack.c.l.b16 %v1736
          %v2306 = vunpack.c.l.b16 %v1737
          %v2307 = vunpack.c.l.b16 %v1738
          %v2308 = vunpack.c.l.b16 %v1739
          %v2309 = vunpack.c.l.b16 %v1740
          %v2310 = vunpack.c.l.b16 %v1741
          %v2311 = vunpack.c.l.b16 %v1742
          %v2312 = vunpack.c.l.b16 %v1743
          %v2313 = vunpack.c.l.b16 %v1744
          %v2314 = vunpack.c.l.b16 %v1745
          %v2315 = vunpack.c.l.b16 %v1746
          %v2316 = vunpack.c.l.b16 %v1747
          %v2317 = vunpack.c.l.b16 %v1748
          %v2318 = vunpack.c.l.b16 %v1749
          %v2319 = vunpack.c.l.b16 %v1750
          %v2320 = vunpack.c.l.b16 %v1751
          %v2321 = vunpack.c.l.b16 %v1752
          %v2322 = vunpack.c.l.b16 %v1753
          %v2323 = vunpack.c.l.b16 %v1754
          %v2324 = vunpack.c.l.b16 %v1755
          %v2325 = vunpack.c.l.b16 %v1756
          %v2326 = vunpack.c.l.b16 %v1757
          %v2327 = vunpack.c.l.b16 %v1758
          %v2328 = vunpack.c.l.b16 %v1759
          %v2329 = vunpack.c.l.b16 %v1760
          %v2330 = vunpack.c.l.b16 %v1761
          %v2331 = vpack.c.b16 %v2300, %v2299
          %v2332 = vpack.c.b16 %v2302, %v2301
          %v2333 = vpack.c.b16 %v2304, %v2303
          %v2334 = vpack.c.b16 %v2306, %v2305
          %v2335 = vpack.c.b16 %v2308, %v2307
          %v2336 = vpack.c.b16 %v2310, %v2309
          %v2337 = vpack.c.b16 %v2312, %v2311
          %v2338 = vpack.c.b16 %v2314, %v2313
          %v2339 = vpack.c.b16 %v2316, %v2315
          %v2340 = vpack.c.b16 %v2318, %v2317
          %v2341 = vpack.c.b16 %v2320, %v2319
          %v2342 = vpack.c.b16 %v2322, %v2321
          %v2343 = vpack.c.b16 %v2324, %v2323
          %v2344 = vpack.c.b16 %v2326, %v2325
          %v2345 = vpack.c.b16 %v2328, %v2327
          %v2346 = vpack.c.b16 %v2330, %v2329
          %2363 = vmatpush.bf16.msra.mxu0 %v2338
          %2364 = vmatpush.bf16.msra.mxu0 %v2337
          %2365 = vmatpush.bf16.msra.mxu0 %v2336
          %2366 = vmatpush.bf16.msra.mxu0 %v2335
          %2367 = vmatpush.bf16.msra.mxu0 %v2334
          %2368 = vmatpush.bf16.msra.mxu0 %v2333
          %2369 = vmatpush.bf16.msra.mxu0 %v2332
          %2370 = vmatpush.bf16.msra.mxu0 %v2331
          %2371 = vmatmul.bf16.gmra.mxu0 %v2251
          %v2372 = vpop.f32.mrf.mxu0
          %v2373 = vadd.f32 0.0, %v2372
          %v2374 = vpop.f32.mrf.mxu0
          %v2375 = vadd.f32 0.0, %v2374
          %2376 = vmatmul.bf16.gmra.mxu0 %v2253
          %v2377 = vpop.f32.mrf.mxu0
          %v2378 = vadd.f32 0.0, %v2377
          %v2379 = vpop.f32.mrf.mxu0
          %v2380 = vadd.f32 0.0, %v2379
          %2381 = vmatmul.bf16.gmra.mxu0 %v2255
          %v2382 = vpop.f32.mrf.mxu0
          %v2383 = vadd.f32 0.0, %v2382
          %v2384 = vpop.f32.mrf.mxu0
          %v2385 = vadd.f32 0.0, %v2384
          %2386 = vmatmul.bf16.gmra.mxu0 %v2257
          %v2387 = vpop.f32.mrf.mxu0
          %v2388 = vadd.f32 0.0, %v2387
          %v2389 = vpop.f32.mrf.mxu0
          %v2390 = vadd.f32 0.0, %v2389
          %2391 = vmatmul.bf16.gmra.mxu0 %v2259
          %v2392 = vpop.f32.mrf.mxu0
          %v2393 = vadd.f32 0.0, %v2392
          %v2394 = vpop.f32.mrf.mxu0
          %v2395 = vadd.f32 0.0, %v2394
          %2396 = vmatmul.bf16.gmra.mxu0 %v2261
          %v2397 = vpop.f32.mrf.mxu0
          %v2398 = vadd.f32 0.0, %v2397
          %v2399 = vpop.f32.mrf.mxu0
          %v2400 = vadd.f32 0.0, %v2399
          %2401 = vmatmul.bf16.gmra.mxu0 %v2263
          %v2402 = vpop.f32.mrf.mxu0
          %v2403 = vadd.f32 0.0, %v2402
          %v2404 = vpop.f32.mrf.mxu0
          %v2405 = vadd.f32 0.0, %v2404
          %2406 = vmatmul.bf16.gmra.mxu0 %v2265
          %v2407 = vpop.f32.mrf.mxu0
          %v2408 = vadd.f32 0.0, %v2407
          %v2409 = vpop.f32.mrf.mxu0
          %v2410 = vadd.f32 0.0, %v2409
          %2411 = vdwg.mxu0
          %2412 = vmatpush.bf16.msra.mxu0 %v2346
          %2413 = vmatpush.bf16.msra.mxu0 %v2345
          %2414 = vmatpush.bf16.msra.mxu0 %v2344
          %2415 = vmatpush.bf16.msra.mxu0 %v2343
          %2416 = vmatpush.bf16.msra.mxu0 %v2342
          %2417 = vmatpush.bf16.msra.mxu0 %v2341
          %2418 = vmatpush.bf16.msra.mxu0 %v2340
          %2419 = vmatpush.bf16.msra.mxu0 %v2339
          %2420 = vmatmul.bf16.gmra.mxu0 %v2252
          %v2421 = vpop.f32.mrf.mxu0
          %v2422 = vadd.f32 %v2373, %v2421
          %v2423 = vpop.f32.mrf.mxu0
          %v2424 = vadd.f32 %v2375, %v2423
          %2425 = vmatmul.bf16.gmra.mxu0 %v2254
          %v2426 = vpop.f32.mrf.mxu0
          %v2427 = vadd.f32 %v2378, %v2426
          %v2428 = vpop.f32.mrf.mxu0
          %v2429 = vadd.f32 %v2380, %v2428
          %2430 = vmatmul.bf16.gmra.mxu0 %v2256
          %v2431 = vpop.f32.mrf.mxu0
          %v2432 = vadd.f32 %v2383, %v2431
          %v2433 = vpop.f32.mrf.mxu0
          %v2434 = vadd.f32 %v2385, %v2433
          %2435 = vmatmul.bf16.gmra.mxu0 %v2258
          %v2436 = vpop.f32.mrf.mxu0
          %v2437 = vadd.f32 %v2388, %v2436
          %v2438 = vpop.f32.mrf.mxu0
          %v2439 = vadd.f32 %v2390, %v2438
          %2440 = vmatmul.bf16.gmra.mxu0 %v2260
          %v2441 = vpop.f32.mrf.mxu0
          %v2442 = vadd.f32 %v2393, %v2441
          %v2443 = vpop.f32.mrf.mxu0
          %v2444 = vadd.f32 %v2395, %v2443
          %2445 = vmatmul.bf16.gmra.mxu0 %v2262
          %v2446 = vpop.f32.mrf.mxu0
          %v2447 = vadd.f32 %v2398, %v2446
          %v2448 = vpop.f32.mrf.mxu0
          %v2449 = vadd.f32 %v2400, %v2448
          %2450 = vmatmul.bf16.gmra.mxu0 %v2264
          %v2451 = vpop.f32.mrf.mxu0
          %v2452 = vadd.f32 %v2403, %v2451
          %v2453 = vpop.f32.mrf.mxu0
          %v2454 = vadd.f32 %v2405, %v2453
          %2455 = vmatmul.bf16.gmra.mxu0 %v2266
          %v2456 = vpop.f32.mrf.mxu0
          %v2457 = vadd.f32 %v2408, %v2456
          %v2458 = vpop.f32.mrf.mxu0
          %v2459 = vadd.f32 %v2410, %v2458
          %2460 = vdwg.mxu0
          %v2461 = vadd.f32 %v2235, %v2422
          %v2462 = vadd.f32 %v2236, %v2424
          %v2463 = vadd.f32 %v2237, %v2427
          %v2464 = vadd.f32 %v2238, %v2429
          %v2465 = vadd.f32 %v2239, %v2432
          %v2466 = vadd.f32 %v2240, %v2434
          %v2467 = vadd.f32 %v2241, %v2437
          %v2468 = vadd.f32 %v2242, %v2439
          %v2469 = vadd.f32 %v2243, %v2442
          %v2470 = vadd.f32 %v2244, %v2444
          %v2471 = vadd.f32 %v2245, %v2447
          %v2472 = vadd.f32 %v2246, %v2449
          %v2473 = vadd.f32 %v2247, %v2452
          %v2474 = vadd.f32 %v2248, %v2454
          %v2475 = vadd.f32 %v2249, %v2457
          %v2476 = vadd.f32 %v2250, %v2459
          %v2477 = vrcp.pop %v2219
          %v2478 = vrcp.pop %v2220
          %v2479 = vrcp.pop %v2221
          %v2480 = vrcp.pop %v2222
          %v2481 = vrcp.pop %v2223
          %v2482 = vrcp.pop %v2224
          %v2483 = vrcp.pop %v2225
          %v2484 = vrcp.pop %v2226
          %v2485 = vrcp.pop %v2227
          %v2486 = vrcp.pop %v2228
          %v2487 = vrcp.pop %v2229
          %v2488 = vrcp.pop %v2230
          %v2489 = vrcp.pop %v2231
          %v2490 = vrcp.pop %v2232
          %v2491 = vrcp.pop %v2233
          %v2492 = vrcp.pop %v2234
          %v2493 = vmul.f32 %v2461, %v2477
          %v2494 = vmul.f32 %v2462, %v2478
          %v2495 = vmul.f32 %v2463, %v2479
          %v2496 = vmul.f32 %v2464, %v2480
          %v2497 = vmul.f32 %v2465, %v2481
          %v2498 = vmul.f32 %v2466, %v2482
          %v2499 = vmul.f32 %v2467, %v2483
          %v2500 = vmul.f32 %v2468, %v2484
          %v2501 = vmul.f32 %v2469, %v2485
          %v2502 = vmul.f32 %v2470, %v2486
          %v2503 = vmul.f32 %v2471, %v2487
          %v2504 = vmul.f32 %v2472, %v2488
          %v2505 = vmul.f32 %v2473, %v2489
          %v2506 = vmul.f32 %v2474, %v2490
          %v2507 = vmul.f32 %v2475, %v2491
          %v2508 = vmul.f32 %v2476, %v2492
          %v2509 = vpack.c.bf16 %v2494, %v2493
          %v2510 = vpack.c.bf16 %v2496, %v2495
          %v2511 = vpack.c.bf16 %v2498, %v2497
          %v2512 = vpack.c.bf16 %v2500, %v2499
          %v2513 = vpack.c.bf16 %v2502, %v2501
          %v2514 = vpack.c.bf16 %v2504, %v2503
          %v2515 = vpack.c.bf16 %v2506, %v2505
          %v2516 = vpack.c.bf16 %v2508, %v2507
          %v2517 = vld [vmem:[#allocation13] sm:$0xf]
          %v2518 = vld [vmem:[#allocation13 + $0x4] sm:$0xf]
          %v2519 = vld [vmem:[#allocation13 + $0x8] sm:$0xf]
          %v2520 = vld [vmem:[#allocation13 + $0xc] sm:$0xf]
          %v2521 = vld [vmem:[#allocation13 + $0x10] sm:$0xf]
          %v2522 = vld [vmem:[#allocation13 + $0x14] sm:$0xf]
          %v2523 = vld [vmem:[#allocation13 + $0x18] sm:$0xf]
          %v2524 = vld [vmem:[#allocation13 + $0x1c] sm:$0xf]
          %v2525 = vld [vmem:[#allocation13 + $0x20] sm:$0xf]
          %v2526 = vld [vmem:[#allocation13 + $0x24] sm:$0xf]
          %v2527 = vld [vmem:[#allocation13 + $0x28] sm:$0xf]
          %v2528 = vld [vmem:[#allocation13 + $0x2c] sm:$0xf]
          %v2529 = vld [vmem:[#allocation13 + $0x30] sm:$0xf]
          %v2530 = vld [vmem:[#allocation13 + $0x34] sm:$0xf]
          %v2531 = vld [vmem:[#allocation13 + $0x38] sm:$0xf]
          %v2532 = vld [vmem:[#allocation13 + $0x3c] sm:$0xf]
          %v2549 = vunpack.c.l.b16 %v2517
          %v2550 = vunpack.c.l.b16 %v2518
          %v2551 = vunpack.c.l.b16 %v2519
          %v2552 = vunpack.c.l.b16 %v2520
          %v2553 = vunpack.c.l.b16 %v2521
          %v2554 = vunpack.c.l.b16 %v2522
          %v2555 = vunpack.c.l.b16 %v2523
          %v2556 = vunpack.c.l.b16 %v2524
          %v2557 = vunpack.c.l.b16 %v2525
          %v2558 = vunpack.c.l.b16 %v2526
          %v2559 = vunpack.c.l.b16 %v2527
          %v2560 = vunpack.c.l.b16 %v2528
          %v2561 = vunpack.c.l.b16 %v2529
          %v2562 = vunpack.c.l.b16 %v2530
          %v2563 = vunpack.c.l.b16 %v2531
          %v2564 = vunpack.c.l.b16 %v2532
          %v2565 = vpack.c.b16 %v2550, %v2549
          %v2566 = vpack.c.b16 %v2552, %v2551
          %v2567 = vpack.c.b16 %v2554, %v2553
          %v2568 = vpack.c.b16 %v2556, %v2555
          %v2569 = vpack.c.b16 %v2558, %v2557
          %v2570 = vpack.c.b16 %v2560, %v2559
          %v2571 = vpack.c.b16 %v2562, %v2561
          %v2572 = vpack.c.b16 %v2564, %v2563
          %2581 = vmatpush.bf16.msra.mxu0 %v2572
          %2582 = vmatpush.bf16.msra.mxu0 %v2571
          %2583 = vmatpush.bf16.msra.mxu0 %v2570
          %2584 = vmatpush.bf16.msra.mxu0 %v2569
          %2585 = vmatpush.bf16.msra.mxu0 %v2568
          %2586 = vmatpush.bf16.msra.mxu0 %v2567
          %2587 = vmatpush.bf16.msra.mxu0 %v2566
          %2588 = vmatpush.bf16.msra.mxu0 %v2565
          %2589 = vmatmul.bf16.gmra.mxu0 %v2509
          %v2590 = vpop.f32.mrf.mxu0
          %v2591 = vadd.f32 0.0, %v2590
          %v2592 = vpop.f32.mrf.mxu0
          %v2593 = vadd.f32 0.0, %v2592
          %2594 = vmatmul.bf16.gmra.mxu0 %v2510
          %v2595 = vpop.f32.mrf.mxu0
          %v2596 = vadd.f32 0.0, %v2595
          %v2597 = vpop.f32.mrf.mxu0
          %v2598 = vadd.f32 0.0, %v2597
          %2599 = vmatmul.bf16.gmra.mxu0 %v2511
          %v2600 = vpop.f32.mrf.mxu0
          %v2601 = vadd.f32 0.0, %v2600
          %v2602 = vpop.f32.mrf.mxu0
          %v2603 = vadd.f32 0.0, %v2602
          %2604 = vmatmul.bf16.gmra.mxu0 %v2512
          %v2605 = vpop.f32.mrf.mxu0
          %v2606 = vadd.f32 0.0, %v2605
          %v2607 = vpop.f32.mrf.mxu0
          %v2608 = vadd.f32 0.0, %v2607
          %2609 = vmatmul.bf16.gmra.mxu0 %v2513
          %v2610 = vpop.f32.mrf.mxu0
          %v2611 = vadd.f32 0.0, %v2610
          %v2612 = vpop.f32.mrf.mxu0
          %v2613 = vadd.f32 0.0, %v2612
          %2614 = vmatmul.bf16.gmra.mxu0 %v2514
          %v2615 = vpop.f32.mrf.mxu0
          %v2616 = vadd.f32 0.0, %v2615
          %v2617 = vpop.f32.mrf.mxu0
          %v2618 = vadd.f32 0.0, %v2617
          %2619 = vmatmul.bf16.gmra.mxu0 %v2515
          %v2620 = vpop.f32.mrf.mxu0
          %v2621 = vadd.f32 0.0, %v2620
          %v2622 = vpop.f32.mrf.mxu0
          %v2623 = vadd.f32 0.0, %v2622
          %2624 = vmatmul.bf16.gmra.mxu0 %v2516
          %v2625 = vpop.f32.mrf.mxu0
          %v2626 = vadd.f32 0.0, %v2625
          %v2627 = vpop.f32.mrf.mxu0
          %v2628 = vadd.f32 0.0, %v2627
          %2629 = vdwg.mxu0
          %v2630 = vadd.f32 %v789, %v2591
          %v2631 = vadd.f32 %v790, %v2593
          %v2632 = vadd.f32 %v791, %v2596
          %v2633 = vadd.f32 %v792, %v2598
          %v2634 = vadd.f32 %v793, %v2601
          %v2635 = vadd.f32 %v794, %v2603
          %v2636 = vadd.f32 %v795, %v2606
          %v2637 = vadd.f32 %v796, %v2608
          %v2638 = vadd.f32 %v797, %v2611
          %v2639 = vadd.f32 %v798, %v2613
          %v2640 = vadd.f32 %v799, %v2616
          %v2641 = vadd.f32 %v800, %v2618
          %v2642 = vadd.f32 %v801, %v2621
          %v2643 = vadd.f32 %v802, %v2623
          %v2644 = vadd.f32 %v803, %v2626
          %v2645 = vadd.f32 %v804, %v2628
          %2646 = vadd.xlane.f32.xlu0 %v2630
          %v2647 = vpop.xlane.xlu0 %2646
          %2648 = vadd.xlane.f32.xlu0 %v2631
          %v2649 = vpop.xlane.xlu0 %2648
          %2650 = vadd.xlane.f32.xlu0 %v2632
          %v2651 = vpop.xlane.xlu0 %2650
          %2652 = vadd.xlane.f32.xlu0 %v2633
          %v2653 = vpop.xlane.xlu0 %2652
          %2654 = vadd.xlane.f32.xlu0 %v2634
          %v2655 = vpop.xlane.xlu0 %2654
          %2656 = vadd.xlane.f32.xlu0 %v2635
          %v2657 = vpop.xlane.xlu0 %2656
          %2658 = vadd.xlane.f32.xlu0 %v2636
          %v2659 = vpop.xlane.xlu0 %2658
          %2660 = vadd.xlane.f32.xlu0 %v2637
          %v2661 = vpop.xlane.xlu0 %2660
          %2662 = vadd.xlane.f32.xlu0 %v2638
          %v2663 = vpop.xlane.xlu0 %2662
          %2664 = vadd.xlane.f32.xlu0 %v2639
          %v2665 = vpop.xlane.xlu0 %2664
          %2666 = vadd.xlane.f32.xlu0 %v2640
          %v2667 = vpop.xlane.xlu0 %2666
          %2668 = vadd.xlane.f32.xlu0 %v2641
          %v2669 = vpop.xlane.xlu0 %2668
          %2670 = vadd.xlane.f32.xlu0 %v2642
          %v2671 = vpop.xlane.xlu0 %2670
          %2672 = vadd.xlane.f32.xlu0 %v2643
          %v2673 = vpop.xlane.xlu0 %2672
          %2674 = vadd.xlane.f32.xlu0 %v2644
          %v2675 = vpop.xlane.xlu0 %2674
          %2676 = vadd.xlane.f32.xlu0 %v2645
          %v2677 = vpop.xlane.xlu0 %2676
          %v2678 = vrcp.pop 128.0
          %v2679 = vmul.f32 128.0, %v2678
          %v2680 = vsub.f32 1.0, %v2679
          %v2681 = vmul.f32 %v2678, %v2680
          %v2682 = vadd.f32 %v2678, %v2681
          %vm2683 = vweird.f32 %v2678
          %v2684 = vsel %vm2683, %v2678, %v2682
          %v2685 = vmul.f32 %v2647, %v2684
          %v2686 = vmul.f32 %v2649, %v2684
          %v2687 = vmul.f32 %v2651, %v2684
          %v2688 = vmul.f32 %v2653, %v2684
          %v2689 = vmul.f32 %v2655, %v2684
          %v2690 = vmul.f32 %v2657, %v2684
          %v2691 = vmul.f32 %v2659, %v2684
          %v2692 = vmul.f32 %v2661, %v2684
          %v2693 = vmul.f32 %v2663, %v2684
          %v2694 = vmul.f32 %v2665, %v2684
          %v2695 = vmul.f32 %v2667, %v2684
          %v2696 = vmul.f32 %v2669, %v2684
          %v2697 = vmul.f32 %v2671, %v2684
          %v2698 = vmul.f32 %v2673, %v2684
          %v2699 = vmul.f32 %v2675, %v2684
          %v2700 = vmul.f32 %v2677, %v2684
          %v2701 = vsub.f32 %v2630, %v2685
          %v2702 = vsub.f32 %v2631, %v2686
          %v2703 = vsub.f32 %v2632, %v2687
          %v2704 = vsub.f32 %v2633, %v2688
          %v2705 = vsub.f32 %v2634, %v2689
          %v2706 = vsub.f32 %v2635, %v2690
          %v2707 = vsub.f32 %v2636, %v2691
          %v2708 = vsub.f32 %v2637, %v2692
          %v2709 = vsub.f32 %v2638, %v2693
          %v2710 = vsub.f32 %v2639, %v2694
          %v2711 = vsub.f32 %v2640, %v2695
          %v2712 = vsub.f32 %v2641, %v2696
          %v2713 = vsub.f32 %v2642, %v2697
          %v2714 = vsub.f32 %v2643, %v2698
          %v2715 = vsub.f32 %v2644, %v2699
          %v2716 = vsub.f32 %v2645, %v2700
          %v2717 = vmul.f32 %v2701, %v2701
          %v2718 = vmul.f32 %v2702, %v2702
          %v2719 = vmul.f32 %v2703, %v2703
          %v2720 = vmul.f32 %v2704, %v2704
          %v2721 = vmul.f32 %v2705, %v2705
          %v2722 = vmul.f32 %v2706, %v2706
          %v2723 = vmul.f32 %v2707, %v2707
          %v2724 = vmul.f32 %v2708, %v2708
          %v2725 = vmul.f32 %v2709, %v2709
          %v2726 = vmul.f32 %v2710, %v2710
          %v2727 = vmul.f32 %v2711, %v2711
          %v2728 = vmul.f32 %v2712, %v2712
          %v2729 = vmul.f32 %v2713, %v2713
          %v2730 = vmul.f32 %v2714, %v2714
          %v2731 = vmul.f32 %v2715, %v2715
          %v2732 = vmul.f32 %v2716, %v2716
          %2733 = vadd.xlane.f32.xlu0 %v2717
          %v2734 = vpop.xlane.xlu0 %2733
          %2735 = vadd.xlane.f32.xlu0 %v2718
          %v2736 = vpop.xlane.xlu0 %2735
          %2737 = vadd.xlane.f32.xlu0 %v2719
          %v2738 = vpop.xlane.xlu0 %2737
          %2739 = vadd.xlane.f32.xlu0 %v2720
          %v2740 = vpop.xlane.xlu0 %2739
          %2741 = vadd.xlane.f32.xlu0 %v2721
          %v2742 = vpop.xlane.xlu0 %2741
          %2743 = vadd.xlane.f32.xlu0 %v2722
          %v2744 = vpop.xlane.xlu0 %2743
          %2745 = vadd.xlane.f32.xlu0 %v2723
          %v2746 = vpop.xlane.xlu0 %2745
          %2747 = vadd.xlane.f32.xlu0 %v2724
          %v2748 = vpop.xlane.xlu0 %2747
          %2749 = vadd.xlane.f32.xlu0 %v2725
          %v2750 = vpop.xlane.xlu0 %2749
          %2751 = vadd.xlane.f32.xlu0 %v2726
          %v2752 = vpop.xlane.xlu0 %2751
          %2753 = vadd.xlane.f32.xlu0 %v2727
          %v2754 = vpop.xlane.xlu0 %2753
          %2755 = vadd.xlane.f32.xlu0 %v2728
          %v2756 = vpop.xlane.xlu0 %2755
          %2757 = vadd.xlane.f32.xlu0 %v2729
          %v2758 = vpop.xlane.xlu0 %2757
          %2759 = vadd.xlane.f32.xlu0 %v2730
          %v2760 = vpop.xlane.xlu0 %2759
          %2761 = vadd.xlane.f32.xlu0 %v2731
          %v2762 = vpop.xlane.xlu0 %2761
          %2763 = vadd.xlane.f32.xlu0 %v2732
          %v2764 = vpop.xlane.xlu0 %2763
          %v2765 = vmul.f32 %v2734, %v2684
          %v2766 = vmul.f32 %v2736, %v2684
          %v2767 = vmul.f32 %v2738, %v2684
          %v2768 = vmul.f32 %v2740, %v2684
          %v2769 = vmul.f32 %v2742, %v2684
          %v2770 = vmul.f32 %v2744, %v2684
          %v2771 = vmul.f32 %v2746, %v2684
          %v2772 = vmul.f32 %v2748, %v2684
          %v2773 = vmul.f32 %v2750, %v2684
          %v2774 = vmul.f32 %v2752, %v2684
          %v2775 = vmul.f32 %v2754, %v2684
          %v2776 = vmul.f32 %v2756, %v2684
          %v2777 = vmul.f32 %v2758, %v2684
          %v2778 = vmul.f32 %v2760, %v2684
          %v2779 = vmul.f32 %v2762, %v2684
          %v2780 = vmul.f32 %v2764, %v2684
          %v2781 = vadd.f32 %v2765, 1e-05
          %v2782 = vadd.f32 %v2766, 1e-05
          %v2783 = vadd.f32 %v2767, 1e-05
          %v2784 = vadd.f32 %v2768, 1e-05
          %v2785 = vadd.f32 %v2769, 1e-05
          %v2786 = vadd.f32 %v2770, 1e-05
          %v2787 = vadd.f32 %v2771, 1e-05
          %v2788 = vadd.f32 %v2772, 1e-05
          %v2789 = vadd.f32 %v2773, 1e-05
          %v2790 = vadd.f32 %v2774, 1e-05
          %v2791 = vadd.f32 %v2775, 1e-05
          %v2792 = vadd.f32 %v2776, 1e-05
          %v2793 = vadd.f32 %v2777, 1e-05
          %v2794 = vadd.f32 %v2778, 1e-05
          %v2795 = vadd.f32 %v2779, 1e-05
          %v2796 = vadd.f32 %v2780, 1e-05
          %v2797 = vrsqrt.pop %v2781
          %v2798 = vmul.f32 %v2797, %v2781
          %v2799 = vmul.f32 %v2798, %v2797
          %v2800 = vmul.f32 0.5, %v2799
          %v2801 = vsub.f32 1.5, %v2800
          %v2802 = vmul.f32 %v2797, %v2801
          %vm2803 = vweird.f32 %v2781
          %vm2804 = vweird.f32 %v2797
          %vm2805 = vmor %vm2803, %vm2804
          %v2806 = vsel %vm2805, %v2797, %v2802
          %v2807 = vrsqrt.pop %v2782
          %v2808 = vmul.f32 %v2807, %v2782
          %v2809 = vmul.f32 %v2808, %v2807
          %v2810 = vmul.f32 0.5, %v2809
          %v2811 = vsub.f32 1.5, %v2810
          %v2812 = vmul.f32 %v2807, %v2811
          %vm2813 = vweird.f32 %v2782
          %vm2814 = vweird.f32 %v2807
          %vm2815 = vmor %vm2813, %vm2814
          %v2816 = vsel %vm2815, %v2807, %v2812
          %v2817 = vrsqrt.pop %v2783
          %v2818 = vmul.f32 %v2817, %v2783
          %v2819 = vmul.f32 %v2818, %v2817
          %v2820 = vmul.f32 0.5, %v2819
          %v2821 = vsub.f32 1.5, %v2820
          %v2822 = vmul.f32 %v2817, %v2821
          %vm2823 = vweird.f32 %v2783
          %vm2824 = vweird.f32 %v2817
          %vm2825 = vmor %vm2823, %vm2824
          %v2826 = vsel %vm2825, %v2817, %v2822
          %v2827 = vrsqrt.pop %v2784
          %v2828 = vmul.f32 %v2827, %v2784
          %v2829 = vmul.f32 %v2828, %v2827
          %v2830 = vmul.f32 0.5, %v2829
          %v2831 = vsub.f32 1.5, %v2830
          %v2832 = vmul.f32 %v2827, %v2831
          %vm2833 = vweird.f32 %v2784
          %vm2834 = vweird.f32 %v2827
          %vm2835 = vmor %vm2833, %vm2834
          %v2836 = vsel %vm2835, %v2827, %v2832
          %v2837 = vrsqrt.pop %v2785
          %v2838 = vmul.f32 %v2837, %v2785
          %v2839 = vmul.f32 %v2838, %v2837
          %v2840 = vmul.f32 0.5, %v2839
          %v2841 = vsub.f32 1.5, %v2840
          %v2842 = vmul.f32 %v2837, %v2841
          %vm2843 = vweird.f32 %v2785
          %vm2844 = vweird.f32 %v2837
          %vm2845 = vmor %vm2843, %vm2844
          %v2846 = vsel %vm2845, %v2837, %v2842
          %v2847 = vrsqrt.pop %v2786
          %v2848 = vmul.f32 %v2847, %v2786
          %v2849 = vmul.f32 %v2848, %v2847
          %v2850 = vmul.f32 0.5, %v2849
          %v2851 = vsub.f32 1.5, %v2850
          %v2852 = vmul.f32 %v2847, %v2851
          %vm2853 = vweird.f32 %v2786
          %vm2854 = vweird.f32 %v2847
          %vm2855 = vmor %vm2853, %vm2854
          %v2856 = vsel %vm2855, %v2847, %v2852
          %v2857 = vrsqrt.pop %v2787
          %v2858 = vmul.f32 %v2857, %v2787
          %v2859 = vmul.f32 %v2858, %v2857
          %v2860 = vmul.f32 0.5, %v2859
          %v2861 = vsub.f32 1.5, %v2860
          %v2862 = vmul.f32 %v2857, %v2861
          %vm2863 = vweird.f32 %v2787
          %vm2864 = vweird.f32 %v2857
          %vm2865 = vmor %vm2863, %vm2864
          %v2866 = vsel %vm2865, %v2857, %v2862
          %v2867 = vrsqrt.pop %v2788
          %v2868 = vmul.f32 %v2867, %v2788
          %v2869 = vmul.f32 %v2868, %v2867
          %v2870 = vmul.f32 0.5, %v2869
          %v2871 = vsub.f32 1.5, %v2870
          %v2872 = vmul.f32 %v2867, %v2871
          %vm2873 = vweird.f32 %v2788
          %vm2874 = vweird.f32 %v2867
          %vm2875 = vmor %vm2873, %vm2874
          %v2876 = vsel %vm2875, %v2867, %v2872
          %v2877 = vrsqrt.pop %v2789
          %v2878 = vmul.f32 %v2877, %v2789
          %v2879 = vmul.f32 %v2878, %v2877
          %v2880 = vmul.f32 0.5, %v2879
          %v2881 = vsub.f32 1.5, %v2880
          %v2882 = vmul.f32 %v2877, %v2881
          %vm2883 = vweird.f32 %v2789
          %vm2884 = vweird.f32 %v2877
          %vm2885 = vmor %vm2883, %vm2884
          %v2886 = vsel %vm2885, %v2877, %v2882
          %v2887 = vrsqrt.pop %v2790
          %v2888 = vmul.f32 %v2887, %v2790
          %v2889 = vmul.f32 %v2888, %v2887
          %v2890 = vmul.f32 0.5, %v2889
          %v2891 = vsub.f32 1.5, %v2890
          %v2892 = vmul.f32 %v2887, %v2891
          %vm2893 = vweird.f32 %v2790
          %vm2894 = vweird.f32 %v2887
          %vm2895 = vmor %vm2893, %vm2894
          %v2896 = vsel %vm2895, %v2887, %v2892
          %v2897 = vrsqrt.pop %v2791
          %v2898 = vmul.f32 %v2897, %v2791
          %v2899 = vmul.f32 %v2898, %v2897
          %v2900 = vmul.f32 0.5, %v2899
          %v2901 = vsub.f32 1.5, %v2900
          %v2902 = vmul.f32 %v2897, %v2901
          %vm2903 = vweird.f32 %v2791
          %vm2904 = vweird.f32 %v2897
          %vm2905 = vmor %vm2903, %vm2904
          %v2906 = vsel %vm2905, %v2897, %v2902
          %v2907 = vrsqrt.pop %v2792
          %v2908 = vmul.f32 %v2907, %v2792
          %v2909 = vmul.f32 %v2908, %v2907
          %v2910 = vmul.f32 0.5, %v2909
          %v2911 = vsub.f32 1.5, %v2910
          %v2912 = vmul.f32 %v2907, %v2911
          %vm2913 = vweird.f32 %v2792
          %vm2914 = vweird.f32 %v2907
          %vm2915 = vmor %vm2913, %vm2914
          %v2916 = vsel %vm2915, %v2907, %v2912
          %v2917 = vrsqrt.pop %v2793
          %v2918 = vmul.f32 %v2917, %v2793
          %v2919 = vmul.f32 %v2918, %v2917
          %v2920 = vmul.f32 0.5, %v2919
          %v2921 = vsub.f32 1.5, %v2920
          %v2922 = vmul.f32 %v2917, %v2921
          %vm2923 = vweird.f32 %v2793
          %vm2924 = vweird.f32 %v2917
          %vm2925 = vmor %vm2923, %vm2924
          %v2926 = vsel %vm2925, %v2917, %v2922
          %v2927 = vrsqrt.pop %v2794
          %v2928 = vmul.f32 %v2927, %v2794
          %v2929 = vmul.f32 %v2928, %v2927
          %v2930 = vmul.f32 0.5, %v2929
          %v2931 = vsub.f32 1.5, %v2930
          %v2932 = vmul.f32 %v2927, %v2931
          %vm2933 = vweird.f32 %v2794
          %vm2934 = vweird.f32 %v2927
          %vm2935 = vmor %vm2933, %vm2934
          %v2936 = vsel %vm2935, %v2927, %v2932
          %v2937 = vrsqrt.pop %v2795
          %v2938 = vmul.f32 %v2937, %v2795
          %v2939 = vmul.f32 %v2938, %v2937
          %v2940 = vmul.f32 0.5, %v2939
          %v2941 = vsub.f32 1.5, %v2940
          %v2942 = vmul.f32 %v2937, %v2941
          %vm2943 = vweird.f32 %v2795
          %vm2944 = vweird.f32 %v2937
          %vm2945 = vmor %vm2943, %vm2944
          %v2946 = vsel %vm2945, %v2937, %v2942
          %v2947 = vrsqrt.pop %v2796
          %v2948 = vmul.f32 %v2947, %v2796
          %v2949 = vmul.f32 %v2948, %v2947
          %v2950 = vmul.f32 0.5, %v2949
          %v2951 = vsub.f32 1.5, %v2950
          %v2952 = vmul.f32 %v2947, %v2951
          %vm2953 = vweird.f32 %v2796
          %vm2954 = vweird.f32 %v2947
          %vm2955 = vmor %vm2953, %vm2954
          %v2956 = vsel %vm2955, %v2947, %v2952
          %v2957 = vmul.f32 %v2701, %v2806
          %v2958 = vmul.f32 %v2702, %v2816
          %v2959 = vmul.f32 %v2703, %v2826
          %v2960 = vmul.f32 %v2704, %v2836
          %v2961 = vmul.f32 %v2705, %v2846
          %v2962 = vmul.f32 %v2706, %v2856
          %v2963 = vmul.f32 %v2707, %v2866
          %v2964 = vmul.f32 %v2708, %v2876
          %v2965 = vmul.f32 %v2709, %v2886
          %v2966 = vmul.f32 %v2710, %v2896
          %v2967 = vmul.f32 %v2711, %v2906
          %v2968 = vmul.f32 %v2712, %v2916
          %v2969 = vmul.f32 %v2713, %v2926
          %v2970 = vmul.f32 %v2714, %v2936
          %v2971 = vmul.f32 %v2715, %v2946
          %v2972 = vmul.f32 %v2716, %v2956
          %v2973 = vld [vmem:[%s7] sm:$0x1]
          %v2975 = vperm.slane %v2973, 0
          %v2977 = vmul.f32 %v2957, %v2975
          %v2978 = vmul.f32 %v2958, %v2975
          %v2979 = vmul.f32 %v2959, %v2975
          %v2980 = vmul.f32 %v2960, %v2975
          %v2981 = vmul.f32 %v2961, %v2975
          %v2982 = vmul.f32 %v2962, %v2975
          %v2983 = vmul.f32 %v2963, %v2975
          %v2984 = vmul.f32 %v2964, %v2975
          %v2985 = vmul.f32 %v2965, %v2975
          %v2986 = vmul.f32 %v2966, %v2975
          %v2987 = vmul.f32 %v2967, %v2975
          %v2988 = vmul.f32 %v2968, %v2975
          %v2989 = vmul.f32 %v2969, %v2975
          %v2990 = vmul.f32 %v2970, %v2975
          %v2991 = vmul.f32 %v2971, %v2975
          %v2992 = vmul.f32 %v2972, %v2975
          %v2993 = vld [vmem:[%s8] sm:$0x1]
          %v2995 = vperm.slane %v2993, 0
          %v2997 = vadd.f32 %v2977, %v2995
          %v2998 = vadd.f32 %v2978, %v2995
          %v2999 = vadd.f32 %v2979, %v2995
          %v3000 = vadd.f32 %v2980, %v2995
          %v3001 = vadd.f32 %v2981, %v2995
          %v3002 = vadd.f32 %v2982, %v2995
          %v3003 = vadd.f32 %v2983, %v2995
          %v3004 = vadd.f32 %v2984, %v2995
          %v3005 = vadd.f32 %v2985, %v2995
          %v3006 = vadd.f32 %v2986, %v2995
          %v3007 = vadd.f32 %v2987, %v2995
          %v3008 = vadd.f32 %v2988, %v2995
          %v3009 = vadd.f32 %v2989, %v2995
          %v3010 = vadd.f32 %v2990, %v2995
          %v3011 = vadd.f32 %v2991, %v2995
          %v3012 = vadd.f32 %v2992, %v2995
          %v3013 = vpack.c.bf16 %v2998, %v2997
          %v3014 = vpack.c.bf16 %v3000, %v2999
          %v3015 = vpack.c.bf16 %v3002, %v3001
          %v3016 = vpack.c.bf16 %v3004, %v3003
          %v3017 = vpack.c.bf16 %v3006, %v3005
          %v3018 = vpack.c.bf16 %v3008, %v3007
          %v3019 = vpack.c.bf16 %v3010, %v3009
          %v3020 = vpack.c.bf16 %v3012, %v3011
          %v3021 = vld [vmem:[#allocation14] sm:$0xff]
          %v3022 = vld [vmem:[#allocation14 + $0x8] sm:$0xff]
          %v3023 = vld [vmem:[#allocation14 + $0x10] sm:$0xff]
          %v3024 = vld [vmem:[#allocation14 + $0x18] sm:$0xff]
          %v3025 = vld [vmem:[#allocation14 + $0x20] sm:$0xff]
          %v3026 = vld [vmem:[#allocation14 + $0x28] sm:$0xff]
          %v3027 = vld [vmem:[#allocation14 + $0x30] sm:$0xff]
          %v3028 = vld [vmem:[#allocation14 + $0x38] sm:$0xff]
          %v3029 = vld [vmem:[#allocation14 + $0x40] sm:$0xff]
          %v3030 = vld [vmem:[#allocation14 + $0x48] sm:$0xff]
          %v3031 = vld [vmem:[#allocation14 + $0x50] sm:$0xff]
          %v3032 = vld [vmem:[#allocation14 + $0x58] sm:$0xff]
          %v3033 = vld [vmem:[#allocation14 + $0x60] sm:$0xff]
          %v3034 = vld [vmem:[#allocation14 + $0x68] sm:$0xff]
          %v3035 = vld [vmem:[#allocation14 + $0x70] sm:$0xff]
          %v3036 = vld [vmem:[#allocation14 + $0x78] sm:$0xff]
          %v3037 = vld [vmem:[%s10] sm:$0x3]
          %v3039 = vperm.slane %v3037, 0
          %v3040 = vperm.slane %v3037, 1
          %v3059 = vunpack.c.l.b16 %v3021
          %v3060 = vunpack.c.h.b16 %v3021
          %v3061 = vunpack.c.l.b16 %v3022
          %v3062 = vunpack.c.h.b16 %v3022
          %v3063 = vunpack.c.l.b16 %v3023
          %v3064 = vunpack.c.h.b16 %v3023
          %v3065 = vunpack.c.l.b16 %v3024
          %v3066 = vunpack.c.h.b16 %v3024
          %v3067 = vunpack.c.l.b16 %v3025
          %v3068 = vunpack.c.h.b16 %v3025
          %v3069 = vunpack.c.l.b16 %v3026
          %v3070 = vunpack.c.h.b16 %v3026
          %v3071 = vunpack.c.l.b16 %v3027
          %v3072 = vunpack.c.h.b16 %v3027
          %v3073 = vunpack.c.l.b16 %v3028
          %v3074 = vunpack.c.h.b16 %v3028
          %v3075 = vunpack.c.l.b16 %v3029
          %v3076 = vunpack.c.h.b16 %v3029
          %v3077 = vunpack.c.l.b16 %v3030
          %v3078 = vunpack.c.h.b16 %v3030
          %v3079 = vunpack.c.l.b16 %v3031
          %v3080 = vunpack.c.h.b16 %v3031
          %v3081 = vunpack.c.l.b16 %v3032
          %v3082 = vunpack.c.h.b16 %v3032
          %v3083 = vunpack.c.l.b16 %v3033
          %v3084 = vunpack.c.h.b16 %v3033
          %v3085 = vunpack.c.l.b16 %v3034
          %v3086 = vunpack.c.h.b16 %v3034
          %v3087 = vunpack.c.l.b16 %v3035
          %v3088 = vunpack.c.h.b16 %v3035
          %v3089 = vunpack.c.l.b16 %v3036
          %v3090 = vunpack.c.h.b16 %v3036
          %v3091 = vpack.c.b16 %v3061, %v3059
          %v3092 = vpack.c.b16 %v3062, %v3060
          %v3093 = vpack.c.b16 %v3065, %v3063
          %v3094 = vpack.c.b16 %v3066, %v3064
          %v3095 = vpack.c.b16 %v3069, %v3067
          %v3096 = vpack.c.b16 %v3070, %v3068
          %v3097 = vpack.c.b16 %v3073, %v3071
          %v3098 = vpack.c.b16 %v3074, %v3072
          %v3099 = vpack.c.b16 %v3077, %v3075
          %v3100 = vpack.c.b16 %v3078, %v3076
          %v3101 = vpack.c.b16 %v3081, %v3079
          %v3102 = vpack.c.b16 %v3082, %v3080
          %v3103 = vpack.c.b16 %v3085, %v3083
          %v3104 = vpack.c.b16 %v3086, %v3084
          %v3105 = vpack.c.b16 %v3089, %v3087
          %v3106 = vpack.c.b16 %v3090, %v3088
          %3123 = vmatpush.bf16.msra.mxu0 %v3105
          %3124 = vmatpush.bf16.msra.mxu0 %v3103
          %3125 = vmatpush.bf16.msra.mxu0 %v3101
          %3126 = vmatpush.bf16.msra.mxu0 %v3099
          %3127 = vmatpush.bf16.msra.mxu0 %v3097
          %3128 = vmatpush.bf16.msra.mxu0 %v3095
          %3129 = vmatpush.bf16.msra.mxu0 %v3093
          %3130 = vmatpush.bf16.msra.mxu0 %v3091
          %3131 = vmatmul.bf16.gmra.mxu0 %v3013
          %v3132 = vpop.f32.mrf.mxu0
          %v3133 = vadd.f32 %v3039, %v3132
          %v3134 = vpop.f32.mrf.mxu0
          %v3135 = vadd.f32 %v3039, %v3134
          %3136 = vmatmul.bf16.gmra.mxu0 %v3014
          %v3137 = vpop.f32.mrf.mxu0
          %v3138 = vadd.f32 %v3039, %v3137
          %v3139 = vpop.f32.mrf.mxu0
          %v3140 = vadd.f32 %v3039, %v3139
          %3141 = vmatmul.bf16.gmra.mxu0 %v3015
          %v3142 = vpop.f32.mrf.mxu0
          %v3143 = vadd.f32 %v3039, %v3142
          %v3144 = vpop.f32.mrf.mxu0
          %v3145 = vadd.f32 %v3039, %v3144
          %3146 = vmatmul.bf16.gmra.mxu0 %v3016
          %v3147 = vpop.f32.mrf.mxu0
          %v3148 = vadd.f32 %v3039, %v3147
          %v3149 = vpop.f32.mrf.mxu0
          %v3150 = vadd.f32 %v3039, %v3149
          %3151 = vmatmul.bf16.gmra.mxu0 %v3017
          %v3152 = vpop.f32.mrf.mxu0
          %v3153 = vadd.f32 %v3039, %v3152
          %v3154 = vpop.f32.mrf.mxu0
          %v3155 = vadd.f32 %v3039, %v3154
          %3156 = vmatmul.bf16.gmra.mxu0 %v3018
          %v3157 = vpop.f32.mrf.mxu0
          %v3158 = vadd.f32 %v3039, %v3157
          %v3159 = vpop.f32.mrf.mxu0
          %v3160 = vadd.f32 %v3039, %v3159
          %3161 = vmatmul.bf16.gmra.mxu0 %v3019
          %v3162 = vpop.f32.mrf.mxu0
          %v3163 = vadd.f32 %v3039, %v3162
          %v3164 = vpop.f32.mrf.mxu0
          %v3165 = vadd.f32 %v3039, %v3164
          %3166 = vmatmul.bf16.gmra.mxu0 %v3020
          %v3167 = vpop.f32.mrf.mxu0
          %v3168 = vadd.f32 %v3039, %v3167
          %v3169 = vpop.f32.mrf.mxu0
          %v3170 = vadd.f32 %v3039, %v3169
          %3171 = vdwg.mxu0
          %3172 = vmatpush.bf16.msra.mxu0 %v3106
          %3173 = vmatpush.bf16.msra.mxu0 %v3104
          %3174 = vmatpush.bf16.msra.mxu0 %v3102
          %3175 = vmatpush.bf16.msra.mxu0 %v3100
          %3176 = vmatpush.bf16.msra.mxu0 %v3098
          %3177 = vmatpush.bf16.msra.mxu0 %v3096
          %3178 = vmatpush.bf16.msra.mxu0 %v3094
          %3179 = vmatpush.bf16.msra.mxu0 %v3092
          %3180 = vmatmul.bf16.gmra.mxu0 %v3013
          %v3181 = vpop.f32.mrf.mxu0
          %v3182 = vadd.f32 %v3040, %v3181
          %v3183 = vpop.f32.mrf.mxu0
          %v3184 = vadd.f32 %v3040, %v3183
          %3185 = vmatmul.bf16.gmra.mxu0 %v3014
          %v3186 = vpop.f32.mrf.mxu0
          %v3187 = vadd.f32 %v3040, %v3186
          %v3188 = vpop.f32.mrf.mxu0
          %v3189 = vadd.f32 %v3040, %v3188
          %3190 = vmatmul.bf16.gmra.mxu0 %v3015
          %v3191 = vpop.f32.mrf.mxu0
          %v3192 = vadd.f32 %v3040, %v3191
          %v3193 = vpop.f32.mrf.mxu0
          %v3194 = vadd.f32 %v3040, %v3193
          %3195 = vmatmul.bf16.gmra.mxu0 %v3016
          %v3196 = vpop.f32.mrf.mxu0
          %v3197 = vadd.f32 %v3040, %v3196
          %v3198 = vpop.f32.mrf.mxu0
          %v3199 = vadd.f32 %v3040, %v3198
          %3200 = vmatmul.bf16.gmra.mxu0 %v3017
          %v3201 = vpop.f32.mrf.mxu0
          %v3202 = vadd.f32 %v3040, %v3201
          %v3203 = vpop.f32.mrf.mxu0
          %v3204 = vadd.f32 %v3040, %v3203
          %3205 = vmatmul.bf16.gmra.mxu0 %v3018
          %v3206 = vpop.f32.mrf.mxu0
          %v3207 = vadd.f32 %v3040, %v3206
          %v3208 = vpop.f32.mrf.mxu0
          %v3209 = vadd.f32 %v3040, %v3208
          %3210 = vmatmul.bf16.gmra.mxu0 %v3019
          %v3211 = vpop.f32.mrf.mxu0
          %v3212 = vadd.f32 %v3040, %v3211
          %v3213 = vpop.f32.mrf.mxu0
          %v3214 = vadd.f32 %v3040, %v3213
          %3215 = vmatmul.bf16.gmra.mxu0 %v3020
          %v3216 = vpop.f32.mrf.mxu0
          %v3217 = vadd.f32 %v3040, %v3216
          %v3218 = vpop.f32.mrf.mxu0
          %v3219 = vadd.f32 %v3040, %v3218
          %3220 = vdwg.mxu0
          %v3221 = vmax.f32 %v3133, 0.0
          %v3222 = vmax.f32 %v3182, 0.0
          %v3223 = vmax.f32 %v3135, 0.0
          %v3224 = vmax.f32 %v3184, 0.0
          %v3225 = vmax.f32 %v3138, 0.0
          %v3226 = vmax.f32 %v3187, 0.0
          %v3227 = vmax.f32 %v3140, 0.0
          %v3228 = vmax.f32 %v3189, 0.0
          %v3229 = vmax.f32 %v3143, 0.0
          %v3230 = vmax.f32 %v3192, 0.0
          %v3231 = vmax.f32 %v3145, 0.0
          %v3232 = vmax.f32 %v3194, 0.0
          %v3233 = vmax.f32 %v3148, 0.0
          %v3234 = vmax.f32 %v3197, 0.0
          %v3235 = vmax.f32 %v3150, 0.0
          %v3236 = vmax.f32 %v3199, 0.0
          %v3237 = vmax.f32 %v3153, 0.0
          %v3238 = vmax.f32 %v3202, 0.0
          %v3239 = vmax.f32 %v3155, 0.0
          %v3240 = vmax.f32 %v3204, 0.0
          %v3241 = vmax.f32 %v3158, 0.0
          %v3242 = vmax.f32 %v3207, 0.0
          %v3243 = vmax.f32 %v3160, 0.0
          %v3244 = vmax.f32 %v3209, 0.0
          %v3245 = vmax.f32 %v3163, 0.0
          %v3246 = vmax.f32 %v3212, 0.0
          %v3247 = vmax.f32 %v3165, 0.0
          %v3248 = vmax.f32 %v3214, 0.0
          %v3249 = vmax.f32 %v3168, 0.0
          %v3250 = vmax.f32 %v3217, 0.0
          %v3251 = vmax.f32 %v3170, 0.0
          %v3252 = vmax.f32 %v3219, 0.0
          %v3253 = vpack.c.bf16 %v3223, %v3221
          %v3254 = vpack.c.bf16 %v3224, %v3222
          %v3255 = vpack.c.bf16 %v3227, %v3225
          %v3256 = vpack.c.bf16 %v3228, %v3226
          %v3257 = vpack.c.bf16 %v3231, %v3229
          %v3258 = vpack.c.bf16 %v3232, %v3230
          %v3259 = vpack.c.bf16 %v3235, %v3233
          %v3260 = vpack.c.bf16 %v3236, %v3234
          %v3261 = vpack.c.bf16 %v3239, %v3237
          %v3262 = vpack.c.bf16 %v3240, %v3238
          %v3263 = vpack.c.bf16 %v3243, %v3241
          %v3264 = vpack.c.bf16 %v3244, %v3242
          %v3265 = vpack.c.bf16 %v3247, %v3245
          %v3266 = vpack.c.bf16 %v3248, %v3246
          %v3267 = vpack.c.bf16 %v3251, %v3249
          %v3268 = vpack.c.bf16 %v3252, %v3250
          %v3269 = vld [vmem:[#allocation16] sm:$0xf]
          %v3270 = vld [vmem:[#allocation16 + $0x4] sm:$0xf]
          %v3271 = vld [vmem:[#allocation16 + $0x8] sm:$0xf]
          %v3272 = vld [vmem:[#allocation16 + $0xc] sm:$0xf]
          %v3273 = vld [vmem:[#allocation16 + $0x10] sm:$0xf]
          %v3274 = vld [vmem:[#allocation16 + $0x14] sm:$0xf]
          %v3275 = vld [vmem:[#allocation16 + $0x18] sm:$0xf]
          %v3276 = vld [vmem:[#allocation16 + $0x1c] sm:$0xf]
          %v3277 = vld [vmem:[#allocation16 + $0x20] sm:$0xf]
          %v3278 = vld [vmem:[#allocation16 + $0x24] sm:$0xf]
          %v3279 = vld [vmem:[#allocation16 + $0x28] sm:$0xf]
          %v3280 = vld [vmem:[#allocation16 + $0x2c] sm:$0xf]
          %v3281 = vld [vmem:[#allocation16 + $0x30] sm:$0xf]
          %v3282 = vld [vmem:[#allocation16 + $0x34] sm:$0xf]
          %v3283 = vld [vmem:[#allocation16 + $0x38] sm:$0xf]
          %v3284 = vld [vmem:[#allocation16 + $0x3c] sm:$0xf]
          %v3285 = vld [vmem:[#allocation16 + $0x40] sm:$0xf]
          %v3286 = vld [vmem:[#allocation16 + $0x44] sm:$0xf]
          %v3287 = vld [vmem:[#allocation16 + $0x48] sm:$0xf]
          %v3288 = vld [vmem:[#allocation16 + $0x4c] sm:$0xf]
          %v3289 = vld [vmem:[#allocation16 + $0x50] sm:$0xf]
          %v3290 = vld [vmem:[#allocation16 + $0x54] sm:$0xf]
          %v3291 = vld [vmem:[#allocation16 + $0x58] sm:$0xf]
          %v3292 = vld [vmem:[#allocation16 + $0x5c] sm:$0xf]
          %v3293 = vld [vmem:[#allocation16 + $0x60] sm:$0xf]
          %v3294 = vld [vmem:[#allocation16 + $0x64] sm:$0xf]
          %v3295 = vld [vmem:[#allocation16 + $0x68] sm:$0xf]
          %v3296 = vld [vmem:[#allocation16 + $0x6c] sm:$0xf]
          %v3297 = vld [vmem:[#allocation16 + $0x70] sm:$0xf]
          %v3298 = vld [vmem:[#allocation16 + $0x74] sm:$0xf]
          %v3299 = vld [vmem:[#allocation16 + $0x78] sm:$0xf]
          %v3300 = vld [vmem:[#allocation16 + $0x7c] sm:$0xf]
          %v3301 = vld [vmem:[%s12] sm:$0x1]
          %v3303 = vperm.slane %v3301, 0
          %v3337 = vunpack.c.l.b16 %v3269
          %v3338 = vunpack.c.l.b16 %v3270
          %v3339 = vunpack.c.l.b16 %v3271
          %v3340 = vunpack.c.l.b16 %v3272
          %v3341 = vunpack.c.l.b16 %v3273
          %v3342 = vunpack.c.l.b16 %v3274
          %v3343 = vunpack.c.l.b16 %v3275
          %v3344 = vunpack.c.l.b16 %v3276
          %v3345 = vunpack.c.l.b16 %v3277
          %v3346 = vunpack.c.l.b16 %v3278
          %v3347 = vunpack.c.l.b16 %v3279
          %v3348 = vunpack.c.l.b16 %v3280
          %v3349 = vunpack.c.l.b16 %v3281
          %v3350 = vunpack.c.l.b16 %v3282
          %v3351 = vunpack.c.l.b16 %v3283
          %v3352 = vunpack.c.l.b16 %v3284
          %v3353 = vunpack.c.l.b16 %v3285
          %v3354 = vunpack.c.l.b16 %v3286
          %v3355 = vunpack.c.l.b16 %v3287
          %v3356 = vunpack.c.l.b16 %v3288
          %v3357 = vunpack.c.l.b16 %v3289
          %v3358 = vunpack.c.l.b16 %v3290
          %v3359 = vunpack.c.l.b16 %v3291
          %v3360 = vunpack.c.l.b16 %v3292
          %v3361 = vunpack.c.l.b16 %v3293
          %v3362 = vunpack.c.l.b16 %v3294
          %v3363 = vunpack.c.l.b16 %v3295
          %v3364 = vunpack.c.l.b16 %v3296
          %v3365 = vunpack.c.l.b16 %v3297
          %v3366 = vunpack.c.l.b16 %v3298
          %v3367 = vunpack.c.l.b16 %v3299
          %v3368 = vunpack.c.l.b16 %v3300
          %v3369 = vpack.c.b16 %v3338, %v3337
          %v3370 = vpack.c.b16 %v3340, %v3339
          %v3371 = vpack.c.b16 %v3342, %v3341
          %v3372 = vpack.c.b16 %v3344, %v3343
          %v3373 = vpack.c.b16 %v3346, %v3345
          %v3374 = vpack.c.b16 %v3348, %v3347
          %v3375 = vpack.c.b16 %v3350, %v3349
          %v3376 = vpack.c.b16 %v3352, %v3351
          %v3377 = vpack.c.b16 %v3354, %v3353
          %v3378 = vpack.c.b16 %v3356, %v3355
          %v3379 = vpack.c.b16 %v3358, %v3357
          %v3380 = vpack.c.b16 %v3360, %v3359
          %v3381 = vpack.c.b16 %v3362, %v3361
          %v3382 = vpack.c.b16 %v3364, %v3363
          %v3383 = vpack.c.b16 %v3366, %v3365
          %v3384 = vpack.c.b16 %v3368, %v3367
          %3401 = vmatpush.bf16.msra.mxu0 %v3376
          %3402 = vmatpush.bf16.msra.mxu0 %v3375
          %3403 = vmatpush.bf16.msra.mxu0 %v3374
          %3404 = vmatpush.bf16.msra.mxu0 %v3373
          %3405 = vmatpush.bf16.msra.mxu0 %v3372
          %3406 = vmatpush.bf16.msra.mxu0 %v3371
          %3407 = vmatpush.bf16.msra.mxu0 %v3370
          %3408 = vmatpush.bf16.msra.mxu0 %v3369
          %3409 = vmatmul.bf16.gmra.mxu0 %v3253
          %v3410 = vpop.f32.mrf.mxu0
          %v3411 = vadd.f32 %v3303, %v3410
          %v3412 = vpop.f32.mrf.mxu0
          %v3413 = vadd.f32 %v3303, %v3412
          %3414 = vmatmul.bf16.gmra.mxu0 %v3255
          %v3415 = vpop.f32.mrf.mxu0
          %v3416 = vadd.f32 %v3303, %v3415
          %v3417 = vpop.f32.mrf.mxu0
          %v3418 = vadd.f32 %v3303, %v3417
          %3419 = vmatmul.bf16.gmra.mxu0 %v3257
          %v3420 = vpop.f32.mrf.mxu0
          %v3421 = vadd.f32 %v3303, %v3420
          %v3422 = vpop.f32.mrf.mxu0
          %v3423 = vadd.f32 %v3303, %v3422
          %3424 = vmatmul.bf16.gmra.mxu0 %v3259
          %v3425 = vpop.f32.mrf.mxu0
          %v3426 = vadd.f32 %v3303, %v3425
          %v3427 = vpop.f32.mrf.mxu0
          %v3428 = vadd.f32 %v3303, %v3427
          %3429 = vmatmul.bf16.gmra.mxu0 %v3261
          %v3430 = vpop.f32.mrf.mxu0
          %v3431 = vadd.f32 %v3303, %v3430
          %v3432 = vpop.f32.mrf.mxu0
          %v3433 = vadd.f32 %v3303, %v3432
          %3434 = vmatmul.bf16.gmra.mxu0 %v3263
          %v3435 = vpop.f32.mrf.mxu0
          %v3436 = vadd.f32 %v3303, %v3435
          %v3437 = vpop.f32.mrf.mxu0
          %v3438 = vadd.f32 %v3303, %v3437
          %3439 = vmatmul.bf16.gmra.mxu0 %v3265
          %v3440 = vpop.f32.mrf.mxu0
          %v3441 = vadd.f32 %v3303, %v3440
          %v3442 = vpop.f32.mrf.mxu0
          %v3443 = vadd.f32 %v3303, %v3442
          %3444 = vmatmul.bf16.gmra.mxu0 %v3267
          %v3445 = vpop.f32.mrf.mxu0
          %v3446 = vadd.f32 %v3303, %v3445
          %v3447 = vpop.f32.mrf.mxu0
          %v3448 = vadd.f32 %v3303, %v3447
          %3449 = vdwg.mxu0
          %3450 = vmatpush.bf16.msra.mxu0 %v3384
          %3451 = vmatpush.bf16.msra.mxu0 %v3383
          %3452 = vmatpush.bf16.msra.mxu0 %v3382
          %3453 = vmatpush.bf16.msra.mxu0 %v3381
          %3454 = vmatpush.bf16.msra.mxu0 %v3380
          %3455 = vmatpush.bf16.msra.mxu0 %v3379
          %3456 = vmatpush.bf16.msra.mxu0 %v3378
          %3457 = vmatpush.bf16.msra.mxu0 %v3377
          %3458 = vmatmul.bf16.gmra.mxu0 %v3254
          %v3459 = vpop.f32.mrf.mxu0
          %v3460 = vadd.f32 %v3411, %v3459
          %v3461 = vpop.f32.mrf.mxu0
          %v3462 = vadd.f32 %v3413, %v3461
          %3463 = vmatmul.bf16.gmra.mxu0 %v3256
          %v3464 = vpop.f32.mrf.mxu0
          %v3465 = vadd.f32 %v3416, %v3464
          %v3466 = vpop.f32.mrf.mxu0
          %v3467 = vadd.f32 %v3418, %v3466
          %3468 = vmatmul.bf16.gmra.mxu0 %v3258
          %v3469 = vpop.f32.mrf.mxu0
          %v3470 = vadd.f32 %v3421, %v3469
          %v3471 = vpop.f32.mrf.mxu0
          %v3472 = vadd.f32 %v3423, %v3471
          %3473 = vmatmul.bf16.gmra.mxu0 %v3260
          %v3474 = vpop.f32.mrf.mxu0
          %v3475 = vadd.f32 %v3426, %v3474
          %v3476 = vpop.f32.mrf.mxu0
          %v3477 = vadd.f32 %v3428, %v3476
          %3478 = vmatmul.bf16.gmra.mxu0 %v3262
          %v3479 = vpop.f32.mrf.mxu0
          %v3480 = vadd.f32 %v3431, %v3479
          %v3481 = vpop.f32.mrf.mxu0
          %v3482 = vadd.f32 %v3433, %v3481
          %3483 = vmatmul.bf16.gmra.mxu0 %v3264
          %v3484 = vpop.f32.mrf.mxu0
          %v3485 = vadd.f32 %v3436, %v3484
          %v3486 = vpop.f32.mrf.mxu0
          %v3487 = vadd.f32 %v3438, %v3486
          %3488 = vmatmul.bf16.gmra.mxu0 %v3266
          %v3489 = vpop.f32.mrf.mxu0
          %v3490 = vadd.f32 %v3441, %v3489
          %v3491 = vpop.f32.mrf.mxu0
          %v3492 = vadd.f32 %v3443, %v3491
          %3493 = vmatmul.bf16.gmra.mxu0 %v3268
          %v3494 = vpop.f32.mrf.mxu0
          %v3495 = vadd.f32 %v3446, %v3494
          %v3496 = vpop.f32.mrf.mxu0
          %v3497 = vadd.f32 %v3448, %v3496
          %3498 = vdwg.mxu0
          %v3499 = vadd.f32 %v2997, %v3460
          %v3500 = vadd.f32 %v2998, %v3462
          %v3501 = vadd.f32 %v2999, %v3465
          %v3502 = vadd.f32 %v3000, %v3467
          %v3503 = vadd.f32 %v3001, %v3470
          %v3504 = vadd.f32 %v3002, %v3472
          %v3505 = vadd.f32 %v3003, %v3475
          %v3506 = vadd.f32 %v3004, %v3477
          %v3507 = vadd.f32 %v3005, %v3480
          %v3508 = vadd.f32 %v3006, %v3482
          %v3509 = vadd.f32 %v3007, %v3485
          %v3510 = vadd.f32 %v3008, %v3487
          %v3511 = vadd.f32 %v3009, %v3490
          %v3512 = vadd.f32 %v3010, %v3492
          %v3513 = vadd.f32 %v3011, %v3495
          %v3514 = vadd.f32 %v3012, %v3497
          %3515 = vadd.xlane.f32.xlu0 %v3499
          %v3516 = vpop.xlane.xlu0 %3515
          %3517 = vadd.xlane.f32.xlu0 %v3500
          %v3518 = vpop.xlane.xlu0 %3517
          %3519 = vadd.xlane.f32.xlu0 %v3501
          %v3520 = vpop.xlane.xlu0 %3519
          %3521 = vadd.xlane.f32.xlu0 %v3502
          %v3522 = vpop.xlane.xlu0 %3521
          %3523 = vadd.xlane.f32.xlu0 %v3503
          %v3524 = vpop.xlane.xlu0 %3523
          %3525 = vadd.xlane.f32.xlu0 %v3504
          %v3526 = vpop.xlane.xlu0 %3525
          %3527 = vadd.xlane.f32.xlu0 %v3505
          %v3528 = vpop.xlane.xlu0 %3527
          %3529 = vadd.xlane.f32.xlu0 %v3506
          %v3530 = vpop.xlane.xlu0 %3529
          %3531 = vadd.xlane.f32.xlu0 %v3507
          %v3532 = vpop.xlane.xlu0 %3531
          %3533 = vadd.xlane.f32.xlu0 %v3508
          %v3534 = vpop.xlane.xlu0 %3533
          %3535 = vadd.xlane.f32.xlu0 %v3509
          %v3536 = vpop.xlane.xlu0 %3535
          %3537 = vadd.xlane.f32.xlu0 %v3510
          %v3538 = vpop.xlane.xlu0 %3537
          %3539 = vadd.xlane.f32.xlu0 %v3511
          %v3540 = vpop.xlane.xlu0 %3539
          %3541 = vadd.xlane.f32.xlu0 %v3512
          %v3542 = vpop.xlane.xlu0 %3541
          %3543 = vadd.xlane.f32.xlu0 %v3513
          %v3544 = vpop.xlane.xlu0 %3543
          %3545 = vadd.xlane.f32.xlu0 %v3514
          %v3546 = vpop.xlane.xlu0 %3545
          %v3547 = vmul.f32 %v3516, %v2684
          %v3548 = vmul.f32 %v3518, %v2684
          %v3549 = vmul.f32 %v3520, %v2684
          %v3550 = vmul.f32 %v3522, %v2684
          %v3551 = vmul.f32 %v3524, %v2684
          %v3552 = vmul.f32 %v3526, %v2684
          %v3553 = vmul.f32 %v3528, %v2684
          %v3554 = vmul.f32 %v3530, %v2684
          %v3555 = vmul.f32 %v3532, %v2684
          %v3556 = vmul.f32 %v3534, %v2684
          %v3557 = vmul.f32 %v3536, %v2684
          %v3558 = vmul.f32 %v3538, %v2684
          %v3559 = vmul.f32 %v3540, %v2684
          %v3560 = vmul.f32 %v3542, %v2684
          %v3561 = vmul.f32 %v3544, %v2684
          %v3562 = vmul.f32 %v3546, %v2684
          %v3563 = vsub.f32 %v3499, %v3547
          %v3564 = vsub.f32 %v3500, %v3548
          %v3565 = vsub.f32 %v3501, %v3549
          %v3566 = vsub.f32 %v3502, %v3550
          %v3567 = vsub.f32 %v3503, %v3551
          %v3568 = vsub.f32 %v3504, %v3552
          %v3569 = vsub.f32 %v3505, %v3553
          %v3570 = vsub.f32 %v3506, %v3554
          %v3571 = vsub.f32 %v3507, %v3555
          %v3572 = vsub.f32 %v3508, %v3556
          %v3573 = vsub.f32 %v3509, %v3557
          %v3574 = vsub.f32 %v3510, %v3558
          %v3575 = vsub.f32 %v3511, %v3559
          %v3576 = vsub.f32 %v3512, %v3560
          %v3577 = vsub.f32 %v3513, %v3561
          %v3578 = vsub.f32 %v3514, %v3562
          %v3579 = vmul.f32 %v3563, %v3563
          %v3580 = vmul.f32 %v3564, %v3564
          %v3581 = vmul.f32 %v3565, %v3565
          %v3582 = vmul.f32 %v3566, %v3566
          %v3583 = vmul.f32 %v3567, %v3567
          %v3584 = vmul.f32 %v3568, %v3568
          %v3585 = vmul.f32 %v3569, %v3569
          %v3586 = vmul.f32 %v3570, %v3570
          %v3587 = vmul.f32 %v3571, %v3571
          %v3588 = vmul.f32 %v3572, %v3572
          %v3589 = vmul.f32 %v3573, %v3573
          %v3590 = vmul.f32 %v3574, %v3574
          %v3591 = vmul.f32 %v3575, %v3575
          %v3592 = vmul.f32 %v3576, %v3576
          %v3593 = vmul.f32 %v3577, %v3577
          %v3594 = vmul.f32 %v3578, %v3578
          %3595 = vadd.xlane.f32.xlu0 %v3579
          %v3596 = vpop.xlane.xlu0 %3595
          %3597 = vadd.xlane.f32.xlu0 %v3580
          %v3598 = vpop.xlane.xlu0 %3597
          %3599 = vadd.xlane.f32.xlu0 %v3581
          %v3600 = vpop.xlane.xlu0 %3599
          %3601 = vadd.xlane.f32.xlu0 %v3582
          %v3602 = vpop.xlane.xlu0 %3601
          %3603 = vadd.xlane.f32.xlu0 %v3583
          %v3604 = vpop.xlane.xlu0 %3603
          %3605 = vadd.xlane.f32.xlu0 %v3584
          %v3606 = vpop.xlane.xlu0 %3605
          %3607 = vadd.xlane.f32.xlu0 %v3585
          %v3608 = vpop.xlane.xlu0 %3607
          %3609 = vadd.xlane.f32.xlu0 %v3586
          %v3610 = vpop.xlane.xlu0 %3609
          %3611 = vadd.xlane.f32.xlu0 %v3587
          %v3612 = vpop.xlane.xlu0 %3611
          %3613 = vadd.xlane.f32.xlu0 %v3588
          %v3614 = vpop.xlane.xlu0 %3613
          %3615 = vadd.xlane.f32.xlu0 %v3589
          %v3616 = vpop.xlane.xlu0 %3615
          %3617 = vadd.xlane.f32.xlu0 %v3590
          %v3618 = vpop.xlane.xlu0 %3617
          %3619 = vadd.xlane.f32.xlu0 %v3591
          %v3620 = vpop.xlane.xlu0 %3619
          %3621 = vadd.xlane.f32.xlu0 %v3592
          %v3622 = vpop.xlane.xlu0 %3621
          %3623 = vadd.xlane.f32.xlu0 %v3593
          %v3624 = vpop.xlane.xlu0 %3623
          %3625 = vadd.xlane.f32.xlu0 %v3594
          %v3626 = vpop.xlane.xlu0 %3625
          %v3627 = vmul.f32 %v3596, %v2684
          %v3628 = vmul.f32 %v3598, %v2684
          %v3629 = vmul.f32 %v3600, %v2684
          %v3630 = vmul.f32 %v3602, %v2684
          %v3631 = vmul.f32 %v3604, %v2684
          %v3632 = vmul.f32 %v3606, %v2684
          %v3633 = vmul.f32 %v3608, %v2684
          %v3634 = vmul.f32 %v3610, %v2684
          %v3635 = vmul.f32 %v3612, %v2684
          %v3636 = vmul.f32 %v3614, %v2684
          %v3637 = vmul.f32 %v3616, %v2684
          %v3638 = vmul.f32 %v3618, %v2684
          %v3639 = vmul.f32 %v3620, %v2684
          %v3640 = vmul.f32 %v3622, %v2684
          %v3641 = vmul.f32 %v3624, %v2684
          %v3642 = vmul.f32 %v3626, %v2684
          %v3643 = vadd.f32 %v3627, 1e-05
          %v3644 = vadd.f32 %v3628, 1e-05
          %v3645 = vadd.f32 %v3629, 1e-05
          %v3646 = vadd.f32 %v3630, 1e-05
          %v3647 = vadd.f32 %v3631, 1e-05
          %v3648 = vadd.f32 %v3632, 1e-05
          %v3649 = vadd.f32 %v3633, 1e-05
          %v3650 = vadd.f32 %v3634, 1e-05
          %v3651 = vadd.f32 %v3635, 1e-05
          %v3652 = vadd.f32 %v3636, 1e-05
          %v3653 = vadd.f32 %v3637, 1e-05
          %v3654 = vadd.f32 %v3638, 1e-05
          %v3655 = vadd.f32 %v3639, 1e-05
          %v3656 = vadd.f32 %v3640, 1e-05
          %v3657 = vadd.f32 %v3641, 1e-05
          %v3658 = vadd.f32 %v3642, 1e-05
          %v3659 = vrsqrt.pop %v3643
          %v3660 = vmul.f32 %v3659, %v3643
          %v3661 = vmul.f32 %v3660, %v3659
          %v3662 = vmul.f32 0.5, %v3661
          %v3663 = vsub.f32 1.5, %v3662
          %v3664 = vmul.f32 %v3659, %v3663
          %vm3665 = vweird.f32 %v3643
          %vm3666 = vweird.f32 %v3659
          %vm3667 = vmor %vm3665, %vm3666
          %v3668 = vsel %vm3667, %v3659, %v3664
          %v3669 = vrsqrt.pop %v3644
          %v3670 = vmul.f32 %v3669, %v3644
          %v3671 = vmul.f32 %v3670, %v3669
          %v3672 = vmul.f32 0.5, %v3671
          %v3673 = vsub.f32 1.5, %v3672
          %v3674 = vmul.f32 %v3669, %v3673
          %vm3675 = vweird.f32 %v3644
          %vm3676 = vweird.f32 %v3669
          %vm3677 = vmor %vm3675, %vm3676
          %v3678 = vsel %vm3677, %v3669, %v3674
          %v3679 = vrsqrt.pop %v3645
          %v3680 = vmul.f32 %v3679, %v3645
          %v3681 = vmul.f32 %v3680, %v3679
          %v3682 = vmul.f32 0.5, %v3681
          %v3683 = vsub.f32 1.5, %v3682
          %v3684 = vmul.f32 %v3679, %v3683
          %vm3685 = vweird.f32 %v3645
          %vm3686 = vweird.f32 %v3679
          %vm3687 = vmor %vm3685, %vm3686
          %v3688 = vsel %vm3687, %v3679, %v3684
          %v3689 = vrsqrt.pop %v3646
          %v3690 = vmul.f32 %v3689, %v3646
          %v3691 = vmul.f32 %v3690, %v3689
          %v3692 = vmul.f32 0.5, %v3691
          %v3693 = vsub.f32 1.5, %v3692
          %v3694 = vmul.f32 %v3689, %v3693
          %vm3695 = vweird.f32 %v3646
          %vm3696 = vweird.f32 %v3689
          %vm3697 = vmor %vm3695, %vm3696
          %v3698 = vsel %vm3697, %v3689, %v3694
          %v3699 = vrsqrt.pop %v3647
          %v3700 = vmul.f32 %v3699, %v3647
          %v3701 = vmul.f32 %v3700, %v3699
          %v3702 = vmul.f32 0.5, %v3701
          %v3703 = vsub.f32 1.5, %v3702
          %v3704 = vmul.f32 %v3699, %v3703
          %vm3705 = vweird.f32 %v3647
          %vm3706 = vweird.f32 %v3699
          %vm3707 = vmor %vm3705, %vm3706
          %v3708 = vsel %vm3707, %v3699, %v3704
          %v3709 = vrsqrt.pop %v3648
          %v3710 = vmul.f32 %v3709, %v3648
          %v3711 = vmul.f32 %v3710, %v3709
          %v3712 = vmul.f32 0.5, %v3711
          %v3713 = vsub.f32 1.5, %v3712
          %v3714 = vmul.f32 %v3709, %v3713
          %vm3715 = vweird.f32 %v3648
          %vm3716 = vweird.f32 %v3709
          %vm3717 = vmor %vm3715, %vm3716
          %v3718 = vsel %vm3717, %v3709, %v3714
          %v3719 = vrsqrt.pop %v3649
          %v3720 = vmul.f32 %v3719, %v3649
          %v3721 = vmul.f32 %v3720, %v3719
          %v3722 = vmul.f32 0.5, %v3721
          %v3723 = vsub.f32 1.5, %v3722
          %v3724 = vmul.f32 %v3719, %v3723
          %vm3725 = vweird.f32 %v3649
          %vm3726 = vweird.f32 %v3719
          %vm3727 = vmor %vm3725, %vm3726
          %v3728 = vsel %vm3727, %v3719, %v3724
          %v3729 = vrsqrt.pop %v3650
          %v3730 = vmul.f32 %v3729, %v3650
          %v3731 = vmul.f32 %v3730, %v3729
          %v3732 = vmul.f32 0.5, %v3731
          %v3733 = vsub.f32 1.5, %v3732
          %v3734 = vmul.f32 %v3729, %v3733
          %vm3735 = vweird.f32 %v3650
          %vm3736 = vweird.f32 %v3729
          %vm3737 = vmor %vm3735, %vm3736
          %v3738 = vsel %vm3737, %v3729, %v3734
          %v3739 = vrsqrt.pop %v3651
          %v3740 = vmul.f32 %v3739, %v3651
          %v3741 = vmul.f32 %v3740, %v3739
          %v3742 = vmul.f32 0.5, %v3741
          %v3743 = vsub.f32 1.5, %v3742
          %v3744 = vmul.f32 %v3739, %v3743
          %vm3745 = vweird.f32 %v3651
          %vm3746 = vweird.f32 %v3739
          %vm3747 = vmor %vm3745, %vm3746
          %v3748 = vsel %vm3747, %v3739, %v3744
          %v3749 = vrsqrt.pop %v3652
          %v3750 = vmul.f32 %v3749, %v3652
          %v3751 = vmul.f32 %v3750, %v3749
          %v3752 = vmul.f32 0.5, %v3751
          %v3753 = vsub.f32 1.5, %v3752
          %v3754 = vmul.f32 %v3749, %v3753
          %vm3755 = vweird.f32 %v3652
          %vm3756 = vweird.f32 %v3749
          %vm3757 = vmor %vm3755, %vm3756
          %v3758 = vsel %vm3757, %v3749, %v3754
          %v3759 = vrsqrt.pop %v3653
          %v3760 = vmul.f32 %v3759, %v3653
          %v3761 = vmul.f32 %v3760, %v3759
          %v3762 = vmul.f32 0.5, %v3761
          %v3763 = vsub.f32 1.5, %v3762
          %v3764 = vmul.f32 %v3759, %v3763
          %vm3765 = vweird.f32 %v3653
          %vm3766 = vweird.f32 %v3759
          %vm3767 = vmor %vm3765, %vm3766
          %v3768 = vsel %vm3767, %v3759, %v3764
          %v3769 = vrsqrt.pop %v3654
          %v3770 = vmul.f32 %v3769, %v3654
          %v3771 = vmul.f32 %v3770, %v3769
          %v3772 = vmul.f32 0.5, %v3771
          %v3773 = vsub.f32 1.5, %v3772
          %v3774 = vmul.f32 %v3769, %v3773
          %vm3775 = vweird.f32 %v3654
          %vm3776 = vweird.f32 %v3769
          %vm3777 = vmor %vm3775, %vm3776
          %v3778 = vsel %vm3777, %v3769, %v3774
          %v3779 = vrsqrt.pop %v3655
          %v3780 = vmul.f32 %v3779, %v3655
          %v3781 = vmul.f32 %v3780, %v3779
          %v3782 = vmul.f32 0.5, %v3781
          %v3783 = vsub.f32 1.5, %v3782
          %v3784 = vmul.f32 %v3779, %v3783
          %vm3785 = vweird.f32 %v3655
          %vm3786 = vweird.f32 %v3779
          %vm3787 = vmor %vm3785, %vm3786
          %v3788 = vsel %vm3787, %v3779, %v3784
          %v3789 = vrsqrt.pop %v3656
          %v3790 = vmul.f32 %v3789, %v3656
          %v3791 = vmul.f32 %v3790, %v3789
          %v3792 = vmul.f32 0.5, %v3791
          %v3793 = vsub.f32 1.5, %v3792
          %v3794 = vmul.f32 %v3789, %v3793
          %vm3795 = vweird.f32 %v3656
          %vm3796 = vweird.f32 %v3789
          %vm3797 = vmor %vm3795, %vm3796
          %v3798 = vsel %vm3797, %v3789, %v3794
          %v3799 = vrsqrt.pop %v3657
          %v3800 = vmul.f32 %v3799, %v3657
          %v3801 = vmul.f32 %v3800, %v3799
          %v3802 = vmul.f32 0.5, %v3801
          %v3803 = vsub.f32 1.5, %v3802
          %v3804 = vmul.f32 %v3799, %v3803
          %vm3805 = vweird.f32 %v3657
          %vm3806 = vweird.f32 %v3799
          %vm3807 = vmor %vm3805, %vm3806
          %v3808 = vsel %vm3807, %v3799, %v3804
          %v3809 = vrsqrt.pop %v3658
          %v3810 = vmul.f32 %v3809, %v3658
          %v3811 = vmul.f32 %v3810, %v3809
          %v3812 = vmul.f32 0.5, %v3811
          %v3813 = vsub.f32 1.5, %v3812
          %v3814 = vmul.f32 %v3809, %v3813
          %vm3815 = vweird.f32 %v3658
          %vm3816 = vweird.f32 %v3809
          %vm3817 = vmor %vm3815, %vm3816
          %v3818 = vsel %vm3817, %v3809, %v3814
          %v3819 = vmul.f32 %v3563, %v3668
          %v3820 = vmul.f32 %v3564, %v3678
          %v3821 = vmul.f32 %v3565, %v3688
          %v3822 = vmul.f32 %v3566, %v3698
          %v3823 = vmul.f32 %v3567, %v3708
          %v3824 = vmul.f32 %v3568, %v3718
          %v3825 = vmul.f32 %v3569, %v3728
          %v3826 = vmul.f32 %v3570, %v3738
          %v3827 = vmul.f32 %v3571, %v3748
          %v3828 = vmul.f32 %v3572, %v3758
          %v3829 = vmul.f32 %v3573, %v3768
          %v3830 = vmul.f32 %v3574, %v3778
          %v3831 = vmul.f32 %v3575, %v3788
          %v3832 = vmul.f32 %v3576, %v3798
          %v3833 = vmul.f32 %v3577, %v3808
          %v3834 = vmul.f32 %v3578, %v3818
          %v3835 = vld [vmem:[%s13] sm:$0x1]
          %v3837 = vperm.slane %v3835, 0
          %v3839 = vmul.f32 %v3819, %v3837
          %v3840 = vmul.f32 %v3820, %v3837
          %v3841 = vmul.f32 %v3821, %v3837
          %v3842 = vmul.f32 %v3822, %v3837
          %v3843 = vmul.f32 %v3823, %v3837
          %v3844 = vmul.f32 %v3824, %v3837
          %v3845 = vmul.f32 %v3825, %v3837
          %v3846 = vmul.f32 %v3826, %v3837
          %v3847 = vmul.f32 %v3827, %v3837
          %v3848 = vmul.f32 %v3828, %v3837
          %v3849 = vmul.f32 %v3829, %v3837
          %v3850 = vmul.f32 %v3830, %v3837
          %v3851 = vmul.f32 %v3831, %v3837
          %v3852 = vmul.f32 %v3832, %v3837
          %v3853 = vmul.f32 %v3833, %v3837
          %v3854 = vmul.f32 %v3834, %v3837
          %v3855 = vld [vmem:[%s14] sm:$0x1]
          %v3857 = vperm.slane %v3855, 0
          %v3859 = vadd.f32 %v3839, %v3857
          %v3860 = vadd.f32 %v3840, %v3857
          %v3861 = vadd.f32 %v3841, %v3857
          %v3862 = vadd.f32 %v3842, %v3857
          %v3863 = vadd.f32 %v3843, %v3857
          %v3864 = vadd.f32 %v3844, %v3857
          %v3865 = vadd.f32 %v3845, %v3857
          %v3866 = vadd.f32 %v3846, %v3857
          %v3867 = vadd.f32 %v3847, %v3857
          %v3868 = vadd.f32 %v3848, %v3857
          %v3869 = vadd.f32 %v3849, %v3857
          %v3870 = vadd.f32 %v3850, %v3857
          %v3871 = vadd.f32 %v3851, %v3857
          %v3872 = vadd.f32 %v3852, %v3857
          %v3873 = vadd.f32 %v3853, %v3857
          %v3874 = vadd.f32 %v3854, %v3857
        $region121: #{tpu_custom_call.1} parent=79 // loop_footer
          %s788 = sadd.s32 1, %s784
        $region122: #{tpu_custom_call.1} parent=79 // loop_footer_branch
          %783 = sbr.rel target = $region118
        $region123: #{tpu_custom_call.1} parent=79 // loop_exit
          _
        %3875 = vst [vmem:[%s763] sm:$0xff] %v789
        %3876 = vst [vmem:[%s763 + $0x8] sm:$0xff] %v790
        %3877 = vst [vmem:[%s763 + $0x10] sm:$0xff] %v791
        %3878 = vst [vmem:[%s763 + $0x18] sm:$0xff] %v792
        %3879 = vst [vmem:[%s763 + $0x20] sm:$0xff] %v793
        %3880 = vst [vmem:[%s763 + $0x28] sm:$0xff] %v794
        %3881 = vst [vmem:[%s763 + $0x30] sm:$0xff] %v795
        %3882 = vst [vmem:[%s763 + $0x38] sm:$0xff] %v796
        %3883 = vst [vmem:[%s763 + $0x40] sm:$0xff] %v797
        %3884 = vst [vmem:[%s763 + $0x48] sm:$0xff] %v798
        %3885 = vst [vmem:[%s763 + $0x50] sm:$0xff] %v799
        %3886 = vst [vmem:[%s763 + $0x58] sm:$0xff] %v800
        %3887 = vst [vmem:[%s763 + $0x60] sm:$0xff] %v801
        %3888 = vst [vmem:[%s763 + $0x68] sm:$0xff] %v802
        %3889 = vst [vmem:[%s763 + $0x70] sm:$0xff] %v803
        %3890 = vst [vmem:[%s763 + $0x78] sm:$0xff] %v804
        %s3891 = sand.u32 %s406, 1
        %s3892 = scalar_lea.sflag [#allocation4], %s3891
        %s3893 = sand.u32 %s406, 1
        %s3894 = smul.addr %s3893, 128
        %s3895 = scalar_lea.vmem [#allocation17], %s3894
        // Predicated region
        $region124: #{tpu_custom_call.1} parent=79 // pred_check
          %p3896 = pneg %p416
        $region125: #{tpu_custom_call.1} parent=79 // pred_check_branch
          %3898 = sbr.rel (%p3896) target = $region127
        $region126: #{tpu_custom_call.1} parent=79 // pred_region
          %s3899 = smul.u32 16, %s45
          %3901 = vsyncadd %s3892, 0
          %s3902 = smul.addr %s44, 32
          %s3903 = sadd.s32 %s3899, %s3902
          %s3904 = smul.addr %s3903, 8
          %s3905 = scalar_lea.hbm %s15, %s3904
          %s3906 = sshll.u32 %s3895, 4
          %s3907 = int_to_ptr.vmem [resolvable:$true] %s3906
          %s3908 = sshll.u32 %s3905, 4
          %s3909 = int_to_ptr.hbm [resolvable:$true] %s3908
          %3914 = dma.vmem_to_hbm [thread:$0]  %s3907, 2048, %s3909, %s3892, 128, 128, 8
        $region127: #{tpu_custom_call.1} parent=79 // pred_fallthru
          _
      $region80: #{tpu_custom_call.1} parent=5 // pred_fallthru
        _
      %p3915 = scmp.le.s32.totalorder 2, %s35
      // Predicated region
      $region128: #{tpu_custom_call.1} parent=5 // pred_check
        %p3916 = pneg %p3915
      $region129: #{tpu_custom_call.1} parent=5 // pred_check_branch
        %3918 = sbr.rel (%p3916) target = $region131
      $region130: #{tpu_custom_call.1} parent=5 // pred_region
        %s3919 = ssub.s32 %s35, 2
        // Predicated region
        $region132: #{tpu_custom_call.1} parent=130 // pred_check
          %p3920 = pneg %p422
        $region133: #{tpu_custom_call.1} parent=130 // pred_check_branch
          %3922 = sbr.rel (%p3920) target = $region135
        $region134: #{tpu_custom_call.1} parent=130 // pred_region
          %s3923 = sand.u32 %s407, 1
          %s3924 = scalar_lea.sflag [#allocation4], %s3923
          %s3925 = sand.u32 %s407, 1
          %s3926 = smul.addr %s3925, 128
          %s3927 = scalar_lea.vmem [#allocation17], %s3926
          %3929 = dma.done %s3924, 2048
        $region135: #{tpu_custom_call.1} parent=130 // pred_fallthru
          _
      $region131: #{tpu_custom_call.1} parent=5 // pred_fallthru
        _
    $region6: #{tpu_custom_call.1} parent=1 // loop_footer
      %s39 = sadd.s32 1, %s35
    $region7: #{tpu_custom_call.1} parent=1 // loop_footer_branch
      %34 = sbr.rel target = $region3
    $region8: #{tpu_custom_call.1} parent=1 // loop_exit
      _
    %3930 = vsyncpa [#allocation3], 1
    %s3931 = scalar_lea.sflag [#allocation3], 1
    %3932 = vsyncpa %s3931, 1
    %3933 = vsyncpa [#allocation6], 1
    %s3934 = scalar_lea.sflag [#allocation6], 1
    %3935 = vsyncpa %s3934, 1
    %3936 = vsyncpa [#allocation9], 1
    %s3937 = scalar_lea.sflag [#allocation9], 1
    %3938 = vsyncpa %s3937, 1
    %3939 = vsyncpa [#allocation12], 1
    %3940 = vsyncpa [#allocation15], 1
    %3941 = vsyncpa [#allocation4], 1
    %s3942 = scalar_lea.sflag [#allocation4], 1
    %3943 = vsyncpa %s3942, 1

</llo_original>
